<compile_context>
chip_gen: v7x
topology: tpu7x:2x2x1
jax: 0.10.0
libtpu: 0.0.40
codegen_flags: <defaults>
</compile_context>

<pallas_src>
import functools

import jax
import jax.numpy as jnp
from jax.experimental import pallas as pl
from jax.experimental.pallas import tpu as pltpu


def _round_up(x, m):
    return (x + m - 1) // m * m


# ---------------------------------------------------------------------------
# Pallas kernels
# ---------------------------------------------------------------------------

def _matmul_bias_kernel(x_ref, w_ref, b_ref, o_ref):
    """o = x @ w + b in one MXU call.  x:(M,K) w:(K,Cout) b:(1,Cout) o:(M,Cout)."""
    o_ref[...] = (jnp.dot(x_ref[...], w_ref[...],
                          preferred_element_type=jnp.float32)
                  + b_ref[...]).astype(o_ref.dtype)


def matmul_bias(x, w, b):
    """x: (M, K), w: (K, Cout), b: (Cout,) -> (M, Cout) float32."""
    M, K = x.shape
    Cout = w.shape[-1]
    b2 = b.reshape(1, Cout).astype(jnp.float32)
    return pl.pallas_call(
        _matmul_bias_kernel,
        out_shape=jax.ShapeDtypeStruct((M, Cout), jnp.float32),
        grid=(1,),
        in_specs=[
            pl.BlockSpec((M, K), lambda i: (0, 0)),
            pl.BlockSpec((K, Cout), lambda i: (0, 0)),
            pl.BlockSpec((1, Cout), lambda i: (0, 0)),
        ],
        out_specs=pl.BlockSpec((M, Cout), lambda i: (0, 0)),
        compiler_params=pltpu.CompilerParams(
            dimension_semantics=("arbitrary",)),
    )(x.astype(jnp.float32), w.astype(jnp.float32), b2)


def _pool_kernel(s_ref, o_ref, *, n_shifts, op, scale, relu):
    """Single-shot reduction over the leading shift axis of s_ref (S, R, Ccol)."""
    r = s_ref[0]
    for i in range(1, n_shifts):          # static unroll; S is 4 or 9
        x = s_ref[i]
        r = jnp.maximum(r, x) if op == "max" else r + x
    if scale != 1.0:
        r = r * scale
    if relu:
        r = jnp.maximum(r, 0.0)
    o_ref[...] = r


def _pool_call(stack, *, op, scale, relu):
    """stack: (S, N, H, W, C) f32 -> (N, H, W, C) reduced over S in one kernel call."""
    S, N, H, W, C = stack.shape
    R, Ccol = N * H, W * C                 # lane-dense 2-D view (W*C on the lane axis)
    stack2 = stack.reshape(S, R, Ccol)
    kernel = functools.partial(_pool_kernel, n_shifts=S, op=op,
                               scale=scale, relu=relu)
    out = pl.pallas_call(
        kernel,
        out_shape=jax.ShapeDtypeStruct((R, Ccol), jnp.float32),
        grid=(1,),
        in_specs=[pl.BlockSpec((S, R, Ccol), lambda i: (0, 0, 0))],
        out_specs=pl.BlockSpec((R, Ccol), lambda i: (0, 0)),
        compiler_params=pltpu.CompilerParams(
            dimension_semantics=("arbitrary",)),
    )(stack2)
    return out.reshape(N, H, W, C)


# ---------------------------------------------------------------------------
# NN building blocks (glue = reshapes / shifted slices; compute = Pallas)
# ---------------------------------------------------------------------------

def conv2d_nhwc(x, w_torch, b, padding=0):
    """x: (N,H,W,Cin) f32; w_torch: (Cout,Cin,KH,KW) torch layout; -> (N,Ho,Wo,Cout).

    im2col with the KH*KW kernel-position axis folded into the contraction dim,
    so each conv is exactly one Pallas matmul call.
    """
    N, H, W, Cin = x.shape
    Cout, _, KH, KW = w_torch.shape
    if padding:
        x = jnp.pad(x, ((0, 0), (padding, padding), (padding, padding), (0, 0)))
    Hp, Wp = H + 2 * padding, W + 2 * padding
    Ho, Wo = Hp - KH + 1, Wp - KW + 1
    M = N * Ho * Wo
    K = KH * KW * Cin

    if KH == 1 and KW == 1:
        patches = x.reshape(M, Cin)
    else:
        # One shifted view per kernel position, concatenated along K:
        # column order is (kh, kw, cin), matching the weight fold below.
        slabs = [x[:, kh:kh + Ho, kw:kw + Wo, :].reshape(M, Cin)
                 for kh in range(KH) for kw in range(KW)]
        patches = jnp.concatenate(slabs, axis=1)

    # (Cout, Cin, KH, KW) -> (KH, KW, Cin, Cout) -> (K, Cout)
    wk = jnp.transpose(w_torch, (2, 3, 1, 0)).reshape(K, Cout)

    # Pad contraction dim to a multiple of 8 with zeros (zero cols x zero rows = 0).
    Kp = _round_up(K, 8)
    if Kp != K:
        patches = jnp.pad(patches, ((0, 0), (0, Kp - K)))
        wk = jnp.pad(wk, ((0, Kp - K), (0, 0)))

    out = matmul_bias(patches, wk, b)
    return out.reshape(N, Ho, Wo, Cout)


def relu_maxpool2x2(x):
    """MaxPool2d(2) followed by ReLU (relu∘maxpool == maxpool∘relu)."""
    stack = jnp.stack([x[:, 0::2, 0::2, :], x[:, 0::2, 1::2, :],
                       x[:, 1::2, 0::2, :], x[:, 1::2, 1::2, :]], axis=0)
    return _pool_call(stack, op="max", scale=1.0, relu=True)


def avg_pool3x3_same(x):
    """F.avg_pool2d(x, 3, stride=1, padding=1) with count_include_pad=True (/9)."""
    N, H, W, C = x.shape
    xp = jnp.pad(x, ((0, 0), (1, 1), (1, 1), (0, 0)))
    slabs = [xp[:, kh:kh + H, kw:kw + W, :]
             for kh in range(3) for kw in range(3)]
    stack = jnp.stack(slabs, axis=0)
    return _pool_call(stack, op="add", scale=1.0 / 9.0, relu=False)


def linear(x, w_torch, b):
    """x: (N, K); w_torch: (Cout, K); torch Linear: x @ W.T + b."""
    return matmul_bias(x, jnp.transpose(w_torch), b)


def inception_a(x, p):
    # Fuse the three 1x1 convs that read the same input (b1, b5_1, b3_1) -> Cout=48.
    w_fused = jnp.concatenate([p["b1_w"], p["b5_1_w"], p["b3_1_w"]], axis=0)
    b_fused = jnp.concatenate([p["b1_b"], p["b5_1_b"], p["b3_1_b"]], axis=0)
    f = conv2d_nhwc(x, w_fused, b_fused, padding=0)      # (N,H,W,48)
    b1 = f[..., 0:16]
    b5 = conv2d_nhwc(f[..., 16:32], p["b5_2_w"], p["b5_2_b"], padding=2)
    b3 = conv2d_nhwc(f[..., 32:48], p["b3_2_w"], p["b3_2_b"], padding=1)
    b3 = conv2d_nhwc(b3, p["b3_3_w"], p["b3_3_b"], padding=1)
    bp = avg_pool3x3_same(x)
    bp = conv2d_nhwc(bp, p["bp_w"], p["bp_b"], padding=0)
    # torch: cat([branch1x1, branch3x3, branch5x5, branch_pool], dim=1)
    return jnp.concatenate([b1, b3, b5, bp], axis=-1)


def net_forward(x_nchw, params):
    n = x_nchw.shape[0]
    x = jnp.transpose(x_nchw, (0, 2, 3, 1)).astype(jnp.float32)   # NCHW -> NHWC
    x = conv2d_nhwc(x, params["conv1_w"], params["conv1_b"], padding=0)  # (N,24,24,10)
    x = relu_maxpool2x2(x)                                               # (N,12,12,10)
    x = inception_a(x, params["incep1"])                                 # (N,12,12,88)
    x = conv2d_nhwc(x, params["conv2_w"], params["conv2_b"], padding=0)  # (N,8,8,20)
    x = relu_maxpool2x2(x)                                               # (N,4,4,20)
    x = inception_a(x, params["incep2"])                                 # (N,4,4,88)
    # torch x.view(N, -1) flattens NCHW order -> transpose back before flattening.
    x = jnp.transpose(x, (0, 3, 1, 2)).reshape(n, -1)                    # (N,1408)
    return linear(x, params["fc_w"], params["fc_b"])                     # (N,10)


# ---------------------------------------------------------------------------
# Deterministic parameter initialization (same shapes as the torch module)
# ---------------------------------------------------------------------------

def _conv_init(key, cout, cin, k):
    k1, k2 = jax.random.split(key)
    bound = 1.0 / float(cin * k * k) ** 0.5
    w = jax.random.uniform(k1, (cout, cin, k, k), jnp.float32, -bound, bound)
    b = jax.random.uniform(k2, (cout,), jnp.float32, -bound, bound)
    return w, b


def _inception_init(key, cin):
    ks = jax.random.split(key, 7)
    p = {}
    p["b1_w"], p["b1_b"] = _conv_init(ks[0], 16, cin, 1)
    p["b5_1_w"], p["b5_1_b"] = _conv_init(ks[1], 16, cin, 1)
    p["b5_2_w"], p["b5_2_b"] = _conv_init(ks[2], 24, 16, 5)
    p["b3_1_w"], p["b3_1_b"] = _conv_init(ks[3], 16, cin, 1)
    p["b3_2_w"], p["b3_2_b"] = _conv_init(ks[4], 24, 16, 3)
    p["b3_3_w"], p["b3_3_b"] = _conv_init(ks[5], 24, 24, 3)
    p["bp_w"], p["bp_b"] = _conv_init(ks[6], 24, cin, 1)
    return p


def init_params(key):
    ks = jax.random.split(key, 5)
    params = {}
    params["conv1_w"], params["conv1_b"] = _conv_init(ks[0], 10, 1, 5)
    params["conv2_w"], params["conv2_b"] = _conv_init(ks[1], 20, 88, 5)
    params["incep1"] = _inception_init(ks[2], 10)
    params["incep2"] = _inception_init(ks[3], 20)
    kf1, kf2 = jax.random.split(ks[4])
    bound = 1.0 / 1408.0 ** 0.5
    params["fc_w"] = jax.random.uniform(kf1, (10, 1408), jnp.float32, -bound, bound)
    params["fc_b"] = jax.random.uniform(kf2, (10,), jnp.float32, -bound, bound)
    return params


if __name__ == "__main__":
    key = jax.random.PRNGKey(0)
    kx, kp = jax.random.split(key)
    # MNIST-like input: the fc layer (1408 = 88*4*4) implies 28x28 single-channel input.
    x = jax.random.normal(kx, (2, 1, 28, 28), jnp.float32)
    params = init_params(kp)

    out = jax.jit(net_forward)(x, params)
    out = jax.block_until_ready(out)
    assert out.shape == (2, 10) and out.dtype == jnp.float32
    print("KERNEL_OK")
</pallas_src>

<mosaic_0001>
module attributes {stable_mosaic.version = 11 : i64} {
  func.func @_matmul_bias_kernel(%arg0: i32, %arg1: memref<1152x32xf32, #tpu.memory_space<vmem>>, %arg2: memref<32x10xf32, #tpu.memory_space<vmem>>, %arg3: memref<1x10xf32, #tpu.memory_space<vmem>>, %arg4: memref<1152x10xf32, #tpu.memory_space<vmem>>) attributes {dimension_semantics = [#tpu.dimension_semantics<arbitrary>], iteration_bounds = array<i64: 1>, scalar_prefetch = 0 : i64, scratch_operands = 0 : i64, tpu.core_type = #tpu.core_type<tc>, window_params = [{pipeline_mode = #tpu.pipeline_mode<synchronous>, transform_indices = @transform_0, window_bounds = array<i64: 1152, 32>}, {pipeline_mode = #tpu.pipeline_mode<synchronous>, transform_indices = @transform_1, window_bounds = array<i64: 32, 10>}, {pipeline_mode = #tpu.pipeline_mode<synchronous>, transform_indices = @transform_2, window_bounds = array<i64: 1, 10>}, {pipeline_mode = #tpu.pipeline_mode<synchronous>, transform_indices = @transform_3, window_bounds = array<i64: 1152, 10>}]} {
    %c0 = arith.constant 0 : index
    %c0_0 = arith.constant 0 : index
    %0 = vector.load %arg1[%c0, %c0_0] : memref<1152x32xf32, #tpu.memory_space<vmem>>, vector<1152x32xf32>
    %c0_1 = arith.constant 0 : index
    %c0_2 = arith.constant 0 : index
    %1 = vector.load %arg2[%c0_1, %c0_2] : memref<32x10xf32, #tpu.memory_space<vmem>>, vector<32x10xf32>
    %cst = arith.constant dense<0.000000e+00> : vector<1152x10xf32>
    %2 = tpu.matmul %0, %1, %cst {dimension_numbers = #tpu.dot_dimension_numbers<[1], [0], [0], [1], [0, 0, 1, 1], [], []>} : vector<1152x32xf32>, vector<32x10xf32>, vector<1152x10xf32> -> vector<1152x10xf32>
    %c0_3 = arith.constant 0 : index
    %c0_4 = arith.constant 0 : index
    %3 = vector.load %arg3[%c0_3, %c0_4] : memref<1x10xf32, #tpu.memory_space<vmem>>, vector<1x10xf32>
    %4 = vector.broadcast %3 : vector<1x10xf32> to vector<1152x10xf32>
    %5 = arith.addf %2, %4 : vector<1152x10xf32>
    %c0_5 = arith.constant 0 : index
    %c0_6 = arith.constant 0 : index
    %6 = vector.load %arg4[%c0_5, %c0_6] : memref<1152x10xf32, #tpu.memory_space<vmem>>, vector<1152x10xf32>
    tpu.vector_store %arg4[%c0_5, %c0_6], %5 {strides = array<i32>} : memref<1152x10xf32, #tpu.memory_space<vmem>>, vector<1152x10xf32>,
    return
  }
  func.func @transform_0(%arg0: i32) -> (i32, i32) {
    %c0_i32 = arith.constant 0 : i32
    %c0_i32_0 = arith.constant 0 : i32
    %c0_i32_1 = arith.constant 0 : i32
    return %c0_i32, %c0_i32_0 : i32, i32
  }
  func.func @transform_1(%arg0: i32) -> (i32, i32) {
    %c0_i32 = arith.constant 0 : i32
    %c0_i32_0 = arith.constant 0 : i32
    %c0_i32_1 = arith.constant 0 : i32
    return %c0_i32, %c0_i32_0 : i32, i32
  }
  func.func @transform_2(%arg0: i32) -> (i32, i32) {
    %c0_i32 = arith.constant 0 : i32
    %c0_i32_0 = arith.constant 0 : i32
    %c0_i32_1 = arith.constant 0 : i32
    return %c0_i32, %c0_i32_0 : i32, i32
  }
  func.func @transform_3(%arg0: i32) -> (i32, i32) {
    %c0_i32 = arith.constant 0 : i32
    %c0_i32_0 = arith.constant 0 : i32
    %c0_i32_1 = arith.constant 0 : i32
    return %c0_i32, %c0_i32_0 : i32, i32
  }
}

module attributes {stable_mosaic.version = 11 : i64} {
  func.func @_pool_kernel(%arg0: i32, %arg1: memref<4x24x120xf32, #tpu.memory_space<vmem>>, %arg2: memref<24x120xf32, #tpu.memory_space<vmem>>) attributes {dimension_semantics = [#tpu.dimension_semantics<arbitrary>], iteration_bounds = array<i64: 1>, scalar_prefetch = 0 : i64, scratch_operands = 0 : i64, tpu.core_type = #tpu.core_type<tc>, window_params = [{pipeline_mode = #tpu.pipeline_mode<synchronous>, transform_indices = @transform_0, window_bounds = array<i64: 4, 24, 120>}, {pipeline_mode = #tpu.pipeline_mode<synchronous>, transform_indices = @transform_1, window_bounds = array<i64: 24, 120>}]} {
    %c0 = arith.constant 0 : index
    %c0_0 = arith.constant 0 : index
    %c0_1 = arith.constant 0 : index
    %0 = vector.load %arg1[%c0, %c0_0, %c0_1] : memref<4x24x120xf32, #tpu.memory_space<vmem>>, vector<1x24x120xf32>
    %1 = vector.shape_cast %0 : vector<1x24x120xf32> to vector<24x120xf32>
    %c1 = arith.constant 1 : index
    %c0_2 = arith.constant 0 : index
    %c0_3 = arith.constant 0 : index
    %2 = vector.load %arg1[%c1, %c0_2, %c0_3] : memref<4x24x120xf32, #tpu.memory_space<vmem>>, vector<1x24x120xf32>
    %3 = vector.shape_cast %2 : vector<1x24x120xf32> to vector<24x120xf32>
    %4 = arith.maximumf %1, %3 : vector<24x120xf32>
    %c2 = arith.constant 2 : index
    %c0_4 = arith.constant 0 : index
    %c0_5 = arith.constant 0 : index
    %5 = vector.load %arg1[%c2, %c0_4, %c0_5] : memref<4x24x120xf32, #tpu.memory_space<vmem>>, vector<1x24x120xf32>
    %6 = vector.shape_cast %5 : vector<1x24x120xf32> to vector<24x120xf32>
    %7 = arith.maximumf %4, %6 : vector<24x120xf32>
    %c3 = arith.constant 3 : index
    %c0_6 = arith.constant 0 : index
    %c0_7 = arith.constant 0 : index
    %8 = vector.load %arg1[%c3, %c0_6, %c0_7] : memref<4x24x120xf32, #tpu.memory_space<vmem>>, vector<1x24x120xf32>
    %9 = vector.shape_cast %8 : vector<1x24x120xf32> to vector<24x120xf32>
    %10 = arith.maximumf %7, %9 : vector<24x120xf32>
    %cst = arith.constant 0.000000e+00 : f32
    %11 = vector.broadcast %cst : f32 to vector<24x120xf32>
    %12 = arith.maximumf %10, %11 : vector<24x120xf32>
    %c0_8 = arith.constant 0 : index
    %c0_9 = arith.constant 0 : index
    %13 = vector.load %arg2[%c0_8, %c0_9] : memref<24x120xf32, #tpu.memory_space<vmem>>, vector<24x120xf32>
    tpu.vector_store %arg2[%c0_8, %c0_9], %12 {strides = array<i32>} : memref<24x120xf32, #tpu.memory_space<vmem>>, vector<24x120xf32>,
    return
  }
  func.func @transform_0(%arg0: i32) -> (i32, i32, i32) {
    %c0_i32 = arith.constant 0 : i32
    %c0_i32_0 = arith.constant 0 : i32
    %c0_i32_1 = arith.constant 0 : i32
    %c0_i32_2 = arith.constant 0 : i32
    return %c0_i32, %c0_i32_0, %c0_i32_1 : i32, i32, i32
  }
  func.func @transform_1(%arg0: i32) -> (i32, i32) {
    %c0_i32 = arith.constant 0 : i32
    %c0_i32_0 = arith.constant 0 : i32
    %c0_i32_1 = arith.constant 0 : i32
    return %c0_i32, %c0_i32_0 : i32, i32
  }
}

module attributes {stable_mosaic.version = 11 : i64} {
  func.func @_matmul_bias_kernel(%arg0: i32, %arg1: memref<288x16xf32, #tpu.memory_space<vmem>>, %arg2: memref<16x48xf32, #tpu.memory_space<vmem>>, %arg3: memref<1x48xf32, #tpu.memory_space<vmem>>, %arg4: memref<288x48xf32, #tpu.memory_space<vmem>>) attributes {dimension_semantics = [#tpu.dimension_semantics<arbitrary>], iteration_bounds = array<i64: 1>, scalar_prefetch = 0 : i64, scratch_operands = 0 : i64, tpu.core_type = #tpu.core_type<tc>, window_params = [{pipeline_mode = #tpu.pipeline_mode<synchronous>, transform_indices = @transform_0, window_bounds = array<i64: 288, 16>}, {pipeline_mode = #tpu.pipeline_mode<synchronous>, transform_indices = @transform_1, window_bounds = array<i64: 16, 48>}, {pipeline_mode = #tpu.pipeline_mode<synchronous>, transform_indices = @transform_2, window_bounds = array<i64: 1, 48>}, {pipeline_mode = #tpu.pipeline_mode<synchronous>, transform_indices = @transform_3, window_bounds = array<i64: 288, 48>}]} {
    %c0 = arith.constant 0 : index
    %c0_0 = arith.constant 0 : index
    %0 = vector.load %arg1[%c0, %c0_0] : memref<288x16xf32, #tpu.memory_space<vmem>>, vector<288x16xf32>
    %c0_1 = arith.constant 0 : index
    %c0_2 = arith.constant 0 : index
    %1 = vector.load %arg2[%c0_1, %c0_2] : memref<16x48xf32, #tpu.memory_space<vmem>>, vector<16x48xf32>
    %cst = arith.constant dense<0.000000e+00> : vector<288x48xf32>
    %2 = tpu.matmul %0, %1, %cst {dimension_numbers = #tpu.dot_dimension_numbers<[1], [0], [0], [1], [0, 0, 1, 1], [], []>} : vector<288x16xf32>, vector<16x48xf32>, vector<288x48xf32> -> vector<288x48xf32>
    %c0_3 = arith.constant 0 : index
    %c0_4 = arith.constant 0 : index
    %3 = vector.load %arg3[%c0_3, %c0_4] : memref<1x48xf32, #tpu.memory_space<vmem>>, vector<1x48xf32>
    %4 = vector.broadcast %3 : vector<1x48xf32> to vector<288x48xf32>
    %5 = arith.addf %2, %4 : vector<288x48xf32>
    %c0_5 = arith.constant 0 : index
    %c0_6 = arith.constant 0 : index
    %6 = vector.load %arg4[%c0_5, %c0_6] : memref<288x48xf32, #tpu.memory_space<vmem>>, vector<288x48xf32>
    tpu.vector_store %arg4[%c0_5, %c0_6], %5 {strides = array<i32>} : memref<288x48xf32, #tpu.memory_space<vmem>>, vector<288x48xf32>,
    return
  }
  func.func @transform_0(%arg0: i32) -> (i32, i32) {
    %c0_i32 = arith.constant 0 : i32
    %c0_i32_0 = arith.constant 0 : i32
    %c0_i32_1 = arith.constant 0 : i32
    return %c0_i32, %c0_i32_0 : i32, i32
  }
  func.func @transform_1(%arg0: i32) -> (i32, i32) {
    %c0_i32 = arith.constant 0 : i32
    %c0_i32_0 = arith.constant 0 : i32
    %c0_i32_1 = arith.constant 0 : i32
    return %c0_i32, %c0_i32_0 : i32, i32
  }
  func.func @transform_2(%arg0: i32) -> (i32, i32) {
    %c0_i32 = arith.constant 0 : i32
    %c0_i32_0 = arith.constant 0 : i32
    %c0_i32_1 = arith.constant 0 : i32
    return %c0_i32, %c0_i32_0 : i32, i32
  }
  func.func @transform_3(%arg0: i32) -> (i32, i32) {
    %c0_i32 = arith.constant 0 : i32
    %c0_i32_0 = arith.constant 0 : i32
    %c0_i32_1 = arith.constant 0 : i32
    return %c0_i32, %c0_i32_0 : i32, i32
  }
}

module attributes {stable_mosaic.version = 11 : i64} {
  func.func @_matmul_bias_kernel(%arg0: i32, %arg1: memref<288x144xf32, #tpu.memory_space<vmem>>, %arg2: memref<144x24xf32, #tpu.memory_space<vmem>>, %arg3: memref<1x24xf32, #tpu.memory_space<vmem>>, %arg4: memref<288x24xf32, #tpu.memory_space<vmem>>) attributes {dimension_semantics = [#tpu.dimension_semantics<arbitrary>], iteration_bounds = array<i64: 1>, scalar_prefetch = 0 : i64, scratch_operands = 0 : i64, tpu.core_type = #tpu.core_type<tc>, window_params = [{pipeline_mode = #tpu.pipeline_mode<synchronous>, transform_indices = @transform_0, window_bounds = array<i64: 288, 144>}, {pipeline_mode = #tpu.pipeline_mode<synchronous>, transform_indices = @transform_1, window_bounds = array<i64: 144, 24>}, {pipeline_mode = #tpu.pipeline_mode<synchronous>, transform_indices = @transform_2, window_bounds = array<i64: 1, 24>}, {pipeline_mode = #tpu.pipeline_mode<synchronous>, transform_indices = @transform_3, window_bounds = array<i64: 288, 24>}]} {
    %c0 = arith.constant 0 : index
    %c0_0 = arith.constant 0 : index
    %0 = vector.load %arg1[%c0, %c0_0] : memref<288x144xf32, #tpu.memory_space<vmem>>, vector<288x144xf32>
    %c0_1 = arith.constant 0 : index
    %c0_2 = arith.constant 0 : index
    %1 = vector.load %arg2[%c0_1, %c0_2] : memref<144x24xf32, #tpu.memory_space<vmem>>, vector<144x24xf32>
    %cst = arith.constant dense<0.000000e+00> : vector<288x24xf32>
    %2 = tpu.matmul %0, %1, %cst {dimension_numbers = #tpu.dot_dimension_numbers<[1], [0], [0], [1], [0, 0, 1, 1], [], []>} : vector<288x144xf32>, vector<144x24xf32>, vector<288x24xf32> -> vector<288x24xf32>
    %c0_3 = arith.constant 0 : index
    %c0_4 = arith.constant 0 : index
    %3 = vector.load %arg3[%c0_3, %c0_4] : memref<1x24xf32, #tpu.memory_space<vmem>>, vector<1x24xf32>
    %4 = vector.broadcast %3 : vector<1x24xf32> to vector<288x24xf32>
    %5 = arith.addf %2, %4 : vector<288x24xf32>
    %c0_5 = arith.constant 0 : index
    %c0_6 = arith.constant 0 : index
    %6 = vector.load %arg4[%c0_5, %c0_6] : memref<288x24xf32, #tpu.memory_space<vmem>>, vector<288x24xf32>
    tpu.vector_store %arg4[%c0_5, %c0_6], %5 {strides = array<i32>} : memref<288x24xf32, #tpu.memory_space<vmem>>, vector<288x24xf32>,
    return
  }
  func.func @transform_0(%arg0: i32) -> (i32, i32) {
    %c0_i32 = arith.constant 0 : i32
    %c0_i32_0 = arith.constant 0 : i32
    %c0_i32_1 = arith.constant 0 : i32
    return %c0_i32, %c0_i32_0 : i32, i32
  }
  func.func @transform_1(%arg0: i32) -> (i32, i32) {
    %c0_i32 = arith.constant 0 : i32
    %c0_i32_0 = arith.constant 0 : i32
    %c0_i32_1 = arith.constant 0 : i32
    return %c0_i32, %c0_i32_0 : i32, i32
  }
  func.func @transform_2(%arg0: i32) -> (i32, i32) {
    %c0_i32 = arith.constant 0 : i32
    %c0_i32_0 = arith.constant 0 : i32
    %c0_i32_1 = arith.constant 0 : i32
    return %c0_i32, %c0_i32_0 : i32, i32
  }
  func.func @transform_3(%arg0: i32) -> (i32, i32) {
    %c0_i32 = arith.constant 0 : i32
    %c0_i32_0 = arith.constant 0 : i32
    %c0_i32_1 = arith.constant 0 : i32
    return %c0_i32, %c0_i32_0 : i32, i32
  }
}

module attributes {stable_mosaic.version = 11 : i64} {
  func.func @_matmul_bias_kernel(%arg0: i32, %arg1: memref<288x216xf32, #tpu.memory_space<vmem>>, %arg2: memref<216x24xf32, #tpu.memory_space<vmem>>, %arg3: memref<1x24xf32, #tpu.memory_space<vmem>>, %arg4: memref<288x24xf32, #tpu.memory_space<vmem>>) attributes {dimension_semantics = [#tpu.dimension_semantics<arbitrary>], iteration_bounds = array<i64: 1>, scalar_prefetch = 0 : i64, scratch_operands = 0 : i64, tpu.core_type = #tpu.core_type<tc>, window_params = [{pipeline_mode = #tpu.pipeline_mode<synchronous>, transform_indices = @transform_0, window_bounds = array<i64: 288, 216>}, {pipeline_mode = #tpu.pipeline_mode<synchronous>, transform_indices = @transform_1, window_bounds = array<i64: 216, 24>}, {pipeline_mode = #tpu.pipeline_mode<synchronous>, transform_indices = @transform_2, window_bounds = array<i64: 1, 24>}, {pipeline_mode = #tpu.pipeline_mode<synchronous>, transform_indices = @transform_3, window_bounds = array<i64: 288, 24>}]} {
    %c0 = arith.constant 0 : index
    %c0_0 = arith.constant 0 : index
    %0 = vector.load %arg1[%c0, %c0_0] : memref<288x216xf32, #tpu.memory_space<vmem>>, vector<288x216xf32>
    %c0_1 = arith.constant 0 : index
    %c0_2 = arith.constant 0 : index
    %1 = vector.load %arg2[%c0_1, %c0_2] : memref<216x24xf32, #tpu.memory_space<vmem>>, vector<216x24xf32>
    %cst = arith.constant dense<0.000000e+00> : vector<288x24xf32>
    %2 = tpu.matmul %0, %1, %cst {dimension_numbers = #tpu.dot_dimension_numbers<[1], [0], [0], [1], [0, 0, 1, 1], [], []>} : vector<288x216xf32>, vector<216x24xf32>, vector<288x24xf32> -> vector<288x24xf32>
    %c0_3 = arith.constant 0 : index
    %c0_4 = arith.constant 0 : index
    %3 = vector.load %arg3[%c0_3, %c0_4] : memref<1x24xf32, #tpu.memory_space<vmem>>, vector<1x24xf32>
    %4 = vector.broadcast %3 : vector<1x24xf32> to vector<288x24xf32>
    %5 = arith.addf %2, %4 : vector<288x24xf32>
    %c0_5 = arith.constant 0 : index
    %c0_6 = arith.constant 0 : index
    %6 = vector.load %arg4[%c0_5, %c0_6] : memref<288x24xf32, #tpu.memory_space<vmem>>, vector<288x24xf32>
    tpu.vector_store %arg4[%c0_5, %c0_6], %5 {strides = array<i32>} : memref<288x24xf32, #tpu.memory_space<vmem>>, vector<288x24xf32>,
    return
  }
  func.func @transform_0(%arg0: i32) -> (i32, i32) {
    %c0_i32 = arith.constant 0 : i32
    %c0_i32_0 = arith.constant 0 : i32
    %c0_i32_1 = arith.constant 0 : i32
    return %c0_i32, %c0_i32_0 : i32, i32
  }
  func.func @transform_1(%arg0: i32) -> (i32, i32) {
    %c0_i32 = arith.constant 0 : i32
    %c0_i32_0 = arith.constant 0 : i32
    %c0_i32_1 = arith.constant 0 : i32
    return %c0_i32, %c0_i32_0 : i32, i32
  }
  func.func @transform_2(%arg0: i32) -> (i32, i32) {
    %c0_i32 = arith.constant 0 : i32
    %c0_i32_0 = arith.constant 0 : i32
    %c0_i32_1 = arith.constant 0 : i32
    return %c0_i32, %c0_i32_0 : i32, i32
  }
  func.func @transform_3(%arg0: i32) -> (i32, i32) {
    %c0_i32 = arith.constant 0 : i32
    %c0_i32_0 = arith.constant 0 : i32
    %c0_i32_1 = arith.constant 0 : i32
    return %c0_i32, %c0_i32_0 : i32, i32
  }
}

module attributes {stable_mosaic.version = 11 : i64} {
  func.func @_matmul_bias_kernel(%arg0: i32, %arg1: memref<288x400xf32, #tpu.memory_space<vmem>>, %arg2: memref<400x24xf32, #tpu.memory_space<vmem>>, %arg3: memref<1x24xf32, #tpu.memory_space<vmem>>, %arg4: memref<288x24xf32, #tpu.memory_space<vmem>>) attributes {dimension_semantics = [#tpu.dimension_semantics<arbitrary>], iteration_bounds = array<i64: 1>, scalar_prefetch = 0 : i64, scratch_operands = 0 : i64, tpu.core_type = #tpu.core_type<tc>, window_params = [{pipeline_mode = #tpu.pipeline_mode<synchronous>, transform_indices = @transform_0, window_bounds = array<i64: 288, 400>}, {pipeline_mode = #tpu.pipeline_mode<synchronous>, transform_indices = @transform_1, window_bounds = array<i64: 400, 24>}, {pipeline_mode = #tpu.pipeline_mode<synchronous>, transform_indices = @transform_2, window_bounds = array<i64: 1, 24>}, {pipeline_mode = #tpu.pipeline_mode<synchronous>, transform_indices = @transform_3, window_bounds = array<i64: 288, 24>}]} {
    %c0 = arith.constant 0 : index
    %c0_0 = arith.constant 0 : index
    %0 = vector.load %arg1[%c0, %c0_0] : memref<288x400xf32, #tpu.memory_space<vmem>>, vector<288x400xf32>
    %c0_1 = arith.constant 0 : index
    %c0_2 = arith.constant 0 : index
    %1 = vector.load %arg2[%c0_1, %c0_2] : memref<400x24xf32, #tpu.memory_space<vmem>>, vector<400x24xf32>
    %cst = arith.constant dense<0.000000e+00> : vector<288x24xf32>
    %2 = tpu.matmul %0, %1, %cst {dimension_numbers = #tpu.dot_dimension_numbers<[1], [0], [0], [1], [0, 0, 1, 1], [], []>} : vector<288x400xf32>, vector<400x24xf32>, vector<288x24xf32> -> vector<288x24xf32>
    %c0_3 = arith.constant 0 : index
    %c0_4 = arith.constant 0 : index
    %3 = vector.load %arg3[%c0_3, %c0_4] : memref<1x24xf32, #tpu.memory_space<vmem>>, vector<1x24xf32>
    %4 = vector.broadcast %3 : vector<1x24xf32> to vector<288x24xf32>
    %5 = arith.addf %2, %4 : vector<288x24xf32>
    %c0_5 = arith.constant 0 : index
    %c0_6 = arith.constant 0 : index
    %6 = vector.load %arg4[%c0_5, %c0_6] : memref<288x24xf32, #tpu.memory_space<vmem>>, vector<288x24xf32>
    tpu.vector_store %arg4[%c0_5, %c0_6], %5 {strides = array<i32>} : memref<288x24xf32, #tpu.memory_space<vmem>>, vector<288x24xf32>,
    return
  }
  func.func @transform_0(%arg0: i32) -> (i32, i32) {
    %c0_i32 = arith.constant 0 : i32
    %c0_i32_0 = arith.constant 0 : i32
    %c0_i32_1 = arith.constant 0 : i32
    return %c0_i32, %c0_i32_0 : i32, i32
  }
  func.func @transform_1(%arg0: i32) -> (i32, i32) {
    %c0_i32 = arith.constant 0 : i32
    %c0_i32_0 = arith.constant 0 : i32
    %c0_i32_1 = arith.constant 0 : i32
    return %c0_i32, %c0_i32_0 : i32, i32
  }
  func.func @transform_2(%arg0: i32) -> (i32, i32) {
    %c0_i32 = arith.constant 0 : i32
    %c0_i32_0 = arith.constant 0 : i32
    %c0_i32_1 = arith.constant 0 : i32
    return %c0_i32, %c0_i32_0 : i32, i32
  }
  func.func @transform_3(%arg0: i32) -> (i32, i32) {
    %c0_i32 = arith.constant 0 : i32
    %c0_i32_0 = arith.constant 0 : i32
    %c0_i32_1 = arith.constant 0 : i32
    return %c0_i32, %c0_i32_0 : i32, i32
  }
}

module attributes {stable_mosaic.version = 11 : i64} {
  func.func @_pool_kernel(%arg0: i32, %arg1: memref<9x24x120xf32, #tpu.memory_space<vmem>>, %arg2: memref<24x120xf32, #tpu.memory_space<vmem>>) attributes {dimension_semantics = [#tpu.dimension_semantics<arbitrary>], iteration_bounds = array<i64: 1>, scalar_prefetch = 0 : i64, scratch_operands = 0 : i64, tpu.core_type = #tpu.core_type<tc>, window_params = [{pipeline_mode = #tpu.pipeline_mode<synchronous>, transform_indices = @transform_0, window_bounds = array<i64: 9, 24, 120>}, {pipeline_mode = #tpu.pipeline_mode<synchronous>, transform_indices = @transform_1, window_bounds = array<i64: 24, 120>}]} {
    %c0 = arith.constant 0 : index
    %c0_0 = arith.constant 0 : index
    %c0_1 = arith.constant 0 : index
    %0 = vector.load %arg1[%c0, %c0_0, %c0_1] : memref<9x24x120xf32, #tpu.memory_space<vmem>>, vector<1x24x120xf32>
    %1 = vector.shape_cast %0 : vector<1x24x120xf32> to vector<24x120xf32>
    %c1 = arith.constant 1 : index
    %c0_2 = arith.constant 0 : index
    %c0_3 = arith.constant 0 : index
    %2 = vector.load %arg1[%c1, %c0_2, %c0_3] : memref<9x24x120xf32, #tpu.memory_space<vmem>>, vector<1x24x120xf32>
    %3 = vector.shape_cast %2 : vector<1x24x120xf32> to vector<24x120xf32>
    %4 = arith.addf %1, %3 : vector<24x120xf32>
    %c2 = arith.constant 2 : index
    %c0_4 = arith.constant 0 : index
    %c0_5 = arith.constant 0 : index
    %5 = vector.load %arg1[%c2, %c0_4, %c0_5] : memref<9x24x120xf32, #tpu.memory_space<vmem>>, vector<1x24x120xf32>
    %6 = vector.shape_cast %5 : vector<1x24x120xf32> to vector<24x120xf32>
    %7 = arith.addf %4, %6 : vector<24x120xf32>
    %c3 = arith.constant 3 : index
    %c0_6 = arith.constant 0 : index
    %c0_7 = arith.constant 0 : index
    %8 = vector.load %arg1[%c3, %c0_6, %c0_7] : memref<9x24x120xf32, #tpu.memory_space<vmem>>, vector<1x24x120xf32>
    %9 = vector.shape_cast %8 : vector<1x24x120xf32> to vector<24x120xf32>
    %10 = arith.addf %7, %9 : vector<24x120xf32>
    %c4 = arith.constant 4 : index
    %c0_8 = arith.constant 0 : index
    %c0_9 = arith.constant 0 : index
    %11 = vector.load %arg1[%c4, %c0_8, %c0_9] : memref<9x24x120xf32, #tpu.memory_space<vmem>>, vector<1x24x120xf32>
    %12 = vector.shape_cast %11 : vector<1x24x120xf32> to vector<24x120xf32>
    %13 = arith.addf %10, %12 : vector<24x120xf32>
    %c5 = arith.constant 5 : index
    %c0_10 = arith.constant 0 : index
    %c0_11 = arith.constant 0 : index
    %14 = vector.load %arg1[%c5, %c0_10, %c0_11] : memref<9x24x120xf32, #tpu.memory_space<vmem>>, vector<1x24x120xf32>
    %15 = vector.shape_cast %14 : vector<1x24x120xf32> to vector<24x120xf32>
    %16 = arith.addf %13, %15 : vector<24x120xf32>
    %c6 = arith.constant 6 : index
    %c0_12 = arith.constant 0 : index
    %c0_13 = arith.constant 0 : index
    %17 = vector.load %arg1[%c6, %c0_12, %c0_13] : memref<9x24x120xf32, #tpu.memory_space<vmem>>, vector<1x24x120xf32>
    %18 = vector.shape_cast %17 : vector<1x24x120xf32> to vector<24x120xf32>
    %19 = arith.addf %16, %18 : vector<24x120xf32>
    %c7 = arith.constant 7 : index
    %c0_14 = arith.constant 0 : index
    %c0_15 = arith.constant 0 : index
    %20 = vector.load %arg1[%c7, %c0_14, %c0_15] : memref<9x24x120xf32, #tpu.memory_space<vmem>>, vector<1x24x120xf32>
    %21 = vector.shape_cast %20 : vector<1x24x120xf32> to vector<24x120xf32>
    %22 = arith.addf %19, %21 : vector<24x120xf32>
    %c8 = arith.constant 8 : index
    %c0_16 = arith.constant 0 : index
    %c0_17 = arith.constant 0 : index
    %23 = vector.load %arg1[%c8, %c0_16, %c0_17] : memref<9x24x120xf32, #tpu.memory_space<vmem>>, vector<1x24x120xf32>
    %24 = vector.shape_cast %23 : vector<1x24x120xf32> to vector<24x120xf32>
    %25 = arith.addf %22, %24 : vector<24x120xf32>
    %cst = arith.constant 0.111111112 : f32
    %26 = vector.broadcast %cst : f32 to vector<24x120xf32>
    %27 = arith.mulf %25, %26 : vector<24x120xf32>
    %c0_18 = arith.constant 0 : index
    %c0_19 = arith.constant 0 : index
    %28 = vector.load %arg2[%c0_18, %c0_19] : memref<24x120xf32, #tpu.memory_space<vmem>>, vector<24x120xf32>
    tpu.vector_store %arg2[%c0_18, %c0_19], %27 {strides = array<i32>} : memref<24x120xf32, #tpu.memory_space<vmem>>, vector<24x120xf32>,
    return
  }
  func.func @transform_0(%arg0: i32) -> (i32, i32, i32) {
    %c0_i32 = arith.constant 0 : i32
    %c0_i32_0 = arith.constant 0 : i32
    %c0_i32_1 = arith.constant 0 : i32
    %c0_i32_2 = arith.constant 0 : i32
    return %c0_i32, %c0_i32_0, %c0_i32_1 : i32, i32, i32
  }
  func.func @transform_1(%arg0: i32) -> (i32, i32) {
    %c0_i32 = arith.constant 0 : i32
    %c0_i32_0 = arith.constant 0 : i32
    %c0_i32_1 = arith.constant 0 : i32
    return %c0_i32, %c0_i32_0 : i32, i32
  }
}

module attributes {stable_mosaic.version = 11 : i64} {
  func.func @_matmul_bias_kernel(%arg0: i32, %arg1: memref<288x16xf32, #tpu.memory_space<vmem>>, %arg2: memref<16x24xf32, #tpu.memory_space<vmem>>, %arg3: memref<1x24xf32, #tpu.memory_space<vmem>>, %arg4: memref<288x24xf32, #tpu.memory_space<vmem>>) attributes {dimension_semantics = [#tpu.dimension_semantics<arbitrary>], iteration_bounds = array<i64: 1>, scalar_prefetch = 0 : i64, scratch_operands = 0 : i64, tpu.core_type = #tpu.core_type<tc>, window_params = [{pipeline_mode = #tpu.pipeline_mode<synchronous>, transform_indices = @transform_0, window_bounds = array<i64: 288, 16>}, {pipeline_mode = #tpu.pipeline_mode<synchronous>, transform_indices = @transform_1, window_bounds = array<i64: 16, 24>}, {pipeline_mode = #tpu.pipeline_mode<synchronous>, transform_indices = @transform_2, window_bounds = array<i64: 1, 24>}, {pipeline_mode = #tpu.pipeline_mode<synchronous>, transform_indices = @transform_3, window_bounds = array<i64: 288, 24>}]} {
    %c0 = arith.constant 0 : index
    %c0_0 = arith.constant 0 : index
    %0 = vector.load %arg1[%c0, %c0_0] : memref<288x16xf32, #tpu.memory_space<vmem>>, vector<288x16xf32>
    %c0_1 = arith.constant 0 : index
    %c0_2 = arith.constant 0 : index
    %1 = vector.load %arg2[%c0_1, %c0_2] : memref<16x24xf32, #tpu.memory_space<vmem>>, vector<16x24xf32>
    %cst = arith.constant dense<0.000000e+00> : vector<288x24xf32>
    %2 = tpu.matmul %0, %1, %cst {dimension_numbers = #tpu.dot_dimension_numbers<[1], [0], [0], [1], [0, 0, 1, 1], [], []>} : vector<288x16xf32>, vector<16x24xf32>, vector<288x24xf32> -> vector<288x24xf32>
    %c0_3 = arith.constant 0 : index
    %c0_4 = arith.constant 0 : index
    %3 = vector.load %arg3[%c0_3, %c0_4] : memref<1x24xf32, #tpu.memory_space<vmem>>, vector<1x24xf32>
    %4 = vector.broadcast %3 : vector<1x24xf32> to vector<288x24xf32>
    %5 = arith.addf %2, %4 : vector<288x24xf32>
    %c0_5 = arith.constant 0 : index
    %c0_6 = arith.constant 0 : index
    %6 = vector.load %arg4[%c0_5, %c0_6] : memref<288x24xf32, #tpu.memory_space<vmem>>, vector<288x24xf32>
    tpu.vector_store %arg4[%c0_5, %c0_6], %5 {strides = array<i32>} : memref<288x24xf32, #tpu.memory_space<vmem>>, vector<288x24xf32>,
    return
  }
  func.func @transform_0(%arg0: i32) -> (i32, i32) {
    %c0_i32 = arith.constant 0 : i32
    %c0_i32_0 = arith.constant 0 : i32
    %c0_i32_1 = arith.constant 0 : i32
    return %c0_i32, %c0_i32_0 : i32, i32
  }
  func.func @transform_1(%arg0: i32) -> (i32, i32) {
    %c0_i32 = arith.constant 0 : i32
    %c0_i32_0 = arith.constant 0 : i32
    %c0_i32_1 = arith.constant 0 : i32
    return %c0_i32, %c0_i32_0 : i32, i32
  }
  func.func @transform_2(%arg0: i32) -> (i32, i32) {
    %c0_i32 = arith.constant 0 : i32
    %c0_i32_0 = arith.constant 0 : i32
    %c0_i32_1 = arith.constant 0 : i32
    return %c0_i32, %c0_i32_0 : i32, i32
  }
  func.func @transform_3(%arg0: i32) -> (i32, i32) {
    %c0_i32 = arith.constant 0 : i32
    %c0_i32_0 = arith.constant 0 : i32
    %c0_i32_1 = arith.constant 0 : i32
    return %c0_i32, %c0_i32_0 : i32, i32
  }
}

module attributes {stable_mosaic.version = 11 : i64} {
  func.func @_matmul_bias_kernel(%arg0: i32, %arg1: memref<128x2200xf32, #tpu.memory_space<vmem>>, %arg2: memref<2200x20xf32, #tpu.memory_space<vmem>>, %arg3: memref<1x20xf32, #tpu.memory_space<vmem>>, %arg4: memref<128x20xf32, #tpu.memory_space<vmem>>) attributes {dimension_semantics = [#tpu.dimension_semantics<arbitrary>], iteration_bounds = array<i64: 1>, scalar_prefetch = 0 : i64, scratch_operands = 0 : i64, tpu.core_type = #tpu.core_type<tc>, window_params = [{pipeline_mode = #tpu.pipeline_mode<synchronous>, transform_indices = @transform_0, window_bounds = array<i64: 128, 2200>}, {pipeline_mode = #tpu.pipeline_mode<synchronous>, transform_indices = @transform_1, window_bounds = array<i64: 2200, 20>}, {pipeline_mode = #tpu.pipeline_mode<synchronous>, transform_indices = @transform_2, window_bounds = array<i64: 1, 20>}, {pipeline_mode = #tpu.pipeline_mode<synchronous>, transform_indices = @transform_3, window_bounds = array<i64: 128, 20>}]} {
    %c0 = arith.constant 0 : index
    %c0_0 = arith.constant 0 : index
    %0 = vector.load %arg1[%c0, %c0_0] : memref<128x2200xf32, #tpu.memory_space<vmem>>, vector<128x2200xf32>
    %c0_1 = arith.constant 0 : index
    %c0_2 = arith.constant 0 : index
    %1 = vector.load %arg2[%c0_1, %c0_2] : memref<2200x20xf32, #tpu.memory_space<vmem>>, vector<2200x20xf32>
    %cst = arith.constant dense<0.000000e+00> : vector<128x20xf32>
    %2 = tpu.matmul %0, %1, %cst {dimension_numbers = #tpu.dot_dimension_numbers<[1], [0], [0], [1], [0, 0, 1, 1], [], []>} : vector<128x2200xf32>, vector<2200x20xf32>, vector<128x20xf32> -> vector<128x20xf32>
    %c0_3 = arith.constant 0 : index
    %c0_4 = arith.constant 0 : index
    %3 = vector.load %arg3[%c0_3, %c0_4] : memref<1x20xf32, #tpu.memory_space<vmem>>, vector<1x20xf32>
    %4 = vector.broadcast %3 : vector<1x20xf32> to vector<128x20xf32>
    %5 = arith.addf %2, %4 : vector<128x20xf32>
    %c0_5 = arith.constant 0 : index
    %c0_6 = arith.constant 0 : index
    %6 = vector.load %arg4[%c0_5, %c0_6] : memref<128x20xf32, #tpu.memory_space<vmem>>, vector<128x20xf32>
    tpu.vector_store %arg4[%c0_5, %c0_6], %5 {strides = array<i32>} : memref<128x20xf32, #tpu.memory_space<vmem>>, vector<128x20xf32>,
    return
  }
  func.func @transform_0(%arg0: i32) -> (i32, i32) {
    %c0_i32 = arith.constant 0 : i32
    %c0_i32_0 = arith.constant 0 : i32
    %c0_i32_1 = arith.constant 0 : i32
    return %c0_i32, %c0_i32_0 : i32, i32
  }
  func.func @transform_1(%arg0: i32) -> (i32, i32) {
    %c0_i32 = arith.constant 0 : i32
    %c0_i32_0 = arith.constant 0 : i32
    %c0_i32_1 = arith.constant 0 : i32
    return %c0_i32, %c0_i32_0 : i32, i32
  }
  func.func @transform_2(%arg0: i32) -> (i32, i32) {
    %c0_i32 = arith.constant 0 : i32
    %c0_i32_0 = arith.constant 0 : i32
    %c0_i32_1 = arith.constant 0 : i32
    return %c0_i32, %c0_i32_0 : i32, i32
  }
  func.func @transform_3(%arg0: i32) -> (i32, i32) {
    %c0_i32 = arith.constant 0 : i32
    %c0_i32_0 = arith.constant 0 : i32
    %c0_i32_1 = arith.constant 0 : i32
    return %c0_i32, %c0_i32_0 : i32, i32
  }
}

module attributes {stable_mosaic.version = 11 : i64} {
  func.func @_pool_kernel(%arg0: i32, %arg1: memref<4x8x80xf32, #tpu.memory_space<vmem>>, %arg2: memref<8x80xf32, #tpu.memory_space<vmem>>) attributes {dimension_semantics = [#tpu.dimension_semantics<arbitrary>], iteration_bounds = array<i64: 1>, scalar_prefetch = 0 : i64, scratch_operands = 0 : i64, tpu.core_type = #tpu.core_type<tc>, window_params = [{pipeline_mode = #tpu.pipeline_mode<synchronous>, transform_indices = @transform_0, window_bounds = array<i64: 4, 8, 80>}, {pipeline_mode = #tpu.pipeline_mode<synchronous>, transform_indices = @transform_1, window_bounds = array<i64: 8, 80>}]} {
    %c0 = arith.constant 0 : index
    %c0_0 = arith.constant 0 : index
    %c0_1 = arith.constant 0 : index
    %0 = vector.load %arg1[%c0, %c0_0, %c0_1] : memref<4x8x80xf32, #tpu.memory_space<vmem>>, vector<1x8x80xf32>
    %1 = vector.shape_cast %0 : vector<1x8x80xf32> to vector<8x80xf32>
    %c1 = arith.constant 1 : index
    %c0_2 = arith.constant 0 : index
    %c0_3 = arith.constant 0 : index
    %2 = vector.load %arg1[%c1, %c0_2, %c0_3] : memref<4x8x80xf32, #tpu.memory_space<vmem>>, vector<1x8x80xf32>
    %3 = vector.shape_cast %2 : vector<1x8x80xf32> to vector<8x80xf32>
    %4 = arith.maximumf %1, %3 : vector<8x80xf32>
    %c2 = arith.constant 2 : index
    %c0_4 = arith.constant 0 : index
    %c0_5 = arith.constant 0 : index
    %5 = vector.load %arg1[%c2, %c0_4, %c0_5] : memref<4x8x80xf32, #tpu.memory_space<vmem>>, vector<1x8x80xf32>
    %6 = vector.shape_cast %5 : vector<1x8x80xf32> to vector<8x80xf32>
    %7 = arith.maximumf %4, %6 : vector<8x80xf32>
    %c3 = arith.constant 3 : index
    %c0_6 = arith.constant 0 : index
    %c0_7 = arith.constant 0 : index
    %8 = vector.load %arg1[%c3, %c0_6, %c0_7] : memref<4x8x80xf32, #tpu.memory_space<vmem>>, vector<1x8x80xf32>
    %9 = vector.shape_cast %8 : vector<1x8x80xf32> to vector<8x80xf32>
    %10 = arith.maximumf %7, %9 : vector<8x80xf32>
    %cst = arith.constant 0.000000e+00 : f32
    %11 = vector.broadcast %cst : f32 to vector<8x80xf32>
    %12 = arith.maximumf %10, %11 : vector<8x80xf32>
    %c0_8 = arith.constant 0 : index
    %c0_9 = arith.constant 0 : index
    %13 = vector.load %arg2[%c0_8, %c0_9] : memref<8x80xf32, #tpu.memory_space<vmem>>, vector<8x80xf32>
    tpu.vector_store %arg2[%c0_8, %c0_9], %12 {strides = array<i32>} : memref<8x80xf32, #tpu.memory_space<vmem>>, vector<8x80xf32>,
    return
  }
  func.func @transform_0(%arg0: i32) -> (i32, i32, i32) {
    %c0_i32 = arith.constant 0 : i32
    %c0_i32_0 = arith.constant 0 : i32
    %c0_i32_1 = arith.constant 0 : i32
    %c0_i32_2 = arith.constant 0 : i32
    return %c0_i32, %c0_i32_0, %c0_i32_1 : i32, i32, i32
  }
  func.func @transform_1(%arg0: i32) -> (i32, i32) {
    %c0_i32 = arith.constant 0 : i32
    %c0_i32_0 = arith.constant 0 : i32
    %c0_i32_1 = arith.constant 0 : i32
    return %c0_i32, %c0_i32_0 : i32, i32
  }
}

module attributes {stable_mosaic.version = 11 : i64} {
  func.func @_matmul_bias_kernel(%arg0: i32, %arg1: memref<32x24xf32, #tpu.memory_space<vmem>>, %arg2: memref<24x48xf32, #tpu.memory_space<vmem>>, %arg3: memref<1x48xf32, #tpu.memory_space<vmem>>, %arg4: memref<32x48xf32, #tpu.memory_space<vmem>>) attributes {dimension_semantics = [#tpu.dimension_semantics<arbitrary>], iteration_bounds = array<i64: 1>, scalar_prefetch = 0 : i64, scratch_operands = 0 : i64, tpu.core_type = #tpu.core_type<tc>, window_params = [{pipeline_mode = #tpu.pipeline_mode<synchronous>, transform_indices = @transform_0, window_bounds = array<i64: 32, 24>}, {pipeline_mode = #tpu.pipeline_mode<synchronous>, transform_indices = @transform_1, window_bounds = array<i64: 24, 48>}, {pipeline_mode = #tpu.pipeline_mode<synchronous>, transform_indices = @transform_2, window_bounds = array<i64: 1, 48>}, {pipeline_mode = #tpu.pipeline_mode<synchronous>, transform_indices = @transform_3, window_bounds = array<i64: 32, 48>}]} {
    %c0 = arith.constant 0 : index
    %c0_0 = arith.constant 0 : index
    %0 = vector.load %arg1[%c0, %c0_0] : memref<32x24xf32, #tpu.memory_space<vmem>>, vector<32x24xf32>
    %c0_1 = arith.constant 0 : index
    %c0_2 = arith.constant 0 : index
    %1 = vector.load %arg2[%c0_1, %c0_2] : memref<24x48xf32, #tpu.memory_space<vmem>>, vector<24x48xf32>
    %cst = arith.constant dense<0.000000e+00> : vector<32x48xf32>
    %2 = tpu.matmul %0, %1, %cst {dimension_numbers = #tpu.dot_dimension_numbers<[1], [0], [0], [1], [0, 0, 1, 1], [], []>} : vector<32x24xf32>, vector<24x48xf32>, vector<32x48xf32> -> vector<32x48xf32>
    %c0_3 = arith.constant 0 : index
    %c0_4 = arith.constant 0 : index
    %3 = vector.load %arg3[%c0_3, %c0_4] : memref<1x48xf32, #tpu.memory_space<vmem>>, vector<1x48xf32>
    %4 = vector.broadcast %3 : vector<1x48xf32> to vector<32x48xf32>
    %5 = arith.addf %2, %4 : vector<32x48xf32>
    %c0_5 = arith.constant 0 : index
    %c0_6 = arith.constant 0 : index
    %6 = vector.load %arg4[%c0_5, %c0_6] : memref<32x48xf32, #tpu.memory_space<vmem>>, vector<32x48xf32>
    tpu.vector_store %arg4[%c0_5, %c0_6], %5 {strides = array<i32>} : memref<32x48xf32, #tpu.memory_space<vmem>>, vector<32x48xf32>,
    return
  }
  func.func @transform_0(%arg0: i32) -> (i32, i32) {
    %c0_i32 = arith.constant 0 : i32
    %c0_i32_0 = arith.constant 0 : i32
    %c0_i32_1 = arith.constant 0 : i32
    return %c0_i32, %c0_i32_0 : i32, i32
  }
  func.func @transform_1(%arg0: i32) -> (i32, i32) {
    %c0_i32 = arith.constant 0 : i32
    %c0_i32_0 = arith.constant 0 : i32
    %c0_i32_1 = arith.constant 0 : i32
    return %c0_i32, %c0_i32_0 : i32, i32
  }
  func.func @transform_2(%arg0: i32) -> (i32, i32) {
    %c0_i32 = arith.constant 0 : i32
    %c0_i32_0 = arith.constant 0 : i32
    %c0_i32_1 = arith.constant 0 : i32
    return %c0_i32, %c0_i32_0 : i32, i32
  }
  func.func @transform_3(%arg0: i32) -> (i32, i32) {
    %c0_i32 = arith.constant 0 : i32
    %c0_i32_0 = arith.constant 0 : i32
    %c0_i32_1 = arith.constant 0 : i32
    return %c0_i32, %c0_i32_0 : i32, i32
  }
}

module attributes {stable_mosaic.version = 11 : i64} {
  func.func @_matmul_bias_kernel(%arg0: i32, %arg1: memref<32x144xf32, #tpu.memory_space<vmem>>, %arg2: memref<144x24xf32, #tpu.memory_space<vmem>>, %arg3: memref<1x24xf32, #tpu.memory_space<vmem>>, %arg4: memref<32x24xf32, #tpu.memory_space<vmem>>) attributes {dimension_semantics = [#tpu.dimension_semantics<arbitrary>], iteration_bounds = array<i64: 1>, scalar_prefetch = 0 : i64, scratch_operands = 0 : i64, tpu.core_type = #tpu.core_type<tc>, window_params = [{pipeline_mode = #tpu.pipeline_mode<synchronous>, transform_indices = @transform_0, window_bounds = array<i64: 32, 144>}, {pipeline_mode = #tpu.pipeline_mode<synchronous>, transform_indices = @transform_1, window_bounds = array<i64: 144, 24>}, {pipeline_mode = #tpu.pipeline_mode<synchronous>, transform_indices = @transform_2, window_bounds = array<i64: 1, 24>}, {pipeline_mode = #tpu.pipeline_mode<synchronous>, transform_indices = @transform_3, window_bounds = array<i64: 32, 24>}]} {
    %c0 = arith.constant 0 : index
    %c0_0 = arith.constant 0 : index
    %0 = vector.load %arg1[%c0, %c0_0] : memref<32x144xf32, #tpu.memory_space<vmem>>, vector<32x144xf32>
    %c0_1 = arith.constant 0 : index
    %c0_2 = arith.constant 0 : index
    %1 = vector.load %arg2[%c0_1, %c0_2] : memref<144x24xf32, #tpu.memory_space<vmem>>, vector<144x24xf32>
    %cst = arith.constant dense<0.000000e+00> : vector<32x24xf32>
    %2 = tpu.matmul %0, %1, %cst {dimension_numbers = #tpu.dot_dimension_numbers<[1], [0], [0], [1], [0, 0, 1, 1], [], []>} : vector<32x144xf32>, vector<144x24xf32>, vector<32x24xf32> -> vector<32x24xf32>
    %c0_3 = arith.constant 0 : index
    %c0_4 = arith.constant 0 : index
    %3 = vector.load %arg3[%c0_3, %c0_4] : memref<1x24xf32, #tpu.memory_space<vmem>>, vector<1x24xf32>
    %4 = vector.broadcast %3 : vector<1x24xf32> to vector<32x24xf32>
    %5 = arith.addf %2, %4 : vector<32x24xf32>
    %c0_5 = arith.constant 0 : index
    %c0_6 = arith.constant 0 : index
    %6 = vector.load %arg4[%c0_5, %c0_6] : memref<32x24xf32, #tpu.memory_space<vmem>>, vector<32x24xf32>
    tpu.vector_store %arg4[%c0_5, %c0_6], %5 {strides = array<i32>} : memref<32x24xf32, #tpu.memory_space<vmem>>, vector<32x24xf32>,
    return
  }
  func.func @transform_0(%arg0: i32) -> (i32, i32) {
    %c0_i32 = arith.constant 0 : i32
    %c0_i32_0 = arith.constant 0 : i32
    %c0_i32_1 = arith.constant 0 : i32
    return %c0_i32, %c0_i32_0 : i32, i32
  }
  func.func @transform_1(%arg0: i32) -> (i32, i32) {
    %c0_i32 = arith.constant 0 : i32
    %c0_i32_0 = arith.constant 0 : i32
    %c0_i32_1 = arith.constant 0 : i32
    return %c0_i32, %c0_i32_0 : i32, i32
  }
  func.func @transform_2(%arg0: i32) -> (i32, i32) {
    %c0_i32 = arith.constant 0 : i32
    %c0_i32_0 = arith.constant 0 : i32
    %c0_i32_1 = arith.constant 0 : i32
    return %c0_i32, %c0_i32_0 : i32, i32
  }
  func.func @transform_3(%arg0: i32) -> (i32, i32) {
    %c0_i32 = arith.constant 0 : i32
    %c0_i32_0 = arith.constant 0 : i32
    %c0_i32_1 = arith.constant 0 : i32
    return %c0_i32, %c0_i32_0 : i32, i32
  }
}

module attributes {stable_mosaic.version = 11 : i64} {
  func.func @_matmul_bias_kernel(%arg0: i32, %arg1: memref<32x216xf32, #tpu.memory_space<vmem>>, %arg2: memref<216x24xf32, #tpu.memory_space<vmem>>, %arg3: memref<1x24xf32, #tpu.memory_space<vmem>>, %arg4: memref<32x24xf32, #tpu.memory_space<vmem>>) attributes {dimension_semantics = [#tpu.dimension_semantics<arbitrary>], iteration_bounds = array<i64: 1>, scalar_prefetch = 0 : i64, scratch_operands = 0 : i64, tpu.core_type = #tpu.core_type<tc>, window_params = [{pipeline_mode = #tpu.pipeline_mode<synchronous>, transform_indices = @transform_0, window_bounds = array<i64: 32, 216>}, {pipeline_mode = #tpu.pipeline_mode<synchronous>, transform_indices = @transform_1, window_bounds = array<i64: 216, 24>}, {pipeline_mode = #tpu.pipeline_mode<synchronous>, transform_indices = @transform_2, window_bounds = array<i64: 1, 24>}, {pipeline_mode = #tpu.pipeline_mode<synchronous>, transform_indices = @transform_3, window_bounds = array<i64: 32, 24>}]} {
    %c0 = arith.constant 0 : index
    %c0_0 = arith.constant 0 : index
    %0 = vector.load %arg1[%c0, %c0_0] : memref<32x216xf32, #tpu.memory_space<vmem>>, vector<32x216xf32>
    %c0_1 = arith.constant 0 : index
    %c0_2 = arith.constant 0 : index
    %1 = vector.load %arg2[%c0_1, %c0_2] : memref<216x24xf32, #tpu.memory_space<vmem>>, vector<216x24xf32>
    %cst = arith.constant dense<0.000000e+00> : vector<32x24xf32>
    %2 = tpu.matmul %0, %1, %cst {dimension_numbers = #tpu.dot_dimension_numbers<[1], [0], [0], [1], [0, 0, 1, 1], [], []>} : vector<32x216xf32>, vector<216x24xf32>, vector<32x24xf32> -> vector<32x24xf32>
    %c0_3 = arith.constant 0 : index
    %c0_4 = arith.constant 0 : index
    %3 = vector.load %arg3[%c0_3, %c0_4] : memref<1x24xf32, #tpu.memory_space<vmem>>, vector<1x24xf32>
    %4 = vector.broadcast %3 : vector<1x24xf32> to vector<32x24xf32>
    %5 = arith.addf %2, %4 : vector<32x24xf32>
    %c0_5 = arith.constant 0 : index
    %c0_6 = arith.constant 0 : index
    %6 = vector.load %arg4[%c0_5, %c0_6] : memref<32x24xf32, #tpu.memory_space<vmem>>, vector<32x24xf32>
    tpu.vector_store %arg4[%c0_5, %c0_6], %5 {strides = array<i32>} : memref<32x24xf32, #tpu.memory_space<vmem>>, vector<32x24xf32>,
    return
  }
  func.func @transform_0(%arg0: i32) -> (i32, i32) {
    %c0_i32 = arith.constant 0 : i32
    %c0_i32_0 = arith.constant 0 : i32
    %c0_i32_1 = arith.constant 0 : i32
    return %c0_i32, %c0_i32_0 : i32, i32
  }
  func.func @transform_1(%arg0: i32) -> (i32, i32) {
    %c0_i32 = arith.constant 0 : i32
    %c0_i32_0 = arith.constant 0 : i32
    %c0_i32_1 = arith.constant 0 : i32
    return %c0_i32, %c0_i32_0 : i32, i32
  }
  func.func @transform_2(%arg0: i32) -> (i32, i32) {
    %c0_i32 = arith.constant 0 : i32
    %c0_i32_0 = arith.constant 0 : i32
    %c0_i32_1 = arith.constant 0 : i32
    return %c0_i32, %c0_i32_0 : i32, i32
  }
  func.func @transform_3(%arg0: i32) -> (i32, i32) {
    %c0_i32 = arith.constant 0 : i32
    %c0_i32_0 = arith.constant 0 : i32
    %c0_i32_1 = arith.constant 0 : i32
    return %c0_i32, %c0_i32_0 : i32, i32
  }
}

module attributes {stable_mosaic.version = 11 : i64} {
  func.func @_matmul_bias_kernel(%arg0: i32, %arg1: memref<32x400xf32, #tpu.memory_space<vmem>>, %arg2: memref<400x24xf32, #tpu.memory_space<vmem>>, %arg3: memref<1x24xf32, #tpu.memory_space<vmem>>, %arg4: memref<32x24xf32, #tpu.memory_space<vmem>>) attributes {dimension_semantics = [#tpu.dimension_semantics<arbitrary>], iteration_bounds = array<i64: 1>, scalar_prefetch = 0 : i64, scratch_operands = 0 : i64, tpu.core_type = #tpu.core_type<tc>, window_params = [{pipeline_mode = #tpu.pipeline_mode<synchronous>, transform_indices = @transform_0, window_bounds = array<i64: 32, 400>}, {pipeline_mode = #tpu.pipeline_mode<synchronous>, transform_indices = @transform_1, window_bounds = array<i64: 400, 24>}, {pipeline_mode = #tpu.pipeline_mode<synchronous>, transform_indices = @transform_2, window_bounds = array<i64: 1, 24>}, {pipeline_mode = #tpu.pipeline_mode<synchronous>, transform_indices = @transform_3, window_bounds = array<i64: 32, 24>}]} {
    %c0 = arith.constant 0 : index
    %c0_0 = arith.constant 0 : index
    %0 = vector.load %arg1[%c0, %c0_0] : memref<32x400xf32, #tpu.memory_space<vmem>>, vector<32x400xf32>
    %c0_1 = arith.constant 0 : index
    %c0_2 = arith.constant 0 : index
    %1 = vector.load %arg2[%c0_1, %c0_2] : memref<400x24xf32, #tpu.memory_space<vmem>>, vector<400x24xf32>
    %cst = arith.constant dense<0.000000e+00> : vector<32x24xf32>
    %2 = tpu.matmul %0, %1, %cst {dimension_numbers = #tpu.dot_dimension_numbers<[1], [0], [0], [1], [0, 0, 1, 1], [], []>} : vector<32x400xf32>, vector<400x24xf32>, vector<32x24xf32> -> vector<32x24xf32>
    %c0_3 = arith.constant 0 : index
    %c0_4 = arith.constant 0 : index
    %3 = vector.load %arg3[%c0_3, %c0_4] : memref<1x24xf32, #tpu.memory_space<vmem>>, vector<1x24xf32>
    %4 = vector.broadcast %3 : vector<1x24xf32> to vector<32x24xf32>
    %5 = arith.addf %2, %4 : vector<32x24xf32>
    %c0_5 = arith.constant 0 : index
    %c0_6 = arith.constant 0 : index
    %6 = vector.load %arg4[%c0_5, %c0_6] : memref<32x24xf32, #tpu.memory_space<vmem>>, vector<32x24xf32>
    tpu.vector_store %arg4[%c0_5, %c0_6], %5 {strides = array<i32>} : memref<32x24xf32, #tpu.memory_space<vmem>>, vector<32x24xf32>,
    return
  }
  func.func @transform_0(%arg0: i32) -> (i32, i32) {
    %c0_i32 = arith.constant 0 : i32
    %c0_i32_0 = arith.constant 0 : i32
    %c0_i32_1 = arith.constant 0 : i32
    return %c0_i32, %c0_i32_0 : i32, i32
  }
  func.func @transform_1(%arg0: i32) -> (i32, i32) {
    %c0_i32 = arith.constant 0 : i32
    %c0_i32_0 = arith.constant 0 : i32
    %c0_i32_1 = arith.constant 0 : i32
    return %c0_i32, %c0_i32_0 : i32, i32
  }
  func.func @transform_2(%arg0: i32) -> (i32, i32) {
    %c0_i32 = arith.constant 0 : i32
    %c0_i32_0 = arith.constant 0 : i32
    %c0_i32_1 = arith.constant 0 : i32
    return %c0_i32, %c0_i32_0 : i32, i32
  }
  func.func @transform_3(%arg0: i32) -> (i32, i32) {
    %c0_i32 = arith.constant 0 : i32
    %c0_i32_0 = arith.constant 0 : i32
    %c0_i32_1 = arith.constant 0 : i32
    return %c0_i32, %c0_i32_0 : i32, i32
  }
}

module attributes {stable_mosaic.version = 11 : i64} {
  func.func @_pool_kernel(%arg0: i32, %arg1: memref<9x8x80xf32, #tpu.memory_space<vmem>>, %arg2: memref<8x80xf32, #tpu.memory_space<vmem>>) attributes {dimension_semantics = [#tpu.dimension_semantics<arbitrary>], iteration_bounds = array<i64: 1>, scalar_prefetch = 0 : i64, scratch_operands = 0 : i64, tpu.core_type = #tpu.core_type<tc>, window_params = [{pipeline_mode = #tpu.pipeline_mode<synchronous>, transform_indices = @transform_0, window_bounds = array<i64: 9, 8, 80>}, {pipeline_mode = #tpu.pipeline_mode<synchronous>, transform_indices = @transform_1, window_bounds = array<i64: 8, 80>}]} {
    %c0 = arith.constant 0 : index
    %c0_0 = arith.constant 0 : index
    %c0_1 = arith.constant 0 : index
    %0 = vector.load %arg1[%c0, %c0_0, %c0_1] : memref<9x8x80xf32, #tpu.memory_space<vmem>>, vector<1x8x80xf32>
    %1 = vector.shape_cast %0 : vector<1x8x80xf32> to vector<8x80xf32>
    %c1 = arith.constant 1 : index
    %c0_2 = arith.constant 0 : index
    %c0_3 = arith.constant 0 : index
    %2 = vector.load %arg1[%c1, %c0_2, %c0_3] : memref<9x8x80xf32, #tpu.memory_space<vmem>>, vector<1x8x80xf32>
    %3 = vector.shape_cast %2 : vector<1x8x80xf32> to vector<8x80xf32>
    %4 = arith.addf %1, %3 : vector<8x80xf32>
    %c2 = arith.constant 2 : index
    %c0_4 = arith.constant 0 : index
    %c0_5 = arith.constant 0 : index
    %5 = vector.load %arg1[%c2, %c0_4, %c0_5] : memref<9x8x80xf32, #tpu.memory_space<vmem>>, vector<1x8x80xf32>
    %6 = vector.shape_cast %5 : vector<1x8x80xf32> to vector<8x80xf32>
    %7 = arith.addf %4, %6 : vector<8x80xf32>
    %c3 = arith.constant 3 : index
    %c0_6 = arith.constant 0 : index
    %c0_7 = arith.constant 0 : index
    %8 = vector.load %arg1[%c3, %c0_6, %c0_7] : memref<9x8x80xf32, #tpu.memory_space<vmem>>, vector<1x8x80xf32>
    %9 = vector.shape_cast %8 : vector<1x8x80xf32> to vector<8x80xf32>
    %10 = arith.addf %7, %9 : vector<8x80xf32>
    %c4 = arith.constant 4 : index
    %c0_8 = arith.constant 0 : index
    %c0_9 = arith.constant 0 : index
    %11 = vector.load %arg1[%c4, %c0_8, %c0_9] : memref<9x8x80xf32, #tpu.memory_space<vmem>>, vector<1x8x80xf32>
    %12 = vector.shape_cast %11 : vector<1x8x80xf32> to vector<8x80xf32>
    %13 = arith.addf %10, %12 : vector<8x80xf32>
    %c5 = arith.constant 5 : index
    %c0_10 = arith.constant 0 : index
    %c0_11 = arith.constant 0 : index
    %14 = vector.load %arg1[%c5, %c0_10, %c0_11] : memref<9x8x80xf32, #tpu.memory_space<vmem>>, vector<1x8x80xf32>
    %15 = vector.shape_cast %14 : vector<1x8x80xf32> to vector<8x80xf32>
    %16 = arith.addf %13, %15 : vector<8x80xf32>
    %c6 = arith.constant 6 : index
    %c0_12 = arith.constant 0 : index
    %c0_13 = arith.constant 0 : index
    %17 = vector.load %arg1[%c6, %c0_12, %c0_13] : memref<9x8x80xf32, #tpu.memory_space<vmem>>, vector<1x8x80xf32>
    %18 = vector.shape_cast %17 : vector<1x8x80xf32> to vector<8x80xf32>
    %19 = arith.addf %16, %18 : vector<8x80xf32>
    %c7 = arith.constant 7 : index
    %c0_14 = arith.constant 0 : index
    %c0_15 = arith.constant 0 : index
    %20 = vector.load %arg1[%c7, %c0_14, %c0_15] : memref<9x8x80xf32, #tpu.memory_space<vmem>>, vector<1x8x80xf32>
    %21 = vector.shape_cast %20 : vector<1x8x80xf32> to vector<8x80xf32>
    %22 = arith.addf %19, %21 : vector<8x80xf32>
    %c8 = arith.constant 8 : index
    %c0_16 = arith.constant 0 : index
    %c0_17 = arith.constant 0 : index
    %23 = vector.load %arg1[%c8, %c0_16, %c0_17] : memref<9x8x80xf32, #tpu.memory_space<vmem>>, vector<1x8x80xf32>
    %24 = vector.shape_cast %23 : vector<1x8x80xf32> to vector<8x80xf32>
    %25 = arith.addf %22, %24 : vector<8x80xf32>
    %cst = arith.constant 0.111111112 : f32
    %26 = vector.broadcast %cst : f32 to vector<8x80xf32>
    %27 = arith.mulf %25, %26 : vector<8x80xf32>
    %c0_18 = arith.constant 0 : index
    %c0_19 = arith.constant 0 : index
    %28 = vector.load %arg2[%c0_18, %c0_19] : memref<8x80xf32, #tpu.memory_space<vmem>>, vector<8x80xf32>
    tpu.vector_store %arg2[%c0_18, %c0_19], %27 {strides = array<i32>} : memref<8x80xf32, #tpu.memory_space<vmem>>, vector<8x80xf32>,
    return
  }
  func.func @transform_0(%arg0: i32) -> (i32, i32, i32) {
    %c0_i32 = arith.constant 0 : i32
    %c0_i32_0 = arith.constant 0 : i32
    %c0_i32_1 = arith.constant 0 : i32
    %c0_i32_2 = arith.constant 0 : i32
    return %c0_i32, %c0_i32_0, %c0_i32_1 : i32, i32, i32
  }
  func.func @transform_1(%arg0: i32) -> (i32, i32) {
    %c0_i32 = arith.constant 0 : i32
    %c0_i32_0 = arith.constant 0 : i32
    %c0_i32_1 = arith.constant 0 : i32
    return %c0_i32, %c0_i32_0 : i32, i32
  }
}

module attributes {stable_mosaic.version = 11 : i64} {
  func.func @_matmul_bias_kernel(%arg0: i32, %arg1: memref<32x24xf32, #tpu.memory_space<vmem>>, %arg2: memref<24x24xf32, #tpu.memory_space<vmem>>, %arg3: memref<1x24xf32, #tpu.memory_space<vmem>>, %arg4: memref<32x24xf32, #tpu.memory_space<vmem>>) attributes {dimension_semantics = [#tpu.dimension_semantics<arbitrary>], iteration_bounds = array<i64: 1>, scalar_prefetch = 0 : i64, scratch_operands = 0 : i64, tpu.core_type = #tpu.core_type<tc>, window_params = [{pipeline_mode = #tpu.pipeline_mode<synchronous>, transform_indices = @transform_0, window_bounds = array<i64: 32, 24>}, {pipeline_mode = #tpu.pipeline_mode<synchronous>, transform_indices = @transform_1, window_bounds = array<i64: 24, 24>}, {pipeline_mode = #tpu.pipeline_mode<synchronous>, transform_indices = @transform_2, window_bounds = array<i64: 1, 24>}, {pipeline_mode = #tpu.pipeline_mode<synchronous>, transform_indices = @transform_3, window_bounds = array<i64: 32, 24>}]} {
    %c0 = arith.constant 0 : index
    %c0_0 = arith.constant 0 : index
    %0 = vector.load %arg1[%c0, %c0_0] : memref<32x24xf32, #tpu.memory_space<vmem>>, vector<32x24xf32>
    %c0_1 = arith.constant 0 : index
    %c0_2 = arith.constant 0 : index
    %1 = vector.load %arg2[%c0_1, %c0_2] : memref<24x24xf32, #tpu.memory_space<vmem>>, vector<24x24xf32>
    %cst = arith.constant dense<0.000000e+00> : vector<32x24xf32>
    %2 = tpu.matmul %0, %1, %cst {dimension_numbers = #tpu.dot_dimension_numbers<[1], [0], [0], [1], [0, 0, 1, 1], [], []>} : vector<32x24xf32>, vector<24x24xf32>, vector<32x24xf32> -> vector<32x24xf32>
    %c0_3 = arith.constant 0 : index
    %c0_4 = arith.constant 0 : index
    %3 = vector.load %arg3[%c0_3, %c0_4] : memref<1x24xf32, #tpu.memory_space<vmem>>, vector<1x24xf32>
    %4 = vector.broadcast %3 : vector<1x24xf32> to vector<32x24xf32>
    %5 = arith.addf %2, %4 : vector<32x24xf32>
    %c0_5 = arith.constant 0 : index
    %c0_6 = arith.constant 0 : index
    %6 = vector.load %arg4[%c0_5, %c0_6] : memref<32x24xf32, #tpu.memory_space<vmem>>, vector<32x24xf32>
    tpu.vector_store %arg4[%c0_5, %c0_6], %5 {strides = array<i32>} : memref<32x24xf32, #tpu.memory_space<vmem>>, vector<32x24xf32>,
    return
  }
  func.func @transform_0(%arg0: i32) -> (i32, i32) {
    %c0_i32 = arith.constant 0 : i32
    %c0_i32_0 = arith.constant 0 : i32
    %c0_i32_1 = arith.constant 0 : i32
    return %c0_i32, %c0_i32_0 : i32, i32
  }
  func.func @transform_1(%arg0: i32) -> (i32, i32) {
    %c0_i32 = arith.constant 0 : i32
    %c0_i32_0 = arith.constant 0 : i32
    %c0_i32_1 = arith.constant 0 : i32
    return %c0_i32, %c0_i32_0 : i32, i32
  }
  func.func @transform_2(%arg0: i32) -> (i32, i32) {
    %c0_i32 = arith.constant 0 : i32
    %c0_i32_0 = arith.constant 0 : i32
    %c0_i32_1 = arith.constant 0 : i32
    return %c0_i32, %c0_i32_0 : i32, i32
  }
  func.func @transform_3(%arg0: i32) -> (i32, i32) {
    %c0_i32 = arith.constant 0 : i32
    %c0_i32_0 = arith.constant 0 : i32
    %c0_i32_1 = arith.constant 0 : i32
    return %c0_i32, %c0_i32_0 : i32, i32
  }
}

module attributes {stable_mosaic.version = 11 : i64} {
  func.func @_matmul_bias_kernel(%arg0: i32, %arg1: memref<2x1408xf32, #tpu.memory_space<vmem>>, %arg2: memref<1408x10xf32, #tpu.memory_space<vmem>>, %arg3: memref<1x10xf32, #tpu.memory_space<vmem>>, %arg4: memref<2x10xf32, #tpu.memory_space<vmem>>) attributes {dimension_semantics = [#tpu.dimension_semantics<arbitrary>], iteration_bounds = array<i64: 1>, scalar_prefetch = 0 : i64, scratch_operands = 0 : i64, tpu.core_type = #tpu.core_type<tc>, window_params = [{pipeline_mode = #tpu.pipeline_mode<synchronous>, transform_indices = @transform_0, window_bounds = array<i64: 2, 1408>}, {pipeline_mode = #tpu.pipeline_mode<synchronous>, transform_indices = @transform_1, window_bounds = array<i64: 1408, 10>}, {pipeline_mode = #tpu.pipeline_mode<synchronous>, transform_indices = @transform_2, window_bounds = array<i64: 1, 10>}, {pipeline_mode = #tpu.pipeline_mode<synchronous>, transform_indices = @transform_3, window_bounds = array<i64: 2, 10>}]} {
    %c0 = arith.constant 0 : index
    %c0_0 = arith.constant 0 : index
    %0 = vector.load %arg1[%c0, %c0_0] : memref<2x1408xf32, #tpu.memory_space<vmem>>, vector<2x1408xf32>
    %c0_1 = arith.constant 0 : index
    %c0_2 = arith.constant 0 : index
    %1 = vector.load %arg2[%c0_1, %c0_2] : memref<1408x10xf32, #tpu.memory_space<vmem>>, vector<1408x10xf32>
    %cst = arith.constant dense<0.000000e+00> : vector<2x10xf32>
    %2 = tpu.matmul %0, %1, %cst {dimension_numbers = #tpu.dot_dimension_numbers<[1], [0], [0], [1], [0, 0, 1, 1], [], []>} : vector<2x1408xf32>, vector<1408x10xf32>, vector<2x10xf32> -> vector<2x10xf32>
    %c0_3 = arith.constant 0 : index
    %c0_4 = arith.constant 0 : index
    %3 = vector.load %arg3[%c0_3, %c0_4] : memref<1x10xf32, #tpu.memory_space<vmem>>, vector<1x10xf32>
    %4 = vector.broadcast %3 : vector<1x10xf32> to vector<2x10xf32>
    %5 = arith.addf %2, %4 : vector<2x10xf32>
    %c0_5 = arith.constant 0 : index
    %c0_6 = arith.constant 0 : index
    %6 = vector.load %arg4[%c0_5, %c0_6] : memref<2x10xf32, #tpu.memory_space<vmem>>, vector<2x10xf32>
    tpu.vector_store %arg4[%c0_5, %c0_6], %5 {strides = array<i32>} : memref<2x10xf32, #tpu.memory_space<vmem>>, vector<2x10xf32>,
    return
  }
  func.func @transform_0(%arg0: i32) -> (i32, i32) {
    %c0_i32 = arith.constant 0 : i32
    %c0_i32_0 = arith.constant 0 : i32
    %c0_i32_1 = arith.constant 0 : i32
    return %c0_i32, %c0_i32_0 : i32, i32
  }
  func.func @transform_1(%arg0: i32) -> (i32, i32) {
    %c0_i32 = arith.constant 0 : i32
    %c0_i32_0 = arith.constant 0 : i32
    %c0_i32_1 = arith.constant 0 : i32
    return %c0_i32, %c0_i32_0 : i32, i32
  }
  func.func @transform_2(%arg0: i32) -> (i32, i32) {
    %c0_i32 = arith.constant 0 : i32
    %c0_i32_0 = arith.constant 0 : i32
    %c0_i32_1 = arith.constant 0 : i32
    return %c0_i32, %c0_i32_0 : i32, i32
  }
  func.func @transform_3(%arg0: i32) -> (i32, i32) {
    %c0_i32 = arith.constant 0 : i32
    %c0_i32_0 = arith.constant 0 : i32
    %c0_i32_1 = arith.constant 0 : i32
    return %c0_i32, %c0_i32_0 : i32, i32
  }
}

</mosaic_0001>

<llo_original>
// kernel: net_forward.17
$region0: #{net_forward.17}
  #allocation0 [shape = 'u32[]', space=smem, size = 0x4, offset = 0x4, fixed_abs, tag = 'smem constant byte address 0x4 - core index']
  #allocation1 [shape = 'u32[144,128]{1,0:T(1,128)}', space=vmem, size = 0x12000, scoped, tag = 'internal scratch']
  %s0 = inlined_call_operand.vmem [shape: f32[1152,32], index: 0, kind: input, shape index: {}]
  %s1 = inlined_call_operand.vmem [shape: f32[32,10], index: 1, kind: input, shape index: {}]
  %s2 = inlined_call_operand.vmem [shape: f32[1,10], index: 2, kind: input, shape index: {}]
  %s3 = inlined_call_operand.vmem [shape: f32[1152,10], index: 3, kind: output, shape index: {}]
  %s4 = sld [smem:[#allocation0]]
  $region22: #{net_forward.17} parent=0
    _
  %s6 = ssub.s32 1, %s4
  %s7 = scalar_select 0, %s6, %s4
  // Predicated region
  $region2: #{net_forward.17} parent=0 // pred_check
    _
  $region3: #{net_forward.17} parent=0 // pred_check_branch
    %9 = sbr.rel (0) target = $region5
  $region4: #{net_forward.17} parent=0 // pred_region
    _
  $region5: #{net_forward.17} parent=0 // pred_fallthru
    _
  // Predicated region
  $region6: #{net_forward.17} parent=0 // pred_check
    _
  $region7: #{net_forward.17} parent=0 // pred_check_branch
    %11 = sbr.rel (0) target = $region9
  $region8: #{net_forward.17} parent=0 // pred_region
    _
  $region9: #{net_forward.17} parent=0 // pred_fallthru
    _
  // Predicated region
  $region10: #{net_forward.17} parent=0 // pred_check
    _
  $region11: #{net_forward.17} parent=0 // pred_check_branch
    %13 = sbr.rel (0) target = $region13
  $region12: #{net_forward.17} parent=0 // pred_region
    _
  $region13: #{net_forward.17} parent=0 // pred_fallthru
    _
  %v14 = vld [vmem:[%s0] sm:$0xff]
  %v15 = vld [vmem:[%s0 + $0x8] sm:$0xff]
  %v16 = vld [vmem:[%s0 + $0x10] sm:$0xff]
  %v17 = vld [vmem:[%s0 + $0x18] sm:$0xff]
  %v18 = vld [vmem:[%s0 + $0x20] sm:$0xff]
  %v19 = vld [vmem:[%s0 + $0x28] sm:$0xff]
  %v20 = vld [vmem:[%s0 + $0x30] sm:$0xff]
  %v21 = vld [vmem:[%s0 + $0x38] sm:$0xff]
  %v22 = vld [vmem:[%s0 + $0x40] sm:$0xff]
  %v23 = vld [vmem:[%s0 + $0x48] sm:$0xff]
  %v24 = vld [vmem:[%s0 + $0x50] sm:$0xff]
  %v25 = vld [vmem:[%s0 + $0x58] sm:$0xff]
  %v26 = vld [vmem:[%s0 + $0x60] sm:$0xff]
  %v27 = vld [vmem:[%s0 + $0x68] sm:$0xff]
  %v28 = vld [vmem:[%s0 + $0x70] sm:$0xff]
  %v29 = vld [vmem:[%s0 + $0x78] sm:$0xff]
  %v30 = vld [vmem:[%s0 + $0x80] sm:$0xff]
  %v31 = vld [vmem:[%s0 + $0x88] sm:$0xff]
  %v32 = vld [vmem:[%s0 + $0x90] sm:$0xff]
  %v33 = vld [vmem:[%s0 + $0x98] sm:$0xff]
  %v34 = vld [vmem:[%s0 + $0xa0] sm:$0xff]
  %v35 = vld [vmem:[%s0 + $0xa8] sm:$0xff]
  %v36 = vld [vmem:[%s0 + $0xb0] sm:$0xff]
  %v37 = vld [vmem:[%s0 + $0xb8] sm:$0xff]
  %v38 = vld [vmem:[%s0 + $0xc0] sm:$0xff]
  %v39 = vld [vmem:[%s0 + $0xc8] sm:$0xff]
  %v40 = vld [vmem:[%s0 + $0xd0] sm:$0xff]
  %v41 = vld [vmem:[%s0 + $0xd8] sm:$0xff]
  %v42 = vld [vmem:[%s0 + $0xe0] sm:$0xff]
  %v43 = vld [vmem:[%s0 + $0xe8] sm:$0xff]
  %v44 = vld [vmem:[%s0 + $0xf0] sm:$0xff]
  %v45 = vld [vmem:[%s0 + $0xf8] sm:$0xff]
  %v46 = vld [vmem:[%s0 + $0x100] sm:$0xff]
  %v47 = vld [vmem:[%s0 + $0x108] sm:$0xff]
  %v48 = vld [vmem:[%s0 + $0x110] sm:$0xff]
  %v49 = vld [vmem:[%s0 + $0x118] sm:$0xff]
  %v50 = vld [vmem:[%s0 + $0x120] sm:$0xff]
  %v51 = vld [vmem:[%s0 + $0x128] sm:$0xff]
  %v52 = vld [vmem:[%s0 + $0x130] sm:$0xff]
  %v53 = vld [vmem:[%s0 + $0x138] sm:$0xff]
  %v54 = vld [vmem:[%s0 + $0x140] sm:$0xff]
  %v55 = vld [vmem:[%s0 + $0x148] sm:$0xff]
  %v56 = vld [vmem:[%s0 + $0x150] sm:$0xff]
  %v57 = vld [vmem:[%s0 + $0x158] sm:$0xff]
  %v58 = vld [vmem:[%s0 + $0x160] sm:$0xff]
  %v59 = vld [vmem:[%s0 + $0x168] sm:$0xff]
  %v60 = vld [vmem:[%s0 + $0x170] sm:$0xff]
  %v61 = vld [vmem:[%s0 + $0x178] sm:$0xff]
  %v62 = vld [vmem:[%s0 + $0x180] sm:$0xff]
  %v63 = vld [vmem:[%s0 + $0x188] sm:$0xff]
  %v64 = vld [vmem:[%s0 + $0x190] sm:$0xff]
  %v65 = vld [vmem:[%s0 + $0x198] sm:$0xff]
  %v66 = vld [vmem:[%s0 + $0x1a0] sm:$0xff]
  %v67 = vld [vmem:[%s0 + $0x1a8] sm:$0xff]
  %v68 = vld [vmem:[%s0 + $0x1b0] sm:$0xff]
  %v69 = vld [vmem:[%s0 + $0x1b8] sm:$0xff]
  %v70 = vld [vmem:[%s0 + $0x1c0] sm:$0xff]
  %v71 = vld [vmem:[%s0 + $0x1c8] sm:$0xff]
  %v72 = vld [vmem:[%s0 + $0x1d0] sm:$0xff]
  %v73 = vld [vmem:[%s0 + $0x1d8] sm:$0xff]
  %v74 = vld [vmem:[%s0 + $0x1e0] sm:$0xff]
  %v75 = vld [vmem:[%s0 + $0x1e8] sm:$0xff]
  %v76 = vld [vmem:[%s0 + $0x1f0] sm:$0xff]
  %v77 = vld [vmem:[%s0 + $0x1f8] sm:$0xff]
  %v78 = vld [vmem:[%s0 + $0x200] sm:$0xff]
  %v79 = vld [vmem:[%s0 + $0x208] sm:$0xff]
  %v80 = vld [vmem:[%s0 + $0x210] sm:$0xff]
  %v81 = vld [vmem:[%s0 + $0x218] sm:$0xff]
  %v82 = vld [vmem:[%s0 + $0x220] sm:$0xff]
  %v83 = vld [vmem:[%s0 + $0x228] sm:$0xff]
  %v84 = vld [vmem:[%s0 + $0x230] sm:$0xff]
  %v85 = vld [vmem:[%s0 + $0x238] sm:$0xff]
  %v86 = vld [vmem:[%s0 + $0x240] sm:$0xff]
  %v87 = vld [vmem:[%s0 + $0x248] sm:$0xff]
  %v88 = vld [vmem:[%s0 + $0x250] sm:$0xff]
  %v89 = vld [vmem:[%s0 + $0x258] sm:$0xff]
  %v90 = vld [vmem:[%s0 + $0x260] sm:$0xff]
  %v91 = vld [vmem:[%s0 + $0x268] sm:$0xff]
  %v92 = vld [vmem:[%s0 + $0x270] sm:$0xff]
  %v93 = vld [vmem:[%s0 + $0x278] sm:$0xff]
  %v94 = vld [vmem:[%s0 + $0x280] sm:$0xff]
  %v95 = vld [vmem:[%s0 + $0x288] sm:$0xff]
  %v96 = vld [vmem:[%s0 + $0x290] sm:$0xff]
  %v97 = vld [vmem:[%s0 + $0x298] sm:$0xff]
  %v98 = vld [vmem:[%s0 + $0x2a0] sm:$0xff]
  %v99 = vld [vmem:[%s0 + $0x2a8] sm:$0xff]
  %v100 = vld [vmem:[%s0 + $0x2b0] sm:$0xff]
  %v101 = vld [vmem:[%s0 + $0x2b8] sm:$0xff]
  %v102 = vld [vmem:[%s0 + $0x2c0] sm:$0xff]
  %v103 = vld [vmem:[%s0 + $0x2c8] sm:$0xff]
  %v104 = vld [vmem:[%s0 + $0x2d0] sm:$0xff]
  %v105 = vld [vmem:[%s0 + $0x2d8] sm:$0xff]
  %v106 = vld [vmem:[%s0 + $0x2e0] sm:$0xff]
  %v107 = vld [vmem:[%s0 + $0x2e8] sm:$0xff]
  %v108 = vld [vmem:[%s0 + $0x2f0] sm:$0xff]
  %v109 = vld [vmem:[%s0 + $0x2f8] sm:$0xff]
  %v110 = vld [vmem:[%s0 + $0x300] sm:$0xff]
  %v111 = vld [vmem:[%s0 + $0x308] sm:$0xff]
  %v112 = vld [vmem:[%s0 + $0x310] sm:$0xff]
  %v113 = vld [vmem:[%s0 + $0x318] sm:$0xff]
  %v114 = vld [vmem:[%s0 + $0x320] sm:$0xff]
  %v115 = vld [vmem:[%s0 + $0x328] sm:$0xff]
  %v116 = vld [vmem:[%s0 + $0x330] sm:$0xff]
  %v117 = vld [vmem:[%s0 + $0x338] sm:$0xff]
  %v118 = vld [vmem:[%s0 + $0x340] sm:$0xff]
  %v119 = vld [vmem:[%s0 + $0x348] sm:$0xff]
  %v120 = vld [vmem:[%s0 + $0x350] sm:$0xff]
  %v121 = vld [vmem:[%s0 + $0x358] sm:$0xff]
  %v122 = vld [vmem:[%s0 + $0x360] sm:$0xff]
  %v123 = vld [vmem:[%s0 + $0x368] sm:$0xff]
  %v124 = vld [vmem:[%s0 + $0x370] sm:$0xff]
  %v125 = vld [vmem:[%s0 + $0x378] sm:$0xff]
  %v126 = vld [vmem:[%s0 + $0x380] sm:$0xff]
  %v127 = vld [vmem:[%s0 + $0x388] sm:$0xff]
  %v128 = vld [vmem:[%s0 + $0x390] sm:$0xff]
  %v129 = vld [vmem:[%s0 + $0x398] sm:$0xff]
  %v130 = vld [vmem:[%s0 + $0x3a0] sm:$0xff]
  %v131 = vld [vmem:[%s0 + $0x3a8] sm:$0xff]
  %v132 = vld [vmem:[%s0 + $0x3b0] sm:$0xff]
  %v133 = vld [vmem:[%s0 + $0x3b8] sm:$0xff]
  %v134 = vld [vmem:[%s0 + $0x3c0] sm:$0xff]
  %v135 = vld [vmem:[%s0 + $0x3c8] sm:$0xff]
  %v136 = vld [vmem:[%s0 + $0x3d0] sm:$0xff]
  %v137 = vld [vmem:[%s0 + $0x3d8] sm:$0xff]
  %v138 = vld [vmem:[%s0 + $0x3e0] sm:$0xff]
  %v139 = vld [vmem:[%s0 + $0x3e8] sm:$0xff]
  %v140 = vld [vmem:[%s0 + $0x3f0] sm:$0xff]
  %v141 = vld [vmem:[%s0 + $0x3f8] sm:$0xff]
  %v142 = vld [vmem:[%s0 + $0x400] sm:$0xff]
  %v143 = vld [vmem:[%s0 + $0x408] sm:$0xff]
  %v144 = vld [vmem:[%s0 + $0x410] sm:$0xff]
  %v145 = vld [vmem:[%s0 + $0x418] sm:$0xff]
  %v146 = vld [vmem:[%s0 + $0x420] sm:$0xff]
  %v147 = vld [vmem:[%s0 + $0x428] sm:$0xff]
  %v148 = vld [vmem:[%s0 + $0x430] sm:$0xff]
  %v149 = vld [vmem:[%s0 + $0x438] sm:$0xff]
  %v150 = vld [vmem:[%s0 + $0x440] sm:$0xff]
  %v151 = vld [vmem:[%s0 + $0x448] sm:$0xff]
  %v152 = vld [vmem:[%s0 + $0x450] sm:$0xff]
  %v153 = vld [vmem:[%s0 + $0x458] sm:$0xff]
  %v154 = vld [vmem:[%s0 + $0x460] sm:$0xff]
  %v155 = vld [vmem:[%s0 + $0x468] sm:$0xff]
  %v156 = vld [vmem:[%s0 + $0x470] sm:$0xff]
  %v157 = vld [vmem:[%s0 + $0x478] sm:$0xff]
  %v158 = vld [vmem:[%s1] sm:$0xff]
  %v159 = vld [vmem:[%s1 + $0x8] sm:$0xff]
  %v160 = vld [vmem:[%s1 + $0x10] sm:$0xff]
  %v161 = vld [vmem:[%s1 + $0x18] sm:$0xff]
  %v162 = vld [vmem:[%s2] sm:$0x1]
  %v164 = vlaneseq
  %v165 = vshrl.u32 %v164, 7
  %v166 = vsub.s32 0, %v165
  %v167 = vrot.slane %v162, %v166
  %vm169 = vcmask 261120
  %v171 = vsel %vm169, %v14, 0
  %v174 = vsel %vm169, %v15, 0
  %v177 = vsel %vm169, %v16, 0
  %v180 = vsel %vm169, %v17, 0
  %v183 = vsel %vm169, %v18, 0
  %v186 = vsel %vm169, %v19, 0
  %v189 = vsel %vm169, %v20, 0
  %v192 = vsel %vm169, %v21, 0
  %v195 = vsel %vm169, %v22, 0
  %v198 = vsel %vm169, %v23, 0
  %v201 = vsel %vm169, %v24, 0
  %v204 = vsel %vm169, %v25, 0
  %v207 = vsel %vm169, %v26, 0
  %v210 = vsel %vm169, %v27, 0
  %v213 = vsel %vm169, %v28, 0
  %v216 = vsel %vm169, %v29, 0
  %v219 = vsel %vm169, %v30, 0
  %v222 = vsel %vm169, %v31, 0
  %v225 = vsel %vm169, %v32, 0
  %v228 = vsel %vm169, %v33, 0
  %v231 = vsel %vm169, %v34, 0
  %v234 = vsel %vm169, %v35, 0
  %v237 = vsel %vm169, %v36, 0
  %v240 = vsel %vm169, %v37, 0
  %v243 = vsel %vm169, %v38, 0
  %v246 = vsel %vm169, %v39, 0
  %v249 = vsel %vm169, %v40, 0
  %v252 = vsel %vm169, %v41, 0
  %v255 = vsel %vm169, %v42, 0
  %v258 = vsel %vm169, %v43, 0
  %v261 = vsel %vm169, %v44, 0
  %v264 = vsel %vm169, %v45, 0
  %v267 = vsel %vm169, %v46, 0
  %v270 = vsel %vm169, %v47, 0
  %v273 = vsel %vm169, %v48, 0
  %v276 = vsel %vm169, %v49, 0
  %v279 = vsel %vm169, %v50, 0
  %v282 = vsel %vm169, %v51, 0
  %v285 = vsel %vm169, %v52, 0
  %v288 = vsel %vm169, %v53, 0
  %v291 = vsel %vm169, %v54, 0
  %v294 = vsel %vm169, %v55, 0
  %v297 = vsel %vm169, %v56, 0
  %v300 = vsel %vm169, %v57, 0
  %v303 = vsel %vm169, %v58, 0
  %v306 = vsel %vm169, %v59, 0
  %v309 = vsel %vm169, %v60, 0
  %v312 = vsel %vm169, %v61, 0
  %v315 = vsel %vm169, %v62, 0
  %v318 = vsel %vm169, %v63, 0
  %v321 = vsel %vm169, %v64, 0
  %v324 = vsel %vm169, %v65, 0
  %v327 = vsel %vm169, %v66, 0
  %v330 = vsel %vm169, %v67, 0
  %v333 = vsel %vm169, %v68, 0
  %v336 = vsel %vm169, %v69, 0
  %v339 = vsel %vm169, %v70, 0
  %v342 = vsel %vm169, %v71, 0
  %v345 = vsel %vm169, %v72, 0
  %v348 = vsel %vm169, %v73, 0
  %v351 = vsel %vm169, %v74, 0
  %v354 = vsel %vm169, %v75, 0
  %v357 = vsel %vm169, %v76, 0
  %v360 = vsel %vm169, %v77, 0
  %v363 = vsel %vm169, %v78, 0
  %v366 = vsel %vm169, %v79, 0
  %v369 = vsel %vm169, %v80, 0
  %v372 = vsel %vm169, %v81, 0
  %v375 = vsel %vm169, %v82, 0
  %v378 = vsel %vm169, %v83, 0
  %v381 = vsel %vm169, %v84, 0
  %v384 = vsel %vm169, %v85, 0
  %v387 = vsel %vm169, %v86, 0
  %v390 = vsel %vm169, %v87, 0
  %v393 = vsel %vm169, %v88, 0
  %v396 = vsel %vm169, %v89, 0
  %v399 = vsel %vm169, %v90, 0
  %v402 = vsel %vm169, %v91, 0
  %v405 = vsel %vm169, %v92, 0
  %v408 = vsel %vm169, %v93, 0
  %v411 = vsel %vm169, %v94, 0
  %v414 = vsel %vm169, %v95, 0
  %v417 = vsel %vm169, %v96, 0
  %v420 = vsel %vm169, %v97, 0
  %v423 = vsel %vm169, %v98, 0
  %v426 = vsel %vm169, %v99, 0
  %v429 = vsel %vm169, %v100, 0
  %v432 = vsel %vm169, %v101, 0
  %v435 = vsel %vm169, %v102, 0
  %v438 = vsel %vm169, %v103, 0
  %v441 = vsel %vm169, %v104, 0
  %v444 = vsel %vm169, %v105, 0
  %v447 = vsel %vm169, %v106, 0
  %v450 = vsel %vm169, %v107, 0
  %v453 = vsel %vm169, %v108, 0
  %v456 = vsel %vm169, %v109, 0
  %v459 = vsel %vm169, %v110, 0
  %v462 = vsel %vm169, %v111, 0
  %v465 = vsel %vm169, %v112, 0
  %v468 = vsel %vm169, %v113, 0
  %v471 = vsel %vm169, %v114, 0
  %v474 = vsel %vm169, %v115, 0
  %v477 = vsel %vm169, %v116, 0
  %v480 = vsel %vm169, %v117, 0
  %v483 = vsel %vm169, %v118, 0
  %v486 = vsel %vm169, %v119, 0
  %v489 = vsel %vm169, %v120, 0
  %v492 = vsel %vm169, %v121, 0
  %v495 = vsel %vm169, %v122, 0
  %v498 = vsel %vm169, %v123, 0
  %v501 = vsel %vm169, %v124, 0
  %v504 = vsel %vm169, %v125, 0
  %v507 = vsel %vm169, %v126, 0
  %v510 = vsel %vm169, %v127, 0
  %v513 = vsel %vm169, %v128, 0
  %v516 = vsel %vm169, %v129, 0
  %v519 = vsel %vm169, %v130, 0
  %v522 = vsel %vm169, %v131, 0
  %v525 = vsel %vm169, %v132, 0
  %v528 = vsel %vm169, %v133, 0
  %v531 = vsel %vm169, %v134, 0
  %v534 = vsel %vm169, %v135, 0
  %v537 = vsel %vm169, %v136, 0
  %v540 = vsel %vm169, %v137, 0
  %v543 = vsel %vm169, %v138, 0
  %v546 = vsel %vm169, %v139, 0
  %v549 = vsel %vm169, %v140, 0
  %v552 = vsel %vm169, %v141, 0
  %v555 = vsel %vm169, %v142, 0
  %v558 = vsel %vm169, %v143, 0
  %v561 = vsel %vm169, %v144, 0
  %v564 = vsel %vm169, %v145, 0
  %v567 = vsel %vm169, %v146, 0
  %v570 = vsel %vm169, %v147, 0
  %v573 = vsel %vm169, %v148, 0
  %v576 = vsel %vm169, %v149, 0
  %v579 = vsel %vm169, %v150, 0
  %v582 = vsel %vm169, %v151, 0
  %v585 = vsel %vm169, %v152, 0
  %v588 = vsel %vm169, %v153, 0
  %v591 = vsel %vm169, %v154, 0
  %v594 = vsel %vm169, %v155, 0
  %v597 = vsel %vm169, %v156, 0
  %v600 = vsel %vm169, %v157, 0
  %602 = vmatprep.subr.mxu0 0.0
  %603 = vmatpush1.msra.mxu0 %v158
  %604 = vmatprep.subr.mxu0 0.0
  %605 = vmatpush1.msra.mxu0 %v159
  %606 = vmatprep.subr.mxu0 0.0
  %607 = vmatpush1.msra.mxu0 %v160
  %608 = vmatprep.subr.mxu0 0.0
  %609 = vmatpush1.msra.mxu0 %v161
  %610 = vmatprep.subr.mxu0 0.0
  %611 = vmatpush1.msra.mxu0 0.0
  %612 = vmatprep.subr.mxu0 0.0
  %613 = vmatpush1.msra.mxu0 0.0
  %614 = vmatprep.subr.mxu0 0.0
  %615 = vmatpush1.msra.mxu0 0.0
  %616 = vmatprep.subr.mxu0 0.0
  %617 = vmatpush1.msra.mxu0 0.0
  %618 = vmatprep.subr.mxu0 0.0
  %619 = vmatpush1.msra.mxu0 0.0
  %620 = vmatprep.subr.mxu0 0.0
  %621 = vmatpush1.msra.mxu0 0.0
  %622 = vmatprep.subr.mxu0 0.0
  %623 = vmatpush1.msra.mxu0 0.0
  %624 = vmatprep.subr.mxu0 0.0
  %625 = vmatpush1.msra.mxu0 0.0
  %626 = vmatprep.subr.mxu0 0.0
  %627 = vmatpush1.msra.mxu0 0.0
  %628 = vmatprep.subr.mxu0 0.0
  %629 = vmatpush1.msra.mxu0 0.0
  %630 = vmatprep.subr.mxu0 0.0
  %631 = vmatpush1.msra.mxu0 0.0
  %632 = vmatprep.subr.mxu0 0.0
  %633 = vmatpush1.msra.mxu0 0.0
  %634 = vmatprep.subr.mxu0 0.0
  %635 = vmatpush1.msra.mxu0 0.0
  %636 = vmatprep.subr.mxu0 0.0
  %637 = vmatpush1.msra.mxu0 0.0
  %638 = vmatprep.subr.mxu0 0.0
  %639 = vmatpush1.msra.mxu0 0.0
  %640 = vmatprep.subr.mxu0 0.0
  %641 = vmatpush1.msra.mxu0 0.0
  %642 = vmatprep.subr.mxu0 0.0
  %643 = vmatpush1.msra.mxu0 0.0
  %644 = vmatprep.subr.mxu0 0.0
  %645 = vmatpush1.msra.mxu0 0.0
  %646 = vmatprep.subr.mxu0 0.0
  %647 = vmatpush1.msra.mxu0 0.0
  %648 = vmatprep.subr.mxu0 0.0
  %649 = vmatpush1.msra.mxu0 0.0
  %650 = vmatprep.subr.mxu0 0.0
  %651 = vmatpush1.msra.mxu0 0.0
  %652 = vmatprep.subr.mxu0 0.0
  %653 = vmatpush1.msra.mxu0 0.0
  %654 = vmatprep.subr.mxu0 0.0
  %655 = vmatpush1.msra.mxu0 0.0
  %656 = vmatprep.subr.mxu0 0.0
  %657 = vmatpush1.msra.mxu0 0.0
  %658 = vmatprep.subr.mxu0 0.0
  %659 = vmatpush1.msra.mxu0 0.0
  %660 = vmatprep.subr.mxu0 0.0
  %661 = vmatpush1.msra.mxu0 0.0
  %662 = vmatprep.subr.mxu0 0.0
  %663 = vmatpush1.msra.mxu0 0.0
  %664 = vmatprep.subr.mxu0 0.0
  %665 = vmatpush1.msra.mxu0 0.0
  %666 = vmatprep.mubr.f32.mxu0 0.0
  %667 = vmatmul.mubr.f32.gmra.mrb[0].mxu0 %v171
  %v668 = vpop.f32.mrb[0].mxu0
  %v669 = vadd.f32 %v167, %v668
  %v670 = vpop.f32.mrb[0].mxu0
  %671 = vmatprep.mubr.f32.mxu0 0.0
  %672 = vmatmul.mubr.f32.gmra.mrb[0].mxu0 %v174
  %v673 = vpop.f32.mrb[0].mxu0
  %v674 = vadd.f32 %v167, %v673
  %v675 = vpop.f32.mrb[0].mxu0
  %676 = vmatprep.mubr.f32.mxu0 0.0
  %677 = vmatmul.mubr.f32.gmra.mrb[0].mxu0 %v177
  %v678 = vpop.f32.mrb[0].mxu0
  %v679 = vadd.f32 %v167, %v678
  %v680 = vpop.f32.mrb[0].mxu0
  %681 = vmatprep.mubr.f32.mxu0 0.0
  %682 = vmatmul.mubr.f32.gmra.mrb[0].mxu0 %v180
  %v683 = vpop.f32.mrb[0].mxu0
  %v684 = vadd.f32 %v167, %v683
  %v685 = vpop.f32.mrb[0].mxu0
  %686 = vmatprep.mubr.f32.mxu0 0.0
  %687 = vmatmul.mubr.f32.gmra.mrb[0].mxu0 %v183
  %v688 = vpop.f32.mrb[0].mxu0
  %v689 = vadd.f32 %v167, %v688
  %v690 = vpop.f32.mrb[0].mxu0
  %691 = vmatprep.mubr.f32.mxu0 0.0
  %692 = vmatmul.mubr.f32.gmra.mrb[0].mxu0 %v186
  %v693 = vpop.f32.mrb[0].mxu0
  %v694 = vadd.f32 %v167, %v693
  %v695 = vpop.f32.mrb[0].mxu0
  %696 = vmatprep.mubr.f32.mxu0 0.0
  %697 = vmatmul.mubr.f32.gmra.mrb[0].mxu0 %v189
  %v698 = vpop.f32.mrb[0].mxu0
  %v699 = vadd.f32 %v167, %v698
  %v700 = vpop.f32.mrb[0].mxu0
  %701 = vmatprep.mubr.f32.mxu0 0.0
  %702 = vmatmul.mubr.f32.gmra.mrb[0].mxu0 %v192
  %v703 = vpop.f32.mrb[0].mxu0
  %v704 = vadd.f32 %v167, %v703
  %v705 = vpop.f32.mrb[0].mxu0
  %706 = vmatprep.mubr.f32.mxu0 0.0
  %707 = vmatmul.mubr.f32.gmra.mrb[0].mxu0 %v195
  %v708 = vpop.f32.mrb[0].mxu0
  %v709 = vadd.f32 %v167, %v708
  %v710 = vpop.f32.mrb[0].mxu0
  %711 = vmatprep.mubr.f32.mxu0 0.0
  %712 = vmatmul.mubr.f32.gmra.mrb[0].mxu0 %v198
  %v713 = vpop.f32.mrb[0].mxu0
  %v714 = vadd.f32 %v167, %v713
  %v715 = vpop.f32.mrb[0].mxu0
  %716 = vmatprep.mubr.f32.mxu0 0.0
  %717 = vmatmul.mubr.f32.gmra.mrb[0].mxu0 %v201
  %v718 = vpop.f32.mrb[0].mxu0
  %v719 = vadd.f32 %v167, %v718
  %v720 = vpop.f32.mrb[0].mxu0
  %721 = vmatprep.mubr.f32.mxu0 0.0
  %722 = vmatmul.mubr.f32.gmra.mrb[0].mxu0 %v204
  %v723 = vpop.f32.mrb[0].mxu0
  %v724 = vadd.f32 %v167, %v723
  %v725 = vpop.f32.mrb[0].mxu0
  %726 = vmatprep.mubr.f32.mxu0 0.0
  %727 = vmatmul.mubr.f32.gmra.mrb[0].mxu0 %v207
  %v728 = vpop.f32.mrb[0].mxu0
  %v729 = vadd.f32 %v167, %v728
  %v730 = vpop.f32.mrb[0].mxu0
  %731 = vmatprep.mubr.f32.mxu0 0.0
  %732 = vmatmul.mubr.f32.gmra.mrb[0].mxu0 %v210
  %v733 = vpop.f32.mrb[0].mxu0
  %v734 = vadd.f32 %v167, %v733
  %v735 = vpop.f32.mrb[0].mxu0
  %736 = vmatprep.mubr.f32.mxu0 0.0
  %737 = vmatmul.mubr.f32.gmra.mrb[0].mxu0 %v213
  %v738 = vpop.f32.mrb[0].mxu0
  %v739 = vadd.f32 %v167, %v738
  %v740 = vpop.f32.mrb[0].mxu0
  %741 = vmatprep.mubr.f32.mxu0 0.0
  %742 = vmatmul.mubr.f32.gmra.mrb[0].mxu0 %v216
  %v743 = vpop.f32.mrb[0].mxu0
  %v744 = vadd.f32 %v167, %v743
  %v745 = vpop.f32.mrb[0].mxu0
  %746 = vmatprep.mubr.f32.mxu0 0.0
  %747 = vmatmul.mubr.f32.gmra.mrb[0].mxu0 %v219
  %v748 = vpop.f32.mrb[0].mxu0
  %v749 = vadd.f32 %v167, %v748
  %v750 = vpop.f32.mrb[0].mxu0
  %751 = vmatprep.mubr.f32.mxu0 0.0
  %752 = vmatmul.mubr.f32.gmra.mrb[0].mxu0 %v222
  %v753 = vpop.f32.mrb[0].mxu0
  %v754 = vadd.f32 %v167, %v753
  %v755 = vpop.f32.mrb[0].mxu0
  %756 = vmatprep.mubr.f32.mxu0 0.0
  %757 = vmatmul.mubr.f32.gmra.mrb[0].mxu0 %v225
  %v758 = vpop.f32.mrb[0].mxu0
  %v759 = vadd.f32 %v167, %v758
  %v760 = vpop.f32.mrb[0].mxu0
  %761 = vmatprep.mubr.f32.mxu0 0.0
  %762 = vmatmul.mubr.f32.gmra.mrb[0].mxu0 %v228
  %v763 = vpop.f32.mrb[0].mxu0
  %v764 = vadd.f32 %v167, %v763
  %v765 = vpop.f32.mrb[0].mxu0
  %766 = vmatprep.mubr.f32.mxu0 0.0
  %767 = vmatmul.mubr.f32.gmra.mrb[0].mxu0 %v231
  %v768 = vpop.f32.mrb[0].mxu0
  %v769 = vadd.f32 %v167, %v768
  %v770 = vpop.f32.mrb[0].mxu0
  %771 = vmatprep.mubr.f32.mxu0 0.0
  %772 = vmatmul.mubr.f32.gmra.mrb[0].mxu0 %v234
  %v773 = vpop.f32.mrb[0].mxu0
  %v774 = vadd.f32 %v167, %v773
  %v775 = vpop.f32.mrb[0].mxu0
  %776 = vmatprep.mubr.f32.mxu0 0.0
  %777 = vmatmul.mubr.f32.gmra.mrb[0].mxu0 %v237
  %v778 = vpop.f32.mrb[0].mxu0
  %v779 = vadd.f32 %v167, %v778
  %v780 = vpop.f32.mrb[0].mxu0
  %781 = vmatprep.mubr.f32.mxu0 0.0
  %782 = vmatmul.mubr.f32.gmra.mrb[0].mxu0 %v240
  %v783 = vpop.f32.mrb[0].mxu0
  %v784 = vadd.f32 %v167, %v783
  %v785 = vpop.f32.mrb[0].mxu0
  %786 = vmatprep.mubr.f32.mxu0 0.0
  %787 = vmatmul.mubr.f32.gmra.mrb[0].mxu0 %v243
  %v788 = vpop.f32.mrb[0].mxu0
  %v789 = vadd.f32 %v167, %v788
  %v790 = vpop.f32.mrb[0].mxu0
  %791 = vmatprep.mubr.f32.mxu0 0.0
  %792 = vmatmul.mubr.f32.gmra.mrb[0].mxu0 %v246
  %v793 = vpop.f32.mrb[0].mxu0
  %v794 = vadd.f32 %v167, %v793
  %v795 = vpop.f32.mrb[0].mxu0
  %796 = vmatprep.mubr.f32.mxu0 0.0
  %797 = vmatmul.mubr.f32.gmra.mrb[0].mxu0 %v249
  %v798 = vpop.f32.mrb[0].mxu0
  %v799 = vadd.f32 %v167, %v798
  %v800 = vpop.f32.mrb[0].mxu0
  %801 = vmatprep.mubr.f32.mxu0 0.0
  %802 = vmatmul.mubr.f32.gmra.mrb[0].mxu0 %v252
  %v803 = vpop.f32.mrb[0].mxu0
  %v804 = vadd.f32 %v167, %v803
  %v805 = vpop.f32.mrb[0].mxu0
  %806 = vmatprep.mubr.f32.mxu0 0.0
  %807 = vmatmul.mubr.f32.gmra.mrb[0].mxu0 %v255
  %v808 = vpop.f32.mrb[0].mxu0
  %v809 = vadd.f32 %v167, %v808
  %v810 = vpop.f32.mrb[0].mxu0
  %811 = vmatprep.mubr.f32.mxu0 0.0
  %812 = vmatmul.mubr.f32.gmra.mrb[0].mxu0 %v258
  %v813 = vpop.f32.mrb[0].mxu0
  %v814 = vadd.f32 %v167, %v813
  %v815 = vpop.f32.mrb[0].mxu0
  %816 = vmatprep.mubr.f32.mxu0 0.0
  %817 = vmatmul.mubr.f32.gmra.mrb[0].mxu0 %v261
  %v818 = vpop.f32.mrb[0].mxu0
  %v819 = vadd.f32 %v167, %v818
  %v820 = vpop.f32.mrb[0].mxu0
  %821 = vmatprep.mubr.f32.mxu0 0.0
  %822 = vmatmul.mubr.f32.gmra.mrb[0].mxu0 %v264
  %v823 = vpop.f32.mrb[0].mxu0
  %v824 = vadd.f32 %v167, %v823
  %v825 = vpop.f32.mrb[0].mxu0
  %826 = vmatprep.mubr.f32.mxu0 0.0
  %827 = vmatmul.mubr.f32.gmra.mrb[0].mxu0 %v267
  %v828 = vpop.f32.mrb[0].mxu0
  %v829 = vadd.f32 %v167, %v828
  %v830 = vpop.f32.mrb[0].mxu0
  %831 = vmatprep.mubr.f32.mxu0 0.0
  %832 = vmatmul.mubr.f32.gmra.mrb[0].mxu0 %v270
  %v833 = vpop.f32.mrb[0].mxu0
  %v834 = vadd.f32 %v167, %v833
  %v835 = vpop.f32.mrb[0].mxu0
  %836 = vmatprep.mubr.f32.mxu0 0.0
  %837 = vmatmul.mubr.f32.gmra.mrb[0].mxu0 %v273
  %v838 = vpop.f32.mrb[0].mxu0
  %v839 = vadd.f32 %v167, %v838
  %v840 = vpop.f32.mrb[0].mxu0
  %841 = vmatprep.mubr.f32.mxu0 0.0
  %842 = vmatmul.mubr.f32.gmra.mrb[0].mxu0 %v276
  %v843 = vpop.f32.mrb[0].mxu0
  %v844 = vadd.f32 %v167, %v843
  %v845 = vpop.f32.mrb[0].mxu0
  %846 = vmatprep.mubr.f32.mxu0 0.0
  %847 = vmatmul.mubr.f32.gmra.mrb[0].mxu0 %v279
  %v848 = vpop.f32.mrb[0].mxu0
  %v849 = vadd.f32 %v167, %v848
  %v850 = vpop.f32.mrb[0].mxu0
  %851 = vmatprep.mubr.f32.mxu0 0.0
  %852 = vmatmul.mubr.f32.gmra.mrb[0].mxu0 %v282
  %v853 = vpop.f32.mrb[0].mxu0
  %v854 = vadd.f32 %v167, %v853
  %v855 = vpop.f32.mrb[0].mxu0
  %856 = vmatprep.mubr.f32.mxu0 0.0
  %857 = vmatmul.mubr.f32.gmra.mrb[0].mxu0 %v285
  %v858 = vpop.f32.mrb[0].mxu0
  %v859 = vadd.f32 %v167, %v858
  %v860 = vpop.f32.mrb[0].mxu0
  %861 = vmatprep.mubr.f32.mxu0 0.0
  %862 = vmatmul.mubr.f32.gmra.mrb[0].mxu0 %v288
  %v863 = vpop.f32.mrb[0].mxu0
  %v864 = vadd.f32 %v167, %v863
  %v865 = vpop.f32.mrb[0].mxu0
  %866 = vmatprep.mubr.f32.mxu0 0.0
  %867 = vmatmul.mubr.f32.gmra.mrb[0].mxu0 %v291
  %v868 = vpop.f32.mrb[0].mxu0
  %v869 = vadd.f32 %v167, %v868
  %v870 = vpop.f32.mrb[0].mxu0
  %871 = vmatprep.mubr.f32.mxu0 0.0
  %872 = vmatmul.mubr.f32.gmra.mrb[0].mxu0 %v294
  %v873 = vpop.f32.mrb[0].mxu0
  %v874 = vadd.f32 %v167, %v873
  %v875 = vpop.f32.mrb[0].mxu0
  %876 = vmatprep.mubr.f32.mxu0 0.0
  %877 = vmatmul.mubr.f32.gmra.mrb[0].mxu0 %v297
  %v878 = vpop.f32.mrb[0].mxu0
  %v879 = vadd.f32 %v167, %v878
  %v880 = vpop.f32.mrb[0].mxu0
  %881 = vmatprep.mubr.f32.mxu0 0.0
  %882 = vmatmul.mubr.f32.gmra.mrb[0].mxu0 %v300
  %v883 = vpop.f32.mrb[0].mxu0
  %v884 = vadd.f32 %v167, %v883
  %v885 = vpop.f32.mrb[0].mxu0
  %886 = vmatprep.mubr.f32.mxu0 0.0
  %887 = vmatmul.mubr.f32.gmra.mrb[0].mxu0 %v303
  %v888 = vpop.f32.mrb[0].mxu0
  %v889 = vadd.f32 %v167, %v888
  %v890 = vpop.f32.mrb[0].mxu0
  %891 = vmatprep.mubr.f32.mxu0 0.0
  %892 = vmatmul.mubr.f32.gmra.mrb[0].mxu0 %v306
  %v893 = vpop.f32.mrb[0].mxu0
  %v894 = vadd.f32 %v167, %v893
  %v895 = vpop.f32.mrb[0].mxu0
  %896 = vmatprep.mubr.f32.mxu0 0.0
  %897 = vmatmul.mubr.f32.gmra.mrb[0].mxu0 %v309
  %v898 = vpop.f32.mrb[0].mxu0
  %v899 = vadd.f32 %v167, %v898
  %v900 = vpop.f32.mrb[0].mxu0
  %901 = vmatprep.mubr.f32.mxu0 0.0
  %902 = vmatmul.mubr.f32.gmra.mrb[0].mxu0 %v312
  %v903 = vpop.f32.mrb[0].mxu0
  %v904 = vadd.f32 %v167, %v903
  %v905 = vpop.f32.mrb[0].mxu0
  %906 = vmatprep.mubr.f32.mxu0 0.0
  %907 = vmatmul.mubr.f32.gmra.mrb[0].mxu0 %v315
  %v908 = vpop.f32.mrb[0].mxu0
  %v909 = vadd.f32 %v167, %v908
  %v910 = vpop.f32.mrb[0].mxu0
  %911 = vmatprep.mubr.f32.mxu0 0.0
  %912 = vmatmul.mubr.f32.gmra.mrb[0].mxu0 %v318
  %v913 = vpop.f32.mrb[0].mxu0
  %v914 = vadd.f32 %v167, %v913
  %v915 = vpop.f32.mrb[0].mxu0
  %916 = vmatprep.mubr.f32.mxu0 0.0
  %917 = vmatmul.mubr.f32.gmra.mrb[0].mxu0 %v321
  %v918 = vpop.f32.mrb[0].mxu0
  %v919 = vadd.f32 %v167, %v918
  %v920 = vpop.f32.mrb[0].mxu0
  %921 = vmatprep.mubr.f32.mxu0 0.0
  %922 = vmatmul.mubr.f32.gmra.mrb[0].mxu0 %v324
  %v923 = vpop.f32.mrb[0].mxu0
  %v924 = vadd.f32 %v167, %v923
  %v925 = vpop.f32.mrb[0].mxu0
  %926 = vmatprep.mubr.f32.mxu0 0.0
  %927 = vmatmul.mubr.f32.gmra.mrb[0].mxu0 %v327
  %v928 = vpop.f32.mrb[0].mxu0
  %v929 = vadd.f32 %v167, %v928
  %v930 = vpop.f32.mrb[0].mxu0
  %931 = vmatprep.mubr.f32.mxu0 0.0
  %932 = vmatmul.mubr.f32.gmra.mrb[0].mxu0 %v330
  %v933 = vpop.f32.mrb[0].mxu0
  %v934 = vadd.f32 %v167, %v933
  %v935 = vpop.f32.mrb[0].mxu0
  %936 = vmatprep.mubr.f32.mxu0 0.0
  %937 = vmatmul.mubr.f32.gmra.mrb[0].mxu0 %v333
  %v938 = vpop.f32.mrb[0].mxu0
  %v939 = vadd.f32 %v167, %v938
  %v940 = vpop.f32.mrb[0].mxu0
  %941 = vmatprep.mubr.f32.mxu0 0.0
  %942 = vmatmul.mubr.f32.gmra.mrb[0].mxu0 %v336
  %v943 = vpop.f32.mrb[0].mxu0
  %v944 = vadd.f32 %v167, %v943
  %v945 = vpop.f32.mrb[0].mxu0
  %946 = vmatprep.mubr.f32.mxu0 0.0
  %947 = vmatmul.mubr.f32.gmra.mrb[0].mxu0 %v339
  %v948 = vpop.f32.mrb[0].mxu0
  %v949 = vadd.f32 %v167, %v948
  %v950 = vpop.f32.mrb[0].mxu0
  %951 = vmatprep.mubr.f32.mxu0 0.0
  %952 = vmatmul.mubr.f32.gmra.mrb[0].mxu0 %v342
  %v953 = vpop.f32.mrb[0].mxu0
  %v954 = vadd.f32 %v167, %v953
  %v955 = vpop.f32.mrb[0].mxu0
  %956 = vmatprep.mubr.f32.mxu0 0.0
  %957 = vmatmul.mubr.f32.gmra.mrb[0].mxu0 %v345
  %v958 = vpop.f32.mrb[0].mxu0
  %v959 = vadd.f32 %v167, %v958
  %v960 = vpop.f32.mrb[0].mxu0
  %961 = vmatprep.mubr.f32.mxu0 0.0
  %962 = vmatmul.mubr.f32.gmra.mrb[0].mxu0 %v348
  %v963 = vpop.f32.mrb[0].mxu0
  %v964 = vadd.f32 %v167, %v963
  %v965 = vpop.f32.mrb[0].mxu0
  %966 = vmatprep.mubr.f32.mxu0 0.0
  %967 = vmatmul.mubr.f32.gmra.mrb[0].mxu0 %v351
  %v968 = vpop.f32.mrb[0].mxu0
  %v969 = vadd.f32 %v167, %v968
  %v970 = vpop.f32.mrb[0].mxu0
  %971 = vmatprep.mubr.f32.mxu0 0.0
  %972 = vmatmul.mubr.f32.gmra.mrb[0].mxu0 %v354
  %v973 = vpop.f32.mrb[0].mxu0
  %v974 = vadd.f32 %v167, %v973
  %v975 = vpop.f32.mrb[0].mxu0
  %976 = vmatprep.mubr.f32.mxu0 0.0
  %977 = vmatmul.mubr.f32.gmra.mrb[0].mxu0 %v357
  %v978 = vpop.f32.mrb[0].mxu0
  %v979 = vadd.f32 %v167, %v978
  %v980 = vpop.f32.mrb[0].mxu0
  %981 = vmatprep.mubr.f32.mxu0 0.0
  %982 = vmatmul.mubr.f32.gmra.mrb[0].mxu0 %v360
  %v983 = vpop.f32.mrb[0].mxu0
  %v984 = vadd.f32 %v167, %v983
  %v985 = vpop.f32.mrb[0].mxu0
  %986 = vmatprep.mubr.f32.mxu0 0.0
  %987 = vmatmul.mubr.f32.gmra.mrb[0].mxu0 %v363
  %v988 = vpop.f32.mrb[0].mxu0
  %v989 = vadd.f32 %v167, %v988
  %v990 = vpop.f32.mrb[0].mxu0
  %991 = vmatprep.mubr.f32.mxu0 0.0
  %992 = vmatmul.mubr.f32.gmra.mrb[0].mxu0 %v366
  %v993 = vpop.f32.mrb[0].mxu0
  %v994 = vadd.f32 %v167, %v993
  %v995 = vpop.f32.mrb[0].mxu0
  %996 = vmatprep.mubr.f32.mxu0 0.0
  %997 = vmatmul.mubr.f32.gmra.mrb[0].mxu0 %v369
  %v998 = vpop.f32.mrb[0].mxu0
  %v999 = vadd.f32 %v167, %v998
  %v1000 = vpop.f32.mrb[0].mxu0
  %1001 = vmatprep.mubr.f32.mxu0 0.0
  %1002 = vmatmul.mubr.f32.gmra.mrb[0].mxu0 %v372
  %v1003 = vpop.f32.mrb[0].mxu0
  %v1004 = vadd.f32 %v167, %v1003
  %v1005 = vpop.f32.mrb[0].mxu0
  %1006 = vmatprep.mubr.f32.mxu0 0.0
  %1007 = vmatmul.mubr.f32.gmra.mrb[0].mxu0 %v375
  %v1008 = vpop.f32.mrb[0].mxu0
  %v1009 = vadd.f32 %v167, %v1008
  %v1010 = vpop.f32.mrb[0].mxu0
  %1011 = vmatprep.mubr.f32.mxu0 0.0
  %1012 = vmatmul.mubr.f32.gmra.mrb[0].mxu0 %v378
  %v1013 = vpop.f32.mrb[0].mxu0
  %v1014 = vadd.f32 %v167, %v1013
  %v1015 = vpop.f32.mrb[0].mxu0
  %1016 = vmatprep.mubr.f32.mxu0 0.0
  %1017 = vmatmul.mubr.f32.gmra.mrb[0].mxu0 %v381
  %v1018 = vpop.f32.mrb[0].mxu0
  %v1019 = vadd.f32 %v167, %v1018
  %v1020 = vpop.f32.mrb[0].mxu0
  %1021 = vmatprep.mubr.f32.mxu0 0.0
  %1022 = vmatmul.mubr.f32.gmra.mrb[0].mxu0 %v384
  %v1023 = vpop.f32.mrb[0].mxu0
  %v1024 = vadd.f32 %v167, %v1023
  %v1025 = vpop.f32.mrb[0].mxu0
  %1026 = vmatprep.mubr.f32.mxu0 0.0
  %1027 = vmatmul.mubr.f32.gmra.mrb[0].mxu0 %v387
  %v1028 = vpop.f32.mrb[0].mxu0
  %v1029 = vadd.f32 %v167, %v1028
  %v1030 = vpop.f32.mrb[0].mxu0
  %1031 = vmatprep.mubr.f32.mxu0 0.0
  %1032 = vmatmul.mubr.f32.gmra.mrb[0].mxu0 %v390
  %v1033 = vpop.f32.mrb[0].mxu0
  %v1034 = vadd.f32 %v167, %v1033
  %v1035 = vpop.f32.mrb[0].mxu0
  %1036 = vmatprep.mubr.f32.mxu0 0.0
  %1037 = vmatmul.mubr.f32.gmra.mrb[0].mxu0 %v393
  %v1038 = vpop.f32.mrb[0].mxu0
  %v1039 = vadd.f32 %v167, %v1038
  %v1040 = vpop.f32.mrb[0].mxu0
  %1041 = vmatprep.mubr.f32.mxu0 0.0
  %1042 = vmatmul.mubr.f32.gmra.mrb[0].mxu0 %v396
  %v1043 = vpop.f32.mrb[0].mxu0
  %v1044 = vadd.f32 %v167, %v1043
  %v1045 = vpop.f32.mrb[0].mxu0
  %1046 = vmatprep.mubr.f32.mxu0 0.0
  %1047 = vmatmul.mubr.f32.gmra.mrb[0].mxu0 %v399
  %v1048 = vpop.f32.mrb[0].mxu0
  %v1049 = vadd.f32 %v167, %v1048
  %v1050 = vpop.f32.mrb[0].mxu0
  %1051 = vmatprep.mubr.f32.mxu0 0.0
  %1052 = vmatmul.mubr.f32.gmra.mrb[0].mxu0 %v402
  %v1053 = vpop.f32.mrb[0].mxu0
  %v1054 = vadd.f32 %v167, %v1053
  %v1055 = vpop.f32.mrb[0].mxu0
  %1056 = vmatprep.mubr.f32.mxu0 0.0
  %1057 = vmatmul.mubr.f32.gmra.mrb[0].mxu0 %v405
  %v1058 = vpop.f32.mrb[0].mxu0
  %v1059 = vadd.f32 %v167, %v1058
  %v1060 = vpop.f32.mrb[0].mxu0
  %1061 = vmatprep.mubr.f32.mxu0 0.0
  %1062 = vmatmul.mubr.f32.gmra.mrb[0].mxu0 %v408
  %v1063 = vpop.f32.mrb[0].mxu0
  %v1064 = vadd.f32 %v167, %v1063
  %v1065 = vpop.f32.mrb[0].mxu0
  %1066 = vmatprep.mubr.f32.mxu0 0.0
  %1067 = vmatmul.mubr.f32.gmra.mrb[0].mxu0 %v411
  %v1068 = vpop.f32.mrb[0].mxu0
  %v1069 = vadd.f32 %v167, %v1068
  %v1070 = vpop.f32.mrb[0].mxu0
  %1071 = vmatprep.mubr.f32.mxu0 0.0
  %1072 = vmatmul.mubr.f32.gmra.mrb[0].mxu0 %v414
  %v1073 = vpop.f32.mrb[0].mxu0
  %v1074 = vadd.f32 %v167, %v1073
  %v1075 = vpop.f32.mrb[0].mxu0
  %1076 = vmatprep.mubr.f32.mxu0 0.0
  %1077 = vmatmul.mubr.f32.gmra.mrb[0].mxu0 %v417
  %v1078 = vpop.f32.mrb[0].mxu0
  %v1079 = vadd.f32 %v167, %v1078
  %v1080 = vpop.f32.mrb[0].mxu0
  %1081 = vmatprep.mubr.f32.mxu0 0.0
  %1082 = vmatmul.mubr.f32.gmra.mrb[0].mxu0 %v420
  %v1083 = vpop.f32.mrb[0].mxu0
  %v1084 = vadd.f32 %v167, %v1083
  %v1085 = vpop.f32.mrb[0].mxu0
  %1086 = vmatprep.mubr.f32.mxu0 0.0
  %1087 = vmatmul.mubr.f32.gmra.mrb[0].mxu0 %v423
  %v1088 = vpop.f32.mrb[0].mxu0
  %v1089 = vadd.f32 %v167, %v1088
  %v1090 = vpop.f32.mrb[0].mxu0
  %1091 = vmatprep.mubr.f32.mxu0 0.0
  %1092 = vmatmul.mubr.f32.gmra.mrb[0].mxu0 %v426
  %v1093 = vpop.f32.mrb[0].mxu0
  %v1094 = vadd.f32 %v167, %v1093
  %v1095 = vpop.f32.mrb[0].mxu0
  %1096 = vmatprep.mubr.f32.mxu0 0.0
  %1097 = vmatmul.mubr.f32.gmra.mrb[0].mxu0 %v429
  %v1098 = vpop.f32.mrb[0].mxu0
  %v1099 = vadd.f32 %v167, %v1098
  %v1100 = vpop.f32.mrb[0].mxu0
  %1101 = vmatprep.mubr.f32.mxu0 0.0
  %1102 = vmatmul.mubr.f32.gmra.mrb[0].mxu0 %v432
  %v1103 = vpop.f32.mrb[0].mxu0
  %v1104 = vadd.f32 %v167, %v1103
  %v1105 = vpop.f32.mrb[0].mxu0
  %1106 = vmatprep.mubr.f32.mxu0 0.0
  %1107 = vmatmul.mubr.f32.gmra.mrb[0].mxu0 %v435
  %v1108 = vpop.f32.mrb[0].mxu0
  %v1109 = vadd.f32 %v167, %v1108
  %v1110 = vpop.f32.mrb[0].mxu0
  %1111 = vmatprep.mubr.f32.mxu0 0.0
  %1112 = vmatmul.mubr.f32.gmra.mrb[0].mxu0 %v438
  %v1113 = vpop.f32.mrb[0].mxu0
  %v1114 = vadd.f32 %v167, %v1113
  %v1115 = vpop.f32.mrb[0].mxu0
  %1116 = vmatprep.mubr.f32.mxu0 0.0
  %1117 = vmatmul.mubr.f32.gmra.mrb[0].mxu0 %v441
  %v1118 = vpop.f32.mrb[0].mxu0
  %v1119 = vadd.f32 %v167, %v1118
  %v1120 = vpop.f32.mrb[0].mxu0
  %1121 = vmatprep.mubr.f32.mxu0 0.0
  %1122 = vmatmul.mubr.f32.gmra.mrb[0].mxu0 %v444
  %v1123 = vpop.f32.mrb[0].mxu0
  %v1124 = vadd.f32 %v167, %v1123
  %v1125 = vpop.f32.mrb[0].mxu0
  %1126 = vmatprep.mubr.f32.mxu0 0.0
  %1127 = vmatmul.mubr.f32.gmra.mrb[0].mxu0 %v447
  %v1128 = vpop.f32.mrb[0].mxu0
  %v1129 = vadd.f32 %v167, %v1128
  %v1130 = vpop.f32.mrb[0].mxu0
  %1131 = vmatprep.mubr.f32.mxu0 0.0
  %1132 = vmatmul.mubr.f32.gmra.mrb[0].mxu0 %v450
  %v1133 = vpop.f32.mrb[0].mxu0
  %v1134 = vadd.f32 %v167, %v1133
  %v1135 = vpop.f32.mrb[0].mxu0
  %1136 = vmatprep.mubr.f32.mxu0 0.0
  %1137 = vmatmul.mubr.f32.gmra.mrb[0].mxu0 %v453
  %v1138 = vpop.f32.mrb[0].mxu0
  %v1139 = vadd.f32 %v167, %v1138
  %v1140 = vpop.f32.mrb[0].mxu0
  %1141 = vmatprep.mubr.f32.mxu0 0.0
  %1142 = vmatmul.mubr.f32.gmra.mrb[0].mxu0 %v456
  %v1143 = vpop.f32.mrb[0].mxu0
  %v1144 = vadd.f32 %v167, %v1143
  %v1145 = vpop.f32.mrb[0].mxu0
  %1146 = vmatprep.mubr.f32.mxu0 0.0
  %1147 = vmatmul.mubr.f32.gmra.mrb[0].mxu0 %v459
  %v1148 = vpop.f32.mrb[0].mxu0
  %v1149 = vadd.f32 %v167, %v1148
  %v1150 = vpop.f32.mrb[0].mxu0
  %1151 = vmatprep.mubr.f32.mxu0 0.0
  %1152 = vmatmul.mubr.f32.gmra.mrb[0].mxu0 %v462
  %v1153 = vpop.f32.mrb[0].mxu0
  %v1154 = vadd.f32 %v167, %v1153
  %v1155 = vpop.f32.mrb[0].mxu0
  %1156 = vmatprep.mubr.f32.mxu0 0.0
  %1157 = vmatmul.mubr.f32.gmra.mrb[0].mxu0 %v465
  %v1158 = vpop.f32.mrb[0].mxu0
  %v1159 = vadd.f32 %v167, %v1158
  %v1160 = vpop.f32.mrb[0].mxu0
  %1161 = vmatprep.mubr.f32.mxu0 0.0
  %1162 = vmatmul.mubr.f32.gmra.mrb[0].mxu0 %v468
  %v1163 = vpop.f32.mrb[0].mxu0
  %v1164 = vadd.f32 %v167, %v1163
  %v1165 = vpop.f32.mrb[0].mxu0
  %1166 = vmatprep.mubr.f32.mxu0 0.0
  %1167 = vmatmul.mubr.f32.gmra.mrb[0].mxu0 %v471
  %v1168 = vpop.f32.mrb[0].mxu0
  %v1169 = vadd.f32 %v167, %v1168
  %v1170 = vpop.f32.mrb[0].mxu0
  %1171 = vmatprep.mubr.f32.mxu0 0.0
  %1172 = vmatmul.mubr.f32.gmra.mrb[0].mxu0 %v474
  %v1173 = vpop.f32.mrb[0].mxu0
  %v1174 = vadd.f32 %v167, %v1173
  %v1175 = vpop.f32.mrb[0].mxu0
  %1176 = vmatprep.mubr.f32.mxu0 0.0
  %1177 = vmatmul.mubr.f32.gmra.mrb[0].mxu0 %v477
  %v1178 = vpop.f32.mrb[0].mxu0
  %v1179 = vadd.f32 %v167, %v1178
  %v1180 = vpop.f32.mrb[0].mxu0
  %1181 = vmatprep.mubr.f32.mxu0 0.0
  %1182 = vmatmul.mubr.f32.gmra.mrb[0].mxu0 %v480
  %v1183 = vpop.f32.mrb[0].mxu0
  %v1184 = vadd.f32 %v167, %v1183
  %v1185 = vpop.f32.mrb[0].mxu0
  %1186 = vmatprep.mubr.f32.mxu0 0.0
  %1187 = vmatmul.mubr.f32.gmra.mrb[0].mxu0 %v483
  %v1188 = vpop.f32.mrb[0].mxu0
  %v1189 = vadd.f32 %v167, %v1188
  %v1190 = vpop.f32.mrb[0].mxu0
  %1191 = vmatprep.mubr.f32.mxu0 0.0
  %1192 = vmatmul.mubr.f32.gmra.mrb[0].mxu0 %v486
  %v1193 = vpop.f32.mrb[0].mxu0
  %v1194 = vadd.f32 %v167, %v1193
  %v1195 = vpop.f32.mrb[0].mxu0
  %1196 = vmatprep.mubr.f32.mxu0 0.0
  %1197 = vmatmul.mubr.f32.gmra.mrb[0].mxu0 %v489
  %v1198 = vpop.f32.mrb[0].mxu0
  %v1199 = vadd.f32 %v167, %v1198
  %v1200 = vpop.f32.mrb[0].mxu0
  %1201 = vmatprep.mubr.f32.mxu0 0.0
  %1202 = vmatmul.mubr.f32.gmra.mrb[0].mxu0 %v492
  %v1203 = vpop.f32.mrb[0].mxu0
  %v1204 = vadd.f32 %v167, %v1203
  %v1205 = vpop.f32.mrb[0].mxu0
  %1206 = vmatprep.mubr.f32.mxu0 0.0
  %1207 = vmatmul.mubr.f32.gmra.mrb[0].mxu0 %v495
  %v1208 = vpop.f32.mrb[0].mxu0
  %v1209 = vadd.f32 %v167, %v1208
  %v1210 = vpop.f32.mrb[0].mxu0
  %1211 = vmatprep.mubr.f32.mxu0 0.0
  %1212 = vmatmul.mubr.f32.gmra.mrb[0].mxu0 %v498
  %v1213 = vpop.f32.mrb[0].mxu0
  %v1214 = vadd.f32 %v167, %v1213
  %v1215 = vpop.f32.mrb[0].mxu0
  %1216 = vmatprep.mubr.f32.mxu0 0.0
  %1217 = vmatmul.mubr.f32.gmra.mrb[0].mxu0 %v501
  %v1218 = vpop.f32.mrb[0].mxu0
  %v1219 = vadd.f32 %v167, %v1218
  %v1220 = vpop.f32.mrb[0].mxu0
  %1221 = vmatprep.mubr.f32.mxu0 0.0
  %1222 = vmatmul.mubr.f32.gmra.mrb[0].mxu0 %v504
  %v1223 = vpop.f32.mrb[0].mxu0
  %v1224 = vadd.f32 %v167, %v1223
  %v1225 = vpop.f32.mrb[0].mxu0
  %1226 = vmatprep.mubr.f32.mxu0 0.0
  %1227 = vmatmul.mubr.f32.gmra.mrb[0].mxu0 %v507
  %v1228 = vpop.f32.mrb[0].mxu0
  %v1229 = vadd.f32 %v167, %v1228
  %v1230 = vpop.f32.mrb[0].mxu0
  %1231 = vmatprep.mubr.f32.mxu0 0.0
  %1232 = vmatmul.mubr.f32.gmra.mrb[0].mxu0 %v510
  %v1233 = vpop.f32.mrb[0].mxu0
  %v1234 = vadd.f32 %v167, %v1233
  %v1235 = vpop.f32.mrb[0].mxu0
  %1236 = vmatprep.mubr.f32.mxu0 0.0
  %1237 = vmatmul.mubr.f32.gmra.mrb[0].mxu0 %v513
  %v1238 = vpop.f32.mrb[0].mxu0
  %v1239 = vadd.f32 %v167, %v1238
  %v1240 = vpop.f32.mrb[0].mxu0
  %1241 = vmatprep.mubr.f32.mxu0 0.0
  %1242 = vmatmul.mubr.f32.gmra.mrb[0].mxu0 %v516
  %v1243 = vpop.f32.mrb[0].mxu0
  %v1244 = vadd.f32 %v167, %v1243
  %v1245 = vpop.f32.mrb[0].mxu0
  %1246 = vmatprep.mubr.f32.mxu0 0.0
  %1247 = vmatmul.mubr.f32.gmra.mrb[0].mxu0 %v519
  %v1248 = vpop.f32.mrb[0].mxu0
  %v1249 = vadd.f32 %v167, %v1248
  %v1250 = vpop.f32.mrb[0].mxu0
  %1251 = vmatprep.mubr.f32.mxu0 0.0
  %1252 = vmatmul.mubr.f32.gmra.mrb[0].mxu0 %v522
  %v1253 = vpop.f32.mrb[0].mxu0
  %v1254 = vadd.f32 %v167, %v1253
  %v1255 = vpop.f32.mrb[0].mxu0
  %1256 = vmatprep.mubr.f32.mxu0 0.0
  %1257 = vmatmul.mubr.f32.gmra.mrb[0].mxu0 %v525
  %v1258 = vpop.f32.mrb[0].mxu0
  %v1259 = vadd.f32 %v167, %v1258
  %v1260 = vpop.f32.mrb[0].mxu0
  %1261 = vmatprep.mubr.f32.mxu0 0.0
  %1262 = vmatmul.mubr.f32.gmra.mrb[0].mxu0 %v528
  %v1263 = vpop.f32.mrb[0].mxu0
  %v1264 = vadd.f32 %v167, %v1263
  %v1265 = vpop.f32.mrb[0].mxu0
  %1266 = vmatprep.mubr.f32.mxu0 0.0
  %1267 = vmatmul.mubr.f32.gmra.mrb[0].mxu0 %v531
  %v1268 = vpop.f32.mrb[0].mxu0
  %v1269 = vadd.f32 %v167, %v1268
  %v1270 = vpop.f32.mrb[0].mxu0
  %1271 = vmatprep.mubr.f32.mxu0 0.0
  %1272 = vmatmul.mubr.f32.gmra.mrb[0].mxu0 %v534
  %v1273 = vpop.f32.mrb[0].mxu0
  %v1274 = vadd.f32 %v167, %v1273
  %v1275 = vpop.f32.mrb[0].mxu0
  %1276 = vmatprep.mubr.f32.mxu0 0.0
  %1277 = vmatmul.mubr.f32.gmra.mrb[0].mxu0 %v537
  %v1278 = vpop.f32.mrb[0].mxu0
  %v1279 = vadd.f32 %v167, %v1278
  %v1280 = vpop.f32.mrb[0].mxu0
  %1281 = vmatprep.mubr.f32.mxu0 0.0
  %1282 = vmatmul.mubr.f32.gmra.mrb[0].mxu0 %v540
  %v1283 = vpop.f32.mrb[0].mxu0
  %v1284 = vadd.f32 %v167, %v1283
  %v1285 = vpop.f32.mrb[0].mxu0
  %1286 = vmatprep.mubr.f32.mxu0 0.0
  %1287 = vmatmul.mubr.f32.gmra.mrb[0].mxu0 %v543
  %v1288 = vpop.f32.mrb[0].mxu0
  %v1289 = vadd.f32 %v167, %v1288
  %v1290 = vpop.f32.mrb[0].mxu0
  %1291 = vmatprep.mubr.f32.mxu0 0.0
  %1292 = vmatmul.mubr.f32.gmra.mrb[0].mxu0 %v546
  %v1293 = vpop.f32.mrb[0].mxu0
  %v1294 = vadd.f32 %v167, %v1293
  %v1295 = vpop.f32.mrb[0].mxu0
  %1296 = vmatprep.mubr.f32.mxu0 0.0
  %1297 = vmatmul.mubr.f32.gmra.mrb[0].mxu0 %v549
  %v1298 = vpop.f32.mrb[0].mxu0
  %v1299 = vadd.f32 %v167, %v1298
  %v1300 = vpop.f32.mrb[0].mxu0
  %1301 = vmatprep.mubr.f32.mxu0 0.0
  %1302 = vmatmul.mubr.f32.gmra.mrb[0].mxu0 %v552
  %v1303 = vpop.f32.mrb[0].mxu0
  %v1304 = vadd.f32 %v167, %v1303
  %v1305 = vpop.f32.mrb[0].mxu0
  %1306 = vmatprep.mubr.f32.mxu0 0.0
  %1307 = vmatmul.mubr.f32.gmra.mrb[0].mxu0 %v555
  %v1308 = vpop.f32.mrb[0].mxu0
  %v1309 = vadd.f32 %v167, %v1308
  %v1310 = vpop.f32.mrb[0].mxu0
  %1311 = vmatprep.mubr.f32.mxu0 0.0
  %1312 = vmatmul.mubr.f32.gmra.mrb[0].mxu0 %v558
  %v1313 = vpop.f32.mrb[0].mxu0
  %v1314 = vadd.f32 %v167, %v1313
  %v1315 = vpop.f32.mrb[0].mxu0
  %1316 = vmatprep.mubr.f32.mxu0 0.0
  %1317 = vmatmul.mubr.f32.gmra.mrb[0].mxu0 %v561
  %v1318 = vpop.f32.mrb[0].mxu0
  %v1319 = vadd.f32 %v167, %v1318
  %v1320 = vpop.f32.mrb[0].mxu0
  %1321 = vmatprep.mubr.f32.mxu0 0.0
  %1322 = vmatmul.mubr.f32.gmra.mrb[0].mxu0 %v564
  %v1323 = vpop.f32.mrb[0].mxu0
  %v1324 = vadd.f32 %v167, %v1323
  %v1325 = vpop.f32.mrb[0].mxu0
  %1326 = vmatprep.mubr.f32.mxu0 0.0
  %1327 = vmatmul.mubr.f32.gmra.mrb[0].mxu0 %v567
  %v1328 = vpop.f32.mrb[0].mxu0
  %v1329 = vadd.f32 %v167, %v1328
  %v1330 = vpop.f32.mrb[0].mxu0
  %1331 = vmatprep.mubr.f32.mxu0 0.0
  %1332 = vmatmul.mubr.f32.gmra.mrb[0].mxu0 %v570
  %v1333 = vpop.f32.mrb[0].mxu0
  %v1334 = vadd.f32 %v167, %v1333
  %v1335 = vpop.f32.mrb[0].mxu0
  %1336 = vmatprep.mubr.f32.mxu0 0.0
  %1337 = vmatmul.mubr.f32.gmra.mrb[0].mxu0 %v573
  %v1338 = vpop.f32.mrb[0].mxu0
  %v1339 = vadd.f32 %v167, %v1338
  %v1340 = vpop.f32.mrb[0].mxu0
  %1341 = vmatprep.mubr.f32.mxu0 0.0
  %1342 = vmatmul.mubr.f32.gmra.mrb[0].mxu0 %v576
  %v1343 = vpop.f32.mrb[0].mxu0
  %v1344 = vadd.f32 %v167, %v1343
  %v1345 = vpop.f32.mrb[0].mxu0
  %1346 = vmatprep.mubr.f32.mxu0 0.0
  %1347 = vmatmul.mubr.f32.gmra.mrb[0].mxu0 %v579
  %v1348 = vpop.f32.mrb[0].mxu0
  %v1349 = vadd.f32 %v167, %v1348
  %v1350 = vpop.f32.mrb[0].mxu0
  %1351 = vmatprep.mubr.f32.mxu0 0.0
  %1352 = vmatmul.mubr.f32.gmra.mrb[0].mxu0 %v582
  %v1353 = vpop.f32.mrb[0].mxu0
  %v1354 = vadd.f32 %v167, %v1353
  %v1355 = vpop.f32.mrb[0].mxu0
  %1356 = vmatprep.mubr.f32.mxu0 0.0
  %1357 = vmatmul.mubr.f32.gmra.mrb[0].mxu0 %v585
  %v1358 = vpop.f32.mrb[0].mxu0
  %v1359 = vadd.f32 %v167, %v1358
  %v1360 = vpop.f32.mrb[0].mxu0
  %1361 = vmatprep.mubr.f32.mxu0 0.0
  %1362 = vmatmul.mubr.f32.gmra.mrb[0].mxu0 %v588
  %v1363 = vpop.f32.mrb[0].mxu0
  %v1364 = vadd.f32 %v167, %v1363
  %v1365 = vpop.f32.mrb[0].mxu0
  %1366 = vmatprep.mubr.f32.mxu0 0.0
  %1367 = vmatmul.mubr.f32.gmra.mrb[0].mxu0 %v591
  %v1368 = vpop.f32.mrb[0].mxu0
  %v1369 = vadd.f32 %v167, %v1368
  %v1370 = vpop.f32.mrb[0].mxu0
  %1371 = vmatprep.mubr.f32.mxu0 0.0
  %1372 = vmatmul.mubr.f32.gmra.mrb[0].mxu0 %v594
  %v1373 = vpop.f32.mrb[0].mxu0
  %v1374 = vadd.f32 %v167, %v1373
  %v1375 = vpop.f32.mrb[0].mxu0
  %1376 = vmatprep.mubr.f32.mxu0 0.0
  %1377 = vmatmul.mubr.f32.gmra.mrb[0].mxu0 %v597
  %v1378 = vpop.f32.mrb[0].mxu0
  %v1379 = vadd.f32 %v167, %v1378
  %v1380 = vpop.f32.mrb[0].mxu0
  %1381 = vmatprep.mubr.f32.mxu0 0.0
  %1382 = vmatmul.mubr.f32.gmra.mrb[0].mxu0 %v600
  %v1383 = vpop.f32.mrb[0].mxu0
  %v1384 = vadd.f32 %v167, %v1383
  %v1385 = vpop.f32.mrb[0].mxu0
  %1386 = vdwg.mxu0
  %vm1387 = vcmask 80896
  %1388 = vst.msk [vmem:[%s3] sm:$0xff] %vm1387, %v669
  %1389 = vst.msk [vmem:[%s3 + $0x8] sm:$0xff] %vm1387, %v674
  %1390 = vst.msk [vmem:[%s3 + $0x10] sm:$0xff] %vm1387, %v679
  %1391 = vst.msk [vmem:[%s3 + $0x18] sm:$0xff] %vm1387, %v684
  %1392 = vst.msk [vmem:[%s3 + $0x20] sm:$0xff] %vm1387, %v689
  %1393 = vst.msk [vmem:[%s3 + $0x28] sm:$0xff] %vm1387, %v694
  %1394 = vst.msk [vmem:[%s3 + $0x30] sm:$0xff] %vm1387, %v699
  %1395 = vst.msk [vmem:[%s3 + $0x38] sm:$0xff] %vm1387, %v704
  %1396 = vst.msk [vmem:[%s3 + $0x40] sm:$0xff] %vm1387, %v709
  %1397 = vst.msk [vmem:[%s3 + $0x48] sm:$0xff] %vm1387, %v714
  %1398 = vst.msk [vmem:[%s3 + $0x50] sm:$0xff] %vm1387, %v719
  %1399 = vst.msk [vmem:[%s3 + $0x58] sm:$0xff] %vm1387, %v724
  %1400 = vst.msk [vmem:[%s3 + $0x60] sm:$0xff] %vm1387, %v729
  %1401 = vst.msk [vmem:[%s3 + $0x68] sm:$0xff] %vm1387, %v734
  %1402 = vst.msk [vmem:[%s3 + $0x70] sm:$0xff] %vm1387, %v739
  %1403 = vst.msk [vmem:[%s3 + $0x78] sm:$0xff] %vm1387, %v744
  %1404 = vst.msk [vmem:[%s3 + $0x80] sm:$0xff] %vm1387, %v749
  %1405 = vst.msk [vmem:[%s3 + $0x88] sm:$0xff] %vm1387, %v754
  %1406 = vst.msk [vmem:[%s3 + $0x90] sm:$0xff] %vm1387, %v759
  %1407 = vst.msk [vmem:[%s3 + $0x98] sm:$0xff] %vm1387, %v764
  %1408 = vst.msk [vmem:[%s3 + $0xa0] sm:$0xff] %vm1387, %v769
  %1409 = vst.msk [vmem:[%s3 + $0xa8] sm:$0xff] %vm1387, %v774
  %1410 = vst.msk [vmem:[%s3 + $0xb0] sm:$0xff] %vm1387, %v779
  %1411 = vst.msk [vmem:[%s3 + $0xb8] sm:$0xff] %vm1387, %v784
  %1412 = vst.msk [vmem:[%s3 + $0xc0] sm:$0xff] %vm1387, %v789
  %1413 = vst.msk [vmem:[%s3 + $0xc8] sm:$0xff] %vm1387, %v794
  %1414 = vst.msk [vmem:[%s3 + $0xd0] sm:$0xff] %vm1387, %v799
  %1415 = vst.msk [vmem:[%s3 + $0xd8] sm:$0xff] %vm1387, %v804
  %1416 = vst.msk [vmem:[%s3 + $0xe0] sm:$0xff] %vm1387, %v809
  %1417 = vst.msk [vmem:[%s3 + $0xe8] sm:$0xff] %vm1387, %v814
  %1418 = vst.msk [vmem:[%s3 + $0xf0] sm:$0xff] %vm1387, %v819
  %1419 = vst.msk [vmem:[%s3 + $0xf8] sm:$0xff] %vm1387, %v824
  %1420 = vst.msk [vmem:[%s3 + $0x100] sm:$0xff] %vm1387, %v829
  %1421 = vst.msk [vmem:[%s3 + $0x108] sm:$0xff] %vm1387, %v834
  %1422 = vst.msk [vmem:[%s3 + $0x110] sm:$0xff] %vm1387, %v839
  %1423 = vst.msk [vmem:[%s3 + $0x118] sm:$0xff] %vm1387, %v844
  %1424 = vst.msk [vmem:[%s3 + $0x120] sm:$0xff] %vm1387, %v849
  %1425 = vst.msk [vmem:[%s3 + $0x128] sm:$0xff] %vm1387, %v854
  %1426 = vst.msk [vmem:[%s3 + $0x130] sm:$0xff] %vm1387, %v859
  %1427 = vst.msk [vmem:[%s3 + $0x138] sm:$0xff] %vm1387, %v864
  %1428 = vst.msk [vmem:[%s3 + $0x140] sm:$0xff] %vm1387, %v869
  %1429 = vst.msk [vmem:[%s3 + $0x148] sm:$0xff] %vm1387, %v874
  %1430 = vst.msk [vmem:[%s3 + $0x150] sm:$0xff] %vm1387, %v879
  %1431 = vst.msk [vmem:[%s3 + $0x158] sm:$0xff] %vm1387, %v884
  %1432 = vst.msk [vmem:[%s3 + $0x160] sm:$0xff] %vm1387, %v889
  %1433 = vst.msk [vmem:[%s3 + $0x168] sm:$0xff] %vm1387, %v894
  %1434 = vst.msk [vmem:[%s3 + $0x170] sm:$0xff] %vm1387, %v899
  %1435 = vst.msk [vmem:[%s3 + $0x178] sm:$0xff] %vm1387, %v904
  %1436 = vst.msk [vmem:[%s3 + $0x180] sm:$0xff] %vm1387, %v909
  %1437 = vst.msk [vmem:[%s3 + $0x188] sm:$0xff] %vm1387, %v914
  %1438 = vst.msk [vmem:[%s3 + $0x190] sm:$0xff] %vm1387, %v919
  %1439 = vst.msk [vmem:[%s3 + $0x198] sm:$0xff] %vm1387, %v924
  %1440 = vst.msk [vmem:[%s3 + $0x1a0] sm:$0xff] %vm1387, %v929
  %1441 = vst.msk [vmem:[%s3 + $0x1a8] sm:$0xff] %vm1387, %v934
  %1442 = vst.msk [vmem:[%s3 + $0x1b0] sm:$0xff] %vm1387, %v939
  %1443 = vst.msk [vmem:[%s3 + $0x1b8] sm:$0xff] %vm1387, %v944
  %1444 = vst.msk [vmem:[%s3 + $0x1c0] sm:$0xff] %vm1387, %v949
  %1445 = vst.msk [vmem:[%s3 + $0x1c8] sm:$0xff] %vm1387, %v954
  %1446 = vst.msk [vmem:[%s3 + $0x1d0] sm:$0xff] %vm1387, %v959
  %1447 = vst.msk [vmem:[%s3 + $0x1d8] sm:$0xff] %vm1387, %v964
  %1448 = vst.msk [vmem:[%s3 + $0x1e0] sm:$0xff] %vm1387, %v969
  %1449 = vst.msk [vmem:[%s3 + $0x1e8] sm:$0xff] %vm1387, %v974
  %1450 = vst.msk [vmem:[%s3 + $0x1f0] sm:$0xff] %vm1387, %v979
  %1451 = vst.msk [vmem:[%s3 + $0x1f8] sm:$0xff] %vm1387, %v984
  %1452 = vst.msk [vmem:[%s3 + $0x200] sm:$0xff] %vm1387, %v989
  %1453 = vst.msk [vmem:[%s3 + $0x208] sm:$0xff] %vm1387, %v994
  %1454 = vst.msk [vmem:[%s3 + $0x210] sm:$0xff] %vm1387, %v999
  %1455 = vst.msk [vmem:[%s3 + $0x218] sm:$0xff] %vm1387, %v1004
  %1456 = vst.msk [vmem:[%s3 + $0x220] sm:$0xff] %vm1387, %v1009
  %1457 = vst.msk [vmem:[%s3 + $0x228] sm:$0xff] %vm1387, %v1014
  %1458 = vst.msk [vmem:[%s3 + $0x230] sm:$0xff] %vm1387, %v1019
  %1459 = vst.msk [vmem:[%s3 + $0x238] sm:$0xff] %vm1387, %v1024
  %1460 = vst.msk [vmem:[%s3 + $0x240] sm:$0xff] %vm1387, %v1029
  %1461 = vst.msk [vmem:[%s3 + $0x248] sm:$0xff] %vm1387, %v1034
  %1462 = vst.msk [vmem:[%s3 + $0x250] sm:$0xff] %vm1387, %v1039
  %1463 = vst.msk [vmem:[%s3 + $0x258] sm:$0xff] %vm1387, %v1044
  %1464 = vst.msk [vmem:[%s3 + $0x260] sm:$0xff] %vm1387, %v1049
  %1465 = vst.msk [vmem:[%s3 + $0x268] sm:$0xff] %vm1387, %v1054
  %1466 = vst.msk [vmem:[%s3 + $0x270] sm:$0xff] %vm1387, %v1059
  %1467 = vst.msk [vmem:[%s3 + $0x278] sm:$0xff] %vm1387, %v1064
  %1468 = vst.msk [vmem:[%s3 + $0x280] sm:$0xff] %vm1387, %v1069
  %1469 = vst.msk [vmem:[%s3 + $0x288] sm:$0xff] %vm1387, %v1074
  %1470 = vst.msk [vmem:[%s3 + $0x290] sm:$0xff] %vm1387, %v1079
  %1471 = vst.msk [vmem:[%s3 + $0x298] sm:$0xff] %vm1387, %v1084
  %1472 = vst.msk [vmem:[%s3 + $0x2a0] sm:$0xff] %vm1387, %v1089
  %1473 = vst.msk [vmem:[%s3 + $0x2a8] sm:$0xff] %vm1387, %v1094
  %1474 = vst.msk [vmem:[%s3 + $0x2b0] sm:$0xff] %vm1387, %v1099
  %1475 = vst.msk [vmem:[%s3 + $0x2b8] sm:$0xff] %vm1387, %v1104
  %1476 = vst.msk [vmem:[%s3 + $0x2c0] sm:$0xff] %vm1387, %v1109
  %1477 = vst.msk [vmem:[%s3 + $0x2c8] sm:$0xff] %vm1387, %v1114
  %1478 = vst.msk [vmem:[%s3 + $0x2d0] sm:$0xff] %vm1387, %v1119
  %1479 = vst.msk [vmem:[%s3 + $0x2d8] sm:$0xff] %vm1387, %v1124
  %1480 = vst.msk [vmem:[%s3 + $0x2e0] sm:$0xff] %vm1387, %v1129
  %1481 = vst.msk [vmem:[%s3 + $0x2e8] sm:$0xff] %vm1387, %v1134
  %1482 = vst.msk [vmem:[%s3 + $0x2f0] sm:$0xff] %vm1387, %v1139
  %1483 = vst.msk [vmem:[%s3 + $0x2f8] sm:$0xff] %vm1387, %v1144
  %1484 = vst.msk [vmem:[%s3 + $0x300] sm:$0xff] %vm1387, %v1149
  %1485 = vst.msk [vmem:[%s3 + $0x308] sm:$0xff] %vm1387, %v1154
  %1486 = vst.msk [vmem:[%s3 + $0x310] sm:$0xff] %vm1387, %v1159
  %1487 = vst.msk [vmem:[%s3 + $0x318] sm:$0xff] %vm1387, %v1164
  %1488 = vst.msk [vmem:[%s3 + $0x320] sm:$0xff] %vm1387, %v1169
  %1489 = vst.msk [vmem:[%s3 + $0x328] sm:$0xff] %vm1387, %v1174
  %1490 = vst.msk [vmem:[%s3 + $0x330] sm:$0xff] %vm1387, %v1179
  %1491 = vst.msk [vmem:[%s3 + $0x338] sm:$0xff] %vm1387, %v1184
  %1492 = vst.msk [vmem:[%s3 + $0x340] sm:$0xff] %vm1387, %v1189
  %1493 = vst.msk [vmem:[%s3 + $0x348] sm:$0xff] %vm1387, %v1194
  %1494 = vst.msk [vmem:[%s3 + $0x350] sm:$0xff] %vm1387, %v1199
  %1495 = vst.msk [vmem:[%s3 + $0x358] sm:$0xff] %vm1387, %v1204
  %1496 = vst.msk [vmem:[%s3 + $0x360] sm:$0xff] %vm1387, %v1209
  %1497 = vst.msk [vmem:[%s3 + $0x368] sm:$0xff] %vm1387, %v1214
  %1498 = vst.msk [vmem:[%s3 + $0x370] sm:$0xff] %vm1387, %v1219
  %1499 = vst.msk [vmem:[%s3 + $0x378] sm:$0xff] %vm1387, %v1224
  %1500 = vst.msk [vmem:[%s3 + $0x380] sm:$0xff] %vm1387, %v1229
  %1501 = vst.msk [vmem:[%s3 + $0x388] sm:$0xff] %vm1387, %v1234
  %1502 = vst.msk [vmem:[%s3 + $0x390] sm:$0xff] %vm1387, %v1239
  %1503 = vst.msk [vmem:[%s3 + $0x398] sm:$0xff] %vm1387, %v1244
  %1504 = vst.msk [vmem:[%s3 + $0x3a0] sm:$0xff] %vm1387, %v1249
  %1505 = vst.msk [vmem:[%s3 + $0x3a8] sm:$0xff] %vm1387, %v1254
  %1506 = vst.msk [vmem:[%s3 + $0x3b0] sm:$0xff] %vm1387, %v1259
  %1507 = vst.msk [vmem:[%s3 + $0x3b8] sm:$0xff] %vm1387, %v1264
  %1508 = vst.msk [vmem:[%s3 + $0x3c0] sm:$0xff] %vm1387, %v1269
  %1509 = vst.msk [vmem:[%s3 + $0x3c8] sm:$0xff] %vm1387, %v1274
  %1510 = vst.msk [vmem:[%s3 + $0x3d0] sm:$0xff] %vm1387, %v1279
  %1511 = vst.msk [vmem:[%s3 + $0x3d8] sm:$0xff] %vm1387, %v1284
  %1512 = vst.msk [vmem:[%s3 + $0x3e0] sm:$0xff] %vm1387, %v1289
  %1513 = vst.msk [vmem:[%s3 + $0x3e8] sm:$0xff] %vm1387, %v1294
  %1514 = vst.msk [vmem:[%s3 + $0x3f0] sm:$0xff] %vm1387, %v1299
  %1515 = vst.msk [vmem:[%s3 + $0x3f8] sm:$0xff] %vm1387, %v1304
  %1516 = vst.msk [vmem:[%s3 + $0x400] sm:$0xff] %vm1387, %v1309
  %1517 = vst.msk [vmem:[%s3 + $0x408] sm:$0xff] %vm1387, %v1314
  %1518 = vst.msk [vmem:[%s3 + $0x410] sm:$0xff] %vm1387, %v1319
  %1519 = vst.msk [vmem:[%s3 + $0x418] sm:$0xff] %vm1387, %v1324
  %1520 = vst.msk [vmem:[%s3 + $0x420] sm:$0xff] %vm1387, %v1329
  %1521 = vst.msk [vmem:[%s3 + $0x428] sm:$0xff] %vm1387, %v1334
  %1522 = vst.msk [vmem:[%s3 + $0x430] sm:$0xff] %vm1387, %v1339
  %1523 = vst.msk [vmem:[%s3 + $0x438] sm:$0xff] %vm1387, %v1344
  %1524 = vst.msk [vmem:[%s3 + $0x440] sm:$0xff] %vm1387, %v1349
  %1525 = vst.msk [vmem:[%s3 + $0x448] sm:$0xff] %vm1387, %v1354
  %1526 = vst.msk [vmem:[%s3 + $0x450] sm:$0xff] %vm1387, %v1359
  %1527 = vst.msk [vmem:[%s3 + $0x458] sm:$0xff] %vm1387, %v1364
  %1528 = vst.msk [vmem:[%s3 + $0x460] sm:$0xff] %vm1387, %v1369
  %1529 = vst.msk [vmem:[%s3 + $0x468] sm:$0xff] %vm1387, %v1374
  %1530 = vst.msk [vmem:[%s3 + $0x470] sm:$0xff] %vm1387, %v1379
  %1531 = vst.msk [vmem:[%s3 + $0x478] sm:$0xff] %vm1387, %v1384
  // Predicated region
  $region14: #{net_forward.17} parent=0 // pred_check
    _
  $region15: #{net_forward.17} parent=0 // pred_check_branch
    %1533 = sbr.rel (0) target = $region17
  $region16: #{net_forward.17} parent=0 // pred_region
    _
  $region17: #{net_forward.17} parent=0 // pred_fallthru
    _
  // Predicated region
  $region18: #{net_forward.17} parent=0 // pred_check
    _
  $region19: #{net_forward.17} parent=0 // pred_check_branch
    %1535 = sbr.rel (0) target = $region21
  $region20: #{net_forward.17} parent=0 // pred_region
    _
  $region21: #{net_forward.17} parent=0 // pred_fallthru
    _

// kernel: net_forward.18
$region0: #{net_forward.18}
  #allocation0 [shape = 'u32[]', space=smem, size = 0x4, offset = 0x4, fixed_abs, tag = 'smem constant byte address 0x4 - core index']
  #allocation1 [shape = 'u32[144,128]{1,0:T(1,128)}', space=vmem, size = 0x12000, scoped, tag = 'internal scratch']
  %s0 = inlined_call_operand.vmem [shape: f32[4,24,120], index: 0, kind: input, shape index: {}]
  %s1 = inlined_call_operand.vmem [shape: f32[24,120], index: 1, kind: output, shape index: {}]
  %s2 = sld [smem:[#allocation0]]
  $region14: #{net_forward.18} parent=0
    _
  %s4 = ssub.s32 1, %s2
  %s5 = scalar_select 0, %s4, %s2
  // Predicated region
  $region2: #{net_forward.18} parent=0 // pred_check
    _
  $region3: #{net_forward.18} parent=0 // pred_check_branch
    %7 = sbr.rel (0) target = $region5
  $region4: #{net_forward.18} parent=0 // pred_region
    _
  $region5: #{net_forward.18} parent=0 // pred_fallthru
    _
  %v8 = vld [vmem:[%s0] sm:$0xff]
  %v9 = vld [vmem:[%s0 + $0x8] sm:$0xff]
  %v10 = vld [vmem:[%s0 + $0x10] sm:$0xff]
  %s11 = scalar_lea.vmem %s0, 24
  %v12 = vld [vmem:[%s11] sm:$0xff]
  %v13 = vld [vmem:[%s11 + $0x8] sm:$0xff]
  %v14 = vld [vmem:[%s11 + $0x10] sm:$0xff]
  %v15 = vmax.f32 %v8, %v12
  %v16 = vmax.f32 %v9, %v13
  %v17 = vmax.f32 %v10, %v14
  %s18 = scalar_lea.vmem %s0, 48
  %v19 = vld [vmem:[%s18] sm:$0xff]
  %v20 = vld [vmem:[%s18 + $0x8] sm:$0xff]
  %v21 = vld [vmem:[%s18 + $0x10] sm:$0xff]
  %v22 = vmax.f32 %v15, %v19
  %v23 = vmax.f32 %v16, %v20
  %v24 = vmax.f32 %v17, %v21
  %s25 = scalar_lea.vmem %s0, 72
  %v26 = vld [vmem:[%s25] sm:$0xff]
  %v27 = vld [vmem:[%s25 + $0x8] sm:$0xff]
  %v28 = vld [vmem:[%s25 + $0x10] sm:$0xff]
  %v29 = vmax.f32 %v22, %v26
  %v30 = vmax.f32 %v23, %v27
  %v31 = vmax.f32 %v24, %v28
  %v32 = vmax.f32 %v29, 0.0
  %v33 = vmax.f32 %v30, 0.0
  %v34 = vmax.f32 %v31, 0.0
  %vm35 = vcmask 982016
  %36 = vst.msk [vmem:[%s1] sm:$0xff] %vm35, %v32
  %37 = vst.msk [vmem:[%s1 + $0x8] sm:$0xff] %vm35, %v33
  %38 = vst.msk [vmem:[%s1 + $0x10] sm:$0xff] %vm35, %v34
  // Predicated region
  $region6: #{net_forward.18} parent=0 // pred_check
    _
  $region7: #{net_forward.18} parent=0 // pred_check_branch
    %40 = sbr.rel (0) target = $region9
  $region8: #{net_forward.18} parent=0 // pred_region
    _
  $region9: #{net_forward.18} parent=0 // pred_fallthru
    _
  // Predicated region
  $region10: #{net_forward.18} parent=0 // pred_check
    _
  $region11: #{net_forward.18} parent=0 // pred_check_branch
    %42 = sbr.rel (0) target = $region13
  $region12: #{net_forward.18} parent=0 // pred_region
    _
  $region13: #{net_forward.18} parent=0 // pred_fallthru
    _

// kernel: net_forward.19
$region0: #{net_forward.19}
  #allocation0 [shape = 'u32[]', space=smem, size = 0x4, offset = 0x4, fixed_abs, tag = 'smem constant byte address 0x4 - core index']
  #allocation1 [shape = 'u32[144,128]{1,0:T(1,128)}', space=vmem, size = 0x12000, scoped, tag = 'internal scratch']
  %s0 = inlined_call_operand.vmem [shape: f32[288,16], index: 0, kind: input, shape index: {}]
  %s1 = inlined_call_operand.vmem [shape: f32[16,48], index: 1, kind: input, shape index: {}]
  %s2 = inlined_call_operand.vmem [shape: f32[1,48], index: 2, kind: input, shape index: {}]
  %s3 = inlined_call_operand.vmem [shape: f32[288,48], index: 3, kind: output, shape index: {}]
  %s4 = sld [smem:[#allocation0]]
  $region22: #{net_forward.19} parent=0
    _
  %s6 = ssub.s32 1, %s4
  %s7 = scalar_select 0, %s6, %s4
  // Predicated region
  $region2: #{net_forward.19} parent=0 // pred_check
    _
  $region3: #{net_forward.19} parent=0 // pred_check_branch
    %9 = sbr.rel (0) target = $region5
  $region4: #{net_forward.19} parent=0 // pred_region
    _
  $region5: #{net_forward.19} parent=0 // pred_fallthru
    _
  // Predicated region
  $region6: #{net_forward.19} parent=0 // pred_check
    _
  $region7: #{net_forward.19} parent=0 // pred_check_branch
    %11 = sbr.rel (0) target = $region9
  $region8: #{net_forward.19} parent=0 // pred_region
    _
  $region9: #{net_forward.19} parent=0 // pred_fallthru
    _
  // Predicated region
  $region10: #{net_forward.19} parent=0 // pred_check
    _
  $region11: #{net_forward.19} parent=0 // pred_check_branch
    %13 = sbr.rel (0) target = $region13
  $region12: #{net_forward.19} parent=0 // pred_region
    _
  $region13: #{net_forward.19} parent=0 // pred_fallthru
    _
  %v14 = vld [vmem:[%s0] sm:$0xff]
  %v15 = vld [vmem:[%s0 + $0x8] sm:$0xff]
  %v16 = vld [vmem:[%s0 + $0x10] sm:$0xff]
  %v17 = vld [vmem:[%s0 + $0x18] sm:$0xff]
  %v18 = vld [vmem:[%s0 + $0x20] sm:$0xff]
  %v19 = vld [vmem:[%s0 + $0x28] sm:$0xff]
  %v20 = vld [vmem:[%s0 + $0x30] sm:$0xff]
  %v21 = vld [vmem:[%s0 + $0x38] sm:$0xff]
  %v22 = vld [vmem:[%s0 + $0x40] sm:$0xff]
  %v23 = vld [vmem:[%s0 + $0x48] sm:$0xff]
  %v24 = vld [vmem:[%s0 + $0x50] sm:$0xff]
  %v25 = vld [vmem:[%s0 + $0x58] sm:$0xff]
  %v26 = vld [vmem:[%s0 + $0x60] sm:$0xff]
  %v27 = vld [vmem:[%s0 + $0x68] sm:$0xff]
  %v28 = vld [vmem:[%s0 + $0x70] sm:$0xff]
  %v29 = vld [vmem:[%s0 + $0x78] sm:$0xff]
  %v30 = vld [vmem:[%s0 + $0x80] sm:$0xff]
  %v31 = vld [vmem:[%s0 + $0x88] sm:$0xff]
  %v32 = vld [vmem:[%s0 + $0x90] sm:$0xff]
  %v33 = vld [vmem:[%s0 + $0x98] sm:$0xff]
  %v34 = vld [vmem:[%s0 + $0xa0] sm:$0xff]
  %v35 = vld [vmem:[%s0 + $0xa8] sm:$0xff]
  %v36 = vld [vmem:[%s0 + $0xb0] sm:$0xff]
  %v37 = vld [vmem:[%s0 + $0xb8] sm:$0xff]
  %v38 = vld [vmem:[%s0 + $0xc0] sm:$0xff]
  %v39 = vld [vmem:[%s0 + $0xc8] sm:$0xff]
  %v40 = vld [vmem:[%s0 + $0xd0] sm:$0xff]
  %v41 = vld [vmem:[%s0 + $0xd8] sm:$0xff]
  %v42 = vld [vmem:[%s0 + $0xe0] sm:$0xff]
  %v43 = vld [vmem:[%s0 + $0xe8] sm:$0xff]
  %v44 = vld [vmem:[%s0 + $0xf0] sm:$0xff]
  %v45 = vld [vmem:[%s0 + $0xf8] sm:$0xff]
  %v46 = vld [vmem:[%s0 + $0x100] sm:$0xff]
  %v47 = vld [vmem:[%s0 + $0x108] sm:$0xff]
  %v48 = vld [vmem:[%s0 + $0x110] sm:$0xff]
  %v49 = vld [vmem:[%s0 + $0x118] sm:$0xff]
  %v50 = vld [vmem:[%s1] sm:$0xff]
  %v51 = vld [vmem:[%s1 + $0x8] sm:$0xff]
  %v52 = vld [vmem:[%s2] sm:$0x1]
  %v54 = vlaneseq
  %v55 = vshrl.u32 %v54, 7
  %v56 = vsub.s32 0, %v55
  %v57 = vrot.slane %v52, %v56
  %vm59 = vcmask 130048
  %v61 = vsel %vm59, %v14, 0
  %v64 = vsel %vm59, %v15, 0
  %v67 = vsel %vm59, %v16, 0
  %v70 = vsel %vm59, %v17, 0
  %v73 = vsel %vm59, %v18, 0
  %v76 = vsel %vm59, %v19, 0
  %v79 = vsel %vm59, %v20, 0
  %v82 = vsel %vm59, %v21, 0
  %v85 = vsel %vm59, %v22, 0
  %v88 = vsel %vm59, %v23, 0
  %v91 = vsel %vm59, %v24, 0
  %v94 = vsel %vm59, %v25, 0
  %v97 = vsel %vm59, %v26, 0
  %v100 = vsel %vm59, %v27, 0
  %v103 = vsel %vm59, %v28, 0
  %v106 = vsel %vm59, %v29, 0
  %v109 = vsel %vm59, %v30, 0
  %v112 = vsel %vm59, %v31, 0
  %v115 = vsel %vm59, %v32, 0
  %v118 = vsel %vm59, %v33, 0
  %v121 = vsel %vm59, %v34, 0
  %v124 = vsel %vm59, %v35, 0
  %v127 = vsel %vm59, %v36, 0
  %v130 = vsel %vm59, %v37, 0
  %v133 = vsel %vm59, %v38, 0
  %v136 = vsel %vm59, %v39, 0
  %v139 = vsel %vm59, %v40, 0
  %v142 = vsel %vm59, %v41, 0
  %v145 = vsel %vm59, %v42, 0
  %v148 = vsel %vm59, %v43, 0
  %v151 = vsel %vm59, %v44, 0
  %v154 = vsel %vm59, %v45, 0
  %v157 = vsel %vm59, %v46, 0
  %v160 = vsel %vm59, %v47, 0
  %v163 = vsel %vm59, %v48, 0
  %v166 = vsel %vm59, %v49, 0
  %168 = vmatprep.subr.mxu0 0.0
  %169 = vmatpush1.msra.mxu0 %v50
  %170 = vmatprep.subr.mxu0 0.0
  %171 = vmatpush1.msra.mxu0 %v51
  %172 = vmatprep.subr.mxu0 0.0
  %173 = vmatpush1.msra.mxu0 0.0
  %174 = vmatprep.subr.mxu0 0.0
  %175 = vmatpush1.msra.mxu0 0.0
  %176 = vmatprep.subr.mxu0 0.0
  %177 = vmatpush1.msra.mxu0 0.0
  %178 = vmatprep.subr.mxu0 0.0
  %179 = vmatpush1.msra.mxu0 0.0
  %180 = vmatprep.subr.mxu0 0.0
  %181 = vmatpush1.msra.mxu0 0.0
  %182 = vmatprep.subr.mxu0 0.0
  %183 = vmatpush1.msra.mxu0 0.0
  %184 = vmatprep.subr.mxu0 0.0
  %185 = vmatpush1.msra.mxu0 0.0
  %186 = vmatprep.subr.mxu0 0.0
  %187 = vmatpush1.msra.mxu0 0.0
  %188 = vmatprep.subr.mxu0 0.0
  %189 = vmatpush1.msra.mxu0 0.0
  %190 = vmatprep.subr.mxu0 0.0
  %191 = vmatpush1.msra.mxu0 0.0
  %192 = vmatprep.subr.mxu0 0.0
  %193 = vmatpush1.msra.mxu0 0.0
  %194 = vmatprep.subr.mxu0 0.0
  %195 = vmatpush1.msra.mxu0 0.0
  %196 = vmatprep.subr.mxu0 0.0
  %197 = vmatpush1.msra.mxu0 0.0
  %198 = vmatprep.subr.mxu0 0.0
  %199 = vmatpush1.msra.mxu0 0.0
  %200 = vmatprep.subr.mxu0 0.0
  %201 = vmatpush1.msra.mxu0 0.0
  %202 = vmatprep.subr.mxu0 0.0
  %203 = vmatpush1.msra.mxu0 0.0
  %204 = vmatprep.subr.mxu0 0.0
  %205 = vmatpush1.msra.mxu0 0.0
  %206 = vmatprep.subr.mxu0 0.0
  %207 = vmatpush1.msra.mxu0 0.0
  %208 = vmatprep.subr.mxu0 0.0
  %209 = vmatpush1.msra.mxu0 0.0
  %210 = vmatprep.subr.mxu0 0.0
  %211 = vmatpush1.msra.mxu0 0.0
  %212 = vmatprep.subr.mxu0 0.0
  %213 = vmatpush1.msra.mxu0 0.0
  %214 = vmatprep.subr.mxu0 0.0
  %215 = vmatpush1.msra.mxu0 0.0
  %216 = vmatprep.subr.mxu0 0.0
  %217 = vmatpush1.msra.mxu0 0.0
  %218 = vmatprep.subr.mxu0 0.0
  %219 = vmatpush1.msra.mxu0 0.0
  %220 = vmatprep.subr.mxu0 0.0
  %221 = vmatpush1.msra.mxu0 0.0
  %222 = vmatprep.subr.mxu0 0.0
  %223 = vmatpush1.msra.mxu0 0.0
  %224 = vmatprep.subr.mxu0 0.0
  %225 = vmatpush1.msra.mxu0 0.0
  %226 = vmatprep.subr.mxu0 0.0
  %227 = vmatpush1.msra.mxu0 0.0
  %228 = vmatprep.subr.mxu0 0.0
  %229 = vmatpush1.msra.mxu0 0.0
  %230 = vmatprep.subr.mxu0 0.0
  %231 = vmatpush1.msra.mxu0 0.0
  %232 = vmatprep.mubr.f32.mxu0 0.0
  %233 = vmatmul.mubr.f32.gmra.mrb[0].mxu0 %v61
  %v234 = vpop.f32.mrb[0].mxu0
  %v235 = vadd.f32 %v57, %v234
  %v236 = vpop.f32.mrb[0].mxu0
  %237 = vmatprep.mubr.f32.mxu0 0.0
  %238 = vmatmul.mubr.f32.gmra.mrb[0].mxu0 %v64
  %v239 = vpop.f32.mrb[0].mxu0
  %v240 = vadd.f32 %v57, %v239
  %v241 = vpop.f32.mrb[0].mxu0
  %242 = vmatprep.mubr.f32.mxu0 0.0
  %243 = vmatmul.mubr.f32.gmra.mrb[0].mxu0 %v67
  %v244 = vpop.f32.mrb[0].mxu0
  %v245 = vadd.f32 %v57, %v244
  %v246 = vpop.f32.mrb[0].mxu0
  %247 = vmatprep.mubr.f32.mxu0 0.0
  %248 = vmatmul.mubr.f32.gmra.mrb[0].mxu0 %v70
  %v249 = vpop.f32.mrb[0].mxu0
  %v250 = vadd.f32 %v57, %v249
  %v251 = vpop.f32.mrb[0].mxu0
  %252 = vmatprep.mubr.f32.mxu0 0.0
  %253 = vmatmul.mubr.f32.gmra.mrb[0].mxu0 %v73
  %v254 = vpop.f32.mrb[0].mxu0
  %v255 = vadd.f32 %v57, %v254
  %v256 = vpop.f32.mrb[0].mxu0
  %257 = vmatprep.mubr.f32.mxu0 0.0
  %258 = vmatmul.mubr.f32.gmra.mrb[0].mxu0 %v76
  %v259 = vpop.f32.mrb[0].mxu0
  %v260 = vadd.f32 %v57, %v259
  %v261 = vpop.f32.mrb[0].mxu0
  %262 = vmatprep.mubr.f32.mxu0 0.0
  %263 = vmatmul.mubr.f32.gmra.mrb[0].mxu0 %v79
  %v264 = vpop.f32.mrb[0].mxu0
  %v265 = vadd.f32 %v57, %v264
  %v266 = vpop.f32.mrb[0].mxu0
  %267 = vmatprep.mubr.f32.mxu0 0.0
  %268 = vmatmul.mubr.f32.gmra.mrb[0].mxu0 %v82
  %v269 = vpop.f32.mrb[0].mxu0
  %v270 = vadd.f32 %v57, %v269
  %v271 = vpop.f32.mrb[0].mxu0
  %272 = vmatprep.mubr.f32.mxu0 0.0
  %273 = vmatmul.mubr.f32.gmra.mrb[0].mxu0 %v85
  %v274 = vpop.f32.mrb[0].mxu0
  %v275 = vadd.f32 %v57, %v274
  %v276 = vpop.f32.mrb[0].mxu0
  %277 = vmatprep.mubr.f32.mxu0 0.0
  %278 = vmatmul.mubr.f32.gmra.mrb[0].mxu0 %v88
  %v279 = vpop.f32.mrb[0].mxu0
  %v280 = vadd.f32 %v57, %v279
  %v281 = vpop.f32.mrb[0].mxu0
  %282 = vmatprep.mubr.f32.mxu0 0.0
  %283 = vmatmul.mubr.f32.gmra.mrb[0].mxu0 %v91
  %v284 = vpop.f32.mrb[0].mxu0
  %v285 = vadd.f32 %v57, %v284
  %v286 = vpop.f32.mrb[0].mxu0
  %287 = vmatprep.mubr.f32.mxu0 0.0
  %288 = vmatmul.mubr.f32.gmra.mrb[0].mxu0 %v94
  %v289 = vpop.f32.mrb[0].mxu0
  %v290 = vadd.f32 %v57, %v289
  %v291 = vpop.f32.mrb[0].mxu0
  %292 = vmatprep.mubr.f32.mxu0 0.0
  %293 = vmatmul.mubr.f32.gmra.mrb[0].mxu0 %v97
  %v294 = vpop.f32.mrb[0].mxu0
  %v295 = vadd.f32 %v57, %v294
  %v296 = vpop.f32.mrb[0].mxu0
  %297 = vmatprep.mubr.f32.mxu0 0.0
  %298 = vmatmul.mubr.f32.gmra.mrb[0].mxu0 %v100
  %v299 = vpop.f32.mrb[0].mxu0
  %v300 = vadd.f32 %v57, %v299
  %v301 = vpop.f32.mrb[0].mxu0
  %302 = vmatprep.mubr.f32.mxu0 0.0
  %303 = vmatmul.mubr.f32.gmra.mrb[0].mxu0 %v103
  %v304 = vpop.f32.mrb[0].mxu0
  %v305 = vadd.f32 %v57, %v304
  %v306 = vpop.f32.mrb[0].mxu0
  %307 = vmatprep.mubr.f32.mxu0 0.0
  %308 = vmatmul.mubr.f32.gmra.mrb[0].mxu0 %v106
  %v309 = vpop.f32.mrb[0].mxu0
  %v310 = vadd.f32 %v57, %v309
  %v311 = vpop.f32.mrb[0].mxu0
  %312 = vmatprep.mubr.f32.mxu0 0.0
  %313 = vmatmul.mubr.f32.gmra.mrb[0].mxu0 %v109
  %v314 = vpop.f32.mrb[0].mxu0
  %v315 = vadd.f32 %v57, %v314
  %v316 = vpop.f32.mrb[0].mxu0
  %317 = vmatprep.mubr.f32.mxu0 0.0
  %318 = vmatmul.mubr.f32.gmra.mrb[0].mxu0 %v112
  %v319 = vpop.f32.mrb[0].mxu0
  %v320 = vadd.f32 %v57, %v319
  %v321 = vpop.f32.mrb[0].mxu0
  %322 = vmatprep.mubr.f32.mxu0 0.0
  %323 = vmatmul.mubr.f32.gmra.mrb[0].mxu0 %v115
  %v324 = vpop.f32.mrb[0].mxu0
  %v325 = vadd.f32 %v57, %v324
  %v326 = vpop.f32.mrb[0].mxu0
  %327 = vmatprep.mubr.f32.mxu0 0.0
  %328 = vmatmul.mubr.f32.gmra.mrb[0].mxu0 %v118
  %v329 = vpop.f32.mrb[0].mxu0
  %v330 = vadd.f32 %v57, %v329
  %v331 = vpop.f32.mrb[0].mxu0
  %332 = vmatprep.mubr.f32.mxu0 0.0
  %333 = vmatmul.mubr.f32.gmra.mrb[0].mxu0 %v121
  %v334 = vpop.f32.mrb[0].mxu0
  %v335 = vadd.f32 %v57, %v334
  %v336 = vpop.f32.mrb[0].mxu0
  %337 = vmatprep.mubr.f32.mxu0 0.0
  %338 = vmatmul.mubr.f32.gmra.mrb[0].mxu0 %v124
  %v339 = vpop.f32.mrb[0].mxu0
  %v340 = vadd.f32 %v57, %v339
  %v341 = vpop.f32.mrb[0].mxu0
  %342 = vmatprep.mubr.f32.mxu0 0.0
  %343 = vmatmul.mubr.f32.gmra.mrb[0].mxu0 %v127
  %v344 = vpop.f32.mrb[0].mxu0
  %v345 = vadd.f32 %v57, %v344
  %v346 = vpop.f32.mrb[0].mxu0
  %347 = vmatprep.mubr.f32.mxu0 0.0
  %348 = vmatmul.mubr.f32.gmra.mrb[0].mxu0 %v130
  %v349 = vpop.f32.mrb[0].mxu0
  %v350 = vadd.f32 %v57, %v349
  %v351 = vpop.f32.mrb[0].mxu0
  %352 = vmatprep.mubr.f32.mxu0 0.0
  %353 = vmatmul.mubr.f32.gmra.mrb[0].mxu0 %v133
  %v354 = vpop.f32.mrb[0].mxu0
  %v355 = vadd.f32 %v57, %v354
  %v356 = vpop.f32.mrb[0].mxu0
  %357 = vmatprep.mubr.f32.mxu0 0.0
  %358 = vmatmul.mubr.f32.gmra.mrb[0].mxu0 %v136
  %v359 = vpop.f32.mrb[0].mxu0
  %v360 = vadd.f32 %v57, %v359
  %v361 = vpop.f32.mrb[0].mxu0
  %362 = vmatprep.mubr.f32.mxu0 0.0
  %363 = vmatmul.mubr.f32.gmra.mrb[0].mxu0 %v139
  %v364 = vpop.f32.mrb[0].mxu0
  %v365 = vadd.f32 %v57, %v364
  %v366 = vpop.f32.mrb[0].mxu0
  %367 = vmatprep.mubr.f32.mxu0 0.0
  %368 = vmatmul.mubr.f32.gmra.mrb[0].mxu0 %v142
  %v369 = vpop.f32.mrb[0].mxu0
  %v370 = vadd.f32 %v57, %v369
  %v371 = vpop.f32.mrb[0].mxu0
  %372 = vmatprep.mubr.f32.mxu0 0.0
  %373 = vmatmul.mubr.f32.gmra.mrb[0].mxu0 %v145
  %v374 = vpop.f32.mrb[0].mxu0
  %v375 = vadd.f32 %v57, %v374
  %v376 = vpop.f32.mrb[0].mxu0
  %377 = vmatprep.mubr.f32.mxu0 0.0
  %378 = vmatmul.mubr.f32.gmra.mrb[0].mxu0 %v148
  %v379 = vpop.f32.mrb[0].mxu0
  %v380 = vadd.f32 %v57, %v379
  %v381 = vpop.f32.mrb[0].mxu0
  %382 = vmatprep.mubr.f32.mxu0 0.0
  %383 = vmatmul.mubr.f32.gmra.mrb[0].mxu0 %v151
  %v384 = vpop.f32.mrb[0].mxu0
  %v385 = vadd.f32 %v57, %v384
  %v386 = vpop.f32.mrb[0].mxu0
  %387 = vmatprep.mubr.f32.mxu0 0.0
  %388 = vmatmul.mubr.f32.gmra.mrb[0].mxu0 %v154
  %v389 = vpop.f32.mrb[0].mxu0
  %v390 = vadd.f32 %v57, %v389
  %v391 = vpop.f32.mrb[0].mxu0
  %392 = vmatprep.mubr.f32.mxu0 0.0
  %393 = vmatmul.mubr.f32.gmra.mrb[0].mxu0 %v157
  %v394 = vpop.f32.mrb[0].mxu0
  %v395 = vadd.f32 %v57, %v394
  %v396 = vpop.f32.mrb[0].mxu0
  %397 = vmatprep.mubr.f32.mxu0 0.0
  %398 = vmatmul.mubr.f32.gmra.mrb[0].mxu0 %v160
  %v399 = vpop.f32.mrb[0].mxu0
  %v400 = vadd.f32 %v57, %v399
  %v401 = vpop.f32.mrb[0].mxu0
  %402 = vmatprep.mubr.f32.mxu0 0.0
  %403 = vmatmul.mubr.f32.gmra.mrb[0].mxu0 %v163
  %v404 = vpop.f32.mrb[0].mxu0
  %v405 = vadd.f32 %v57, %v404
  %v406 = vpop.f32.mrb[0].mxu0
  %407 = vmatprep.mubr.f32.mxu0 0.0
  %408 = vmatmul.mubr.f32.gmra.mrb[0].mxu0 %v166
  %v409 = vpop.f32.mrb[0].mxu0
  %v410 = vadd.f32 %v57, %v409
  %v411 = vpop.f32.mrb[0].mxu0
  %412 = vdwg.mxu0
  %vm413 = vcmask 392192
  %414 = vst.msk [vmem:[%s3] sm:$0xff] %vm413, %v235
  %415 = vst.msk [vmem:[%s3 + $0x8] sm:$0xff] %vm413, %v240
  %416 = vst.msk [vmem:[%s3 + $0x10] sm:$0xff] %vm413, %v245
  %417 = vst.msk [vmem:[%s3 + $0x18] sm:$0xff] %vm413, %v250
  %418 = vst.msk [vmem:[%s3 + $0x20] sm:$0xff] %vm413, %v255
  %419 = vst.msk [vmem:[%s3 + $0x28] sm:$0xff] %vm413, %v260
  %420 = vst.msk [vmem:[%s3 + $0x30] sm:$0xff] %vm413, %v265
  %421 = vst.msk [vmem:[%s3 + $0x38] sm:$0xff] %vm413, %v270
  %422 = vst.msk [vmem:[%s3 + $0x40] sm:$0xff] %vm413, %v275
  %423 = vst.msk [vmem:[%s3 + $0x48] sm:$0xff] %vm413, %v280
  %424 = vst.msk [vmem:[%s3 + $0x50] sm:$0xff] %vm413, %v285
  %425 = vst.msk [vmem:[%s3 + $0x58] sm:$0xff] %vm413, %v290
  %426 = vst.msk [vmem:[%s3 + $0x60] sm:$0xff] %vm413, %v295
  %427 = vst.msk [vmem:[%s3 + $0x68] sm:$0xff] %vm413, %v300
  %428 = vst.msk [vmem:[%s3 + $0x70] sm:$0xff] %vm413, %v305
  %429 = vst.msk [vmem:[%s3 + $0x78] sm:$0xff] %vm413, %v310
  %430 = vst.msk [vmem:[%s3 + $0x80] sm:$0xff] %vm413, %v315
  %431 = vst.msk [vmem:[%s3 + $0x88] sm:$0xff] %vm413, %v320
  %432 = vst.msk [vmem:[%s3 + $0x90] sm:$0xff] %vm413, %v325
  %433 = vst.msk [vmem:[%s3 + $0x98] sm:$0xff] %vm413, %v330
  %434 = vst.msk [vmem:[%s3 + $0xa0] sm:$0xff] %vm413, %v335
  %435 = vst.msk [vmem:[%s3 + $0xa8] sm:$0xff] %vm413, %v340
  %436 = vst.msk [vmem:[%s3 + $0xb0] sm:$0xff] %vm413, %v345
  %437 = vst.msk [vmem:[%s3 + $0xb8] sm:$0xff] %vm413, %v350
  %438 = vst.msk [vmem:[%s3 + $0xc0] sm:$0xff] %vm413, %v355
  %439 = vst.msk [vmem:[%s3 + $0xc8] sm:$0xff] %vm413, %v360
  %440 = vst.msk [vmem:[%s3 + $0xd0] sm:$0xff] %vm413, %v365
  %441 = vst.msk [vmem:[%s3 + $0xd8] sm:$0xff] %vm413, %v370
  %442 = vst.msk [vmem:[%s3 + $0xe0] sm:$0xff] %vm413, %v375
  %443 = vst.msk [vmem:[%s3 + $0xe8] sm:$0xff] %vm413, %v380
  %444 = vst.msk [vmem:[%s3 + $0xf0] sm:$0xff] %vm413, %v385
  %445 = vst.msk [vmem:[%s3 + $0xf8] sm:$0xff] %vm413, %v390
  %446 = vst.msk [vmem:[%s3 + $0x100] sm:$0xff] %vm413, %v395
  %447 = vst.msk [vmem:[%s3 + $0x108] sm:$0xff] %vm413, %v400
  %448 = vst.msk [vmem:[%s3 + $0x110] sm:$0xff] %vm413, %v405
  %449 = vst.msk [vmem:[%s3 + $0x118] sm:$0xff] %vm413, %v410
  // Predicated region
  $region14: #{net_forward.19} parent=0 // pred_check
    _
  $region15: #{net_forward.19} parent=0 // pred_check_branch
    %451 = sbr.rel (0) target = $region17
  $region16: #{net_forward.19} parent=0 // pred_region
    _
  $region17: #{net_forward.19} parent=0 // pred_fallthru
    _
  // Predicated region
  $region18: #{net_forward.19} parent=0 // pred_check
    _
  $region19: #{net_forward.19} parent=0 // pred_check_branch
    %453 = sbr.rel (0) target = $region21
  $region20: #{net_forward.19} parent=0 // pred_region
    _
  $region21: #{net_forward.19} parent=0 // pred_fallthru
    _

// kernel: net_forward.21
$region0: #{net_forward.21}
  #allocation0 [shape = 'u32[]', space=smem, size = 0x4, offset = 0x4, fixed_abs, tag = 'smem constant byte address 0x4 - core index']
  #allocation1 [shape = 'u32[144,128]{1,0:T(1,128)}', space=vmem, size = 0x12000, scoped, tag = 'internal scratch']
  %s0 = inlined_call_operand.vmem [shape: f32[288,144], index: 0, kind: input, shape index: {}]
  %s1 = inlined_call_operand.vmem [shape: f32[144,24], index: 1, kind: input, shape index: {}]
  %s2 = inlined_call_operand.vmem [shape: f32[1,24], index: 2, kind: input, shape index: {}]
  %s3 = inlined_call_operand.vmem [shape: f32[288,24], index: 3, kind: output, shape index: {}]
  %s4 = sld [smem:[#allocation0]]
  $region22: #{net_forward.21} parent=0
    _
  %s6 = ssub.s32 1, %s4
  %s7 = scalar_select 0, %s6, %s4
  // Predicated region
  $region2: #{net_forward.21} parent=0 // pred_check
    _
  $region3: #{net_forward.21} parent=0 // pred_check_branch
    %9 = sbr.rel (0) target = $region5
  $region4: #{net_forward.21} parent=0 // pred_region
    _
  $region5: #{net_forward.21} parent=0 // pred_fallthru
    _
  // Predicated region
  $region6: #{net_forward.21} parent=0 // pred_check
    _
  $region7: #{net_forward.21} parent=0 // pred_check_branch
    %11 = sbr.rel (0) target = $region9
  $region8: #{net_forward.21} parent=0 // pred_region
    _
  $region9: #{net_forward.21} parent=0 // pred_fallthru
    _
  // Predicated region
  $region10: #{net_forward.21} parent=0 // pred_check
    _
  $region11: #{net_forward.21} parent=0 // pred_check_branch
    %13 = sbr.rel (0) target = $region13
  $region12: #{net_forward.21} parent=0 // pred_region
    _
  $region13: #{net_forward.21} parent=0 // pred_fallthru
    _
  %v14 = vld [vmem:[%s0] sm:$0xff]
  %v15 = vld [vmem:[%s0 + $0x8] sm:$0xff]
  %v16 = vld [vmem:[%s0 + $0x10] sm:$0xff]
  %v17 = vld [vmem:[%s0 + $0x18] sm:$0xff]
  %v18 = vld [vmem:[%s0 + $0x20] sm:$0xff]
  %v19 = vld [vmem:[%s0 + $0x28] sm:$0xff]
  %v20 = vld [vmem:[%s0 + $0x30] sm:$0xff]
  %v21 = vld [vmem:[%s0 + $0x38] sm:$0xff]
  %v22 = vld [vmem:[%s0 + $0x40] sm:$0xff]
  %v23 = vld [vmem:[%s0 + $0x48] sm:$0xff]
  %v24 = vld [vmem:[%s0 + $0x50] sm:$0xff]
  %v25 = vld [vmem:[%s0 + $0x58] sm:$0xff]
  %v26 = vld [vmem:[%s0 + $0x60] sm:$0xff]
  %v27 = vld [vmem:[%s0 + $0x68] sm:$0xff]
  %v28 = vld [vmem:[%s0 + $0x70] sm:$0xff]
  %v29 = vld [vmem:[%s0 + $0x78] sm:$0xff]
  %v30 = vld [vmem:[%s0 + $0x80] sm:$0xff]
  %v31 = vld [vmem:[%s0 + $0x88] sm:$0xff]
  %v32 = vld [vmem:[%s0 + $0x90] sm:$0xff]
  %v33 = vld [vmem:[%s0 + $0x98] sm:$0xff]
  %v34 = vld [vmem:[%s0 + $0xa0] sm:$0xff]
  %v35 = vld [vmem:[%s0 + $0xa8] sm:$0xff]
  %v36 = vld [vmem:[%s0 + $0xb0] sm:$0xff]
  %v37 = vld [vmem:[%s0 + $0xb8] sm:$0xff]
  %v38 = vld [vmem:[%s0 + $0xc0] sm:$0xff]
  %v39 = vld [vmem:[%s0 + $0xc8] sm:$0xff]
  %v40 = vld [vmem:[%s0 + $0xd0] sm:$0xff]
  %v41 = vld [vmem:[%s0 + $0xd8] sm:$0xff]
  %v42 = vld [vmem:[%s0 + $0xe0] sm:$0xff]
  %v43 = vld [vmem:[%s0 + $0xe8] sm:$0xff]
  %v44 = vld [vmem:[%s0 + $0xf0] sm:$0xff]
  %v45 = vld [vmem:[%s0 + $0xf8] sm:$0xff]
  %v46 = vld [vmem:[%s0 + $0x100] sm:$0xff]
  %v47 = vld [vmem:[%s0 + $0x108] sm:$0xff]
  %v48 = vld [vmem:[%s0 + $0x110] sm:$0xff]
  %v49 = vld [vmem:[%s0 + $0x118] sm:$0xff]
  %v50 = vld [vmem:[%s0 + $0x120] sm:$0xff]
  %v51 = vld [vmem:[%s0 + $0x128] sm:$0xff]
  %v52 = vld [vmem:[%s0 + $0x130] sm:$0xff]
  %v53 = vld [vmem:[%s0 + $0x138] sm:$0xff]
  %v54 = vld [vmem:[%s0 + $0x140] sm:$0xff]
  %v55 = vld [vmem:[%s0 + $0x148] sm:$0xff]
  %v56 = vld [vmem:[%s0 + $0x150] sm:$0xff]
  %v57 = vld [vmem:[%s0 + $0x158] sm:$0xff]
  %v58 = vld [vmem:[%s0 + $0x160] sm:$0xff]
  %v59 = vld [vmem:[%s0 + $0x168] sm:$0xff]
  %v60 = vld [vmem:[%s0 + $0x170] sm:$0xff]
  %v61 = vld [vmem:[%s0 + $0x178] sm:$0xff]
  %v62 = vld [vmem:[%s0 + $0x180] sm:$0xff]
  %v63 = vld [vmem:[%s0 + $0x188] sm:$0xff]
  %v64 = vld [vmem:[%s0 + $0x190] sm:$0xff]
  %v65 = vld [vmem:[%s0 + $0x198] sm:$0xff]
  %v66 = vld [vmem:[%s0 + $0x1a0] sm:$0xff]
  %v67 = vld [vmem:[%s0 + $0x1a8] sm:$0xff]
  %v68 = vld [vmem:[%s0 + $0x1b0] sm:$0xff]
  %v69 = vld [vmem:[%s0 + $0x1b8] sm:$0xff]
  %v70 = vld [vmem:[%s0 + $0x1c0] sm:$0xff]
  %v71 = vld [vmem:[%s0 + $0x1c8] sm:$0xff]
  %v72 = vld [vmem:[%s0 + $0x1d0] sm:$0xff]
  %v73 = vld [vmem:[%s0 + $0x1d8] sm:$0xff]
  %v74 = vld [vmem:[%s0 + $0x1e0] sm:$0xff]
  %v75 = vld [vmem:[%s0 + $0x1e8] sm:$0xff]
  %v76 = vld [vmem:[%s0 + $0x1f0] sm:$0xff]
  %v77 = vld [vmem:[%s0 + $0x1f8] sm:$0xff]
  %v78 = vld [vmem:[%s0 + $0x200] sm:$0xff]
  %v79 = vld [vmem:[%s0 + $0x208] sm:$0xff]
  %v80 = vld [vmem:[%s0 + $0x210] sm:$0xff]
  %v81 = vld [vmem:[%s0 + $0x218] sm:$0xff]
  %v82 = vld [vmem:[%s0 + $0x220] sm:$0xff]
  %v83 = vld [vmem:[%s0 + $0x228] sm:$0xff]
  %v84 = vld [vmem:[%s0 + $0x230] sm:$0xff]
  %v85 = vld [vmem:[%s0 + $0x238] sm:$0xff]
  %v86 = vld [vmem:[%s1] sm:$0xff]
  %v87 = vld [vmem:[%s1 + $0x8] sm:$0xff]
  %v88 = vld [vmem:[%s1 + $0x10] sm:$0xff]
  %v89 = vld [vmem:[%s1 + $0x18] sm:$0xff]
  %v90 = vld [vmem:[%s1 + $0x20] sm:$0xff]
  %v91 = vld [vmem:[%s1 + $0x28] sm:$0xff]
  %v92 = vld [vmem:[%s1 + $0x30] sm:$0xff]
  %v93 = vld [vmem:[%s1 + $0x38] sm:$0xff]
  %v94 = vld [vmem:[%s1 + $0x40] sm:$0xff]
  %v95 = vld [vmem:[%s1 + $0x48] sm:$0xff]
  %v96 = vld [vmem:[%s1 + $0x50] sm:$0xff]
  %v97 = vld [vmem:[%s1 + $0x58] sm:$0xff]
  %v98 = vld [vmem:[%s1 + $0x60] sm:$0xff]
  %v99 = vld [vmem:[%s1 + $0x68] sm:$0xff]
  %v100 = vld [vmem:[%s1 + $0x70] sm:$0xff]
  %v101 = vld [vmem:[%s1 + $0x78] sm:$0xff]
  %v102 = vld [vmem:[%s1 + $0x80] sm:$0xff]
  %v103 = vld [vmem:[%s1 + $0x88] sm:$0xff]
  %v104 = vld [vmem:[%s2] sm:$0x1]
  %v106 = vlaneseq
  %v107 = vshrl.u32 %v106, 7
  %v108 = vsub.s32 0, %v107
  %v109 = vrot.slane %v104, %v108
  %vm111 = vcmask 130048
  %v113 = vsel %vm111, %v15, 0
  %v116 = vsel %vm111, %v17, 0
  %v119 = vsel %vm111, %v19, 0
  %v122 = vsel %vm111, %v21, 0
  %v125 = vsel %vm111, %v23, 0
  %v128 = vsel %vm111, %v25, 0
  %v131 = vsel %vm111, %v27, 0
  %v134 = vsel %vm111, %v29, 0
  %v137 = vsel %vm111, %v31, 0
  %v140 = vsel %vm111, %v33, 0
  %v143 = vsel %vm111, %v35, 0
  %v146 = vsel %vm111, %v37, 0
  %v149 = vsel %vm111, %v39, 0
  %v152 = vsel %vm111, %v41, 0
  %v155 = vsel %vm111, %v43, 0
  %v158 = vsel %vm111, %v45, 0
  %v161 = vsel %vm111, %v47, 0
  %v164 = vsel %vm111, %v49, 0
  %v167 = vsel %vm111, %v51, 0
  %v170 = vsel %vm111, %v53, 0
  %v173 = vsel %vm111, %v55, 0
  %v176 = vsel %vm111, %v57, 0
  %v179 = vsel %vm111, %v59, 0
  %v182 = vsel %vm111, %v61, 0
  %v185 = vsel %vm111, %v63, 0
  %v188 = vsel %vm111, %v65, 0
  %v191 = vsel %vm111, %v67, 0
  %v194 = vsel %vm111, %v69, 0
  %v197 = vsel %vm111, %v71, 0
  %v200 = vsel %vm111, %v73, 0
  %v203 = vsel %vm111, %v75, 0
  %v206 = vsel %vm111, %v77, 0
  %v209 = vsel %vm111, %v79, 0
  %v212 = vsel %vm111, %v81, 0
  %v215 = vsel %vm111, %v83, 0
  %v218 = vsel %vm111, %v85, 0
  %220 = vmatprep.subr.mxu0 0.0
  %221 = vmatpush1.msra.mxu0 %v86
  %222 = vmatprep.subr.mxu0 0.0
  %223 = vmatpush1.msra.mxu0 %v87
  %224 = vmatprep.subr.mxu0 0.0
  %225 = vmatpush1.msra.mxu0 %v88
  %226 = vmatprep.subr.mxu0 0.0
  %227 = vmatpush1.msra.mxu0 %v89
  %228 = vmatprep.subr.mxu0 0.0
  %229 = vmatpush1.msra.mxu0 %v90
  %230 = vmatprep.subr.mxu0 0.0
  %231 = vmatpush1.msra.mxu0 %v91
  %232 = vmatprep.subr.mxu0 0.0
  %233 = vmatpush1.msra.mxu0 %v92
  %234 = vmatprep.subr.mxu0 0.0
  %235 = vmatpush1.msra.mxu0 %v93
  %236 = vmatprep.subr.mxu0 0.0
  %237 = vmatpush1.msra.mxu0 %v94
  %238 = vmatprep.subr.mxu0 0.0
  %239 = vmatpush1.msra.mxu0 %v95
  %240 = vmatprep.subr.mxu0 0.0
  %241 = vmatpush1.msra.mxu0 %v96
  %242 = vmatprep.subr.mxu0 0.0
  %243 = vmatpush1.msra.mxu0 %v97
  %244 = vmatprep.subr.mxu0 0.0
  %245 = vmatpush1.msra.mxu0 %v98
  %246 = vmatprep.subr.mxu0 0.0
  %247 = vmatpush1.msra.mxu0 %v99
  %248 = vmatprep.subr.mxu0 0.0
  %249 = vmatpush1.msra.mxu0 %v100
  %250 = vmatprep.subr.mxu0 0.0
  %251 = vmatpush1.msra.mxu0 %v101
  %252 = vmatprep.subr.mxu0 0.0
  %253 = vmatpush1.msra.mxu0 %v102
  %254 = vmatprep.subr.mxu0 0.0
  %255 = vmatpush1.msra.mxu0 %v103
  %256 = vmatprep.subr.mxu0 0.0
  %257 = vmatpush1.msra.mxu0 0.0
  %258 = vmatprep.subr.mxu0 0.0
  %259 = vmatpush1.msra.mxu0 0.0
  %260 = vmatprep.subr.mxu0 0.0
  %261 = vmatpush1.msra.mxu0 0.0
  %262 = vmatprep.subr.mxu0 0.0
  %263 = vmatpush1.msra.mxu0 0.0
  %264 = vmatprep.subr.mxu0 0.0
  %265 = vmatpush1.msra.mxu0 0.0
  %266 = vmatprep.subr.mxu0 0.0
  %267 = vmatpush1.msra.mxu0 0.0
  %268 = vmatprep.subr.mxu0 0.0
  %269 = vmatpush1.msra.mxu0 0.0
  %270 = vmatprep.subr.mxu0 0.0
  %271 = vmatpush1.msra.mxu0 0.0
  %272 = vmatprep.subr.mxu0 0.0
  %273 = vmatpush1.msra.mxu0 0.0
  %274 = vmatprep.subr.mxu0 0.0
  %275 = vmatpush1.msra.mxu0 0.0
  %276 = vmatprep.subr.mxu0 0.0
  %277 = vmatpush1.msra.mxu0 0.0
  %278 = vmatprep.subr.mxu0 0.0
  %279 = vmatpush1.msra.mxu0 0.0
  %280 = vmatprep.subr.mxu0 0.0
  %281 = vmatpush1.msra.mxu0 0.0
  %282 = vmatprep.subr.mxu0 0.0
  %283 = vmatpush1.msra.mxu0 0.0
  %284 = vmatprep.mubr.f32.mxu0 %v113
  %285 = vmatmul.mubr.f32.gmra.mrb[0].mxu0 %v14
  %v286 = vpop.f32.mrb[0].mxu0
  %v287 = vadd.f32 %v109, %v286
  %v288 = vpop.f32.mrb[0].mxu0
  %289 = vmatprep.mubr.f32.mxu0 %v116
  %290 = vmatmul.mubr.f32.gmra.mrb[0].mxu0 %v16
  %v291 = vpop.f32.mrb[0].mxu0
  %v292 = vadd.f32 %v109, %v291
  %v293 = vpop.f32.mrb[0].mxu0
  %294 = vmatprep.mubr.f32.mxu0 %v119
  %295 = vmatmul.mubr.f32.gmra.mrb[0].mxu0 %v18
  %v296 = vpop.f32.mrb[0].mxu0
  %v297 = vadd.f32 %v109, %v296
  %v298 = vpop.f32.mrb[0].mxu0
  %299 = vmatprep.mubr.f32.mxu0 %v122
  %300 = vmatmul.mubr.f32.gmra.mrb[0].mxu0 %v20
  %v301 = vpop.f32.mrb[0].mxu0
  %v302 = vadd.f32 %v109, %v301
  %v303 = vpop.f32.mrb[0].mxu0
  %304 = vmatprep.mubr.f32.mxu0 %v125
  %305 = vmatmul.mubr.f32.gmra.mrb[0].mxu0 %v22
  %v306 = vpop.f32.mrb[0].mxu0
  %v307 = vadd.f32 %v109, %v306
  %v308 = vpop.f32.mrb[0].mxu0
  %309 = vmatprep.mubr.f32.mxu0 %v128
  %310 = vmatmul.mubr.f32.gmra.mrb[0].mxu0 %v24
  %v311 = vpop.f32.mrb[0].mxu0
  %v312 = vadd.f32 %v109, %v311
  %v313 = vpop.f32.mrb[0].mxu0
  %314 = vmatprep.mubr.f32.mxu0 %v131
  %315 = vmatmul.mubr.f32.gmra.mrb[0].mxu0 %v26
  %v316 = vpop.f32.mrb[0].mxu0
  %v317 = vadd.f32 %v109, %v316
  %v318 = vpop.f32.mrb[0].mxu0
  %319 = vmatprep.mubr.f32.mxu0 %v134
  %320 = vmatmul.mubr.f32.gmra.mrb[0].mxu0 %v28
  %v321 = vpop.f32.mrb[0].mxu0
  %v322 = vadd.f32 %v109, %v321
  %v323 = vpop.f32.mrb[0].mxu0
  %324 = vmatprep.mubr.f32.mxu0 %v137
  %325 = vmatmul.mubr.f32.gmra.mrb[0].mxu0 %v30
  %v326 = vpop.f32.mrb[0].mxu0
  %v327 = vadd.f32 %v109, %v326
  %v328 = vpop.f32.mrb[0].mxu0
  %329 = vmatprep.mubr.f32.mxu0 %v140
  %330 = vmatmul.mubr.f32.gmra.mrb[0].mxu0 %v32
  %v331 = vpop.f32.mrb[0].mxu0
  %v332 = vadd.f32 %v109, %v331
  %v333 = vpop.f32.mrb[0].mxu0
  %334 = vmatprep.mubr.f32.mxu0 %v143
  %335 = vmatmul.mubr.f32.gmra.mrb[0].mxu0 %v34
  %v336 = vpop.f32.mrb[0].mxu0
  %v337 = vadd.f32 %v109, %v336
  %v338 = vpop.f32.mrb[0].mxu0
  %339 = vmatprep.mubr.f32.mxu0 %v146
  %340 = vmatmul.mubr.f32.gmra.mrb[0].mxu0 %v36
  %v341 = vpop.f32.mrb[0].mxu0
  %v342 = vadd.f32 %v109, %v341
  %v343 = vpop.f32.mrb[0].mxu0
  %344 = vmatprep.mubr.f32.mxu0 %v149
  %345 = vmatmul.mubr.f32.gmra.mrb[0].mxu0 %v38
  %v346 = vpop.f32.mrb[0].mxu0
  %v347 = vadd.f32 %v109, %v346
  %v348 = vpop.f32.mrb[0].mxu0
  %349 = vmatprep.mubr.f32.mxu0 %v152
  %350 = vmatmul.mubr.f32.gmra.mrb[0].mxu0 %v40
  %v351 = vpop.f32.mrb[0].mxu0
  %v352 = vadd.f32 %v109, %v351
  %v353 = vpop.f32.mrb[0].mxu0
  %354 = vmatprep.mubr.f32.mxu0 %v155
  %355 = vmatmul.mubr.f32.gmra.mrb[0].mxu0 %v42
  %v356 = vpop.f32.mrb[0].mxu0
  %v357 = vadd.f32 %v109, %v356
  %v358 = vpop.f32.mrb[0].mxu0
  %359 = vmatprep.mubr.f32.mxu0 %v158
  %360 = vmatmul.mubr.f32.gmra.mrb[0].mxu0 %v44
  %v361 = vpop.f32.mrb[0].mxu0
  %v362 = vadd.f32 %v109, %v361
  %v363 = vpop.f32.mrb[0].mxu0
  %364 = vmatprep.mubr.f32.mxu0 %v161
  %365 = vmatmul.mubr.f32.gmra.mrb[0].mxu0 %v46
  %v366 = vpop.f32.mrb[0].mxu0
  %v367 = vadd.f32 %v109, %v366
  %v368 = vpop.f32.mrb[0].mxu0
  %369 = vmatprep.mubr.f32.mxu0 %v164
  %370 = vmatmul.mubr.f32.gmra.mrb[0].mxu0 %v48
  %v371 = vpop.f32.mrb[0].mxu0
  %v372 = vadd.f32 %v109, %v371
  %v373 = vpop.f32.mrb[0].mxu0
  %374 = vmatprep.mubr.f32.mxu0 %v167
  %375 = vmatmul.mubr.f32.gmra.mrb[0].mxu0 %v50
  %v376 = vpop.f32.mrb[0].mxu0
  %v377 = vadd.f32 %v109, %v376
  %v378 = vpop.f32.mrb[0].mxu0
  %379 = vmatprep.mubr.f32.mxu0 %v170
  %380 = vmatmul.mubr.f32.gmra.mrb[0].mxu0 %v52
  %v381 = vpop.f32.mrb[0].mxu0
  %v382 = vadd.f32 %v109, %v381
  %v383 = vpop.f32.mrb[0].mxu0
  %384 = vmatprep.mubr.f32.mxu0 %v173
  %385 = vmatmul.mubr.f32.gmra.mrb[0].mxu0 %v54
  %v386 = vpop.f32.mrb[0].mxu0
  %v387 = vadd.f32 %v109, %v386
  %v388 = vpop.f32.mrb[0].mxu0
  %389 = vmatprep.mubr.f32.mxu0 %v176
  %390 = vmatmul.mubr.f32.gmra.mrb[0].mxu0 %v56
  %v391 = vpop.f32.mrb[0].mxu0
  %v392 = vadd.f32 %v109, %v391
  %v393 = vpop.f32.mrb[0].mxu0
  %394 = vmatprep.mubr.f32.mxu0 %v179
  %395 = vmatmul.mubr.f32.gmra.mrb[0].mxu0 %v58
  %v396 = vpop.f32.mrb[0].mxu0
  %v397 = vadd.f32 %v109, %v396
  %v398 = vpop.f32.mrb[0].mxu0
  %399 = vmatprep.mubr.f32.mxu0 %v182
  %400 = vmatmul.mubr.f32.gmra.mrb[0].mxu0 %v60
  %v401 = vpop.f32.mrb[0].mxu0
  %v402 = vadd.f32 %v109, %v401
  %v403 = vpop.f32.mrb[0].mxu0
  %404 = vmatprep.mubr.f32.mxu0 %v185
  %405 = vmatmul.mubr.f32.gmra.mrb[0].mxu0 %v62
  %v406 = vpop.f32.mrb[0].mxu0
  %v407 = vadd.f32 %v109, %v406
  %v408 = vpop.f32.mrb[0].mxu0
  %409 = vmatprep.mubr.f32.mxu0 %v188
  %410 = vmatmul.mubr.f32.gmra.mrb[0].mxu0 %v64
  %v411 = vpop.f32.mrb[0].mxu0
  %v412 = vadd.f32 %v109, %v411
  %v413 = vpop.f32.mrb[0].mxu0
  %414 = vmatprep.mubr.f32.mxu0 %v191
  %415 = vmatmul.mubr.f32.gmra.mrb[0].mxu0 %v66
  %v416 = vpop.f32.mrb[0].mxu0
  %v417 = vadd.f32 %v109, %v416
  %v418 = vpop.f32.mrb[0].mxu0
  %419 = vmatprep.mubr.f32.mxu0 %v194
  %420 = vmatmul.mubr.f32.gmra.mrb[0].mxu0 %v68
  %v421 = vpop.f32.mrb[0].mxu0
  %v422 = vadd.f32 %v109, %v421
  %v423 = vpop.f32.mrb[0].mxu0
  %424 = vmatprep.mubr.f32.mxu0 %v197
  %425 = vmatmul.mubr.f32.gmra.mrb[0].mxu0 %v70
  %v426 = vpop.f32.mrb[0].mxu0
  %v427 = vadd.f32 %v109, %v426
  %v428 = vpop.f32.mrb[0].mxu0
  %429 = vmatprep.mubr.f32.mxu0 %v200
  %430 = vmatmul.mubr.f32.gmra.mrb[0].mxu0 %v72
  %v431 = vpop.f32.mrb[0].mxu0
  %v432 = vadd.f32 %v109, %v431
  %v433 = vpop.f32.mrb[0].mxu0
  %434 = vmatprep.mubr.f32.mxu0 %v203
  %435 = vmatmul.mubr.f32.gmra.mrb[0].mxu0 %v74
  %v436 = vpop.f32.mrb[0].mxu0
  %v437 = vadd.f32 %v109, %v436
  %v438 = vpop.f32.mrb[0].mxu0
  %439 = vmatprep.mubr.f32.mxu0 %v206
  %440 = vmatmul.mubr.f32.gmra.mrb[0].mxu0 %v76
  %v441 = vpop.f32.mrb[0].mxu0
  %v442 = vadd.f32 %v109, %v441
  %v443 = vpop.f32.mrb[0].mxu0
  %444 = vmatprep.mubr.f32.mxu0 %v209
  %445 = vmatmul.mubr.f32.gmra.mrb[0].mxu0 %v78
  %v446 = vpop.f32.mrb[0].mxu0
  %v447 = vadd.f32 %v109, %v446
  %v448 = vpop.f32.mrb[0].mxu0
  %449 = vmatprep.mubr.f32.mxu0 %v212
  %450 = vmatmul.mubr.f32.gmra.mrb[0].mxu0 %v80
  %v451 = vpop.f32.mrb[0].mxu0
  %v452 = vadd.f32 %v109, %v451
  %v453 = vpop.f32.mrb[0].mxu0
  %454 = vmatprep.mubr.f32.mxu0 %v215
  %455 = vmatmul.mubr.f32.gmra.mrb[0].mxu0 %v82
  %v456 = vpop.f32.mrb[0].mxu0
  %v457 = vadd.f32 %v109, %v456
  %v458 = vpop.f32.mrb[0].mxu0
  %459 = vmatprep.mubr.f32.mxu0 %v218
  %460 = vmatmul.mubr.f32.gmra.mrb[0].mxu0 %v84
  %v461 = vpop.f32.mrb[0].mxu0
  %v462 = vadd.f32 %v109, %v461
  %v463 = vpop.f32.mrb[0].mxu0
  %464 = vdwg.mxu0
  %vm465 = vcmask 195584
  %466 = vst.msk [vmem:[%s3] sm:$0xff] %vm465, %v287
  %467 = vst.msk [vmem:[%s3 + $0x8] sm:$0xff] %vm465, %v292
  %468 = vst.msk [vmem:[%s3 + $0x10] sm:$0xff] %vm465, %v297
  %469 = vst.msk [vmem:[%s3 + $0x18] sm:$0xff] %vm465, %v302
  %470 = vst.msk [vmem:[%s3 + $0x20] sm:$0xff] %vm465, %v307
  %471 = vst.msk [vmem:[%s3 + $0x28] sm:$0xff] %vm465, %v312
  %472 = vst.msk [vmem:[%s3 + $0x30] sm:$0xff] %vm465, %v317
  %473 = vst.msk [vmem:[%s3 + $0x38] sm:$0xff] %vm465, %v322
  %474 = vst.msk [vmem:[%s3 + $0x40] sm:$0xff] %vm465, %v327
  %475 = vst.msk [vmem:[%s3 + $0x48] sm:$0xff] %vm465, %v332
  %476 = vst.msk [vmem:[%s3 + $0x50] sm:$0xff] %vm465, %v337
  %477 = vst.msk [vmem:[%s3 + $0x58] sm:$0xff] %vm465, %v342
  %478 = vst.msk [vmem:[%s3 + $0x60] sm:$0xff] %vm465, %v347
  %479 = vst.msk [vmem:[%s3 + $0x68] sm:$0xff] %vm465, %v352
  %480 = vst.msk [vmem:[%s3 + $0x70] sm:$0xff] %vm465, %v357
  %481 = vst.msk [vmem:[%s3 + $0x78] sm:$0xff] %vm465, %v362
  %482 = vst.msk [vmem:[%s3 + $0x80] sm:$0xff] %vm465, %v367
  %483 = vst.msk [vmem:[%s3 + $0x88] sm:$0xff] %vm465, %v372
  %484 = vst.msk [vmem:[%s3 + $0x90] sm:$0xff] %vm465, %v377
  %485 = vst.msk [vmem:[%s3 + $0x98] sm:$0xff] %vm465, %v382
  %486 = vst.msk [vmem:[%s3 + $0xa0] sm:$0xff] %vm465, %v387
  %487 = vst.msk [vmem:[%s3 + $0xa8] sm:$0xff] %vm465, %v392
  %488 = vst.msk [vmem:[%s3 + $0xb0] sm:$0xff] %vm465, %v397
  %489 = vst.msk [vmem:[%s3 + $0xb8] sm:$0xff] %vm465, %v402
  %490 = vst.msk [vmem:[%s3 + $0xc0] sm:$0xff] %vm465, %v407
  %491 = vst.msk [vmem:[%s3 + $0xc8] sm:$0xff] %vm465, %v412
  %492 = vst.msk [vmem:[%s3 + $0xd0] sm:$0xff] %vm465, %v417
  %493 = vst.msk [vmem:[%s3 + $0xd8] sm:$0xff] %vm465, %v422
  %494 = vst.msk [vmem:[%s3 + $0xe0] sm:$0xff] %vm465, %v427
  %495 = vst.msk [vmem:[%s3 + $0xe8] sm:$0xff] %vm465, %v432
  %496 = vst.msk [vmem:[%s3 + $0xf0] sm:$0xff] %vm465, %v437
  %497 = vst.msk [vmem:[%s3 + $0xf8] sm:$0xff] %vm465, %v442
  %498 = vst.msk [vmem:[%s3 + $0x100] sm:$0xff] %vm465, %v447
  %499 = vst.msk [vmem:[%s3 + $0x108] sm:$0xff] %vm465, %v452
  %500 = vst.msk [vmem:[%s3 + $0x110] sm:$0xff] %vm465, %v457
  %501 = vst.msk [vmem:[%s3 + $0x118] sm:$0xff] %vm465, %v462
  // Predicated region
  $region14: #{net_forward.21} parent=0 // pred_check
    _
  $region15: #{net_forward.21} parent=0 // pred_check_branch
    %503 = sbr.rel (0) target = $region17
  $region16: #{net_forward.21} parent=0 // pred_region
    _
  $region17: #{net_forward.21} parent=0 // pred_fallthru
    _
  // Predicated region
  $region18: #{net_forward.21} parent=0 // pred_check
    _
  $region19: #{net_forward.21} parent=0 // pred_check_branch
    %505 = sbr.rel (0) target = $region21
  $region20: #{net_forward.21} parent=0 // pred_region
    _
  $region21: #{net_forward.21} parent=0 // pred_fallthru
    _

// kernel: net_forward.22
$region0: #{net_forward.22}
  #allocation0 [shape = 'u32[]', space=smem, size = 0x4, offset = 0x4, fixed_abs, tag = 'smem constant byte address 0x4 - core index']
  #allocation1 [shape = 'u32[144,128]{1,0:T(1,128)}', space=vmem, size = 0x12000, scoped, tag = 'internal scratch']
  %s0 = inlined_call_operand.vmem [shape: f32[288,216], index: 0, kind: input, shape index: {}]
  %s1 = inlined_call_operand.vmem [shape: f32[216,24], index: 1, kind: input, shape index: {}]
  %s2 = inlined_call_operand.vmem [shape: f32[1,24], index: 2, kind: input, shape index: {}]
  %s3 = inlined_call_operand.vmem [shape: f32[288,24], index: 3, kind: output, shape index: {}]
  %s4 = sld [smem:[#allocation0]]
  $region22: #{net_forward.22} parent=0
    _
  %s6 = ssub.s32 1, %s4
  %s7 = scalar_select 0, %s6, %s4
  // Predicated region
  $region2: #{net_forward.22} parent=0 // pred_check
    _
  $region3: #{net_forward.22} parent=0 // pred_check_branch
    %9 = sbr.rel (0) target = $region5
  $region4: #{net_forward.22} parent=0 // pred_region
    _
  $region5: #{net_forward.22} parent=0 // pred_fallthru
    _
  // Predicated region
  $region6: #{net_forward.22} parent=0 // pred_check
    _
  $region7: #{net_forward.22} parent=0 // pred_check_branch
    %11 = sbr.rel (0) target = $region9
  $region8: #{net_forward.22} parent=0 // pred_region
    _
  $region9: #{net_forward.22} parent=0 // pred_fallthru
    _
  // Predicated region
  $region10: #{net_forward.22} parent=0 // pred_check
    _
  $region11: #{net_forward.22} parent=0 // pred_check_branch
    %13 = sbr.rel (0) target = $region13
  $region12: #{net_forward.22} parent=0 // pred_region
    _
  $region13: #{net_forward.22} parent=0 // pred_fallthru
    _
  %v14 = vld [vmem:[%s0] sm:$0xff]
  %v15 = vld [vmem:[%s0 + $0x8] sm:$0xff]
  %v16 = vld [vmem:[%s0 + $0x10] sm:$0xff]
  %v17 = vld [vmem:[%s0 + $0x18] sm:$0xff]
  %v18 = vld [vmem:[%s0 + $0x20] sm:$0xff]
  %v19 = vld [vmem:[%s0 + $0x28] sm:$0xff]
  %v20 = vld [vmem:[%s0 + $0x30] sm:$0xff]
  %v21 = vld [vmem:[%s0 + $0x38] sm:$0xff]
  %v22 = vld [vmem:[%s0 + $0x40] sm:$0xff]
  %v23 = vld [vmem:[%s0 + $0x48] sm:$0xff]
  %v24 = vld [vmem:[%s0 + $0x50] sm:$0xff]
  %v25 = vld [vmem:[%s0 + $0x58] sm:$0xff]
  %v26 = vld [vmem:[%s0 + $0x60] sm:$0xff]
  %v27 = vld [vmem:[%s0 + $0x68] sm:$0xff]
  %v28 = vld [vmem:[%s0 + $0x70] sm:$0xff]
  %v29 = vld [vmem:[%s0 + $0x78] sm:$0xff]
  %v30 = vld [vmem:[%s0 + $0x80] sm:$0xff]
  %v31 = vld [vmem:[%s0 + $0x88] sm:$0xff]
  %v32 = vld [vmem:[%s0 + $0x90] sm:$0xff]
  %v33 = vld [vmem:[%s0 + $0x98] sm:$0xff]
  %v34 = vld [vmem:[%s0 + $0xa0] sm:$0xff]
  %v35 = vld [vmem:[%s0 + $0xa8] sm:$0xff]
  %v36 = vld [vmem:[%s0 + $0xb0] sm:$0xff]
  %v37 = vld [vmem:[%s0 + $0xb8] sm:$0xff]
  %v38 = vld [vmem:[%s0 + $0xc0] sm:$0xff]
  %v39 = vld [vmem:[%s0 + $0xc8] sm:$0xff]
  %v40 = vld [vmem:[%s0 + $0xd0] sm:$0xff]
  %v41 = vld [vmem:[%s0 + $0xd8] sm:$0xff]
  %v42 = vld [vmem:[%s0 + $0xe0] sm:$0xff]
  %v43 = vld [vmem:[%s0 + $0xe8] sm:$0xff]
  %v44 = vld [vmem:[%s0 + $0xf0] sm:$0xff]
  %v45 = vld [vmem:[%s0 + $0xf8] sm:$0xff]
  %v46 = vld [vmem:[%s0 + $0x100] sm:$0xff]
  %v47 = vld [vmem:[%s0 + $0x108] sm:$0xff]
  %v48 = vld [vmem:[%s0 + $0x110] sm:$0xff]
  %v49 = vld [vmem:[%s0 + $0x118] sm:$0xff]
  %v50 = vld [vmem:[%s0 + $0x120] sm:$0xff]
  %v51 = vld [vmem:[%s0 + $0x128] sm:$0xff]
  %v52 = vld [vmem:[%s0 + $0x130] sm:$0xff]
  %v53 = vld [vmem:[%s0 + $0x138] sm:$0xff]
  %v54 = vld [vmem:[%s0 + $0x140] sm:$0xff]
  %v55 = vld [vmem:[%s0 + $0x148] sm:$0xff]
  %v56 = vld [vmem:[%s0 + $0x150] sm:$0xff]
  %v57 = vld [vmem:[%s0 + $0x158] sm:$0xff]
  %v58 = vld [vmem:[%s0 + $0x160] sm:$0xff]
  %v59 = vld [vmem:[%s0 + $0x168] sm:$0xff]
  %v60 = vld [vmem:[%s0 + $0x170] sm:$0xff]
  %v61 = vld [vmem:[%s0 + $0x178] sm:$0xff]
  %v62 = vld [vmem:[%s0 + $0x180] sm:$0xff]
  %v63 = vld [vmem:[%s0 + $0x188] sm:$0xff]
  %v64 = vld [vmem:[%s0 + $0x190] sm:$0xff]
  %v65 = vld [vmem:[%s0 + $0x198] sm:$0xff]
  %v66 = vld [vmem:[%s0 + $0x1a0] sm:$0xff]
  %v67 = vld [vmem:[%s0 + $0x1a8] sm:$0xff]
  %v68 = vld [vmem:[%s0 + $0x1b0] sm:$0xff]
  %v69 = vld [vmem:[%s0 + $0x1b8] sm:$0xff]
  %v70 = vld [vmem:[%s0 + $0x1c0] sm:$0xff]
  %v71 = vld [vmem:[%s0 + $0x1c8] sm:$0xff]
  %v72 = vld [vmem:[%s0 + $0x1d0] sm:$0xff]
  %v73 = vld [vmem:[%s0 + $0x1d8] sm:$0xff]
  %v74 = vld [vmem:[%s0 + $0x1e0] sm:$0xff]
  %v75 = vld [vmem:[%s0 + $0x1e8] sm:$0xff]
  %v76 = vld [vmem:[%s0 + $0x1f0] sm:$0xff]
  %v77 = vld [vmem:[%s0 + $0x1f8] sm:$0xff]
  %v78 = vld [vmem:[%s0 + $0x200] sm:$0xff]
  %v79 = vld [vmem:[%s0 + $0x208] sm:$0xff]
  %v80 = vld [vmem:[%s0 + $0x210] sm:$0xff]
  %v81 = vld [vmem:[%s0 + $0x218] sm:$0xff]
  %v82 = vld [vmem:[%s0 + $0x220] sm:$0xff]
  %v83 = vld [vmem:[%s0 + $0x228] sm:$0xff]
  %v84 = vld [vmem:[%s0 + $0x230] sm:$0xff]
  %v85 = vld [vmem:[%s0 + $0x238] sm:$0xff]
  %v86 = vld [vmem:[%s1] sm:$0xff]
  %v87 = vld [vmem:[%s1 + $0x8] sm:$0xff]
  %v88 = vld [vmem:[%s1 + $0x10] sm:$0xff]
  %v89 = vld [vmem:[%s1 + $0x18] sm:$0xff]
  %v90 = vld [vmem:[%s1 + $0x20] sm:$0xff]
  %v91 = vld [vmem:[%s1 + $0x28] sm:$0xff]
  %v92 = vld [vmem:[%s1 + $0x30] sm:$0xff]
  %v93 = vld [vmem:[%s1 + $0x38] sm:$0xff]
  %v94 = vld [vmem:[%s1 + $0x40] sm:$0xff]
  %v95 = vld [vmem:[%s1 + $0x48] sm:$0xff]
  %v96 = vld [vmem:[%s1 + $0x50] sm:$0xff]
  %v97 = vld [vmem:[%s1 + $0x58] sm:$0xff]
  %v98 = vld [vmem:[%s1 + $0x60] sm:$0xff]
  %v99 = vld [vmem:[%s1 + $0x68] sm:$0xff]
  %v100 = vld [vmem:[%s1 + $0x70] sm:$0xff]
  %v101 = vld [vmem:[%s1 + $0x78] sm:$0xff]
  %v102 = vld [vmem:[%s1 + $0x80] sm:$0xff]
  %v103 = vld [vmem:[%s1 + $0x88] sm:$0xff]
  %v104 = vld [vmem:[%s1 + $0x90] sm:$0xff]
  %v105 = vld [vmem:[%s1 + $0x98] sm:$0xff]
  %v106 = vld [vmem:[%s1 + $0xa0] sm:$0xff]
  %v107 = vld [vmem:[%s1 + $0xa8] sm:$0xff]
  %v108 = vld [vmem:[%s1 + $0xb0] sm:$0xff]
  %v109 = vld [vmem:[%s1 + $0xb8] sm:$0xff]
  %v110 = vld [vmem:[%s1 + $0xc0] sm:$0xff]
  %v111 = vld [vmem:[%s1 + $0xc8] sm:$0xff]
  %v112 = vld [vmem:[%s1 + $0xd0] sm:$0xff]
  %v113 = vld [vmem:[%s2] sm:$0x1]
  %v115 = vlaneseq
  %v116 = vshrl.u32 %v115, 7
  %v117 = vsub.s32 0, %v116
  %v118 = vrot.slane %v113, %v117
  %vm120 = vcmask 719872
  %v122 = vsel %vm120, %v15, 0
  %v125 = vsel %vm120, %v17, 0
  %v128 = vsel %vm120, %v19, 0
  %v131 = vsel %vm120, %v21, 0
  %v134 = vsel %vm120, %v23, 0
  %v137 = vsel %vm120, %v25, 0
  %v140 = vsel %vm120, %v27, 0
  %v143 = vsel %vm120, %v29, 0
  %v146 = vsel %vm120, %v31, 0
  %v149 = vsel %vm120, %v33, 0
  %v152 = vsel %vm120, %v35, 0
  %v155 = vsel %vm120, %v37, 0
  %v158 = vsel %vm120, %v39, 0
  %v161 = vsel %vm120, %v41, 0
  %v164 = vsel %vm120, %v43, 0
  %v167 = vsel %vm120, %v45, 0
  %v170 = vsel %vm120, %v47, 0
  %v173 = vsel %vm120, %v49, 0
  %v176 = vsel %vm120, %v51, 0
  %v179 = vsel %vm120, %v53, 0
  %v182 = vsel %vm120, %v55, 0
  %v185 = vsel %vm120, %v57, 0
  %v188 = vsel %vm120, %v59, 0
  %v191 = vsel %vm120, %v61, 0
  %v194 = vsel %vm120, %v63, 0
  %v197 = vsel %vm120, %v65, 0
  %v200 = vsel %vm120, %v67, 0
  %v203 = vsel %vm120, %v69, 0
  %v206 = vsel %vm120, %v71, 0
  %v209 = vsel %vm120, %v73, 0
  %v212 = vsel %vm120, %v75, 0
  %v215 = vsel %vm120, %v77, 0
  %v218 = vsel %vm120, %v79, 0
  %v221 = vsel %vm120, %v81, 0
  %v224 = vsel %vm120, %v83, 0
  %v227 = vsel %vm120, %v85, 0
  %229 = vmatprep.subr.mxu0 0.0
  %230 = vmatpush1.msra.mxu0 %v86
  %231 = vmatprep.subr.mxu0 0.0
  %232 = vmatpush1.msra.mxu0 %v87
  %233 = vmatprep.subr.mxu0 0.0
  %234 = vmatpush1.msra.mxu0 %v88
  %235 = vmatprep.subr.mxu0 0.0
  %236 = vmatpush1.msra.mxu0 %v89
  %237 = vmatprep.subr.mxu0 0.0
  %238 = vmatpush1.msra.mxu0 %v90
  %239 = vmatprep.subr.mxu0 0.0
  %240 = vmatpush1.msra.mxu0 %v91
  %241 = vmatprep.subr.mxu0 0.0
  %242 = vmatpush1.msra.mxu0 %v92
  %243 = vmatprep.subr.mxu0 0.0
  %244 = vmatpush1.msra.mxu0 %v93
  %245 = vmatprep.subr.mxu0 0.0
  %246 = vmatpush1.msra.mxu0 %v94
  %247 = vmatprep.subr.mxu0 0.0
  %248 = vmatpush1.msra.mxu0 %v95
  %249 = vmatprep.subr.mxu0 0.0
  %250 = vmatpush1.msra.mxu0 %v96
  %251 = vmatprep.subr.mxu0 0.0
  %252 = vmatpush1.msra.mxu0 %v97
  %253 = vmatprep.subr.mxu0 0.0
  %254 = vmatpush1.msra.mxu0 %v98
  %255 = vmatprep.subr.mxu0 0.0
  %256 = vmatpush1.msra.mxu0 %v99
  %257 = vmatprep.subr.mxu0 0.0
  %258 = vmatpush1.msra.mxu0 %v100
  %259 = vmatprep.subr.mxu0 0.0
  %260 = vmatpush1.msra.mxu0 %v101
  %261 = vmatprep.subr.mxu0 0.0
  %262 = vmatpush1.msra.mxu0 %v102
  %263 = vmatprep.subr.mxu0 0.0
  %264 = vmatpush1.msra.mxu0 %v103
  %265 = vmatprep.subr.mxu0 0.0
  %266 = vmatpush1.msra.mxu0 %v104
  %267 = vmatprep.subr.mxu0 0.0
  %268 = vmatpush1.msra.mxu0 %v105
  %269 = vmatprep.subr.mxu0 0.0
  %270 = vmatpush1.msra.mxu0 %v106
  %271 = vmatprep.subr.mxu0 0.0
  %272 = vmatpush1.msra.mxu0 %v107
  %273 = vmatprep.subr.mxu0 0.0
  %274 = vmatpush1.msra.mxu0 %v108
  %275 = vmatprep.subr.mxu0 0.0
  %276 = vmatpush1.msra.mxu0 %v109
  %277 = vmatprep.subr.mxu0 0.0
  %278 = vmatpush1.msra.mxu0 %v110
  %279 = vmatprep.subr.mxu0 0.0
  %280 = vmatpush1.msra.mxu0 %v111
  %281 = vmatprep.subr.mxu0 0.0
  %282 = vmatpush1.msra.mxu0 %v112
  %283 = vmatprep.subr.mxu0 0.0
  %284 = vmatpush1.msra.mxu0 0.0
  %285 = vmatprep.subr.mxu0 0.0
  %286 = vmatpush1.msra.mxu0 0.0
  %287 = vmatprep.subr.mxu0 0.0
  %288 = vmatpush1.msra.mxu0 0.0
  %289 = vmatprep.subr.mxu0 0.0
  %290 = vmatpush1.msra.mxu0 0.0
  %291 = vmatprep.subr.mxu0 0.0
  %292 = vmatpush1.msra.mxu0 0.0
  %293 = vmatprep.mubr.f32.mxu0 %v122
  %294 = vmatmul.mubr.f32.gmra.mrb[0].mxu0 %v14
  %v295 = vpop.f32.mrb[0].mxu0
  %v296 = vadd.f32 %v118, %v295
  %v297 = vpop.f32.mrb[0].mxu0
  %298 = vmatprep.mubr.f32.mxu0 %v125
  %299 = vmatmul.mubr.f32.gmra.mrb[0].mxu0 %v16
  %v300 = vpop.f32.mrb[0].mxu0
  %v301 = vadd.f32 %v118, %v300
  %v302 = vpop.f32.mrb[0].mxu0
  %303 = vmatprep.mubr.f32.mxu0 %v128
  %304 = vmatmul.mubr.f32.gmra.mrb[0].mxu0 %v18
  %v305 = vpop.f32.mrb[0].mxu0
  %v306 = vadd.f32 %v118, %v305
  %v307 = vpop.f32.mrb[0].mxu0
  %308 = vmatprep.mubr.f32.mxu0 %v131
  %309 = vmatmul.mubr.f32.gmra.mrb[0].mxu0 %v20
  %v310 = vpop.f32.mrb[0].mxu0
  %v311 = vadd.f32 %v118, %v310
  %v312 = vpop.f32.mrb[0].mxu0
  %313 = vmatprep.mubr.f32.mxu0 %v134
  %314 = vmatmul.mubr.f32.gmra.mrb[0].mxu0 %v22
  %v315 = vpop.f32.mrb[0].mxu0
  %v316 = vadd.f32 %v118, %v315
  %v317 = vpop.f32.mrb[0].mxu0
  %318 = vmatprep.mubr.f32.mxu0 %v137
  %319 = vmatmul.mubr.f32.gmra.mrb[0].mxu0 %v24
  %v320 = vpop.f32.mrb[0].mxu0
  %v321 = vadd.f32 %v118, %v320
  %v322 = vpop.f32.mrb[0].mxu0
  %323 = vmatprep.mubr.f32.mxu0 %v140
  %324 = vmatmul.mubr.f32.gmra.mrb[0].mxu0 %v26
  %v325 = vpop.f32.mrb[0].mxu0
  %v326 = vadd.f32 %v118, %v325
  %v327 = vpop.f32.mrb[0].mxu0
  %328 = vmatprep.mubr.f32.mxu0 %v143
  %329 = vmatmul.mubr.f32.gmra.mrb[0].mxu0 %v28
  %v330 = vpop.f32.mrb[0].mxu0
  %v331 = vadd.f32 %v118, %v330
  %v332 = vpop.f32.mrb[0].mxu0
  %333 = vmatprep.mubr.f32.mxu0 %v146
  %334 = vmatmul.mubr.f32.gmra.mrb[0].mxu0 %v30
  %v335 = vpop.f32.mrb[0].mxu0
  %v336 = vadd.f32 %v118, %v335
  %v337 = vpop.f32.mrb[0].mxu0
  %338 = vmatprep.mubr.f32.mxu0 %v149
  %339 = vmatmul.mubr.f32.gmra.mrb[0].mxu0 %v32
  %v340 = vpop.f32.mrb[0].mxu0
  %v341 = vadd.f32 %v118, %v340
  %v342 = vpop.f32.mrb[0].mxu0
  %343 = vmatprep.mubr.f32.mxu0 %v152
  %344 = vmatmul.mubr.f32.gmra.mrb[0].mxu0 %v34
  %v345 = vpop.f32.mrb[0].mxu0
  %v346 = vadd.f32 %v118, %v345
  %v347 = vpop.f32.mrb[0].mxu0
  %348 = vmatprep.mubr.f32.mxu0 %v155
  %349 = vmatmul.mubr.f32.gmra.mrb[0].mxu0 %v36
  %v350 = vpop.f32.mrb[0].mxu0
  %v351 = vadd.f32 %v118, %v350
  %v352 = vpop.f32.mrb[0].mxu0
  %353 = vmatprep.mubr.f32.mxu0 %v158
  %354 = vmatmul.mubr.f32.gmra.mrb[0].mxu0 %v38
  %v355 = vpop.f32.mrb[0].mxu0
  %v356 = vadd.f32 %v118, %v355
  %v357 = vpop.f32.mrb[0].mxu0
  %358 = vmatprep.mubr.f32.mxu0 %v161
  %359 = vmatmul.mubr.f32.gmra.mrb[0].mxu0 %v40
  %v360 = vpop.f32.mrb[0].mxu0
  %v361 = vadd.f32 %v118, %v360
  %v362 = vpop.f32.mrb[0].mxu0
  %363 = vmatprep.mubr.f32.mxu0 %v164
  %364 = vmatmul.mubr.f32.gmra.mrb[0].mxu0 %v42
  %v365 = vpop.f32.mrb[0].mxu0
  %v366 = vadd.f32 %v118, %v365
  %v367 = vpop.f32.mrb[0].mxu0
  %368 = vmatprep.mubr.f32.mxu0 %v167
  %369 = vmatmul.mubr.f32.gmra.mrb[0].mxu0 %v44
  %v370 = vpop.f32.mrb[0].mxu0
  %v371 = vadd.f32 %v118, %v370
  %v372 = vpop.f32.mrb[0].mxu0
  %373 = vmatprep.mubr.f32.mxu0 %v170
  %374 = vmatmul.mubr.f32.gmra.mrb[0].mxu0 %v46
  %v375 = vpop.f32.mrb[0].mxu0
  %v376 = vadd.f32 %v118, %v375
  %v377 = vpop.f32.mrb[0].mxu0
  %378 = vmatprep.mubr.f32.mxu0 %v173
  %379 = vmatmul.mubr.f32.gmra.mrb[0].mxu0 %v48
  %v380 = vpop.f32.mrb[0].mxu0
  %v381 = vadd.f32 %v118, %v380
  %v382 = vpop.f32.mrb[0].mxu0
  %383 = vmatprep.mubr.f32.mxu0 %v176
  %384 = vmatmul.mubr.f32.gmra.mrb[0].mxu0 %v50
  %v385 = vpop.f32.mrb[0].mxu0
  %v386 = vadd.f32 %v118, %v385
  %v387 = vpop.f32.mrb[0].mxu0
  %388 = vmatprep.mubr.f32.mxu0 %v179
  %389 = vmatmul.mubr.f32.gmra.mrb[0].mxu0 %v52
  %v390 = vpop.f32.mrb[0].mxu0
  %v391 = vadd.f32 %v118, %v390
  %v392 = vpop.f32.mrb[0].mxu0
  %393 = vmatprep.mubr.f32.mxu0 %v182
  %394 = vmatmul.mubr.f32.gmra.mrb[0].mxu0 %v54
  %v395 = vpop.f32.mrb[0].mxu0
  %v396 = vadd.f32 %v118, %v395
  %v397 = vpop.f32.mrb[0].mxu0
  %398 = vmatprep.mubr.f32.mxu0 %v185
  %399 = vmatmul.mubr.f32.gmra.mrb[0].mxu0 %v56
  %v400 = vpop.f32.mrb[0].mxu0
  %v401 = vadd.f32 %v118, %v400
  %v402 = vpop.f32.mrb[0].mxu0
  %403 = vmatprep.mubr.f32.mxu0 %v188
  %404 = vmatmul.mubr.f32.gmra.mrb[0].mxu0 %v58
  %v405 = vpop.f32.mrb[0].mxu0
  %v406 = vadd.f32 %v118, %v405
  %v407 = vpop.f32.mrb[0].mxu0
  %408 = vmatprep.mubr.f32.mxu0 %v191
  %409 = vmatmul.mubr.f32.gmra.mrb[0].mxu0 %v60
  %v410 = vpop.f32.mrb[0].mxu0
  %v411 = vadd.f32 %v118, %v410
  %v412 = vpop.f32.mrb[0].mxu0
  %413 = vmatprep.mubr.f32.mxu0 %v194
  %414 = vmatmul.mubr.f32.gmra.mrb[0].mxu0 %v62
  %v415 = vpop.f32.mrb[0].mxu0
  %v416 = vadd.f32 %v118, %v415
  %v417 = vpop.f32.mrb[0].mxu0
  %418 = vmatprep.mubr.f32.mxu0 %v197
  %419 = vmatmul.mubr.f32.gmra.mrb[0].mxu0 %v64
  %v420 = vpop.f32.mrb[0].mxu0
  %v421 = vadd.f32 %v118, %v420
  %v422 = vpop.f32.mrb[0].mxu0
  %423 = vmatprep.mubr.f32.mxu0 %v200
  %424 = vmatmul.mubr.f32.gmra.mrb[0].mxu0 %v66
  %v425 = vpop.f32.mrb[0].mxu0
  %v426 = vadd.f32 %v118, %v425
  %v427 = vpop.f32.mrb[0].mxu0
  %428 = vmatprep.mubr.f32.mxu0 %v203
  %429 = vmatmul.mubr.f32.gmra.mrb[0].mxu0 %v68
  %v430 = vpop.f32.mrb[0].mxu0
  %v431 = vadd.f32 %v118, %v430
  %v432 = vpop.f32.mrb[0].mxu0
  %433 = vmatprep.mubr.f32.mxu0 %v206
  %434 = vmatmul.mubr.f32.gmra.mrb[0].mxu0 %v70
  %v435 = vpop.f32.mrb[0].mxu0
  %v436 = vadd.f32 %v118, %v435
  %v437 = vpop.f32.mrb[0].mxu0
  %438 = vmatprep.mubr.f32.mxu0 %v209
  %439 = vmatmul.mubr.f32.gmra.mrb[0].mxu0 %v72
  %v440 = vpop.f32.mrb[0].mxu0
  %v441 = vadd.f32 %v118, %v440
  %v442 = vpop.f32.mrb[0].mxu0
  %443 = vmatprep.mubr.f32.mxu0 %v212
  %444 = vmatmul.mubr.f32.gmra.mrb[0].mxu0 %v74
  %v445 = vpop.f32.mrb[0].mxu0
  %v446 = vadd.f32 %v118, %v445
  %v447 = vpop.f32.mrb[0].mxu0
  %448 = vmatprep.mubr.f32.mxu0 %v215
  %449 = vmatmul.mubr.f32.gmra.mrb[0].mxu0 %v76
  %v450 = vpop.f32.mrb[0].mxu0
  %v451 = vadd.f32 %v118, %v450
  %v452 = vpop.f32.mrb[0].mxu0
  %453 = vmatprep.mubr.f32.mxu0 %v218
  %454 = vmatmul.mubr.f32.gmra.mrb[0].mxu0 %v78
  %v455 = vpop.f32.mrb[0].mxu0
  %v456 = vadd.f32 %v118, %v455
  %v457 = vpop.f32.mrb[0].mxu0
  %458 = vmatprep.mubr.f32.mxu0 %v221
  %459 = vmatmul.mubr.f32.gmra.mrb[0].mxu0 %v80
  %v460 = vpop.f32.mrb[0].mxu0
  %v461 = vadd.f32 %v118, %v460
  %v462 = vpop.f32.mrb[0].mxu0
  %463 = vmatprep.mubr.f32.mxu0 %v224
  %464 = vmatmul.mubr.f32.gmra.mrb[0].mxu0 %v82
  %v465 = vpop.f32.mrb[0].mxu0
  %v466 = vadd.f32 %v118, %v465
  %v467 = vpop.f32.mrb[0].mxu0
  %468 = vmatprep.mubr.f32.mxu0 %v227
  %469 = vmatmul.mubr.f32.gmra.mrb[0].mxu0 %v84
  %v470 = vpop.f32.mrb[0].mxu0
  %v471 = vadd.f32 %v118, %v470
  %v472 = vpop.f32.mrb[0].mxu0
  %473 = vdwg.mxu0
  %vm474 = vcmask 195584
  %475 = vst.msk [vmem:[%s3] sm:$0xff] %vm474, %v296
  %476 = vst.msk [vmem:[%s3 + $0x8] sm:$0xff] %vm474, %v301
  %477 = vst.msk [vmem:[%s3 + $0x10] sm:$0xff] %vm474, %v306
  %478 = vst.msk [vmem:[%s3 + $0x18] sm:$0xff] %vm474, %v311
  %479 = vst.msk [vmem:[%s3 + $0x20] sm:$0xff] %vm474, %v316
  %480 = vst.msk [vmem:[%s3 + $0x28] sm:$0xff] %vm474, %v321
  %481 = vst.msk [vmem:[%s3 + $0x30] sm:$0xff] %vm474, %v326
  %482 = vst.msk [vmem:[%s3 + $0x38] sm:$0xff] %vm474, %v331
  %483 = vst.msk [vmem:[%s3 + $0x40] sm:$0xff] %vm474, %v336
  %484 = vst.msk [vmem:[%s3 + $0x48] sm:$0xff] %vm474, %v341
  %485 = vst.msk [vmem:[%s3 + $0x50] sm:$0xff] %vm474, %v346
  %486 = vst.msk [vmem:[%s3 + $0x58] sm:$0xff] %vm474, %v351
  %487 = vst.msk [vmem:[%s3 + $0x60] sm:$0xff] %vm474, %v356
  %488 = vst.msk [vmem:[%s3 + $0x68] sm:$0xff] %vm474, %v361
  %489 = vst.msk [vmem:[%s3 + $0x70] sm:$0xff] %vm474, %v366
  %490 = vst.msk [vmem:[%s3 + $0x78] sm:$0xff] %vm474, %v371
  %491 = vst.msk [vmem:[%s3 + $0x80] sm:$0xff] %vm474, %v376
  %492 = vst.msk [vmem:[%s3 + $0x88] sm:$0xff] %vm474, %v381
  %493 = vst.msk [vmem:[%s3 + $0x90] sm:$0xff] %vm474, %v386
  %494 = vst.msk [vmem:[%s3 + $0x98] sm:$0xff] %vm474, %v391
  %495 = vst.msk [vmem:[%s3 + $0xa0] sm:$0xff] %vm474, %v396
  %496 = vst.msk [vmem:[%s3 + $0xa8] sm:$0xff] %vm474, %v401
  %497 = vst.msk [vmem:[%s3 + $0xb0] sm:$0xff] %vm474, %v406
  %498 = vst.msk [vmem:[%s3 + $0xb8] sm:$0xff] %vm474, %v411
  %499 = vst.msk [vmem:[%s3 + $0xc0] sm:$0xff] %vm474, %v416
  %500 = vst.msk [vmem:[%s3 + $0xc8] sm:$0xff] %vm474, %v421
  %501 = vst.msk [vmem:[%s3 + $0xd0] sm:$0xff] %vm474, %v426
  %502 = vst.msk [vmem:[%s3 + $0xd8] sm:$0xff] %vm474, %v431
  %503 = vst.msk [vmem:[%s3 + $0xe0] sm:$0xff] %vm474, %v436
  %504 = vst.msk [vmem:[%s3 + $0xe8] sm:$0xff] %vm474, %v441
  %505 = vst.msk [vmem:[%s3 + $0xf0] sm:$0xff] %vm474, %v446
  %506 = vst.msk [vmem:[%s3 + $0xf8] sm:$0xff] %vm474, %v451
  %507 = vst.msk [vmem:[%s3 + $0x100] sm:$0xff] %vm474, %v456
  %508 = vst.msk [vmem:[%s3 + $0x108] sm:$0xff] %vm474, %v461
  %509 = vst.msk [vmem:[%s3 + $0x110] sm:$0xff] %vm474, %v466
  %510 = vst.msk [vmem:[%s3 + $0x118] sm:$0xff] %vm474, %v471
  // Predicated region
  $region14: #{net_forward.22} parent=0 // pred_check
    _
  $region15: #{net_forward.22} parent=0 // pred_check_branch
    %512 = sbr.rel (0) target = $region17
  $region16: #{net_forward.22} parent=0 // pred_region
    _
  $region17: #{net_forward.22} parent=0 // pred_fallthru
    _
  // Predicated region
  $region18: #{net_forward.22} parent=0 // pred_check
    _
  $region19: #{net_forward.22} parent=0 // pred_check_branch
    %514 = sbr.rel (0) target = $region21
  $region20: #{net_forward.22} parent=0 // pred_region
    _
  $region21: #{net_forward.22} parent=0 // pred_fallthru
    _

// kernel: net_forward.20
$region0: #{net_forward.20}
  #allocation0 [shape = 'u32[]', space=smem, size = 0x4, offset = 0x4, fixed_abs, tag = 'smem constant byte address 0x4 - core index']
  #allocation1 [shape = 'u32[144,128]{1,0:T(1,128)}', space=vmem, size = 0x12000, scoped, tag = 'internal scratch']
  %s0 = inlined_call_operand.vmem [shape: f32[288,400], index: 0, kind: input, shape index: {}]
  %s1 = inlined_call_operand.vmem [shape: f32[400,24], index: 1, kind: input, shape index: {}]
  %s2 = inlined_call_operand.vmem [shape: f32[1,24], index: 2, kind: input, shape index: {}]
  %s3 = inlined_call_operand.vmem [shape: f32[288,24], index: 3, kind: output, shape index: {}]
  %s4 = sld [smem:[#allocation0]]
  $region22: #{net_forward.20} parent=0
    _
  %s6 = ssub.s32 1, %s4
  %s7 = scalar_select 0, %s6, %s4
  // Predicated region
  $region2: #{net_forward.20} parent=0 // pred_check
    _
  $region3: #{net_forward.20} parent=0 // pred_check_branch
    %9 = sbr.rel (0) target = $region5
  $region4: #{net_forward.20} parent=0 // pred_region
    _
  $region5: #{net_forward.20} parent=0 // pred_fallthru
    _
  // Predicated region
  $region6: #{net_forward.20} parent=0 // pred_check
    _
  $region7: #{net_forward.20} parent=0 // pred_check_branch
    %11 = sbr.rel (0) target = $region9
  $region8: #{net_forward.20} parent=0 // pred_region
    _
  $region9: #{net_forward.20} parent=0 // pred_fallthru
    _
  // Predicated region
  $region10: #{net_forward.20} parent=0 // pred_check
    _
  $region11: #{net_forward.20} parent=0 // pred_check_branch
    %13 = sbr.rel (0) target = $region13
  $region12: #{net_forward.20} parent=0 // pred_region
    _
  $region13: #{net_forward.20} parent=0 // pred_fallthru
    _
  %v14 = vld [vmem:[%s0] sm:$0xff]
  %v15 = vld [vmem:[%s0 + $0x8] sm:$0xff]
  %v16 = vld [vmem:[%s0 + $0x10] sm:$0xff]
  %v17 = vld [vmem:[%s0 + $0x18] sm:$0xff]
  %v18 = vld [vmem:[%s0 + $0x20] sm:$0xff]
  %v19 = vld [vmem:[%s0 + $0x28] sm:$0xff]
  %v20 = vld [vmem:[%s0 + $0x30] sm:$0xff]
  %v21 = vld [vmem:[%s0 + $0x38] sm:$0xff]
  %v22 = vld [vmem:[%s0 + $0x40] sm:$0xff]
  %v23 = vld [vmem:[%s0 + $0x48] sm:$0xff]
  %v24 = vld [vmem:[%s0 + $0x50] sm:$0xff]
  %v25 = vld [vmem:[%s0 + $0x58] sm:$0xff]
  %v26 = vld [vmem:[%s0 + $0x60] sm:$0xff]
  %v27 = vld [vmem:[%s0 + $0x68] sm:$0xff]
  %v28 = vld [vmem:[%s0 + $0x70] sm:$0xff]
  %v29 = vld [vmem:[%s0 + $0x78] sm:$0xff]
  %v30 = vld [vmem:[%s0 + $0x80] sm:$0xff]
  %v31 = vld [vmem:[%s0 + $0x88] sm:$0xff]
  %v32 = vld [vmem:[%s0 + $0x90] sm:$0xff]
  %v33 = vld [vmem:[%s0 + $0x98] sm:$0xff]
  %v34 = vld [vmem:[%s0 + $0xa0] sm:$0xff]
  %v35 = vld [vmem:[%s0 + $0xa8] sm:$0xff]
  %v36 = vld [vmem:[%s0 + $0xb0] sm:$0xff]
  %v37 = vld [vmem:[%s0 + $0xb8] sm:$0xff]
  %v38 = vld [vmem:[%s0 + $0xc0] sm:$0xff]
  %v39 = vld [vmem:[%s0 + $0xc8] sm:$0xff]
  %v40 = vld [vmem:[%s0 + $0xd0] sm:$0xff]
  %v41 = vld [vmem:[%s0 + $0xd8] sm:$0xff]
  %v42 = vld [vmem:[%s0 + $0xe0] sm:$0xff]
  %v43 = vld [vmem:[%s0 + $0xe8] sm:$0xff]
  %v44 = vld [vmem:[%s0 + $0xf0] sm:$0xff]
  %v45 = vld [vmem:[%s0 + $0xf8] sm:$0xff]
  %v46 = vld [vmem:[%s0 + $0x100] sm:$0xff]
  %v47 = vld [vmem:[%s0 + $0x108] sm:$0xff]
  %v48 = vld [vmem:[%s0 + $0x110] sm:$0xff]
  %v49 = vld [vmem:[%s0 + $0x118] sm:$0xff]
  %v50 = vld [vmem:[%s0 + $0x120] sm:$0xff]
  %v51 = vld [vmem:[%s0 + $0x128] sm:$0xff]
  %v52 = vld [vmem:[%s0 + $0x130] sm:$0xff]
  %v53 = vld [vmem:[%s0 + $0x138] sm:$0xff]
  %v54 = vld [vmem:[%s0 + $0x140] sm:$0xff]
  %v55 = vld [vmem:[%s0 + $0x148] sm:$0xff]
  %v56 = vld [vmem:[%s0 + $0x150] sm:$0xff]
  %v57 = vld [vmem:[%s0 + $0x158] sm:$0xff]
  %v58 = vld [vmem:[%s0 + $0x160] sm:$0xff]
  %v59 = vld [vmem:[%s0 + $0x168] sm:$0xff]
  %v60 = vld [vmem:[%s0 + $0x170] sm:$0xff]
  %v61 = vld [vmem:[%s0 + $0x178] sm:$0xff]
  %v62 = vld [vmem:[%s0 + $0x180] sm:$0xff]
  %v63 = vld [vmem:[%s0 + $0x188] sm:$0xff]
  %v64 = vld [vmem:[%s0 + $0x190] sm:$0xff]
  %v65 = vld [vmem:[%s0 + $0x198] sm:$0xff]
  %v66 = vld [vmem:[%s0 + $0x1a0] sm:$0xff]
  %v67 = vld [vmem:[%s0 + $0x1a8] sm:$0xff]
  %v68 = vld [vmem:[%s0 + $0x1b0] sm:$0xff]
  %v69 = vld [vmem:[%s0 + $0x1b8] sm:$0xff]
  %v70 = vld [vmem:[%s0 + $0x1c0] sm:$0xff]
  %v71 = vld [vmem:[%s0 + $0x1c8] sm:$0xff]
  %v72 = vld [vmem:[%s0 + $0x1d0] sm:$0xff]
  %v73 = vld [vmem:[%s0 + $0x1d8] sm:$0xff]
  %v74 = vld [vmem:[%s0 + $0x1e0] sm:$0xff]
  %v75 = vld [vmem:[%s0 + $0x1e8] sm:$0xff]
  %v76 = vld [vmem:[%s0 + $0x1f0] sm:$0xff]
  %v77 = vld [vmem:[%s0 + $0x1f8] sm:$0xff]
  %v78 = vld [vmem:[%s0 + $0x200] sm:$0xff]
  %v79 = vld [vmem:[%s0 + $0x208] sm:$0xff]
  %v80 = vld [vmem:[%s0 + $0x210] sm:$0xff]
  %v81 = vld [vmem:[%s0 + $0x218] sm:$0xff]
  %v82 = vld [vmem:[%s0 + $0x220] sm:$0xff]
  %v83 = vld [vmem:[%s0 + $0x228] sm:$0xff]
  %v84 = vld [vmem:[%s0 + $0x230] sm:$0xff]
  %v85 = vld [vmem:[%s0 + $0x238] sm:$0xff]
  %v86 = vld [vmem:[%s0 + $0x240] sm:$0xff]
  %v87 = vld [vmem:[%s0 + $0x248] sm:$0xff]
  %v88 = vld [vmem:[%s0 + $0x250] sm:$0xff]
  %v89 = vld [vmem:[%s0 + $0x258] sm:$0xff]
  %v90 = vld [vmem:[%s0 + $0x260] sm:$0xff]
  %v91 = vld [vmem:[%s0 + $0x268] sm:$0xff]
  %v92 = vld [vmem:[%s0 + $0x270] sm:$0xff]
  %v93 = vld [vmem:[%s0 + $0x278] sm:$0xff]
  %v94 = vld [vmem:[%s0 + $0x280] sm:$0xff]
  %v95 = vld [vmem:[%s0 + $0x288] sm:$0xff]
  %v96 = vld [vmem:[%s0 + $0x290] sm:$0xff]
  %v97 = vld [vmem:[%s0 + $0x298] sm:$0xff]
  %v98 = vld [vmem:[%s0 + $0x2a0] sm:$0xff]
  %v99 = vld [vmem:[%s0 + $0x2a8] sm:$0xff]
  %v100 = vld [vmem:[%s0 + $0x2b0] sm:$0xff]
  %v101 = vld [vmem:[%s0 + $0x2b8] sm:$0xff]
  %v102 = vld [vmem:[%s0 + $0x2c0] sm:$0xff]
  %v103 = vld [vmem:[%s0 + $0x2c8] sm:$0xff]
  %v104 = vld [vmem:[%s0 + $0x2d0] sm:$0xff]
  %v105 = vld [vmem:[%s0 + $0x2d8] sm:$0xff]
  %v106 = vld [vmem:[%s0 + $0x2e0] sm:$0xff]
  %v107 = vld [vmem:[%s0 + $0x2e8] sm:$0xff]
  %v108 = vld [vmem:[%s0 + $0x2f0] sm:$0xff]
  %v109 = vld [vmem:[%s0 + $0x2f8] sm:$0xff]
  %v110 = vld [vmem:[%s0 + $0x300] sm:$0xff]
  %v111 = vld [vmem:[%s0 + $0x308] sm:$0xff]
  %v112 = vld [vmem:[%s0 + $0x310] sm:$0xff]
  %v113 = vld [vmem:[%s0 + $0x318] sm:$0xff]
  %v114 = vld [vmem:[%s0 + $0x320] sm:$0xff]
  %v115 = vld [vmem:[%s0 + $0x328] sm:$0xff]
  %v116 = vld [vmem:[%s0 + $0x330] sm:$0xff]
  %v117 = vld [vmem:[%s0 + $0x338] sm:$0xff]
  %v118 = vld [vmem:[%s0 + $0x340] sm:$0xff]
  %v119 = vld [vmem:[%s0 + $0x348] sm:$0xff]
  %v120 = vld [vmem:[%s0 + $0x350] sm:$0xff]
  %v121 = vld [vmem:[%s0 + $0x358] sm:$0xff]
  %v122 = vld [vmem:[%s0 + $0x360] sm:$0xff]
  %v123 = vld [vmem:[%s0 + $0x368] sm:$0xff]
  %v124 = vld [vmem:[%s0 + $0x370] sm:$0xff]
  %v125 = vld [vmem:[%s0 + $0x378] sm:$0xff]
  %v126 = vld [vmem:[%s0 + $0x380] sm:$0xff]
  %v127 = vld [vmem:[%s0 + $0x388] sm:$0xff]
  %v128 = vld [vmem:[%s0 + $0x390] sm:$0xff]
  %v129 = vld [vmem:[%s0 + $0x398] sm:$0xff]
  %v130 = vld [vmem:[%s0 + $0x3a0] sm:$0xff]
  %v131 = vld [vmem:[%s0 + $0x3a8] sm:$0xff]
  %v132 = vld [vmem:[%s0 + $0x3b0] sm:$0xff]
  %v133 = vld [vmem:[%s0 + $0x3b8] sm:$0xff]
  %v134 = vld [vmem:[%s0 + $0x3c0] sm:$0xff]
  %v135 = vld [vmem:[%s0 + $0x3c8] sm:$0xff]
  %v136 = vld [vmem:[%s0 + $0x3d0] sm:$0xff]
  %v137 = vld [vmem:[%s0 + $0x3d8] sm:$0xff]
  %v138 = vld [vmem:[%s0 + $0x3e0] sm:$0xff]
  %v139 = vld [vmem:[%s0 + $0x3e8] sm:$0xff]
  %v140 = vld [vmem:[%s0 + $0x3f0] sm:$0xff]
  %v141 = vld [vmem:[%s0 + $0x3f8] sm:$0xff]
  %v142 = vld [vmem:[%s0 + $0x400] sm:$0xff]
  %v143 = vld [vmem:[%s0 + $0x408] sm:$0xff]
  %v144 = vld [vmem:[%s0 + $0x410] sm:$0xff]
  %v145 = vld [vmem:[%s0 + $0x418] sm:$0xff]
  %v146 = vld [vmem:[%s0 + $0x420] sm:$0xff]
  %v147 = vld [vmem:[%s0 + $0x428] sm:$0xff]
  %v148 = vld [vmem:[%s0 + $0x430] sm:$0xff]
  %v149 = vld [vmem:[%s0 + $0x438] sm:$0xff]
  %v150 = vld [vmem:[%s0 + $0x440] sm:$0xff]
  %v151 = vld [vmem:[%s0 + $0x448] sm:$0xff]
  %v152 = vld [vmem:[%s0 + $0x450] sm:$0xff]
  %v153 = vld [vmem:[%s0 + $0x458] sm:$0xff]
  %v154 = vld [vmem:[%s0 + $0x460] sm:$0xff]
  %v155 = vld [vmem:[%s0 + $0x468] sm:$0xff]
  %v156 = vld [vmem:[%s0 + $0x470] sm:$0xff]
  %v157 = vld [vmem:[%s0 + $0x478] sm:$0xff]
  %v158 = vld [vmem:[%s1] sm:$0xff]
  %v159 = vld [vmem:[%s1 + $0x8] sm:$0xff]
  %v160 = vld [vmem:[%s1 + $0x10] sm:$0xff]
  %v161 = vld [vmem:[%s1 + $0x18] sm:$0xff]
  %v162 = vld [vmem:[%s1 + $0x20] sm:$0xff]
  %v163 = vld [vmem:[%s1 + $0x28] sm:$0xff]
  %v164 = vld [vmem:[%s1 + $0x30] sm:$0xff]
  %v165 = vld [vmem:[%s1 + $0x38] sm:$0xff]
  %v166 = vld [vmem:[%s1 + $0x40] sm:$0xff]
  %v167 = vld [vmem:[%s1 + $0x48] sm:$0xff]
  %v168 = vld [vmem:[%s1 + $0x50] sm:$0xff]
  %v169 = vld [vmem:[%s1 + $0x58] sm:$0xff]
  %v170 = vld [vmem:[%s1 + $0x60] sm:$0xff]
  %v171 = vld [vmem:[%s1 + $0x68] sm:$0xff]
  %v172 = vld [vmem:[%s1 + $0x70] sm:$0xff]
  %v173 = vld [vmem:[%s1 + $0x78] sm:$0xff]
  %v174 = vld [vmem:[%s1 + $0x80] sm:$0xff]
  %v175 = vld [vmem:[%s1 + $0x88] sm:$0xff]
  %v176 = vld [vmem:[%s1 + $0x90] sm:$0xff]
  %v177 = vld [vmem:[%s1 + $0x98] sm:$0xff]
  %v178 = vld [vmem:[%s1 + $0xa0] sm:$0xff]
  %v179 = vld [vmem:[%s1 + $0xa8] sm:$0xff]
  %v180 = vld [vmem:[%s1 + $0xb0] sm:$0xff]
  %v181 = vld [vmem:[%s1 + $0xb8] sm:$0xff]
  %v182 = vld [vmem:[%s1 + $0xc0] sm:$0xff]
  %v183 = vld [vmem:[%s1 + $0xc8] sm:$0xff]
  %v184 = vld [vmem:[%s1 + $0xd0] sm:$0xff]
  %v185 = vld [vmem:[%s1 + $0xd8] sm:$0xff]
  %v186 = vld [vmem:[%s1 + $0xe0] sm:$0xff]
  %v187 = vld [vmem:[%s1 + $0xe8] sm:$0xff]
  %v188 = vld [vmem:[%s1 + $0xf0] sm:$0xff]
  %v189 = vld [vmem:[%s1 + $0xf8] sm:$0xff]
  %v190 = vld [vmem:[%s1 + $0x100] sm:$0xff]
  %v191 = vld [vmem:[%s1 + $0x108] sm:$0xff]
  %v192 = vld [vmem:[%s1 + $0x110] sm:$0xff]
  %v193 = vld [vmem:[%s1 + $0x118] sm:$0xff]
  %v194 = vld [vmem:[%s1 + $0x120] sm:$0xff]
  %v195 = vld [vmem:[%s1 + $0x128] sm:$0xff]
  %v196 = vld [vmem:[%s1 + $0x130] sm:$0xff]
  %v197 = vld [vmem:[%s1 + $0x138] sm:$0xff]
  %v198 = vld [vmem:[%s1 + $0x140] sm:$0xff]
  %v199 = vld [vmem:[%s1 + $0x148] sm:$0xff]
  %v200 = vld [vmem:[%s1 + $0x150] sm:$0xff]
  %v201 = vld [vmem:[%s1 + $0x158] sm:$0xff]
  %v202 = vld [vmem:[%s1 + $0x160] sm:$0xff]
  %v203 = vld [vmem:[%s1 + $0x168] sm:$0xff]
  %v204 = vld [vmem:[%s1 + $0x170] sm:$0xff]
  %v205 = vld [vmem:[%s1 + $0x178] sm:$0xff]
  %v206 = vld [vmem:[%s1 + $0x180] sm:$0xff]
  %v207 = vld [vmem:[%s1 + $0x188] sm:$0xff]
  %v208 = vld [vmem:[%s2] sm:$0x1]
  %v210 = vlaneseq
  %v211 = vshrl.u32 %v210, 7
  %v212 = vsub.s32 0, %v211
  %v213 = vrot.slane %v208, %v212
  %vm215 = vcmask 130048
  %v217 = vsel %vm215, %v17, 0
  %v220 = vsel %vm215, %v21, 0
  %v223 = vsel %vm215, %v25, 0
  %v226 = vsel %vm215, %v29, 0
  %v229 = vsel %vm215, %v33, 0
  %v232 = vsel %vm215, %v37, 0
  %v235 = vsel %vm215, %v41, 0
  %v238 = vsel %vm215, %v45, 0
  %v241 = vsel %vm215, %v49, 0
  %v244 = vsel %vm215, %v53, 0
  %v247 = vsel %vm215, %v57, 0
  %v250 = vsel %vm215, %v61, 0
  %v253 = vsel %vm215, %v65, 0
  %v256 = vsel %vm215, %v69, 0
  %v259 = vsel %vm215, %v73, 0
  %v262 = vsel %vm215, %v77, 0
  %v265 = vsel %vm215, %v81, 0
  %v268 = vsel %vm215, %v85, 0
  %v271 = vsel %vm215, %v89, 0
  %v274 = vsel %vm215, %v93, 0
  %v277 = vsel %vm215, %v97, 0
  %v280 = vsel %vm215, %v101, 0
  %v283 = vsel %vm215, %v105, 0
  %v286 = vsel %vm215, %v109, 0
  %v289 = vsel %vm215, %v113, 0
  %v292 = vsel %vm215, %v117, 0
  %v295 = vsel %vm215, %v121, 0
  %v298 = vsel %vm215, %v125, 0
  %v301 = vsel %vm215, %v129, 0
  %v304 = vsel %vm215, %v133, 0
  %v307 = vsel %vm215, %v137, 0
  %v310 = vsel %vm215, %v141, 0
  %v313 = vsel %vm215, %v145, 0
  %v316 = vsel %vm215, %v149, 0
  %v319 = vsel %vm215, %v153, 0
  %v322 = vsel %vm215, %v157, 0
  %324 = vmatprep.subr.mxu0 0.0
  %325 = vmatpush1.msra.mxu0 %v158
  %326 = vmatprep.subr.mxu0 0.0
  %327 = vmatpush1.msra.mxu0 %v159
  %328 = vmatprep.subr.mxu0 0.0
  %329 = vmatpush1.msra.mxu0 %v160
  %330 = vmatprep.subr.mxu0 0.0
  %331 = vmatpush1.msra.mxu0 %v161
  %332 = vmatprep.subr.mxu0 0.0
  %333 = vmatpush1.msra.mxu0 %v162
  %334 = vmatprep.subr.mxu0 0.0
  %335 = vmatpush1.msra.mxu0 %v163
  %336 = vmatprep.subr.mxu0 0.0
  %337 = vmatpush1.msra.mxu0 %v164
  %338 = vmatprep.subr.mxu0 0.0
  %339 = vmatpush1.msra.mxu0 %v165
  %340 = vmatprep.subr.mxu0 0.0
  %341 = vmatpush1.msra.mxu0 %v166
  %342 = vmatprep.subr.mxu0 0.0
  %343 = vmatpush1.msra.mxu0 %v167
  %344 = vmatprep.subr.mxu0 0.0
  %345 = vmatpush1.msra.mxu0 %v168
  %346 = vmatprep.subr.mxu0 0.0
  %347 = vmatpush1.msra.mxu0 %v169
  %348 = vmatprep.subr.mxu0 0.0
  %349 = vmatpush1.msra.mxu0 %v170
  %350 = vmatprep.subr.mxu0 0.0
  %351 = vmatpush1.msra.mxu0 %v171
  %352 = vmatprep.subr.mxu0 0.0
  %353 = vmatpush1.msra.mxu0 %v172
  %354 = vmatprep.subr.mxu0 0.0
  %355 = vmatpush1.msra.mxu0 %v173
  %356 = vmatprep.subr.mxu0 0.0
  %357 = vmatpush1.msra.mxu0 %v174
  %358 = vmatprep.subr.mxu0 0.0
  %359 = vmatpush1.msra.mxu0 %v175
  %360 = vmatprep.subr.mxu0 0.0
  %361 = vmatpush1.msra.mxu0 %v176
  %362 = vmatprep.subr.mxu0 0.0
  %363 = vmatpush1.msra.mxu0 %v177
  %364 = vmatprep.subr.mxu0 0.0
  %365 = vmatpush1.msra.mxu0 %v178
  %366 = vmatprep.subr.mxu0 0.0
  %367 = vmatpush1.msra.mxu0 %v179
  %368 = vmatprep.subr.mxu0 0.0
  %369 = vmatpush1.msra.mxu0 %v180
  %370 = vmatprep.subr.mxu0 0.0
  %371 = vmatpush1.msra.mxu0 %v181
  %372 = vmatprep.subr.mxu0 0.0
  %373 = vmatpush1.msra.mxu0 %v182
  %374 = vmatprep.subr.mxu0 0.0
  %375 = vmatpush1.msra.mxu0 %v183
  %376 = vmatprep.subr.mxu0 0.0
  %377 = vmatpush1.msra.mxu0 %v184
  %378 = vmatprep.subr.mxu0 0.0
  %379 = vmatpush1.msra.mxu0 %v185
  %380 = vmatprep.subr.mxu0 0.0
  %381 = vmatpush1.msra.mxu0 %v186
  %382 = vmatprep.subr.mxu0 0.0
  %383 = vmatpush1.msra.mxu0 %v187
  %384 = vmatprep.subr.mxu0 0.0
  %385 = vmatpush1.msra.mxu0 %v188
  %386 = vmatprep.subr.mxu0 0.0
  %387 = vmatpush1.msra.mxu0 %v189
  %388 = vmatprep.mubr.f32.mxu0 %v15
  %389 = vmatmul.mubr.f32.gmra.mrb[0].mxu0 %v14
  %v390 = vpop.f32.mrb[0].mxu0
  %v391 = vadd.f32 %v213, %v390
  %v392 = vpop.f32.mrb[0].mxu0
  %393 = vmatprep.mubr.f32.mxu0 %v19
  %394 = vmatmul.mubr.f32.gmra.mrb[0].mxu0 %v18
  %v395 = vpop.f32.mrb[0].mxu0
  %v396 = vadd.f32 %v213, %v395
  %v397 = vpop.f32.mrb[0].mxu0
  %398 = vmatprep.mubr.f32.mxu0 %v23
  %399 = vmatmul.mubr.f32.gmra.mrb[0].mxu0 %v22
  %v400 = vpop.f32.mrb[0].mxu0
  %v401 = vadd.f32 %v213, %v400
  %v402 = vpop.f32.mrb[0].mxu0
  %403 = vmatprep.mubr.f32.mxu0 %v27
  %404 = vmatmul.mubr.f32.gmra.mrb[0].mxu0 %v26
  %v405 = vpop.f32.mrb[0].mxu0
  %v406 = vadd.f32 %v213, %v405
  %v407 = vpop.f32.mrb[0].mxu0
  %408 = vmatprep.mubr.f32.mxu0 %v31
  %409 = vmatmul.mubr.f32.gmra.mrb[0].mxu0 %v30
  %v410 = vpop.f32.mrb[0].mxu0
  %v411 = vadd.f32 %v213, %v410
  %v412 = vpop.f32.mrb[0].mxu0
  %413 = vmatprep.mubr.f32.mxu0 %v35
  %414 = vmatmul.mubr.f32.gmra.mrb[0].mxu0 %v34
  %v415 = vpop.f32.mrb[0].mxu0
  %v416 = vadd.f32 %v213, %v415
  %v417 = vpop.f32.mrb[0].mxu0
  %418 = vmatprep.mubr.f32.mxu0 %v39
  %419 = vmatmul.mubr.f32.gmra.mrb[0].mxu0 %v38
  %v420 = vpop.f32.mrb[0].mxu0
  %v421 = vadd.f32 %v213, %v420
  %v422 = vpop.f32.mrb[0].mxu0
  %423 = vmatprep.mubr.f32.mxu0 %v43
  %424 = vmatmul.mubr.f32.gmra.mrb[0].mxu0 %v42
  %v425 = vpop.f32.mrb[0].mxu0
  %v426 = vadd.f32 %v213, %v425
  %v427 = vpop.f32.mrb[0].mxu0
  %428 = vmatprep.mubr.f32.mxu0 %v47
  %429 = vmatmul.mubr.f32.gmra.mrb[0].mxu0 %v46
  %v430 = vpop.f32.mrb[0].mxu0
  %v431 = vadd.f32 %v213, %v430
  %v432 = vpop.f32.mrb[0].mxu0
  %433 = vmatprep.mubr.f32.mxu0 %v51
  %434 = vmatmul.mubr.f32.gmra.mrb[0].mxu0 %v50
  %v435 = vpop.f32.mrb[0].mxu0
  %v436 = vadd.f32 %v213, %v435
  %v437 = vpop.f32.mrb[0].mxu0
  %438 = vmatprep.mubr.f32.mxu0 %v55
  %439 = vmatmul.mubr.f32.gmra.mrb[0].mxu0 %v54
  %v440 = vpop.f32.mrb[0].mxu0
  %v441 = vadd.f32 %v213, %v440
  %v442 = vpop.f32.mrb[0].mxu0
  %443 = vmatprep.mubr.f32.mxu0 %v59
  %444 = vmatmul.mubr.f32.gmra.mrb[0].mxu0 %v58
  %v445 = vpop.f32.mrb[0].mxu0
  %v446 = vadd.f32 %v213, %v445
  %v447 = vpop.f32.mrb[0].mxu0
  %448 = vmatprep.mubr.f32.mxu0 %v63
  %449 = vmatmul.mubr.f32.gmra.mrb[0].mxu0 %v62
  %v450 = vpop.f32.mrb[0].mxu0
  %v451 = vadd.f32 %v213, %v450
  %v452 = vpop.f32.mrb[0].mxu0
  %453 = vmatprep.mubr.f32.mxu0 %v67
  %454 = vmatmul.mubr.f32.gmra.mrb[0].mxu0 %v66
  %v455 = vpop.f32.mrb[0].mxu0
  %v456 = vadd.f32 %v213, %v455
  %v457 = vpop.f32.mrb[0].mxu0
  %458 = vmatprep.mubr.f32.mxu0 %v71
  %459 = vmatmul.mubr.f32.gmra.mrb[0].mxu0 %v70
  %v460 = vpop.f32.mrb[0].mxu0
  %v461 = vadd.f32 %v213, %v460
  %v462 = vpop.f32.mrb[0].mxu0
  %463 = vmatprep.mubr.f32.mxu0 %v75
  %464 = vmatmul.mubr.f32.gmra.mrb[0].mxu0 %v74
  %v465 = vpop.f32.mrb[0].mxu0
  %v466 = vadd.f32 %v213, %v465
  %v467 = vpop.f32.mrb[0].mxu0
  %468 = vmatprep.mubr.f32.mxu0 %v79
  %469 = vmatmul.mubr.f32.gmra.mrb[0].mxu0 %v78
  %v470 = vpop.f32.mrb[0].mxu0
  %v471 = vadd.f32 %v213, %v470
  %v472 = vpop.f32.mrb[0].mxu0
  %473 = vmatprep.mubr.f32.mxu0 %v83
  %474 = vmatmul.mubr.f32.gmra.mrb[0].mxu0 %v82
  %v475 = vpop.f32.mrb[0].mxu0
  %v476 = vadd.f32 %v213, %v475
  %v477 = vpop.f32.mrb[0].mxu0
  %478 = vmatprep.mubr.f32.mxu0 %v87
  %479 = vmatmul.mubr.f32.gmra.mrb[0].mxu0 %v86
  %v480 = vpop.f32.mrb[0].mxu0
  %v481 = vadd.f32 %v213, %v480
  %v482 = vpop.f32.mrb[0].mxu0
  %483 = vmatprep.mubr.f32.mxu0 %v91
  %484 = vmatmul.mubr.f32.gmra.mrb[0].mxu0 %v90
  %v485 = vpop.f32.mrb[0].mxu0
  %v486 = vadd.f32 %v213, %v485
  %v487 = vpop.f32.mrb[0].mxu0
  %488 = vmatprep.mubr.f32.mxu0 %v95
  %489 = vmatmul.mubr.f32.gmra.mrb[0].mxu0 %v94
  %v490 = vpop.f32.mrb[0].mxu0
  %v491 = vadd.f32 %v213, %v490
  %v492 = vpop.f32.mrb[0].mxu0
  %493 = vmatprep.mubr.f32.mxu0 %v99
  %494 = vmatmul.mubr.f32.gmra.mrb[0].mxu0 %v98
  %v495 = vpop.f32.mrb[0].mxu0
  %v496 = vadd.f32 %v213, %v495
  %v497 = vpop.f32.mrb[0].mxu0
  %498 = vmatprep.mubr.f32.mxu0 %v103
  %499 = vmatmul.mubr.f32.gmra.mrb[0].mxu0 %v102
  %v500 = vpop.f32.mrb[0].mxu0
  %v501 = vadd.f32 %v213, %v500
  %v502 = vpop.f32.mrb[0].mxu0
  %503 = vmatprep.mubr.f32.mxu0 %v107
  %504 = vmatmul.mubr.f32.gmra.mrb[0].mxu0 %v106
  %v505 = vpop.f32.mrb[0].mxu0
  %v506 = vadd.f32 %v213, %v505
  %v507 = vpop.f32.mrb[0].mxu0
  %508 = vmatprep.mubr.f32.mxu0 %v111
  %509 = vmatmul.mubr.f32.gmra.mrb[0].mxu0 %v110
  %v510 = vpop.f32.mrb[0].mxu0
  %v511 = vadd.f32 %v213, %v510
  %v512 = vpop.f32.mrb[0].mxu0
  %513 = vmatprep.mubr.f32.mxu0 %v115
  %514 = vmatmul.mubr.f32.gmra.mrb[0].mxu0 %v114
  %v515 = vpop.f32.mrb[0].mxu0
  %v516 = vadd.f32 %v213, %v515
  %v517 = vpop.f32.mrb[0].mxu0
  %518 = vmatprep.mubr.f32.mxu0 %v119
  %519 = vmatmul.mubr.f32.gmra.mrb[0].mxu0 %v118
  %v520 = vpop.f32.mrb[0].mxu0
  %v521 = vadd.f32 %v213, %v520
  %v522 = vpop.f32.mrb[0].mxu0
  %523 = vmatprep.mubr.f32.mxu0 %v123
  %524 = vmatmul.mubr.f32.gmra.mrb[0].mxu0 %v122
  %v525 = vpop.f32.mrb[0].mxu0
  %v526 = vadd.f32 %v213, %v525
  %v527 = vpop.f32.mrb[0].mxu0
  %528 = vmatprep.mubr.f32.mxu0 %v127
  %529 = vmatmul.mubr.f32.gmra.mrb[0].mxu0 %v126
  %v530 = vpop.f32.mrb[0].mxu0
  %v531 = vadd.f32 %v213, %v530
  %v532 = vpop.f32.mrb[0].mxu0
  %533 = vmatprep.mubr.f32.mxu0 %v131
  %534 = vmatmul.mubr.f32.gmra.mrb[0].mxu0 %v130
  %v535 = vpop.f32.mrb[0].mxu0
  %v536 = vadd.f32 %v213, %v535
  %v537 = vpop.f32.mrb[0].mxu0
  %538 = vmatprep.mubr.f32.mxu0 %v135
  %539 = vmatmul.mubr.f32.gmra.mrb[0].mxu0 %v134
  %v540 = vpop.f32.mrb[0].mxu0
  %v541 = vadd.f32 %v213, %v540
  %v542 = vpop.f32.mrb[0].mxu0
  %543 = vmatprep.mubr.f32.mxu0 %v139
  %544 = vmatmul.mubr.f32.gmra.mrb[0].mxu0 %v138
  %v545 = vpop.f32.mrb[0].mxu0
  %v546 = vadd.f32 %v213, %v545
  %v547 = vpop.f32.mrb[0].mxu0
  %548 = vmatprep.mubr.f32.mxu0 %v143
  %549 = vmatmul.mubr.f32.gmra.mrb[0].mxu0 %v142
  %v550 = vpop.f32.mrb[0].mxu0
  %v551 = vadd.f32 %v213, %v550
  %v552 = vpop.f32.mrb[0].mxu0
  %553 = vmatprep.mubr.f32.mxu0 %v147
  %554 = vmatmul.mubr.f32.gmra.mrb[0].mxu0 %v146
  %v555 = vpop.f32.mrb[0].mxu0
  %v556 = vadd.f32 %v213, %v555
  %v557 = vpop.f32.mrb[0].mxu0
  %558 = vmatprep.mubr.f32.mxu0 %v151
  %559 = vmatmul.mubr.f32.gmra.mrb[0].mxu0 %v150
  %v560 = vpop.f32.mrb[0].mxu0
  %v561 = vadd.f32 %v213, %v560
  %v562 = vpop.f32.mrb[0].mxu0
  %563 = vmatprep.mubr.f32.mxu0 %v155
  %564 = vmatmul.mubr.f32.gmra.mrb[0].mxu0 %v154
  %v565 = vpop.f32.mrb[0].mxu0
  %v566 = vadd.f32 %v213, %v565
  %v567 = vpop.f32.mrb[0].mxu0
  %568 = vdwg.mxu0
  %569 = vmatprep.subr.mxu0 0.0
  %570 = vmatpush1.msra.mxu0 %v190
  %571 = vmatprep.subr.mxu0 0.0
  %572 = vmatpush1.msra.mxu0 %v191
  %573 = vmatprep.subr.mxu0 0.0
  %574 = vmatpush1.msra.mxu0 %v192
  %575 = vmatprep.subr.mxu0 0.0
  %576 = vmatpush1.msra.mxu0 %v193
  %577 = vmatprep.subr.mxu0 0.0
  %578 = vmatpush1.msra.mxu0 %v194
  %579 = vmatprep.subr.mxu0 0.0
  %580 = vmatpush1.msra.mxu0 %v195
  %581 = vmatprep.subr.mxu0 0.0
  %582 = vmatpush1.msra.mxu0 %v196
  %583 = vmatprep.subr.mxu0 0.0
  %584 = vmatpush1.msra.mxu0 %v197
  %585 = vmatprep.subr.mxu0 0.0
  %586 = vmatpush1.msra.mxu0 %v198
  %587 = vmatprep.subr.mxu0 0.0
  %588 = vmatpush1.msra.mxu0 %v199
  %589 = vmatprep.subr.mxu0 0.0
  %590 = vmatpush1.msra.mxu0 %v200
  %591 = vmatprep.subr.mxu0 0.0
  %592 = vmatpush1.msra.mxu0 %v201
  %593 = vmatprep.subr.mxu0 0.0
  %594 = vmatpush1.msra.mxu0 %v202
  %595 = vmatprep.subr.mxu0 0.0
  %596 = vmatpush1.msra.mxu0 %v203
  %597 = vmatprep.subr.mxu0 0.0
  %598 = vmatpush1.msra.mxu0 %v204
  %599 = vmatprep.subr.mxu0 0.0
  %600 = vmatpush1.msra.mxu0 %v205
  %601 = vmatprep.subr.mxu0 0.0
  %602 = vmatpush1.msra.mxu0 %v206
  %603 = vmatprep.subr.mxu0 0.0
  %604 = vmatpush1.msra.mxu0 %v207
  %605 = vmatprep.subr.mxu0 0.0
  %606 = vmatpush1.msra.mxu0 0.0
  %607 = vmatprep.subr.mxu0 0.0
  %608 = vmatpush1.msra.mxu0 0.0
  %609 = vmatprep.subr.mxu0 0.0
  %610 = vmatpush1.msra.mxu0 0.0
  %611 = vmatprep.subr.mxu0 0.0
  %612 = vmatpush1.msra.mxu0 0.0
  %613 = vmatprep.subr.mxu0 0.0
  %614 = vmatpush1.msra.mxu0 0.0
  %615 = vmatprep.subr.mxu0 0.0
  %616 = vmatpush1.msra.mxu0 0.0
  %617 = vmatprep.subr.mxu0 0.0
  %618 = vmatpush1.msra.mxu0 0.0
  %619 = vmatprep.subr.mxu0 0.0
  %620 = vmatpush1.msra.mxu0 0.0
  %621 = vmatprep.subr.mxu0 0.0
  %622 = vmatpush1.msra.mxu0 0.0
  %623 = vmatprep.subr.mxu0 0.0
  %624 = vmatpush1.msra.mxu0 0.0
  %625 = vmatprep.subr.mxu0 0.0
  %626 = vmatpush1.msra.mxu0 0.0
  %627 = vmatprep.subr.mxu0 0.0
  %628 = vmatpush1.msra.mxu0 0.0
  %629 = vmatprep.subr.mxu0 0.0
  %630 = vmatpush1.msra.mxu0 0.0
  %631 = vmatprep.subr.mxu0 0.0
  %632 = vmatpush1.msra.mxu0 0.0
  %633 = vmatprep.mubr.f32.mxu0 %v217
  %634 = vmatmul.mubr.f32.gmra.mrb[0].mxu0 %v16
  %v635 = vpop.f32.mrb[0].mxu0
  %v636 = vadd.f32 %v391, %v635
  %v637 = vpop.f32.mrb[0].mxu0
  %638 = vmatprep.mubr.f32.mxu0 %v220
  %639 = vmatmul.mubr.f32.gmra.mrb[0].mxu0 %v20
  %v640 = vpop.f32.mrb[0].mxu0
  %v641 = vadd.f32 %v396, %v640
  %v642 = vpop.f32.mrb[0].mxu0
  %643 = vmatprep.mubr.f32.mxu0 %v223
  %644 = vmatmul.mubr.f32.gmra.mrb[0].mxu0 %v24
  %v645 = vpop.f32.mrb[0].mxu0
  %v646 = vadd.f32 %v401, %v645
  %v647 = vpop.f32.mrb[0].mxu0
  %648 = vmatprep.mubr.f32.mxu0 %v226
  %649 = vmatmul.mubr.f32.gmra.mrb[0].mxu0 %v28
  %v650 = vpop.f32.mrb[0].mxu0
  %v651 = vadd.f32 %v406, %v650
  %v652 = vpop.f32.mrb[0].mxu0
  %653 = vmatprep.mubr.f32.mxu0 %v229
  %654 = vmatmul.mubr.f32.gmra.mrb[0].mxu0 %v32
  %v655 = vpop.f32.mrb[0].mxu0
  %v656 = vadd.f32 %v411, %v655
  %v657 = vpop.f32.mrb[0].mxu0
  %658 = vmatprep.mubr.f32.mxu0 %v232
  %659 = vmatmul.mubr.f32.gmra.mrb[0].mxu0 %v36
  %v660 = vpop.f32.mrb[0].mxu0
  %v661 = vadd.f32 %v416, %v660
  %v662 = vpop.f32.mrb[0].mxu0
  %663 = vmatprep.mubr.f32.mxu0 %v235
  %664 = vmatmul.mubr.f32.gmra.mrb[0].mxu0 %v40
  %v665 = vpop.f32.mrb[0].mxu0
  %v666 = vadd.f32 %v421, %v665
  %v667 = vpop.f32.mrb[0].mxu0
  %668 = vmatprep.mubr.f32.mxu0 %v238
  %669 = vmatmul.mubr.f32.gmra.mrb[0].mxu0 %v44
  %v670 = vpop.f32.mrb[0].mxu0
  %v671 = vadd.f32 %v426, %v670
  %v672 = vpop.f32.mrb[0].mxu0
  %673 = vmatprep.mubr.f32.mxu0 %v241
  %674 = vmatmul.mubr.f32.gmra.mrb[0].mxu0 %v48
  %v675 = vpop.f32.mrb[0].mxu0
  %v676 = vadd.f32 %v431, %v675
  %v677 = vpop.f32.mrb[0].mxu0
  %678 = vmatprep.mubr.f32.mxu0 %v244
  %679 = vmatmul.mubr.f32.gmra.mrb[0].mxu0 %v52
  %v680 = vpop.f32.mrb[0].mxu0
  %v681 = vadd.f32 %v436, %v680
  %v682 = vpop.f32.mrb[0].mxu0
  %683 = vmatprep.mubr.f32.mxu0 %v247
  %684 = vmatmul.mubr.f32.gmra.mrb[0].mxu0 %v56
  %v685 = vpop.f32.mrb[0].mxu0
  %v686 = vadd.f32 %v441, %v685
  %v687 = vpop.f32.mrb[0].mxu0
  %688 = vmatprep.mubr.f32.mxu0 %v250
  %689 = vmatmul.mubr.f32.gmra.mrb[0].mxu0 %v60
  %v690 = vpop.f32.mrb[0].mxu0
  %v691 = vadd.f32 %v446, %v690
  %v692 = vpop.f32.mrb[0].mxu0
  %693 = vmatprep.mubr.f32.mxu0 %v253
  %694 = vmatmul.mubr.f32.gmra.mrb[0].mxu0 %v64
  %v695 = vpop.f32.mrb[0].mxu0
  %v696 = vadd.f32 %v451, %v695
  %v697 = vpop.f32.mrb[0].mxu0
  %698 = vmatprep.mubr.f32.mxu0 %v256
  %699 = vmatmul.mubr.f32.gmra.mrb[0].mxu0 %v68
  %v700 = vpop.f32.mrb[0].mxu0
  %v701 = vadd.f32 %v456, %v700
  %v702 = vpop.f32.mrb[0].mxu0
  %703 = vmatprep.mubr.f32.mxu0 %v259
  %704 = vmatmul.mubr.f32.gmra.mrb[0].mxu0 %v72
  %v705 = vpop.f32.mrb[0].mxu0
  %v706 = vadd.f32 %v461, %v705
  %v707 = vpop.f32.mrb[0].mxu0
  %708 = vmatprep.mubr.f32.mxu0 %v262
  %709 = vmatmul.mubr.f32.gmra.mrb[0].mxu0 %v76
  %v710 = vpop.f32.mrb[0].mxu0
  %v711 = vadd.f32 %v466, %v710
  %v712 = vpop.f32.mrb[0].mxu0
  %713 = vmatprep.mubr.f32.mxu0 %v265
  %714 = vmatmul.mubr.f32.gmra.mrb[0].mxu0 %v80
  %v715 = vpop.f32.mrb[0].mxu0
  %v716 = vadd.f32 %v471, %v715
  %v717 = vpop.f32.mrb[0].mxu0
  %718 = vmatprep.mubr.f32.mxu0 %v268
  %719 = vmatmul.mubr.f32.gmra.mrb[0].mxu0 %v84
  %v720 = vpop.f32.mrb[0].mxu0
  %v721 = vadd.f32 %v476, %v720
  %v722 = vpop.f32.mrb[0].mxu0
  %723 = vmatprep.mubr.f32.mxu0 %v271
  %724 = vmatmul.mubr.f32.gmra.mrb[0].mxu0 %v88
  %v725 = vpop.f32.mrb[0].mxu0
  %v726 = vadd.f32 %v481, %v725
  %v727 = vpop.f32.mrb[0].mxu0
  %728 = vmatprep.mubr.f32.mxu0 %v274
  %729 = vmatmul.mubr.f32.gmra.mrb[0].mxu0 %v92
  %v730 = vpop.f32.mrb[0].mxu0
  %v731 = vadd.f32 %v486, %v730
  %v732 = vpop.f32.mrb[0].mxu0
  %733 = vmatprep.mubr.f32.mxu0 %v277
  %734 = vmatmul.mubr.f32.gmra.mrb[0].mxu0 %v96
  %v735 = vpop.f32.mrb[0].mxu0
  %v736 = vadd.f32 %v491, %v735
  %v737 = vpop.f32.mrb[0].mxu0
  %738 = vmatprep.mubr.f32.mxu0 %v280
  %739 = vmatmul.mubr.f32.gmra.mrb[0].mxu0 %v100
  %v740 = vpop.f32.mrb[0].mxu0
  %v741 = vadd.f32 %v496, %v740
  %v742 = vpop.f32.mrb[0].mxu0
  %743 = vmatprep.mubr.f32.mxu0 %v283
  %744 = vmatmul.mubr.f32.gmra.mrb[0].mxu0 %v104
  %v745 = vpop.f32.mrb[0].mxu0
  %v746 = vadd.f32 %v501, %v745
  %v747 = vpop.f32.mrb[0].mxu0
  %748 = vmatprep.mubr.f32.mxu0 %v286
  %749 = vmatmul.mubr.f32.gmra.mrb[0].mxu0 %v108
  %v750 = vpop.f32.mrb[0].mxu0
  %v751 = vadd.f32 %v506, %v750
  %v752 = vpop.f32.mrb[0].mxu0
  %753 = vmatprep.mubr.f32.mxu0 %v289
  %754 = vmatmul.mubr.f32.gmra.mrb[0].mxu0 %v112
  %v755 = vpop.f32.mrb[0].mxu0
  %v756 = vadd.f32 %v511, %v755
  %v757 = vpop.f32.mrb[0].mxu0
  %758 = vmatprep.mubr.f32.mxu0 %v292
  %759 = vmatmul.mubr.f32.gmra.mrb[0].mxu0 %v116
  %v760 = vpop.f32.mrb[0].mxu0
  %v761 = vadd.f32 %v516, %v760
  %v762 = vpop.f32.mrb[0].mxu0
  %763 = vmatprep.mubr.f32.mxu0 %v295
  %764 = vmatmul.mubr.f32.gmra.mrb[0].mxu0 %v120
  %v765 = vpop.f32.mrb[0].mxu0
  %v766 = vadd.f32 %v521, %v765
  %v767 = vpop.f32.mrb[0].mxu0
  %768 = vmatprep.mubr.f32.mxu0 %v298
  %769 = vmatmul.mubr.f32.gmra.mrb[0].mxu0 %v124
  %v770 = vpop.f32.mrb[0].mxu0
  %v771 = vadd.f32 %v526, %v770
  %v772 = vpop.f32.mrb[0].mxu0
  %773 = vmatprep.mubr.f32.mxu0 %v301
  %774 = vmatmul.mubr.f32.gmra.mrb[0].mxu0 %v128
  %v775 = vpop.f32.mrb[0].mxu0
  %v776 = vadd.f32 %v531, %v775
  %v777 = vpop.f32.mrb[0].mxu0
  %778 = vmatprep.mubr.f32.mxu0 %v304
  %779 = vmatmul.mubr.f32.gmra.mrb[0].mxu0 %v132
  %v780 = vpop.f32.mrb[0].mxu0
  %v781 = vadd.f32 %v536, %v780
  %v782 = vpop.f32.mrb[0].mxu0
  %783 = vmatprep.mubr.f32.mxu0 %v307
  %784 = vmatmul.mubr.f32.gmra.mrb[0].mxu0 %v136
  %v785 = vpop.f32.mrb[0].mxu0
  %v786 = vadd.f32 %v541, %v785
  %v787 = vpop.f32.mrb[0].mxu0
  %788 = vmatprep.mubr.f32.mxu0 %v310
  %789 = vmatmul.mubr.f32.gmra.mrb[0].mxu0 %v140
  %v790 = vpop.f32.mrb[0].mxu0
  %v791 = vadd.f32 %v546, %v790
  %v792 = vpop.f32.mrb[0].mxu0
  %793 = vmatprep.mubr.f32.mxu0 %v313
  %794 = vmatmul.mubr.f32.gmra.mrb[0].mxu0 %v144
  %v795 = vpop.f32.mrb[0].mxu0
  %v796 = vadd.f32 %v551, %v795
  %v797 = vpop.f32.mrb[0].mxu0
  %798 = vmatprep.mubr.f32.mxu0 %v316
  %799 = vmatmul.mubr.f32.gmra.mrb[0].mxu0 %v148
  %v800 = vpop.f32.mrb[0].mxu0
  %v801 = vadd.f32 %v556, %v800
  %v802 = vpop.f32.mrb[0].mxu0
  %803 = vmatprep.mubr.f32.mxu0 %v319
  %804 = vmatmul.mubr.f32.gmra.mrb[0].mxu0 %v152
  %v805 = vpop.f32.mrb[0].mxu0
  %v806 = vadd.f32 %v561, %v805
  %v807 = vpop.f32.mrb[0].mxu0
  %808 = vmatprep.mubr.f32.mxu0 %v322
  %809 = vmatmul.mubr.f32.gmra.mrb[0].mxu0 %v156
  %v810 = vpop.f32.mrb[0].mxu0
  %v811 = vadd.f32 %v566, %v810
  %v812 = vpop.f32.mrb[0].mxu0
  %813 = vdwg.mxu0
  %vm814 = vcmask 195584
  %815 = vst.msk [vmem:[%s3] sm:$0xff] %vm814, %v636
  %816 = vst.msk [vmem:[%s3 + $0x8] sm:$0xff] %vm814, %v641
  %817 = vst.msk [vmem:[%s3 + $0x10] sm:$0xff] %vm814, %v646
  %818 = vst.msk [vmem:[%s3 + $0x18] sm:$0xff] %vm814, %v651
  %819 = vst.msk [vmem:[%s3 + $0x20] sm:$0xff] %vm814, %v656
  %820 = vst.msk [vmem:[%s3 + $0x28] sm:$0xff] %vm814, %v661
  %821 = vst.msk [vmem:[%s3 + $0x30] sm:$0xff] %vm814, %v666
  %822 = vst.msk [vmem:[%s3 + $0x38] sm:$0xff] %vm814, %v671
  %823 = vst.msk [vmem:[%s3 + $0x40] sm:$0xff] %vm814, %v676
  %824 = vst.msk [vmem:[%s3 + $0x48] sm:$0xff] %vm814, %v681
  %825 = vst.msk [vmem:[%s3 + $0x50] sm:$0xff] %vm814, %v686
  %826 = vst.msk [vmem:[%s3 + $0x58] sm:$0xff] %vm814, %v691
  %827 = vst.msk [vmem:[%s3 + $0x60] sm:$0xff] %vm814, %v696
  %828 = vst.msk [vmem:[%s3 + $0x68] sm:$0xff] %vm814, %v701
  %829 = vst.msk [vmem:[%s3 + $0x70] sm:$0xff] %vm814, %v706
  %830 = vst.msk [vmem:[%s3 + $0x78] sm:$0xff] %vm814, %v711
  %831 = vst.msk [vmem:[%s3 + $0x80] sm:$0xff] %vm814, %v716
  %832 = vst.msk [vmem:[%s3 + $0x88] sm:$0xff] %vm814, %v721
  %833 = vst.msk [vmem:[%s3 + $0x90] sm:$0xff] %vm814, %v726
  %834 = vst.msk [vmem:[%s3 + $0x98] sm:$0xff] %vm814, %v731
  %835 = vst.msk [vmem:[%s3 + $0xa0] sm:$0xff] %vm814, %v736
  %836 = vst.msk [vmem:[%s3 + $0xa8] sm:$0xff] %vm814, %v741
  %837 = vst.msk [vmem:[%s3 + $0xb0] sm:$0xff] %vm814, %v746
  %838 = vst.msk [vmem:[%s3 + $0xb8] sm:$0xff] %vm814, %v751
  %839 = vst.msk [vmem:[%s3 + $0xc0] sm:$0xff] %vm814, %v756
  %840 = vst.msk [vmem:[%s3 + $0xc8] sm:$0xff] %vm814, %v761
  %841 = vst.msk [vmem:[%s3 + $0xd0] sm:$0xff] %vm814, %v766
  %842 = vst.msk [vmem:[%s3 + $0xd8] sm:$0xff] %vm814, %v771
  %843 = vst.msk [vmem:[%s3 + $0xe0] sm:$0xff] %vm814, %v776
  %844 = vst.msk [vmem:[%s3 + $0xe8] sm:$0xff] %vm814, %v781
  %845 = vst.msk [vmem:[%s3 + $0xf0] sm:$0xff] %vm814, %v786
  %846 = vst.msk [vmem:[%s3 + $0xf8] sm:$0xff] %vm814, %v791
  %847 = vst.msk [vmem:[%s3 + $0x100] sm:$0xff] %vm814, %v796
  %848 = vst.msk [vmem:[%s3 + $0x108] sm:$0xff] %vm814, %v801
  %849 = vst.msk [vmem:[%s3 + $0x110] sm:$0xff] %vm814, %v806
  %850 = vst.msk [vmem:[%s3 + $0x118] sm:$0xff] %vm814, %v811
  // Predicated region
  $region14: #{net_forward.20} parent=0 // pred_check
    _
  $region15: #{net_forward.20} parent=0 // pred_check_branch
    %852 = sbr.rel (0) target = $region17
  $region16: #{net_forward.20} parent=0 // pred_region
    _
  $region17: #{net_forward.20} parent=0 // pred_fallthru
    _
  // Predicated region
  $region18: #{net_forward.20} parent=0 // pred_check
    _
  $region19: #{net_forward.20} parent=0 // pred_check_branch
    %854 = sbr.rel (0) target = $region21
  $region20: #{net_forward.20} parent=0 // pred_region
    _
  $region21: #{net_forward.20} parent=0 // pred_fallthru
    _

// kernel: net_forward.23
$region0: #{net_forward.23}
  #allocation0 [shape = 'u32[]', space=smem, size = 0x4, offset = 0x4, fixed_abs, tag = 'smem constant byte address 0x4 - core index']
  #allocation1 [shape = 'u32[144,128]{1,0:T(1,128)}', space=vmem, size = 0x12000, scoped, tag = 'internal scratch']
  %s0 = inlined_call_operand.vmem [shape: f32[9,24,120], index: 0, kind: input, shape index: {}]
  %s1 = inlined_call_operand.vmem [shape: f32[24,120], index: 1, kind: output, shape index: {}]
  %s2 = sld [smem:[#allocation0]]
  $region14: #{net_forward.23} parent=0
    _
  %s4 = ssub.s32 1, %s2
  %s5 = scalar_select 0, %s4, %s2
  // Predicated region
  $region2: #{net_forward.23} parent=0 // pred_check
    _
  $region3: #{net_forward.23} parent=0 // pred_check_branch
    %7 = sbr.rel (0) target = $region5
  $region4: #{net_forward.23} parent=0 // pred_region
    _
  $region5: #{net_forward.23} parent=0 // pred_fallthru
    _
  %v8 = vld [vmem:[%s0] sm:$0xff]
  %v9 = vld [vmem:[%s0 + $0x8] sm:$0xff]
  %v10 = vld [vmem:[%s0 + $0x10] sm:$0xff]
  %s11 = scalar_lea.vmem %s0, 24
  %v12 = vld [vmem:[%s11] sm:$0xff]
  %v13 = vld [vmem:[%s11 + $0x8] sm:$0xff]
  %v14 = vld [vmem:[%s11 + $0x10] sm:$0xff]
  %v15 = vadd.f32 %v8, %v12
  %v16 = vadd.f32 %v9, %v13
  %v17 = vadd.f32 %v10, %v14
  %s18 = scalar_lea.vmem %s0, 48
  %v19 = vld [vmem:[%s18] sm:$0xff]
  %v20 = vld [vmem:[%s18 + $0x8] sm:$0xff]
  %v21 = vld [vmem:[%s18 + $0x10] sm:$0xff]
  %v22 = vadd.f32 %v15, %v19
  %v23 = vadd.f32 %v16, %v20
  %v24 = vadd.f32 %v17, %v21
  %s25 = scalar_lea.vmem %s0, 72
  %v26 = vld [vmem:[%s25] sm:$0xff]
  %v27 = vld [vmem:[%s25 + $0x8] sm:$0xff]
  %v28 = vld [vmem:[%s25 + $0x10] sm:$0xff]
  %v29 = vadd.f32 %v22, %v26
  %v30 = vadd.f32 %v23, %v27
  %v31 = vadd.f32 %v24, %v28
  %s32 = scalar_lea.vmem %s0, 96
  %v33 = vld [vmem:[%s32] sm:$0xff]
  %v34 = vld [vmem:[%s32 + $0x8] sm:$0xff]
  %v35 = vld [vmem:[%s32 + $0x10] sm:$0xff]
  %v36 = vadd.f32 %v29, %v33
  %v37 = vadd.f32 %v30, %v34
  %v38 = vadd.f32 %v31, %v35
  %s39 = scalar_lea.vmem %s0, 120
  %v40 = vld [vmem:[%s39] sm:$0xff]
  %v41 = vld [vmem:[%s39 + $0x8] sm:$0xff]
  %v42 = vld [vmem:[%s39 + $0x10] sm:$0xff]
  %v43 = vadd.f32 %v36, %v40
  %v44 = vadd.f32 %v37, %v41
  %v45 = vadd.f32 %v38, %v42
  %s46 = scalar_lea.vmem %s0, 144
  %v47 = vld [vmem:[%s46] sm:$0xff]
  %v48 = vld [vmem:[%s46 + $0x8] sm:$0xff]
  %v49 = vld [vmem:[%s46 + $0x10] sm:$0xff]
  %v50 = vadd.f32 %v43, %v47
  %v51 = vadd.f32 %v44, %v48
  %v52 = vadd.f32 %v45, %v49
  %s53 = scalar_lea.vmem %s0, 168
  %v54 = vld [vmem:[%s53] sm:$0xff]
  %v55 = vld [vmem:[%s53 + $0x8] sm:$0xff]
  %v56 = vld [vmem:[%s53 + $0x10] sm:$0xff]
  %v57 = vadd.f32 %v50, %v54
  %v58 = vadd.f32 %v51, %v55
  %v59 = vadd.f32 %v52, %v56
  %s60 = scalar_lea.vmem %s0, 192
  %v61 = vld [vmem:[%s60] sm:$0xff]
  %v62 = vld [vmem:[%s60 + $0x8] sm:$0xff]
  %v63 = vld [vmem:[%s60 + $0x10] sm:$0xff]
  %v64 = vadd.f32 %v57, %v61
  %v65 = vadd.f32 %v58, %v62
  %v66 = vadd.f32 %v59, %v63
  %v67 = vmul.f32 %v64, 0.11111111
  %v68 = vmul.f32 %v65, 0.11111111
  %v69 = vmul.f32 %v66, 0.11111111
  %vm70 = vcmask 982016
  %71 = vst.msk [vmem:[%s1] sm:$0xff] %vm70, %v67
  %72 = vst.msk [vmem:[%s1 + $0x8] sm:$0xff] %vm70, %v68
  %73 = vst.msk [vmem:[%s1 + $0x10] sm:$0xff] %vm70, %v69
  // Predicated region
  $region6: #{net_forward.23} parent=0 // pred_check
    _
  $region7: #{net_forward.23} parent=0 // pred_check_branch
    %75 = sbr.rel (0) target = $region9
  $region8: #{net_forward.23} parent=0 // pred_region
    _
  $region9: #{net_forward.23} parent=0 // pred_fallthru
    _
  // Predicated region
  $region10: #{net_forward.23} parent=0 // pred_check
    _
  $region11: #{net_forward.23} parent=0 // pred_check_branch
    %77 = sbr.rel (0) target = $region13
  $region12: #{net_forward.23} parent=0 // pred_region
    _
  $region13: #{net_forward.23} parent=0 // pred_fallthru
    _

// kernel: net_forward.24
$region0: #{net_forward.24}
  #allocation0 [shape = 'u32[]', space=smem, size = 0x4, offset = 0x4, fixed_abs, tag = 'smem constant byte address 0x4 - core index']
  #allocation1 [shape = 'u32[144,128]{1,0:T(1,128)}', space=vmem, size = 0x12000, scoped, tag = 'internal scratch']
  %s0 = inlined_call_operand.vmem [shape: f32[288,16], index: 0, kind: input, shape index: {}]
  %s1 = inlined_call_operand.vmem [shape: f32[16,24], index: 1, kind: input, shape index: {}]
  %s2 = inlined_call_operand.vmem [shape: f32[1,24], index: 2, kind: input, shape index: {}]
  %s3 = inlined_call_operand.vmem [shape: f32[288,24], index: 3, kind: output, shape index: {}]
  %s4 = sld [smem:[#allocation0]]
  $region22: #{net_forward.24} parent=0
    _
  %s6 = ssub.s32 1, %s4
  %s7 = scalar_select 0, %s6, %s4
  // Predicated region
  $region2: #{net_forward.24} parent=0 // pred_check
    _
  $region3: #{net_forward.24} parent=0 // pred_check_branch
    %9 = sbr.rel (0) target = $region5
  $region4: #{net_forward.24} parent=0 // pred_region
    _
  $region5: #{net_forward.24} parent=0 // pred_fallthru
    _
  // Predicated region
  $region6: #{net_forward.24} parent=0 // pred_check
    _
  $region7: #{net_forward.24} parent=0 // pred_check_branch
    %11 = sbr.rel (0) target = $region9
  $region8: #{net_forward.24} parent=0 // pred_region
    _
  $region9: #{net_forward.24} parent=0 // pred_fallthru
    _
  // Predicated region
  $region10: #{net_forward.24} parent=0 // pred_check
    _
  $region11: #{net_forward.24} parent=0 // pred_check_branch
    %13 = sbr.rel (0) target = $region13
  $region12: #{net_forward.24} parent=0 // pred_region
    _
  $region13: #{net_forward.24} parent=0 // pred_fallthru
    _
  %v14 = vld [vmem:[%s0] sm:$0xff]
  %v15 = vld [vmem:[%s0 + $0x8] sm:$0xff]
  %v16 = vld [vmem:[%s0 + $0x10] sm:$0xff]
  %v17 = vld [vmem:[%s0 + $0x18] sm:$0xff]
  %v18 = vld [vmem:[%s0 + $0x20] sm:$0xff]
  %v19 = vld [vmem:[%s0 + $0x28] sm:$0xff]
  %v20 = vld [vmem:[%s0 + $0x30] sm:$0xff]
  %v21 = vld [vmem:[%s0 + $0x38] sm:$0xff]
  %v22 = vld [vmem:[%s0 + $0x40] sm:$0xff]
  %v23 = vld [vmem:[%s0 + $0x48] sm:$0xff]
  %v24 = vld [vmem:[%s0 + $0x50] sm:$0xff]
  %v25 = vld [vmem:[%s0 + $0x58] sm:$0xff]
  %v26 = vld [vmem:[%s0 + $0x60] sm:$0xff]
  %v27 = vld [vmem:[%s0 + $0x68] sm:$0xff]
  %v28 = vld [vmem:[%s0 + $0x70] sm:$0xff]
  %v29 = vld [vmem:[%s0 + $0x78] sm:$0xff]
  %v30 = vld [vmem:[%s0 + $0x80] sm:$0xff]
  %v31 = vld [vmem:[%s0 + $0x88] sm:$0xff]
  %v32 = vld [vmem:[%s0 + $0x90] sm:$0xff]
  %v33 = vld [vmem:[%s0 + $0x98] sm:$0xff]
  %v34 = vld [vmem:[%s0 + $0xa0] sm:$0xff]
  %v35 = vld [vmem:[%s0 + $0xa8] sm:$0xff]
  %v36 = vld [vmem:[%s0 + $0xb0] sm:$0xff]
  %v37 = vld [vmem:[%s0 + $0xb8] sm:$0xff]
  %v38 = vld [vmem:[%s0 + $0xc0] sm:$0xff]
  %v39 = vld [vmem:[%s0 + $0xc8] sm:$0xff]
  %v40 = vld [vmem:[%s0 + $0xd0] sm:$0xff]
  %v41 = vld [vmem:[%s0 + $0xd8] sm:$0xff]
  %v42 = vld [vmem:[%s0 + $0xe0] sm:$0xff]
  %v43 = vld [vmem:[%s0 + $0xe8] sm:$0xff]
  %v44 = vld [vmem:[%s0 + $0xf0] sm:$0xff]
  %v45 = vld [vmem:[%s0 + $0xf8] sm:$0xff]
  %v46 = vld [vmem:[%s0 + $0x100] sm:$0xff]
  %v47 = vld [vmem:[%s0 + $0x108] sm:$0xff]
  %v48 = vld [vmem:[%s0 + $0x110] sm:$0xff]
  %v49 = vld [vmem:[%s0 + $0x118] sm:$0xff]
  %v50 = vld [vmem:[%s1] sm:$0xff]
  %v51 = vld [vmem:[%s1 + $0x8] sm:$0xff]
  %v52 = vld [vmem:[%s2] sm:$0x1]
  %v54 = vlaneseq
  %v55 = vshrl.u32 %v54, 7
  %v56 = vsub.s32 0, %v55
  %v57 = vrot.slane %v52, %v56
  %vm59 = vcmask 130048
  %v61 = vsel %vm59, %v14, 0
  %v64 = vsel %vm59, %v15, 0
  %v67 = vsel %vm59, %v16, 0
  %v70 = vsel %vm59, %v17, 0
  %v73 = vsel %vm59, %v18, 0
  %v76 = vsel %vm59, %v19, 0
  %v79 = vsel %vm59, %v20, 0
  %v82 = vsel %vm59, %v21, 0
  %v85 = vsel %vm59, %v22, 0
  %v88 = vsel %vm59, %v23, 0
  %v91 = vsel %vm59, %v24, 0
  %v94 = vsel %vm59, %v25, 0
  %v97 = vsel %vm59, %v26, 0
  %v100 = vsel %vm59, %v27, 0
  %v103 = vsel %vm59, %v28, 0
  %v106 = vsel %vm59, %v29, 0
  %v109 = vsel %vm59, %v30, 0
  %v112 = vsel %vm59, %v31, 0
  %v115 = vsel %vm59, %v32, 0
  %v118 = vsel %vm59, %v33, 0
  %v121 = vsel %vm59, %v34, 0
  %v124 = vsel %vm59, %v35, 0
  %v127 = vsel %vm59, %v36, 0
  %v130 = vsel %vm59, %v37, 0
  %v133 = vsel %vm59, %v38, 0
  %v136 = vsel %vm59, %v39, 0
  %v139 = vsel %vm59, %v40, 0
  %v142 = vsel %vm59, %v41, 0
  %v145 = vsel %vm59, %v42, 0
  %v148 = vsel %vm59, %v43, 0
  %v151 = vsel %vm59, %v44, 0
  %v154 = vsel %vm59, %v45, 0
  %v157 = vsel %vm59, %v46, 0
  %v160 = vsel %vm59, %v47, 0
  %v163 = vsel %vm59, %v48, 0
  %v166 = vsel %vm59, %v49, 0
  %168 = vmatprep.subr.mxu0 0.0
  %169 = vmatpush1.msra.mxu0 %v50
  %170 = vmatprep.subr.mxu0 0.0
  %171 = vmatpush1.msra.mxu0 %v51
  %172 = vmatprep.subr.mxu0 0.0
  %173 = vmatpush1.msra.mxu0 0.0
  %174 = vmatprep.subr.mxu0 0.0
  %175 = vmatpush1.msra.mxu0 0.0
  %176 = vmatprep.subr.mxu0 0.0
  %177 = vmatpush1.msra.mxu0 0.0
  %178 = vmatprep.subr.mxu0 0.0
  %179 = vmatpush1.msra.mxu0 0.0
  %180 = vmatprep.subr.mxu0 0.0
  %181 = vmatpush1.msra.mxu0 0.0
  %182 = vmatprep.subr.mxu0 0.0
  %183 = vmatpush1.msra.mxu0 0.0
  %184 = vmatprep.subr.mxu0 0.0
  %185 = vmatpush1.msra.mxu0 0.0
  %186 = vmatprep.subr.mxu0 0.0
  %187 = vmatpush1.msra.mxu0 0.0
  %188 = vmatprep.subr.mxu0 0.0
  %189 = vmatpush1.msra.mxu0 0.0
  %190 = vmatprep.subr.mxu0 0.0
  %191 = vmatpush1.msra.mxu0 0.0
  %192 = vmatprep.subr.mxu0 0.0
  %193 = vmatpush1.msra.mxu0 0.0
  %194 = vmatprep.subr.mxu0 0.0
  %195 = vmatpush1.msra.mxu0 0.0
  %196 = vmatprep.subr.mxu0 0.0
  %197 = vmatpush1.msra.mxu0 0.0
  %198 = vmatprep.subr.mxu0 0.0
  %199 = vmatpush1.msra.mxu0 0.0
  %200 = vmatprep.subr.mxu0 0.0
  %201 = vmatpush1.msra.mxu0 0.0
  %202 = vmatprep.subr.mxu0 0.0
  %203 = vmatpush1.msra.mxu0 0.0
  %204 = vmatprep.subr.mxu0 0.0
  %205 = vmatpush1.msra.mxu0 0.0
  %206 = vmatprep.subr.mxu0 0.0
  %207 = vmatpush1.msra.mxu0 0.0
  %208 = vmatprep.subr.mxu0 0.0
  %209 = vmatpush1.msra.mxu0 0.0
  %210 = vmatprep.subr.mxu0 0.0
  %211 = vmatpush1.msra.mxu0 0.0
  %212 = vmatprep.subr.mxu0 0.0
  %213 = vmatpush1.msra.mxu0 0.0
  %214 = vmatprep.subr.mxu0 0.0
  %215 = vmatpush1.msra.mxu0 0.0
  %216 = vmatprep.subr.mxu0 0.0
  %217 = vmatpush1.msra.mxu0 0.0
  %218 = vmatprep.subr.mxu0 0.0
  %219 = vmatpush1.msra.mxu0 0.0
  %220 = vmatprep.subr.mxu0 0.0
  %221 = vmatpush1.msra.mxu0 0.0
  %222 = vmatprep.subr.mxu0 0.0
  %223 = vmatpush1.msra.mxu0 0.0
  %224 = vmatprep.subr.mxu0 0.0
  %225 = vmatpush1.msra.mxu0 0.0
  %226 = vmatprep.subr.mxu0 0.0
  %227 = vmatpush1.msra.mxu0 0.0
  %228 = vmatprep.subr.mxu0 0.0
  %229 = vmatpush1.msra.mxu0 0.0
  %230 = vmatprep.subr.mxu0 0.0
  %231 = vmatpush1.msra.mxu0 0.0
  %232 = vmatprep.mubr.f32.mxu0 0.0
  %233 = vmatmul.mubr.f32.gmra.mrb[0].mxu0 %v61
  %v234 = vpop.f32.mrb[0].mxu0
  %v235 = vadd.f32 %v57, %v234
  %v236 = vpop.f32.mrb[0].mxu0
  %237 = vmatprep.mubr.f32.mxu0 0.0
  %238 = vmatmul.mubr.f32.gmra.mrb[0].mxu0 %v64
  %v239 = vpop.f32.mrb[0].mxu0
  %v240 = vadd.f32 %v57, %v239
  %v241 = vpop.f32.mrb[0].mxu0
  %242 = vmatprep.mubr.f32.mxu0 0.0
  %243 = vmatmul.mubr.f32.gmra.mrb[0].mxu0 %v67
  %v244 = vpop.f32.mrb[0].mxu0
  %v245 = vadd.f32 %v57, %v244
  %v246 = vpop.f32.mrb[0].mxu0
  %247 = vmatprep.mubr.f32.mxu0 0.0
  %248 = vmatmul.mubr.f32.gmra.mrb[0].mxu0 %v70
  %v249 = vpop.f32.mrb[0].mxu0
  %v250 = vadd.f32 %v57, %v249
  %v251 = vpop.f32.mrb[0].mxu0
  %252 = vmatprep.mubr.f32.mxu0 0.0
  %253 = vmatmul.mubr.f32.gmra.mrb[0].mxu0 %v73
  %v254 = vpop.f32.mrb[0].mxu0
  %v255 = vadd.f32 %v57, %v254
  %v256 = vpop.f32.mrb[0].mxu0
  %257 = vmatprep.mubr.f32.mxu0 0.0
  %258 = vmatmul.mubr.f32.gmra.mrb[0].mxu0 %v76
  %v259 = vpop.f32.mrb[0].mxu0
  %v260 = vadd.f32 %v57, %v259
  %v261 = vpop.f32.mrb[0].mxu0
  %262 = vmatprep.mubr.f32.mxu0 0.0
  %263 = vmatmul.mubr.f32.gmra.mrb[0].mxu0 %v79
  %v264 = vpop.f32.mrb[0].mxu0
  %v265 = vadd.f32 %v57, %v264
  %v266 = vpop.f32.mrb[0].mxu0
  %267 = vmatprep.mubr.f32.mxu0 0.0
  %268 = vmatmul.mubr.f32.gmra.mrb[0].mxu0 %v82
  %v269 = vpop.f32.mrb[0].mxu0
  %v270 = vadd.f32 %v57, %v269
  %v271 = vpop.f32.mrb[0].mxu0
  %272 = vmatprep.mubr.f32.mxu0 0.0
  %273 = vmatmul.mubr.f32.gmra.mrb[0].mxu0 %v85
  %v274 = vpop.f32.mrb[0].mxu0
  %v275 = vadd.f32 %v57, %v274
  %v276 = vpop.f32.mrb[0].mxu0
  %277 = vmatprep.mubr.f32.mxu0 0.0
  %278 = vmatmul.mubr.f32.gmra.mrb[0].mxu0 %v88
  %v279 = vpop.f32.mrb[0].mxu0
  %v280 = vadd.f32 %v57, %v279
  %v281 = vpop.f32.mrb[0].mxu0
  %282 = vmatprep.mubr.f32.mxu0 0.0
  %283 = vmatmul.mubr.f32.gmra.mrb[0].mxu0 %v91
  %v284 = vpop.f32.mrb[0].mxu0
  %v285 = vadd.f32 %v57, %v284
  %v286 = vpop.f32.mrb[0].mxu0
  %287 = vmatprep.mubr.f32.mxu0 0.0
  %288 = vmatmul.mubr.f32.gmra.mrb[0].mxu0 %v94
  %v289 = vpop.f32.mrb[0].mxu0
  %v290 = vadd.f32 %v57, %v289
  %v291 = vpop.f32.mrb[0].mxu0
  %292 = vmatprep.mubr.f32.mxu0 0.0
  %293 = vmatmul.mubr.f32.gmra.mrb[0].mxu0 %v97
  %v294 = vpop.f32.mrb[0].mxu0
  %v295 = vadd.f32 %v57, %v294
  %v296 = vpop.f32.mrb[0].mxu0
  %297 = vmatprep.mubr.f32.mxu0 0.0
  %298 = vmatmul.mubr.f32.gmra.mrb[0].mxu0 %v100
  %v299 = vpop.f32.mrb[0].mxu0
  %v300 = vadd.f32 %v57, %v299
  %v301 = vpop.f32.mrb[0].mxu0
  %302 = vmatprep.mubr.f32.mxu0 0.0
  %303 = vmatmul.mubr.f32.gmra.mrb[0].mxu0 %v103
  %v304 = vpop.f32.mrb[0].mxu0
  %v305 = vadd.f32 %v57, %v304
  %v306 = vpop.f32.mrb[0].mxu0
  %307 = vmatprep.mubr.f32.mxu0 0.0
  %308 = vmatmul.mubr.f32.gmra.mrb[0].mxu0 %v106
  %v309 = vpop.f32.mrb[0].mxu0
  %v310 = vadd.f32 %v57, %v309
  %v311 = vpop.f32.mrb[0].mxu0
  %312 = vmatprep.mubr.f32.mxu0 0.0
  %313 = vmatmul.mubr.f32.gmra.mrb[0].mxu0 %v109
  %v314 = vpop.f32.mrb[0].mxu0
  %v315 = vadd.f32 %v57, %v314
  %v316 = vpop.f32.mrb[0].mxu0
  %317 = vmatprep.mubr.f32.mxu0 0.0
  %318 = vmatmul.mubr.f32.gmra.mrb[0].mxu0 %v112
  %v319 = vpop.f32.mrb[0].mxu0
  %v320 = vadd.f32 %v57, %v319
  %v321 = vpop.f32.mrb[0].mxu0
  %322 = vmatprep.mubr.f32.mxu0 0.0
  %323 = vmatmul.mubr.f32.gmra.mrb[0].mxu0 %v115
  %v324 = vpop.f32.mrb[0].mxu0
  %v325 = vadd.f32 %v57, %v324
  %v326 = vpop.f32.mrb[0].mxu0
  %327 = vmatprep.mubr.f32.mxu0 0.0
  %328 = vmatmul.mubr.f32.gmra.mrb[0].mxu0 %v118
  %v329 = vpop.f32.mrb[0].mxu0
  %v330 = vadd.f32 %v57, %v329
  %v331 = vpop.f32.mrb[0].mxu0
  %332 = vmatprep.mubr.f32.mxu0 0.0
  %333 = vmatmul.mubr.f32.gmra.mrb[0].mxu0 %v121
  %v334 = vpop.f32.mrb[0].mxu0
  %v335 = vadd.f32 %v57, %v334
  %v336 = vpop.f32.mrb[0].mxu0
  %337 = vmatprep.mubr.f32.mxu0 0.0
  %338 = vmatmul.mubr.f32.gmra.mrb[0].mxu0 %v124
  %v339 = vpop.f32.mrb[0].mxu0
  %v340 = vadd.f32 %v57, %v339
  %v341 = vpop.f32.mrb[0].mxu0
  %342 = vmatprep.mubr.f32.mxu0 0.0
  %343 = vmatmul.mubr.f32.gmra.mrb[0].mxu0 %v127
  %v344 = vpop.f32.mrb[0].mxu0
  %v345 = vadd.f32 %v57, %v344
  %v346 = vpop.f32.mrb[0].mxu0
  %347 = vmatprep.mubr.f32.mxu0 0.0
  %348 = vmatmul.mubr.f32.gmra.mrb[0].mxu0 %v130
  %v349 = vpop.f32.mrb[0].mxu0
  %v350 = vadd.f32 %v57, %v349
  %v351 = vpop.f32.mrb[0].mxu0
  %352 = vmatprep.mubr.f32.mxu0 0.0
  %353 = vmatmul.mubr.f32.gmra.mrb[0].mxu0 %v133
  %v354 = vpop.f32.mrb[0].mxu0
  %v355 = vadd.f32 %v57, %v354
  %v356 = vpop.f32.mrb[0].mxu0
  %357 = vmatprep.mubr.f32.mxu0 0.0
  %358 = vmatmul.mubr.f32.gmra.mrb[0].mxu0 %v136
  %v359 = vpop.f32.mrb[0].mxu0
  %v360 = vadd.f32 %v57, %v359
  %v361 = vpop.f32.mrb[0].mxu0
  %362 = vmatprep.mubr.f32.mxu0 0.0
  %363 = vmatmul.mubr.f32.gmra.mrb[0].mxu0 %v139
  %v364 = vpop.f32.mrb[0].mxu0
  %v365 = vadd.f32 %v57, %v364
  %v366 = vpop.f32.mrb[0].mxu0
  %367 = vmatprep.mubr.f32.mxu0 0.0
  %368 = vmatmul.mubr.f32.gmra.mrb[0].mxu0 %v142
  %v369 = vpop.f32.mrb[0].mxu0
  %v370 = vadd.f32 %v57, %v369
  %v371 = vpop.f32.mrb[0].mxu0
  %372 = vmatprep.mubr.f32.mxu0 0.0
  %373 = vmatmul.mubr.f32.gmra.mrb[0].mxu0 %v145
  %v374 = vpop.f32.mrb[0].mxu0
  %v375 = vadd.f32 %v57, %v374
  %v376 = vpop.f32.mrb[0].mxu0
  %377 = vmatprep.mubr.f32.mxu0 0.0
  %378 = vmatmul.mubr.f32.gmra.mrb[0].mxu0 %v148
  %v379 = vpop.f32.mrb[0].mxu0
  %v380 = vadd.f32 %v57, %v379
  %v381 = vpop.f32.mrb[0].mxu0
  %382 = vmatprep.mubr.f32.mxu0 0.0
  %383 = vmatmul.mubr.f32.gmra.mrb[0].mxu0 %v151
  %v384 = vpop.f32.mrb[0].mxu0
  %v385 = vadd.f32 %v57, %v384
  %v386 = vpop.f32.mrb[0].mxu0
  %387 = vmatprep.mubr.f32.mxu0 0.0
  %388 = vmatmul.mubr.f32.gmra.mrb[0].mxu0 %v154
  %v389 = vpop.f32.mrb[0].mxu0
  %v390 = vadd.f32 %v57, %v389
  %v391 = vpop.f32.mrb[0].mxu0
  %392 = vmatprep.mubr.f32.mxu0 0.0
  %393 = vmatmul.mubr.f32.gmra.mrb[0].mxu0 %v157
  %v394 = vpop.f32.mrb[0].mxu0
  %v395 = vadd.f32 %v57, %v394
  %v396 = vpop.f32.mrb[0].mxu0
  %397 = vmatprep.mubr.f32.mxu0 0.0
  %398 = vmatmul.mubr.f32.gmra.mrb[0].mxu0 %v160
  %v399 = vpop.f32.mrb[0].mxu0
  %v400 = vadd.f32 %v57, %v399
  %v401 = vpop.f32.mrb[0].mxu0
  %402 = vmatprep.mubr.f32.mxu0 0.0
  %403 = vmatmul.mubr.f32.gmra.mrb[0].mxu0 %v163
  %v404 = vpop.f32.mrb[0].mxu0
  %v405 = vadd.f32 %v57, %v404
  %v406 = vpop.f32.mrb[0].mxu0
  %407 = vmatprep.mubr.f32.mxu0 0.0
  %408 = vmatmul.mubr.f32.gmra.mrb[0].mxu0 %v166
  %v409 = vpop.f32.mrb[0].mxu0
  %v410 = vadd.f32 %v57, %v409
  %v411 = vpop.f32.mrb[0].mxu0
  %412 = vdwg.mxu0
  %vm413 = vcmask 195584
  %414 = vst.msk [vmem:[%s3] sm:$0xff] %vm413, %v235
  %415 = vst.msk [vmem:[%s3 + $0x8] sm:$0xff] %vm413, %v240
  %416 = vst.msk [vmem:[%s3 + $0x10] sm:$0xff] %vm413, %v245
  %417 = vst.msk [vmem:[%s3 + $0x18] sm:$0xff] %vm413, %v250
  %418 = vst.msk [vmem:[%s3 + $0x20] sm:$0xff] %vm413, %v255
  %419 = vst.msk [vmem:[%s3 + $0x28] sm:$0xff] %vm413, %v260
  %420 = vst.msk [vmem:[%s3 + $0x30] sm:$0xff] %vm413, %v265
  %421 = vst.msk [vmem:[%s3 + $0x38] sm:$0xff] %vm413, %v270
  %422 = vst.msk [vmem:[%s3 + $0x40] sm:$0xff] %vm413, %v275
  %423 = vst.msk [vmem:[%s3 + $0x48] sm:$0xff] %vm413, %v280
  %424 = vst.msk [vmem:[%s3 + $0x50] sm:$0xff] %vm413, %v285
  %425 = vst.msk [vmem:[%s3 + $0x58] sm:$0xff] %vm413, %v290
  %426 = vst.msk [vmem:[%s3 + $0x60] sm:$0xff] %vm413, %v295
  %427 = vst.msk [vmem:[%s3 + $0x68] sm:$0xff] %vm413, %v300
  %428 = vst.msk [vmem:[%s3 + $0x70] sm:$0xff] %vm413, %v305
  %429 = vst.msk [vmem:[%s3 + $0x78] sm:$0xff] %vm413, %v310
  %430 = vst.msk [vmem:[%s3 + $0x80] sm:$0xff] %vm413, %v315
  %431 = vst.msk [vmem:[%s3 + $0x88] sm:$0xff] %vm413, %v320
  %432 = vst.msk [vmem:[%s3 + $0x90] sm:$0xff] %vm413, %v325
  %433 = vst.msk [vmem:[%s3 + $0x98] sm:$0xff] %vm413, %v330
  %434 = vst.msk [vmem:[%s3 + $0xa0] sm:$0xff] %vm413, %v335
  %435 = vst.msk [vmem:[%s3 + $0xa8] sm:$0xff] %vm413, %v340
  %436 = vst.msk [vmem:[%s3 + $0xb0] sm:$0xff] %vm413, %v345
  %437 = vst.msk [vmem:[%s3 + $0xb8] sm:$0xff] %vm413, %v350
  %438 = vst.msk [vmem:[%s3 + $0xc0] sm:$0xff] %vm413, %v355
  %439 = vst.msk [vmem:[%s3 + $0xc8] sm:$0xff] %vm413, %v360
  %440 = vst.msk [vmem:[%s3 + $0xd0] sm:$0xff] %vm413, %v365
  %441 = vst.msk [vmem:[%s3 + $0xd8] sm:$0xff] %vm413, %v370
  %442 = vst.msk [vmem:[%s3 + $0xe0] sm:$0xff] %vm413, %v375
  %443 = vst.msk [vmem:[%s3 + $0xe8] sm:$0xff] %vm413, %v380
  %444 = vst.msk [vmem:[%s3 + $0xf0] sm:$0xff] %vm413, %v385
  %445 = vst.msk [vmem:[%s3 + $0xf8] sm:$0xff] %vm413, %v390
  %446 = vst.msk [vmem:[%s3 + $0x100] sm:$0xff] %vm413, %v395
  %447 = vst.msk [vmem:[%s3 + $0x108] sm:$0xff] %vm413, %v400
  %448 = vst.msk [vmem:[%s3 + $0x110] sm:$0xff] %vm413, %v405
  %449 = vst.msk [vmem:[%s3 + $0x118] sm:$0xff] %vm413, %v410
  // Predicated region
  $region14: #{net_forward.24} parent=0 // pred_check
    _
  $region15: #{net_forward.24} parent=0 // pred_check_branch
    %451 = sbr.rel (0) target = $region17
  $region16: #{net_forward.24} parent=0 // pred_region
    _
  $region17: #{net_forward.24} parent=0 // pred_fallthru
    _
  // Predicated region
  $region18: #{net_forward.24} parent=0 // pred_check
    _
  $region19: #{net_forward.24} parent=0 // pred_check_branch
    %453 = sbr.rel (0) target = $region21
  $region20: #{net_forward.24} parent=0 // pred_region
    _
  $region21: #{net_forward.24} parent=0 // pred_fallthru
    _

// kernel: net_forward.25
$region0: #{net_forward.25}
  #allocation0 [shape = 'u32[]', space=smem, size = 0x4, offset = 0x4, fixed_abs, tag = 'smem constant byte address 0x4 - core index']
  #allocation1 [shape = 'u32[144,128]{1,0:T(1,128)}', space=vmem, size = 0x12000, scoped, tag = 'internal scratch']
  %s0 = inlined_call_operand.vmem [shape: f32[128,2200], index: 0, kind: input, shape index: {}]
  %s1 = inlined_call_operand.vmem [shape: f32[2200,20], index: 1, kind: input, shape index: {}]
  %s2 = inlined_call_operand.vmem [shape: f32[1,20], index: 2, kind: input, shape index: {}]
  %s3 = inlined_call_operand.vmem [shape: f32[128,20], index: 3, kind: output, shape index: {}]
  %s4 = sld [smem:[#allocation0]]
  $region22: #{net_forward.25} parent=0
    _
  %s6 = ssub.s32 1, %s4
  %s7 = scalar_select 0, %s6, %s4
  // Predicated region
  $region2: #{net_forward.25} parent=0 // pred_check
    _
  $region3: #{net_forward.25} parent=0 // pred_check_branch
    %9 = sbr.rel (0) target = $region5
  $region4: #{net_forward.25} parent=0 // pred_region
    _
  $region5: #{net_forward.25} parent=0 // pred_fallthru
    _
  // Predicated region
  $region6: #{net_forward.25} parent=0 // pred_check
    _
  $region7: #{net_forward.25} parent=0 // pred_check_branch
    %11 = sbr.rel (0) target = $region9
  $region8: #{net_forward.25} parent=0 // pred_region
    _
  $region9: #{net_forward.25} parent=0 // pred_fallthru
    _
  // Predicated region
  $region10: #{net_forward.25} parent=0 // pred_check
    _
  $region11: #{net_forward.25} parent=0 // pred_check_branch
    %13 = sbr.rel (0) target = $region13
  $region12: #{net_forward.25} parent=0 // pred_region
    _
  $region13: #{net_forward.25} parent=0 // pred_fallthru
    _
  %v14 = vld [vmem:[%s0] sm:$0xff]
  %v15 = vld [vmem:[%s0 + $0x8] sm:$0xff]
  %v16 = vld [vmem:[%s0 + $0x10] sm:$0xff]
  %v17 = vld [vmem:[%s0 + $0x18] sm:$0xff]
  %v18 = vld [vmem:[%s0 + $0x20] sm:$0xff]
  %v19 = vld [vmem:[%s0 + $0x28] sm:$0xff]
  %v20 = vld [vmem:[%s0 + $0x30] sm:$0xff]
  %v21 = vld [vmem:[%s0 + $0x38] sm:$0xff]
  %v22 = vld [vmem:[%s0 + $0x40] sm:$0xff]
  %v23 = vld [vmem:[%s0 + $0x48] sm:$0xff]
  %v24 = vld [vmem:[%s0 + $0x50] sm:$0xff]
  %v25 = vld [vmem:[%s0 + $0x58] sm:$0xff]
  %v26 = vld [vmem:[%s0 + $0x60] sm:$0xff]
  %v27 = vld [vmem:[%s0 + $0x68] sm:$0xff]
  %v28 = vld [vmem:[%s0 + $0x70] sm:$0xff]
  %v29 = vld [vmem:[%s0 + $0x78] sm:$0xff]
  %v30 = vld [vmem:[%s0 + $0x80] sm:$0xff]
  %v31 = vld [vmem:[%s0 + $0x88] sm:$0xff]
  %v32 = vld [vmem:[%s0 + $0x90] sm:$0xff]
  %v33 = vld [vmem:[%s0 + $0x98] sm:$0xff]
  %v34 = vld [vmem:[%s0 + $0xa0] sm:$0xff]
  %v35 = vld [vmem:[%s0 + $0xa8] sm:$0xff]
  %v36 = vld [vmem:[%s0 + $0xb0] sm:$0xff]
  %v37 = vld [vmem:[%s0 + $0xb8] sm:$0xff]
  %v38 = vld [vmem:[%s0 + $0xc0] sm:$0xff]
  %v39 = vld [vmem:[%s0 + $0xc8] sm:$0xff]
  %v40 = vld [vmem:[%s0 + $0xd0] sm:$0xff]
  %v41 = vld [vmem:[%s0 + $0xd8] sm:$0xff]
  %v42 = vld [vmem:[%s0 + $0xe0] sm:$0xff]
  %v43 = vld [vmem:[%s0 + $0xe8] sm:$0xff]
  %v44 = vld [vmem:[%s0 + $0xf0] sm:$0xff]
  %v45 = vld [vmem:[%s0 + $0xf8] sm:$0xff]
  %v46 = vld [vmem:[%s0 + $0x100] sm:$0xff]
  %v47 = vld [vmem:[%s0 + $0x108] sm:$0xff]
  %v48 = vld [vmem:[%s0 + $0x110] sm:$0xff]
  %v49 = vld [vmem:[%s0 + $0x118] sm:$0xff]
  %v50 = vld [vmem:[%s0 + $0x120] sm:$0xff]
  %v51 = vld [vmem:[%s0 + $0x128] sm:$0xff]
  %v52 = vld [vmem:[%s0 + $0x130] sm:$0xff]
  %v53 = vld [vmem:[%s0 + $0x138] sm:$0xff]
  %v54 = vld [vmem:[%s0 + $0x140] sm:$0xff]
  %v55 = vld [vmem:[%s0 + $0x148] sm:$0xff]
  %v56 = vld [vmem:[%s0 + $0x150] sm:$0xff]
  %v57 = vld [vmem:[%s0 + $0x158] sm:$0xff]
  %v58 = vld [vmem:[%s0 + $0x160] sm:$0xff]
  %v59 = vld [vmem:[%s0 + $0x168] sm:$0xff]
  %v60 = vld [vmem:[%s0 + $0x170] sm:$0xff]
  %v61 = vld [vmem:[%s0 + $0x178] sm:$0xff]
  %v62 = vld [vmem:[%s0 + $0x180] sm:$0xff]
  %v63 = vld [vmem:[%s0 + $0x188] sm:$0xff]
  %v64 = vld [vmem:[%s0 + $0x190] sm:$0xff]
  %v65 = vld [vmem:[%s0 + $0x198] sm:$0xff]
  %v66 = vld [vmem:[%s0 + $0x1a0] sm:$0xff]
  %v67 = vld [vmem:[%s0 + $0x1a8] sm:$0xff]
  %v68 = vld [vmem:[%s0 + $0x1b0] sm:$0xff]
  %v69 = vld [vmem:[%s0 + $0x1b8] sm:$0xff]
  %v70 = vld [vmem:[%s0 + $0x1c0] sm:$0xff]
  %v71 = vld [vmem:[%s0 + $0x1c8] sm:$0xff]
  %v72 = vld [vmem:[%s0 + $0x1d0] sm:$0xff]
  %v73 = vld [vmem:[%s0 + $0x1d8] sm:$0xff]
  %v74 = vld [vmem:[%s0 + $0x1e0] sm:$0xff]
  %v75 = vld [vmem:[%s0 + $0x1e8] sm:$0xff]
  %v76 = vld [vmem:[%s0 + $0x1f0] sm:$0xff]
  %v77 = vld [vmem:[%s0 + $0x1f8] sm:$0xff]
  %v78 = vld [vmem:[%s0 + $0x200] sm:$0xff]
  %v79 = vld [vmem:[%s0 + $0x208] sm:$0xff]
  %v80 = vld [vmem:[%s0 + $0x210] sm:$0xff]
  %v81 = vld [vmem:[%s0 + $0x218] sm:$0xff]
  %v82 = vld [vmem:[%s0 + $0x220] sm:$0xff]
  %v83 = vld [vmem:[%s0 + $0x228] sm:$0xff]
  %v84 = vld [vmem:[%s0 + $0x230] sm:$0xff]
  %v85 = vld [vmem:[%s0 + $0x238] sm:$0xff]
  %v86 = vld [vmem:[%s0 + $0x240] sm:$0xff]
  %v87 = vld [vmem:[%s0 + $0x248] sm:$0xff]
  %v88 = vld [vmem:[%s0 + $0x250] sm:$0xff]
  %v89 = vld [vmem:[%s0 + $0x258] sm:$0xff]
  %v90 = vld [vmem:[%s0 + $0x260] sm:$0xff]
  %v91 = vld [vmem:[%s0 + $0x268] sm:$0xff]
  %v92 = vld [vmem:[%s0 + $0x270] sm:$0xff]
  %v93 = vld [vmem:[%s0 + $0x278] sm:$0xff]
  %v94 = vld [vmem:[%s0 + $0x280] sm:$0xff]
  %v95 = vld [vmem:[%s0 + $0x288] sm:$0xff]
  %v96 = vld [vmem:[%s0 + $0x290] sm:$0xff]
  %v97 = vld [vmem:[%s0 + $0x298] sm:$0xff]
  %v98 = vld [vmem:[%s0 + $0x2a0] sm:$0xff]
  %v99 = vld [vmem:[%s0 + $0x2a8] sm:$0xff]
  %v100 = vld [vmem:[%s0 + $0x2b0] sm:$0xff]
  %v101 = vld [vmem:[%s0 + $0x2b8] sm:$0xff]
  %v102 = vld [vmem:[%s0 + $0x2c0] sm:$0xff]
  %v103 = vld [vmem:[%s0 + $0x2c8] sm:$0xff]
  %v104 = vld [vmem:[%s0 + $0x2d0] sm:$0xff]
  %v105 = vld [vmem:[%s0 + $0x2d8] sm:$0xff]
  %v106 = vld [vmem:[%s0 + $0x2e0] sm:$0xff]
  %v107 = vld [vmem:[%s0 + $0x2e8] sm:$0xff]
  %v108 = vld [vmem:[%s0 + $0x2f0] sm:$0xff]
  %v109 = vld [vmem:[%s0 + $0x2f8] sm:$0xff]
  %v110 = vld [vmem:[%s0 + $0x300] sm:$0xff]
  %v111 = vld [vmem:[%s0 + $0x308] sm:$0xff]
  %v112 = vld [vmem:[%s0 + $0x310] sm:$0xff]
  %v113 = vld [vmem:[%s0 + $0x318] sm:$0xff]
  %v114 = vld [vmem:[%s0 + $0x320] sm:$0xff]
  %v115 = vld [vmem:[%s0 + $0x328] sm:$0xff]
  %v116 = vld [vmem:[%s0 + $0x330] sm:$0xff]
  %v117 = vld [vmem:[%s0 + $0x338] sm:$0xff]
  %v118 = vld [vmem:[%s0 + $0x340] sm:$0xff]
  %v119 = vld [vmem:[%s0 + $0x348] sm:$0xff]
  %v120 = vld [vmem:[%s0 + $0x350] sm:$0xff]
  %v121 = vld [vmem:[%s0 + $0x358] sm:$0xff]
  %v122 = vld [vmem:[%s0 + $0x360] sm:$0xff]
  %v123 = vld [vmem:[%s0 + $0x368] sm:$0xff]
  %v124 = vld [vmem:[%s0 + $0x370] sm:$0xff]
  %v125 = vld [vmem:[%s0 + $0x378] sm:$0xff]
  %v126 = vld [vmem:[%s0 + $0x380] sm:$0xff]
  %v127 = vld [vmem:[%s0 + $0x388] sm:$0xff]
  %v128 = vld [vmem:[%s0 + $0x390] sm:$0xff]
  %v129 = vld [vmem:[%s0 + $0x398] sm:$0xff]
  %v130 = vld [vmem:[%s0 + $0x3a0] sm:$0xff]
  %v131 = vld [vmem:[%s0 + $0x3a8] sm:$0xff]
  %v132 = vld [vmem:[%s0 + $0x3b0] sm:$0xff]
  %v133 = vld [vmem:[%s0 + $0x3b8] sm:$0xff]
  %v134 = vld [vmem:[%s0 + $0x3c0] sm:$0xff]
  %v135 = vld [vmem:[%s0 + $0x3c8] sm:$0xff]
  %v136 = vld [vmem:[%s0 + $0x3d0] sm:$0xff]
  %v137 = vld [vmem:[%s0 + $0x3d8] sm:$0xff]
  %v138 = vld [vmem:[%s0 + $0x3e0] sm:$0xff]
  %v139 = vld [vmem:[%s0 + $0x3e8] sm:$0xff]
  %v140 = vld [vmem:[%s0 + $0x3f0] sm:$0xff]
  %v141 = vld [vmem:[%s0 + $0x3f8] sm:$0xff]
  %v142 = vld [vmem:[%s0 + $0x400] sm:$0xff]
  %v143 = vld [vmem:[%s0 + $0x408] sm:$0xff]
  %v144 = vld [vmem:[%s0 + $0x410] sm:$0xff]
  %v145 = vld [vmem:[%s0 + $0x418] sm:$0xff]
  %v146 = vld [vmem:[%s0 + $0x420] sm:$0xff]
  %v147 = vld [vmem:[%s0 + $0x428] sm:$0xff]
  %v148 = vld [vmem:[%s0 + $0x430] sm:$0xff]
  %v149 = vld [vmem:[%s0 + $0x438] sm:$0xff]
  %v150 = vld [vmem:[%s0 + $0x440] sm:$0xff]
  %v151 = vld [vmem:[%s0 + $0x448] sm:$0xff]
  %v152 = vld [vmem:[%s0 + $0x450] sm:$0xff]
  %v153 = vld [vmem:[%s0 + $0x458] sm:$0xff]
  %v154 = vld [vmem:[%s0 + $0x460] sm:$0xff]
  %v155 = vld [vmem:[%s0 + $0x468] sm:$0xff]
  %v156 = vld [vmem:[%s0 + $0x470] sm:$0xff]
  %v157 = vld [vmem:[%s0 + $0x478] sm:$0xff]
  %v158 = vld [vmem:[%s0 + $0x480] sm:$0xff]
  %v159 = vld [vmem:[%s0 + $0x488] sm:$0xff]
  %v160 = vld [vmem:[%s0 + $0x490] sm:$0xff]
  %v161 = vld [vmem:[%s0 + $0x498] sm:$0xff]
  %v162 = vld [vmem:[%s0 + $0x4a0] sm:$0xff]
  %v163 = vld [vmem:[%s0 + $0x4a8] sm:$0xff]
  %v164 = vld [vmem:[%s0 + $0x4b0] sm:$0xff]
  %v165 = vld [vmem:[%s0 + $0x4b8] sm:$0xff]
  %v166 = vld [vmem:[%s0 + $0x4c0] sm:$0xff]
  %v167 = vld [vmem:[%s0 + $0x4c8] sm:$0xff]
  %v168 = vld [vmem:[%s0 + $0x4d0] sm:$0xff]
  %v169 = vld [vmem:[%s0 + $0x4d8] sm:$0xff]
  %v170 = vld [vmem:[%s0 + $0x4e0] sm:$0xff]
  %v171 = vld [vmem:[%s0 + $0x4e8] sm:$0xff]
  %v172 = vld [vmem:[%s0 + $0x4f0] sm:$0xff]
  %v173 = vld [vmem:[%s0 + $0x4f8] sm:$0xff]
  %v174 = vld [vmem:[%s0 + $0x500] sm:$0xff]
  %v175 = vld [vmem:[%s0 + $0x508] sm:$0xff]
  %v176 = vld [vmem:[%s0 + $0x510] sm:$0xff]
  %v177 = vld [vmem:[%s0 + $0x518] sm:$0xff]
  %v178 = vld [vmem:[%s0 + $0x520] sm:$0xff]
  %v179 = vld [vmem:[%s0 + $0x528] sm:$0xff]
  %v180 = vld [vmem:[%s0 + $0x530] sm:$0xff]
  %v181 = vld [vmem:[%s0 + $0x538] sm:$0xff]
  %v182 = vld [vmem:[%s0 + $0x540] sm:$0xff]
  %v183 = vld [vmem:[%s0 + $0x548] sm:$0xff]
  %v184 = vld [vmem:[%s0 + $0x550] sm:$0xff]
  %v185 = vld [vmem:[%s0 + $0x558] sm:$0xff]
  %v186 = vld [vmem:[%s0 + $0x560] sm:$0xff]
  %v187 = vld [vmem:[%s0 + $0x568] sm:$0xff]
  %v188 = vld [vmem:[%s0 + $0x570] sm:$0xff]
  %v189 = vld [vmem:[%s0 + $0x578] sm:$0xff]
  %v190 = vld [vmem:[%s0 + $0x580] sm:$0xff]
  %v191 = vld [vmem:[%s0 + $0x588] sm:$0xff]
  %v192 = vld [vmem:[%s0 + $0x590] sm:$0xff]
  %v193 = vld [vmem:[%s0 + $0x598] sm:$0xff]
  %v194 = vld [vmem:[%s0 + $0x5a0] sm:$0xff]
  %v195 = vld [vmem:[%s0 + $0x5a8] sm:$0xff]
  %v196 = vld [vmem:[%s0 + $0x5b0] sm:$0xff]
  %v197 = vld [vmem:[%s0 + $0x5b8] sm:$0xff]
  %v198 = vld [vmem:[%s0 + $0x5c0] sm:$0xff]
  %v199 = vld [vmem:[%s0 + $0x5c8] sm:$0xff]
  %v200 = vld [vmem:[%s0 + $0x5d0] sm:$0xff]
  %v201 = vld [vmem:[%s0 + $0x5d8] sm:$0xff]
  %v202 = vld [vmem:[%s0 + $0x5e0] sm:$0xff]
  %v203 = vld [vmem:[%s0 + $0x5e8] sm:$0xff]
  %v204 = vld [vmem:[%s0 + $0x5f0] sm:$0xff]
  %v205 = vld [vmem:[%s0 + $0x5f8] sm:$0xff]
  %v206 = vld [vmem:[%s0 + $0x600] sm:$0xff]
  %v207 = vld [vmem:[%s0 + $0x608] sm:$0xff]
  %v208 = vld [vmem:[%s0 + $0x610] sm:$0xff]
  %v209 = vld [vmem:[%s0 + $0x618] sm:$0xff]
  %v210 = vld [vmem:[%s0 + $0x620] sm:$0xff]
  %v211 = vld [vmem:[%s0 + $0x628] sm:$0xff]
  %v212 = vld [vmem:[%s0 + $0x630] sm:$0xff]
  %v213 = vld [vmem:[%s0 + $0x638] sm:$0xff]
  %v214 = vld [vmem:[%s0 + $0x640] sm:$0xff]
  %v215 = vld [vmem:[%s0 + $0x648] sm:$0xff]
  %v216 = vld [vmem:[%s0 + $0x650] sm:$0xff]
  %v217 = vld [vmem:[%s0 + $0x658] sm:$0xff]
  %v218 = vld [vmem:[%s0 + $0x660] sm:$0xff]
  %v219 = vld [vmem:[%s0 + $0x668] sm:$0xff]
  %v220 = vld [vmem:[%s0 + $0x670] sm:$0xff]
  %v221 = vld [vmem:[%s0 + $0x678] sm:$0xff]
  %v222 = vld [vmem:[%s0 + $0x680] sm:$0xff]
  %v223 = vld [vmem:[%s0 + $0x688] sm:$0xff]
  %v224 = vld [vmem:[%s0 + $0x690] sm:$0xff]
  %v225 = vld [vmem:[%s0 + $0x698] sm:$0xff]
  %v226 = vld [vmem:[%s0 + $0x6a0] sm:$0xff]
  %v227 = vld [vmem:[%s0 + $0x6a8] sm:$0xff]
  %v228 = vld [vmem:[%s0 + $0x6b0] sm:$0xff]
  %v229 = vld [vmem:[%s0 + $0x6b8] sm:$0xff]
  %v230 = vld [vmem:[%s0 + $0x6c0] sm:$0xff]
  %v231 = vld [vmem:[%s0 + $0x6c8] sm:$0xff]
  %v232 = vld [vmem:[%s0 + $0x6d0] sm:$0xff]
  %v233 = vld [vmem:[%s0 + $0x6d8] sm:$0xff]
  %v234 = vld [vmem:[%s0 + $0x6e0] sm:$0xff]
  %v235 = vld [vmem:[%s0 + $0x6e8] sm:$0xff]
  %v236 = vld [vmem:[%s0 + $0x6f0] sm:$0xff]
  %v237 = vld [vmem:[%s0 + $0x6f8] sm:$0xff]
  %v238 = vld [vmem:[%s0 + $0x700] sm:$0xff]
  %v239 = vld [vmem:[%s0 + $0x708] sm:$0xff]
  %v240 = vld [vmem:[%s0 + $0x710] sm:$0xff]
  %v241 = vld [vmem:[%s0 + $0x718] sm:$0xff]
  %v242 = vld [vmem:[%s0 + $0x720] sm:$0xff]
  %v243 = vld [vmem:[%s0 + $0x728] sm:$0xff]
  %v244 = vld [vmem:[%s0 + $0x730] sm:$0xff]
  %v245 = vld [vmem:[%s0 + $0x738] sm:$0xff]
  %v246 = vld [vmem:[%s0 + $0x740] sm:$0xff]
  %v247 = vld [vmem:[%s0 + $0x748] sm:$0xff]
  %v248 = vld [vmem:[%s0 + $0x750] sm:$0xff]
  %v249 = vld [vmem:[%s0 + $0x758] sm:$0xff]
  %v250 = vld [vmem:[%s0 + $0x760] sm:$0xff]
  %v251 = vld [vmem:[%s0 + $0x768] sm:$0xff]
  %v252 = vld [vmem:[%s0 + $0x770] sm:$0xff]
  %v253 = vld [vmem:[%s0 + $0x778] sm:$0xff]
  %v254 = vld [vmem:[%s0 + $0x780] sm:$0xff]
  %v255 = vld [vmem:[%s0 + $0x788] sm:$0xff]
  %v256 = vld [vmem:[%s0 + $0x790] sm:$0xff]
  %v257 = vld [vmem:[%s0 + $0x798] sm:$0xff]
  %v258 = vld [vmem:[%s0 + $0x7a0] sm:$0xff]
  %v259 = vld [vmem:[%s0 + $0x7a8] sm:$0xff]
  %v260 = vld [vmem:[%s0 + $0x7b0] sm:$0xff]
  %v261 = vld [vmem:[%s0 + $0x7b8] sm:$0xff]
  %v262 = vld [vmem:[%s0 + $0x7c0] sm:$0xff]
  %v263 = vld [vmem:[%s0 + $0x7c8] sm:$0xff]
  %v264 = vld [vmem:[%s0 + $0x7d0] sm:$0xff]
  %v265 = vld [vmem:[%s0 + $0x7d8] sm:$0xff]
  %v266 = vld [vmem:[%s0 + $0x7e0] sm:$0xff]
  %v267 = vld [vmem:[%s0 + $0x7e8] sm:$0xff]
  %v268 = vld [vmem:[%s0 + $0x7f0] sm:$0xff]
  %v269 = vld [vmem:[%s0 + $0x7f8] sm:$0xff]
  %v270 = vld [vmem:[%s0 + $0x800] sm:$0xff]
  %v271 = vld [vmem:[%s0 + $0x808] sm:$0xff]
  %v272 = vld [vmem:[%s0 + $0x810] sm:$0xff]
  %v273 = vld [vmem:[%s0 + $0x818] sm:$0xff]
  %v274 = vld [vmem:[%s0 + $0x820] sm:$0xff]
  %v275 = vld [vmem:[%s0 + $0x828] sm:$0xff]
  %v276 = vld [vmem:[%s0 + $0x830] sm:$0xff]
  %v277 = vld [vmem:[%s0 + $0x838] sm:$0xff]
  %v278 = vld [vmem:[%s0 + $0x840] sm:$0xff]
  %v279 = vld [vmem:[%s0 + $0x848] sm:$0xff]
  %v280 = vld [vmem:[%s0 + $0x850] sm:$0xff]
  %v281 = vld [vmem:[%s0 + $0x858] sm:$0xff]
  %v282 = vld [vmem:[%s0 + $0x860] sm:$0xff]
  %v283 = vld [vmem:[%s0 + $0x868] sm:$0xff]
  %v284 = vld [vmem:[%s0 + $0x870] sm:$0xff]
  %v285 = vld [vmem:[%s0 + $0x878] sm:$0xff]
  %v286 = vld [vmem:[%s0 + $0x880] sm:$0xff]
  %v287 = vld [vmem:[%s0 + $0x888] sm:$0xff]
  %v288 = vld [vmem:[%s0 + $0x890] sm:$0xff]
  %v289 = vld [vmem:[%s0 + $0x898] sm:$0xff]
  %v290 = vld [vmem:[%s0 + $0x8a0] sm:$0xff]
  %v291 = vld [vmem:[%s0 + $0x8a8] sm:$0xff]
  %v292 = vld [vmem:[%s0 + $0x8b0] sm:$0xff]
  %v293 = vld [vmem:[%s0 + $0x8b8] sm:$0xff]
  %v294 = vld [vmem:[%s0 + $0x8c0] sm:$0xff]
  %v295 = vld [vmem:[%s0 + $0x8c8] sm:$0xff]
  %v296 = vld [vmem:[%s0 + $0x8d0] sm:$0xff]
  %v297 = vld [vmem:[%s0 + $0x8d8] sm:$0xff]
  %v298 = vld [vmem:[%s0 + $0x8e0] sm:$0xff]
  %v299 = vld [vmem:[%s0 + $0x8e8] sm:$0xff]
  %v300 = vld [vmem:[%s0 + $0x8f0] sm:$0xff]
  %v301 = vld [vmem:[%s0 + $0x8f8] sm:$0xff]
  %v302 = vld [vmem:[%s1] sm:$0xff]
  %v303 = vld [vmem:[%s1 + $0x8] sm:$0xff]
  %v304 = vld [vmem:[%s1 + $0x10] sm:$0xff]
  %v305 = vld [vmem:[%s1 + $0x18] sm:$0xff]
  %v306 = vld [vmem:[%s1 + $0x20] sm:$0xff]
  %v307 = vld [vmem:[%s1 + $0x28] sm:$0xff]
  %v308 = vld [vmem:[%s1 + $0x30] sm:$0xff]
  %v309 = vld [vmem:[%s1 + $0x38] sm:$0xff]
  %v310 = vld [vmem:[%s1 + $0x40] sm:$0xff]
  %v311 = vld [vmem:[%s1 + $0x48] sm:$0xff]
  %v312 = vld [vmem:[%s1 + $0x50] sm:$0xff]
  %v313 = vld [vmem:[%s1 + $0x58] sm:$0xff]
  %v314 = vld [vmem:[%s1 + $0x60] sm:$0xff]
  %v315 = vld [vmem:[%s1 + $0x68] sm:$0xff]
  %v316 = vld [vmem:[%s1 + $0x70] sm:$0xff]
  %v317 = vld [vmem:[%s1 + $0x78] sm:$0xff]
  %v318 = vld [vmem:[%s1 + $0x80] sm:$0xff]
  %v319 = vld [vmem:[%s1 + $0x88] sm:$0xff]
  %v320 = vld [vmem:[%s1 + $0x90] sm:$0xff]
  %v321 = vld [vmem:[%s1 + $0x98] sm:$0xff]
  %v322 = vld [vmem:[%s1 + $0xa0] sm:$0xff]
  %v323 = vld [vmem:[%s1 + $0xa8] sm:$0xff]
  %v324 = vld [vmem:[%s1 + $0xb0] sm:$0xff]
  %v325 = vld [vmem:[%s1 + $0xb8] sm:$0xff]
  %v326 = vld [vmem:[%s1 + $0xc0] sm:$0xff]
  %v327 = vld [vmem:[%s1 + $0xc8] sm:$0xff]
  %v328 = vld [vmem:[%s1 + $0xd0] sm:$0xff]
  %v329 = vld [vmem:[%s1 + $0xd8] sm:$0xff]
  %v330 = vld [vmem:[%s1 + $0xe0] sm:$0xff]
  %v331 = vld [vmem:[%s1 + $0xe8] sm:$0xff]
  %v332 = vld [vmem:[%s1 + $0xf0] sm:$0xff]
  %v333 = vld [vmem:[%s1 + $0xf8] sm:$0xff]
  %v334 = vld [vmem:[%s1 + $0x100] sm:$0xff]
  %v335 = vld [vmem:[%s1 + $0x108] sm:$0xff]
  %v336 = vld [vmem:[%s1 + $0x110] sm:$0xff]
  %v337 = vld [vmem:[%s1 + $0x118] sm:$0xff]
  %v338 = vld [vmem:[%s1 + $0x120] sm:$0xff]
  %v339 = vld [vmem:[%s1 + $0x128] sm:$0xff]
  %v340 = vld [vmem:[%s1 + $0x130] sm:$0xff]
  %v341 = vld [vmem:[%s1 + $0x138] sm:$0xff]
  %v342 = vld [vmem:[%s1 + $0x140] sm:$0xff]
  %v343 = vld [vmem:[%s1 + $0x148] sm:$0xff]
  %v344 = vld [vmem:[%s1 + $0x150] sm:$0xff]
  %v345 = vld [vmem:[%s1 + $0x158] sm:$0xff]
  %v346 = vld [vmem:[%s1 + $0x160] sm:$0xff]
  %v347 = vld [vmem:[%s1 + $0x168] sm:$0xff]
  %v348 = vld [vmem:[%s1 + $0x170] sm:$0xff]
  %v349 = vld [vmem:[%s1 + $0x178] sm:$0xff]
  %v350 = vld [vmem:[%s1 + $0x180] sm:$0xff]
  %v351 = vld [vmem:[%s1 + $0x188] sm:$0xff]
  %v352 = vld [vmem:[%s1 + $0x190] sm:$0xff]
  %v353 = vld [vmem:[%s1 + $0x198] sm:$0xff]
  %v354 = vld [vmem:[%s1 + $0x1a0] sm:$0xff]
  %v355 = vld [vmem:[%s1 + $0x1a8] sm:$0xff]
  %v356 = vld [vmem:[%s1 + $0x1b0] sm:$0xff]
  %v357 = vld [vmem:[%s1 + $0x1b8] sm:$0xff]
  %v358 = vld [vmem:[%s1 + $0x1c0] sm:$0xff]
  %v359 = vld [vmem:[%s1 + $0x1c8] sm:$0xff]
  %v360 = vld [vmem:[%s1 + $0x1d0] sm:$0xff]
  %v361 = vld [vmem:[%s1 + $0x1d8] sm:$0xff]
  %v362 = vld [vmem:[%s1 + $0x1e0] sm:$0xff]
  %v363 = vld [vmem:[%s1 + $0x1e8] sm:$0xff]
  %v364 = vld [vmem:[%s1 + $0x1f0] sm:$0xff]
  %v365 = vld [vmem:[%s1 + $0x1f8] sm:$0xff]
  %v366 = vld [vmem:[%s1 + $0x200] sm:$0xff]
  %v367 = vld [vmem:[%s1 + $0x208] sm:$0xff]
  %v368 = vld [vmem:[%s1 + $0x210] sm:$0xff]
  %v369 = vld [vmem:[%s1 + $0x218] sm:$0xff]
  %v370 = vld [vmem:[%s1 + $0x220] sm:$0xff]
  %v371 = vld [vmem:[%s1 + $0x228] sm:$0xff]
  %v372 = vld [vmem:[%s1 + $0x230] sm:$0xff]
  %v373 = vld [vmem:[%s1 + $0x238] sm:$0xff]
  %v374 = vld [vmem:[%s1 + $0x240] sm:$0xff]
  %v375 = vld [vmem:[%s1 + $0x248] sm:$0xff]
  %v376 = vld [vmem:[%s1 + $0x250] sm:$0xff]
  %v377 = vld [vmem:[%s1 + $0x258] sm:$0xff]
  %v378 = vld [vmem:[%s1 + $0x260] sm:$0xff]
  %v379 = vld [vmem:[%s1 + $0x268] sm:$0xff]
  %v380 = vld [vmem:[%s1 + $0x270] sm:$0xff]
  %v381 = vld [vmem:[%s1 + $0x278] sm:$0xff]
  %v382 = vld [vmem:[%s1 + $0x280] sm:$0xff]
  %v383 = vld [vmem:[%s1 + $0x288] sm:$0xff]
  %v384 = vld [vmem:[%s1 + $0x290] sm:$0xff]
  %v385 = vld [vmem:[%s1 + $0x298] sm:$0xff]
  %v386 = vld [vmem:[%s1 + $0x2a0] sm:$0xff]
  %v387 = vld [vmem:[%s1 + $0x2a8] sm:$0xff]
  %v388 = vld [vmem:[%s1 + $0x2b0] sm:$0xff]
  %v389 = vld [vmem:[%s1 + $0x2b8] sm:$0xff]
  %v390 = vld [vmem:[%s1 + $0x2c0] sm:$0xff]
  %v391 = vld [vmem:[%s1 + $0x2c8] sm:$0xff]
  %v392 = vld [vmem:[%s1 + $0x2d0] sm:$0xff]
  %v393 = vld [vmem:[%s1 + $0x2d8] sm:$0xff]
  %v394 = vld [vmem:[%s1 + $0x2e0] sm:$0xff]
  %v395 = vld [vmem:[%s1 + $0x2e8] sm:$0xff]
  %v396 = vld [vmem:[%s1 + $0x2f0] sm:$0xff]
  %v397 = vld [vmem:[%s1 + $0x2f8] sm:$0xff]
  %v398 = vld [vmem:[%s1 + $0x300] sm:$0xff]
  %v399 = vld [vmem:[%s1 + $0x308] sm:$0xff]
  %v400 = vld [vmem:[%s1 + $0x310] sm:$0xff]
  %v401 = vld [vmem:[%s1 + $0x318] sm:$0xff]
  %v402 = vld [vmem:[%s1 + $0x320] sm:$0xff]
  %v403 = vld [vmem:[%s1 + $0x328] sm:$0xff]
  %v404 = vld [vmem:[%s1 + $0x330] sm:$0xff]
  %v405 = vld [vmem:[%s1 + $0x338] sm:$0xff]
  %v406 = vld [vmem:[%s1 + $0x340] sm:$0xff]
  %v407 = vld [vmem:[%s1 + $0x348] sm:$0xff]
  %v408 = vld [vmem:[%s1 + $0x350] sm:$0xff]
  %v409 = vld [vmem:[%s1 + $0x358] sm:$0xff]
  %v410 = vld [vmem:[%s1 + $0x360] sm:$0xff]
  %v411 = vld [vmem:[%s1 + $0x368] sm:$0xff]
  %v412 = vld [vmem:[%s1 + $0x370] sm:$0xff]
  %v413 = vld [vmem:[%s1 + $0x378] sm:$0xff]
  %v414 = vld [vmem:[%s1 + $0x380] sm:$0xff]
  %v415 = vld [vmem:[%s1 + $0x388] sm:$0xff]
  %v416 = vld [vmem:[%s1 + $0x390] sm:$0xff]
  %v417 = vld [vmem:[%s1 + $0x398] sm:$0xff]
  %v418 = vld [vmem:[%s1 + $0x3a0] sm:$0xff]
  %v419 = vld [vmem:[%s1 + $0x3a8] sm:$0xff]
  %v420 = vld [vmem:[%s1 + $0x3b0] sm:$0xff]
  %v421 = vld [vmem:[%s1 + $0x3b8] sm:$0xff]
  %v422 = vld [vmem:[%s1 + $0x3c0] sm:$0xff]
  %v423 = vld [vmem:[%s1 + $0x3c8] sm:$0xff]
  %v424 = vld [vmem:[%s1 + $0x3d0] sm:$0xff]
  %v425 = vld [vmem:[%s1 + $0x3d8] sm:$0xff]
  %v426 = vld [vmem:[%s1 + $0x3e0] sm:$0xff]
  %v427 = vld [vmem:[%s1 + $0x3e8] sm:$0xff]
  %v428 = vld [vmem:[%s1 + $0x3f0] sm:$0xff]
  %v429 = vld [vmem:[%s1 + $0x3f8] sm:$0xff]
  %v430 = vld [vmem:[%s1 + $0x400] sm:$0xff]
  %v431 = vld [vmem:[%s1 + $0x408] sm:$0xff]
  %v432 = vld [vmem:[%s1 + $0x410] sm:$0xff]
  %v433 = vld [vmem:[%s1 + $0x418] sm:$0xff]
  %v434 = vld [vmem:[%s1 + $0x420] sm:$0xff]
  %v435 = vld [vmem:[%s1 + $0x428] sm:$0xff]
  %v436 = vld [vmem:[%s1 + $0x430] sm:$0xff]
  %v437 = vld [vmem:[%s1 + $0x438] sm:$0xff]
  %v438 = vld [vmem:[%s1 + $0x440] sm:$0xff]
  %v439 = vld [vmem:[%s1 + $0x448] sm:$0xff]
  %v440 = vld [vmem:[%s1 + $0x450] sm:$0xff]
  %v441 = vld [vmem:[%s1 + $0x458] sm:$0xff]
  %v442 = vld [vmem:[%s1 + $0x460] sm:$0xff]
  %v443 = vld [vmem:[%s1 + $0x468] sm:$0xff]
  %v444 = vld [vmem:[%s1 + $0x470] sm:$0xff]
  %v445 = vld [vmem:[%s1 + $0x478] sm:$0xff]
  %v446 = vld [vmem:[%s1 + $0x480] sm:$0xff]
  %v447 = vld [vmem:[%s1 + $0x488] sm:$0xff]
  %v448 = vld [vmem:[%s1 + $0x490] sm:$0xff]
  %v449 = vld [vmem:[%s1 + $0x498] sm:$0xff]
  %v450 = vld [vmem:[%s1 + $0x4a0] sm:$0xff]
  %v451 = vld [vmem:[%s1 + $0x4a8] sm:$0xff]
  %v452 = vld [vmem:[%s1 + $0x4b0] sm:$0xff]
  %v453 = vld [vmem:[%s1 + $0x4b8] sm:$0xff]
  %v454 = vld [vmem:[%s1 + $0x4c0] sm:$0xff]
  %v455 = vld [vmem:[%s1 + $0x4c8] sm:$0xff]
  %v456 = vld [vmem:[%s1 + $0x4d0] sm:$0xff]
  %v457 = vld [vmem:[%s1 + $0x4d8] sm:$0xff]
  %v458 = vld [vmem:[%s1 + $0x4e0] sm:$0xff]
  %v459 = vld [vmem:[%s1 + $0x4e8] sm:$0xff]
  %v460 = vld [vmem:[%s1 + $0x4f0] sm:$0xff]
  %v461 = vld [vmem:[%s1 + $0x4f8] sm:$0xff]
  %v462 = vld [vmem:[%s1 + $0x500] sm:$0xff]
  %v463 = vld [vmem:[%s1 + $0x508] sm:$0xff]
  %v464 = vld [vmem:[%s1 + $0x510] sm:$0xff]
  %v465 = vld [vmem:[%s1 + $0x518] sm:$0xff]
  %v466 = vld [vmem:[%s1 + $0x520] sm:$0xff]
  %v467 = vld [vmem:[%s1 + $0x528] sm:$0xff]
  %v468 = vld [vmem:[%s1 + $0x530] sm:$0xff]
  %v469 = vld [vmem:[%s1 + $0x538] sm:$0xff]
  %v470 = vld [vmem:[%s1 + $0x540] sm:$0xff]
  %v471 = vld [vmem:[%s1 + $0x548] sm:$0xff]
  %v472 = vld [vmem:[%s1 + $0x550] sm:$0xff]
  %v473 = vld [vmem:[%s1 + $0x558] sm:$0xff]
  %v474 = vld [vmem:[%s1 + $0x560] sm:$0xff]
  %v475 = vld [vmem:[%s1 + $0x568] sm:$0xff]
  %v476 = vld [vmem:[%s1 + $0x570] sm:$0xff]
  %v477 = vld [vmem:[%s1 + $0x578] sm:$0xff]
  %v478 = vld [vmem:[%s1 + $0x580] sm:$0xff]
  %v479 = vld [vmem:[%s1 + $0x588] sm:$0xff]
  %v480 = vld [vmem:[%s1 + $0x590] sm:$0xff]
  %v481 = vld [vmem:[%s1 + $0x598] sm:$0xff]
  %v482 = vld [vmem:[%s1 + $0x5a0] sm:$0xff]
  %v483 = vld [vmem:[%s1 + $0x5a8] sm:$0xff]
  %v484 = vld [vmem:[%s1 + $0x5b0] sm:$0xff]
  %v485 = vld [vmem:[%s1 + $0x5b8] sm:$0xff]
  %v486 = vld [vmem:[%s1 + $0x5c0] sm:$0xff]
  %v487 = vld [vmem:[%s1 + $0x5c8] sm:$0xff]
  %v488 = vld [vmem:[%s1 + $0x5d0] sm:$0xff]
  %v489 = vld [vmem:[%s1 + $0x5d8] sm:$0xff]
  %v490 = vld [vmem:[%s1 + $0x5e0] sm:$0xff]
  %v491 = vld [vmem:[%s1 + $0x5e8] sm:$0xff]
  %v492 = vld [vmem:[%s1 + $0x5f0] sm:$0xff]
  %v493 = vld [vmem:[%s1 + $0x5f8] sm:$0xff]
  %v494 = vld [vmem:[%s1 + $0x600] sm:$0xff]
  %v495 = vld [vmem:[%s1 + $0x608] sm:$0xff]
  %v496 = vld [vmem:[%s1 + $0x610] sm:$0xff]
  %v497 = vld [vmem:[%s1 + $0x618] sm:$0xff]
  %v498 = vld [vmem:[%s1 + $0x620] sm:$0xff]
  %v499 = vld [vmem:[%s1 + $0x628] sm:$0xff]
  %v500 = vld [vmem:[%s1 + $0x630] sm:$0xff]
  %v501 = vld [vmem:[%s1 + $0x638] sm:$0xff]
  %v502 = vld [vmem:[%s1 + $0x640] sm:$0xff]
  %v503 = vld [vmem:[%s1 + $0x648] sm:$0xff]
  %v504 = vld [vmem:[%s1 + $0x650] sm:$0xff]
  %v505 = vld [vmem:[%s1 + $0x658] sm:$0xff]
  %v506 = vld [vmem:[%s1 + $0x660] sm:$0xff]
  %v507 = vld [vmem:[%s1 + $0x668] sm:$0xff]
  %v508 = vld [vmem:[%s1 + $0x670] sm:$0xff]
  %v509 = vld [vmem:[%s1 + $0x678] sm:$0xff]
  %v510 = vld [vmem:[%s1 + $0x680] sm:$0xff]
  %v511 = vld [vmem:[%s1 + $0x688] sm:$0xff]
  %v512 = vld [vmem:[%s1 + $0x690] sm:$0xff]
  %v513 = vld [vmem:[%s1 + $0x698] sm:$0xff]
  %v514 = vld [vmem:[%s1 + $0x6a0] sm:$0xff]
  %v515 = vld [vmem:[%s1 + $0x6a8] sm:$0xff]
  %v516 = vld [vmem:[%s1 + $0x6b0] sm:$0xff]
  %v517 = vld [vmem:[%s1 + $0x6b8] sm:$0xff]
  %v518 = vld [vmem:[%s1 + $0x6c0] sm:$0xff]
  %v519 = vld [vmem:[%s1 + $0x6c8] sm:$0xff]
  %v520 = vld [vmem:[%s1 + $0x6d0] sm:$0xff]
  %v521 = vld [vmem:[%s1 + $0x6d8] sm:$0xff]
  %v522 = vld [vmem:[%s1 + $0x6e0] sm:$0xff]
  %v523 = vld [vmem:[%s1 + $0x6e8] sm:$0xff]
  %v524 = vld [vmem:[%s1 + $0x6f0] sm:$0xff]
  %v525 = vld [vmem:[%s1 + $0x6f8] sm:$0xff]
  %v526 = vld [vmem:[%s1 + $0x700] sm:$0xff]
  %v527 = vld [vmem:[%s1 + $0x708] sm:$0xff]
  %v528 = vld [vmem:[%s1 + $0x710] sm:$0xff]
  %v529 = vld [vmem:[%s1 + $0x718] sm:$0xff]
  %v530 = vld [vmem:[%s1 + $0x720] sm:$0xff]
  %v531 = vld [vmem:[%s1 + $0x728] sm:$0xff]
  %v532 = vld [vmem:[%s1 + $0x730] sm:$0xff]
  %v533 = vld [vmem:[%s1 + $0x738] sm:$0xff]
  %v534 = vld [vmem:[%s1 + $0x740] sm:$0xff]
  %v535 = vld [vmem:[%s1 + $0x748] sm:$0xff]
  %v536 = vld [vmem:[%s1 + $0x750] sm:$0xff]
  %v537 = vld [vmem:[%s1 + $0x758] sm:$0xff]
  %v538 = vld [vmem:[%s1 + $0x760] sm:$0xff]
  %v539 = vld [vmem:[%s1 + $0x768] sm:$0xff]
  %v540 = vld [vmem:[%s1 + $0x770] sm:$0xff]
  %v541 = vld [vmem:[%s1 + $0x778] sm:$0xff]
  %v542 = vld [vmem:[%s1 + $0x780] sm:$0xff]
  %v543 = vld [vmem:[%s1 + $0x788] sm:$0xff]
  %v544 = vld [vmem:[%s1 + $0x790] sm:$0xff]
  %v545 = vld [vmem:[%s1 + $0x798] sm:$0xff]
  %v546 = vld [vmem:[%s1 + $0x7a0] sm:$0xff]
  %v547 = vld [vmem:[%s1 + $0x7a8] sm:$0xff]
  %v548 = vld [vmem:[%s1 + $0x7b0] sm:$0xff]
  %v549 = vld [vmem:[%s1 + $0x7b8] sm:$0xff]
  %v550 = vld [vmem:[%s1 + $0x7c0] sm:$0xff]
  %v551 = vld [vmem:[%s1 + $0x7c8] sm:$0xff]
  %v552 = vld [vmem:[%s1 + $0x7d0] sm:$0xff]
  %v553 = vld [vmem:[%s1 + $0x7d8] sm:$0xff]
  %v554 = vld [vmem:[%s1 + $0x7e0] sm:$0xff]
  %v555 = vld [vmem:[%s1 + $0x7e8] sm:$0xff]
  %v556 = vld [vmem:[%s1 + $0x7f0] sm:$0xff]
  %v557 = vld [vmem:[%s1 + $0x7f8] sm:$0xff]
  %v558 = vld [vmem:[%s1 + $0x800] sm:$0xff]
  %v559 = vld [vmem:[%s1 + $0x808] sm:$0xff]
  %v560 = vld [vmem:[%s1 + $0x810] sm:$0xff]
  %v561 = vld [vmem:[%s1 + $0x818] sm:$0xff]
  %v562 = vld [vmem:[%s1 + $0x820] sm:$0xff]
  %v563 = vld [vmem:[%s1 + $0x828] sm:$0xff]
  %v564 = vld [vmem:[%s1 + $0x830] sm:$0xff]
  %v565 = vld [vmem:[%s1 + $0x838] sm:$0xff]
  %v566 = vld [vmem:[%s1 + $0x840] sm:$0xff]
  %v567 = vld [vmem:[%s1 + $0x848] sm:$0xff]
  %v568 = vld [vmem:[%s1 + $0x850] sm:$0xff]
  %v569 = vld [vmem:[%s1 + $0x858] sm:$0xff]
  %v570 = vld [vmem:[%s1 + $0x860] sm:$0xff]
  %v571 = vld [vmem:[%s1 + $0x868] sm:$0xff]
  %v572 = vld [vmem:[%s1 + $0x870] sm:$0xff]
  %v573 = vld [vmem:[%s1 + $0x878] sm:$0xff]
  %v574 = vld [vmem:[%s1 + $0x880] sm:$0xff]
  %v575 = vld [vmem:[%s1 + $0x888] sm:$0xff]
  %v576 = vld [vmem:[%s1 + $0x890] sm:$0xff]
  %v577 = vld [vmem:[%s2] sm:$0x1]
  %v579 = vlaneseq
  %v580 = vshrl.u32 %v579, 7
  %v581 = vsub.s32 0, %v580
  %v582 = vrot.slane %v577, %v581
  %vm584 = vcmask 195584
  %v586 = vsel %vm584, %v31, 0
  %v589 = vsel %vm584, %v49, 0
  %v592 = vsel %vm584, %v67, 0
  %v595 = vsel %vm584, %v85, 0
  %v598 = vsel %vm584, %v103, 0
  %v601 = vsel %vm584, %v121, 0
  %v604 = vsel %vm584, %v139, 0
  %v607 = vsel %vm584, %v157, 0
  %v610 = vsel %vm584, %v175, 0
  %v613 = vsel %vm584, %v193, 0
  %v616 = vsel %vm584, %v211, 0
  %v619 = vsel %vm584, %v229, 0
  %v622 = vsel %vm584, %v247, 0
  %v625 = vsel %vm584, %v265, 0
  %v628 = vsel %vm584, %v283, 0
  %v631 = vsel %vm584, %v301, 0
  %633 = vmatprep.subr.mxu0 0.0
  %634 = vmatpush1.msra.mxu0 %v302
  %635 = vmatprep.subr.mxu0 0.0
  %636 = vmatpush1.msra.mxu0 %v303
  %637 = vmatprep.subr.mxu0 0.0
  %638 = vmatpush1.msra.mxu0 %v304
  %639 = vmatprep.subr.mxu0 0.0
  %640 = vmatpush1.msra.mxu0 %v305
  %641 = vmatprep.subr.mxu0 0.0
  %642 = vmatpush1.msra.mxu0 %v306
  %643 = vmatprep.subr.mxu0 0.0
  %644 = vmatpush1.msra.mxu0 %v307
  %645 = vmatprep.subr.mxu0 0.0
  %646 = vmatpush1.msra.mxu0 %v308
  %647 = vmatprep.subr.mxu0 0.0
  %648 = vmatpush1.msra.mxu0 %v309
  %649 = vmatprep.subr.mxu0 0.0
  %650 = vmatpush1.msra.mxu0 %v310
  %651 = vmatprep.subr.mxu0 0.0
  %652 = vmatpush1.msra.mxu0 %v311
  %653 = vmatprep.subr.mxu0 0.0
  %654 = vmatpush1.msra.mxu0 %v312
  %655 = vmatprep.subr.mxu0 0.0
  %656 = vmatpush1.msra.mxu0 %v313
  %657 = vmatprep.subr.mxu0 0.0
  %658 = vmatpush1.msra.mxu0 %v314
  %659 = vmatprep.subr.mxu0 0.0
  %660 = vmatpush1.msra.mxu0 %v315
  %661 = vmatprep.subr.mxu0 0.0
  %662 = vmatpush1.msra.mxu0 %v316
  %663 = vmatprep.subr.mxu0 0.0
  %664 = vmatpush1.msra.mxu0 %v317
  %665 = vmatprep.subr.mxu0 0.0
  %666 = vmatpush1.msra.mxu0 %v318
  %667 = vmatprep.subr.mxu0 0.0
  %668 = vmatpush1.msra.mxu0 %v319
  %669 = vmatprep.subr.mxu0 0.0
  %670 = vmatpush1.msra.mxu0 %v320
  %671 = vmatprep.subr.mxu0 0.0
  %672 = vmatpush1.msra.mxu0 %v321
  %673 = vmatprep.subr.mxu0 0.0
  %674 = vmatpush1.msra.mxu0 %v322
  %675 = vmatprep.subr.mxu0 0.0
  %676 = vmatpush1.msra.mxu0 %v323
  %677 = vmatprep.subr.mxu0 0.0
  %678 = vmatpush1.msra.mxu0 %v324
  %679 = vmatprep.subr.mxu0 0.0
  %680 = vmatpush1.msra.mxu0 %v325
  %681 = vmatprep.subr.mxu0 0.0
  %682 = vmatpush1.msra.mxu0 %v326
  %683 = vmatprep.subr.mxu0 0.0
  %684 = vmatpush1.msra.mxu0 %v327
  %685 = vmatprep.subr.mxu0 0.0
  %686 = vmatpush1.msra.mxu0 %v328
  %687 = vmatprep.subr.mxu0 0.0
  %688 = vmatpush1.msra.mxu0 %v329
  %689 = vmatprep.subr.mxu0 0.0
  %690 = vmatpush1.msra.mxu0 %v330
  %691 = vmatprep.subr.mxu0 0.0
  %692 = vmatpush1.msra.mxu0 %v331
  %693 = vmatprep.subr.mxu0 0.0
  %694 = vmatpush1.msra.mxu0 %v332
  %695 = vmatprep.subr.mxu0 0.0
  %696 = vmatpush1.msra.mxu0 %v333
  %697 = vmatprep.mubr.f32.mxu0 %v15
  %698 = vmatmul.mubr.f32.gmra.mrb[0].mxu0 %v14
  %v699 = vpop.f32.mrb[0].mxu0
  %v700 = vadd.f32 %v582, %v699
  %v701 = vpop.f32.mrb[0].mxu0
  %702 = vmatprep.mubr.f32.mxu0 %v33
  %703 = vmatmul.mubr.f32.gmra.mrb[0].mxu0 %v32
  %v704 = vpop.f32.mrb[0].mxu0
  %v705 = vadd.f32 %v582, %v704
  %v706 = vpop.f32.mrb[0].mxu0
  %707 = vmatprep.mubr.f32.mxu0 %v51
  %708 = vmatmul.mubr.f32.gmra.mrb[0].mxu0 %v50
  %v709 = vpop.f32.mrb[0].mxu0
  %v710 = vadd.f32 %v582, %v709
  %v711 = vpop.f32.mrb[0].mxu0
  %712 = vmatprep.mubr.f32.mxu0 %v69
  %713 = vmatmul.mubr.f32.gmra.mrb[0].mxu0 %v68
  %v714 = vpop.f32.mrb[0].mxu0
  %v715 = vadd.f32 %v582, %v714
  %v716 = vpop.f32.mrb[0].mxu0
  %717 = vmatprep.mubr.f32.mxu0 %v87
  %718 = vmatmul.mubr.f32.gmra.mrb[0].mxu0 %v86
  %v719 = vpop.f32.mrb[0].mxu0
  %v720 = vadd.f32 %v582, %v719
  %v721 = vpop.f32.mrb[0].mxu0
  %722 = vmatprep.mubr.f32.mxu0 %v105
  %723 = vmatmul.mubr.f32.gmra.mrb[0].mxu0 %v104
  %v724 = vpop.f32.mrb[0].mxu0
  %v725 = vadd.f32 %v582, %v724
  %v726 = vpop.f32.mrb[0].mxu0
  %727 = vmatprep.mubr.f32.mxu0 %v123
  %728 = vmatmul.mubr.f32.gmra.mrb[0].mxu0 %v122
  %v729 = vpop.f32.mrb[0].mxu0
  %v730 = vadd.f32 %v582, %v729
  %v731 = vpop.f32.mrb[0].mxu0
  %732 = vmatprep.mubr.f32.mxu0 %v141
  %733 = vmatmul.mubr.f32.gmra.mrb[0].mxu0 %v140
  %v734 = vpop.f32.mrb[0].mxu0
  %v735 = vadd.f32 %v582, %v734
  %v736 = vpop.f32.mrb[0].mxu0
  %737 = vmatprep.mubr.f32.mxu0 %v159
  %738 = vmatmul.mubr.f32.gmra.mrb[0].mxu0 %v158
  %v739 = vpop.f32.mrb[0].mxu0
  %v740 = vadd.f32 %v582, %v739
  %v741 = vpop.f32.mrb[0].mxu0
  %742 = vmatprep.mubr.f32.mxu0 %v177
  %743 = vmatmul.mubr.f32.gmra.mrb[0].mxu0 %v176
  %v744 = vpop.f32.mrb[0].mxu0
  %v745 = vadd.f32 %v582, %v744
  %v746 = vpop.f32.mrb[0].mxu0
  %747 = vmatprep.mubr.f32.mxu0 %v195
  %748 = vmatmul.mubr.f32.gmra.mrb[0].mxu0 %v194
  %v749 = vpop.f32.mrb[0].mxu0
  %v750 = vadd.f32 %v582, %v749
  %v751 = vpop.f32.mrb[0].mxu0
  %752 = vmatprep.mubr.f32.mxu0 %v213
  %753 = vmatmul.mubr.f32.gmra.mrb[0].mxu0 %v212
  %v754 = vpop.f32.mrb[0].mxu0
  %v755 = vadd.f32 %v582, %v754
  %v756 = vpop.f32.mrb[0].mxu0
  %757 = vmatprep.mubr.f32.mxu0 %v231
  %758 = vmatmul.mubr.f32.gmra.mrb[0].mxu0 %v230
  %v759 = vpop.f32.mrb[0].mxu0
  %v760 = vadd.f32 %v582, %v759
  %v761 = vpop.f32.mrb[0].mxu0
  %762 = vmatprep.mubr.f32.mxu0 %v249
  %763 = vmatmul.mubr.f32.gmra.mrb[0].mxu0 %v248
  %v764 = vpop.f32.mrb[0].mxu0
  %v765 = vadd.f32 %v582, %v764
  %v766 = vpop.f32.mrb[0].mxu0
  %767 = vmatprep.mubr.f32.mxu0 %v267
  %768 = vmatmul.mubr.f32.gmra.mrb[0].mxu0 %v266
  %v769 = vpop.f32.mrb[0].mxu0
  %v770 = vadd.f32 %v582, %v769
  %v771 = vpop.f32.mrb[0].mxu0
  %772 = vmatprep.mubr.f32.mxu0 %v285
  %773 = vmatmul.mubr.f32.gmra.mrb[0].mxu0 %v284
  %v774 = vpop.f32.mrb[0].mxu0
  %v775 = vadd.f32 %v582, %v774
  %v776 = vpop.f32.mrb[0].mxu0
  %777 = vdwg.mxu0
  %778 = vmatprep.subr.mxu0 0.0
  %779 = vmatpush1.msra.mxu0 %v334
  %780 = vmatprep.subr.mxu0 0.0
  %781 = vmatpush1.msra.mxu0 %v335
  %782 = vmatprep.subr.mxu0 0.0
  %783 = vmatpush1.msra.mxu0 %v336
  %784 = vmatprep.subr.mxu0 0.0
  %785 = vmatpush1.msra.mxu0 %v337
  %786 = vmatprep.subr.mxu0 0.0
  %787 = vmatpush1.msra.mxu0 %v338
  %788 = vmatprep.subr.mxu0 0.0
  %789 = vmatpush1.msra.mxu0 %v339
  %790 = vmatprep.subr.mxu0 0.0
  %791 = vmatpush1.msra.mxu0 %v340
  %792 = vmatprep.subr.mxu0 0.0
  %793 = vmatpush1.msra.mxu0 %v341
  %794 = vmatprep.subr.mxu0 0.0
  %795 = vmatpush1.msra.mxu0 %v342
  %796 = vmatprep.subr.mxu0 0.0
  %797 = vmatpush1.msra.mxu0 %v343
  %798 = vmatprep.subr.mxu0 0.0
  %799 = vmatpush1.msra.mxu0 %v344
  %800 = vmatprep.subr.mxu0 0.0
  %801 = vmatpush1.msra.mxu0 %v345
  %802 = vmatprep.subr.mxu0 0.0
  %803 = vmatpush1.msra.mxu0 %v346
  %804 = vmatprep.subr.mxu0 0.0
  %805 = vmatpush1.msra.mxu0 %v347
  %806 = vmatprep.subr.mxu0 0.0
  %807 = vmatpush1.msra.mxu0 %v348
  %808 = vmatprep.subr.mxu0 0.0
  %809 = vmatpush1.msra.mxu0 %v349
  %810 = vmatprep.subr.mxu0 0.0
  %811 = vmatpush1.msra.mxu0 %v350
  %812 = vmatprep.subr.mxu0 0.0
  %813 = vmatpush1.msra.mxu0 %v351
  %814 = vmatprep.subr.mxu0 0.0
  %815 = vmatpush1.msra.mxu0 %v352
  %816 = vmatprep.subr.mxu0 0.0
  %817 = vmatpush1.msra.mxu0 %v353
  %818 = vmatprep.subr.mxu0 0.0
  %819 = vmatpush1.msra.mxu0 %v354
  %820 = vmatprep.subr.mxu0 0.0
  %821 = vmatpush1.msra.mxu0 %v355
  %822 = vmatprep.subr.mxu0 0.0
  %823 = vmatpush1.msra.mxu0 %v356
  %824 = vmatprep.subr.mxu0 0.0
  %825 = vmatpush1.msra.mxu0 %v357
  %826 = vmatprep.subr.mxu0 0.0
  %827 = vmatpush1.msra.mxu0 %v358
  %828 = vmatprep.subr.mxu0 0.0
  %829 = vmatpush1.msra.mxu0 %v359
  %830 = vmatprep.subr.mxu0 0.0
  %831 = vmatpush1.msra.mxu0 %v360
  %832 = vmatprep.subr.mxu0 0.0
  %833 = vmatpush1.msra.mxu0 %v361
  %834 = vmatprep.subr.mxu0 0.0
  %835 = vmatpush1.msra.mxu0 %v362
  %836 = vmatprep.subr.mxu0 0.0
  %837 = vmatpush1.msra.mxu0 %v363
  %838 = vmatprep.subr.mxu0 0.0
  %839 = vmatpush1.msra.mxu0 %v364
  %840 = vmatprep.subr.mxu0 0.0
  %841 = vmatpush1.msra.mxu0 %v365
  %842 = vmatprep.mubr.f32.mxu0 %v17
  %843 = vmatmul.mubr.f32.gmra.mrb[0].mxu0 %v16
  %v844 = vpop.f32.mrb[0].mxu0
  %v845 = vadd.f32 %v700, %v844
  %v846 = vpop.f32.mrb[0].mxu0
  %847 = vmatprep.mubr.f32.mxu0 %v35
  %848 = vmatmul.mubr.f32.gmra.mrb[0].mxu0 %v34
  %v849 = vpop.f32.mrb[0].mxu0
  %v850 = vadd.f32 %v705, %v849
  %v851 = vpop.f32.mrb[0].mxu0
  %852 = vmatprep.mubr.f32.mxu0 %v53
  %853 = vmatmul.mubr.f32.gmra.mrb[0].mxu0 %v52
  %v854 = vpop.f32.mrb[0].mxu0
  %v855 = vadd.f32 %v710, %v854
  %v856 = vpop.f32.mrb[0].mxu0
  %857 = vmatprep.mubr.f32.mxu0 %v71
  %858 = vmatmul.mubr.f32.gmra.mrb[0].mxu0 %v70
  %v859 = vpop.f32.mrb[0].mxu0
  %v860 = vadd.f32 %v715, %v859
  %v861 = vpop.f32.mrb[0].mxu0
  %862 = vmatprep.mubr.f32.mxu0 %v89
  %863 = vmatmul.mubr.f32.gmra.mrb[0].mxu0 %v88
  %v864 = vpop.f32.mrb[0].mxu0
  %v865 = vadd.f32 %v720, %v864
  %v866 = vpop.f32.mrb[0].mxu0
  %867 = vmatprep.mubr.f32.mxu0 %v107
  %868 = vmatmul.mubr.f32.gmra.mrb[0].mxu0 %v106
  %v869 = vpop.f32.mrb[0].mxu0
  %v870 = vadd.f32 %v725, %v869
  %v871 = vpop.f32.mrb[0].mxu0
  %872 = vmatprep.mubr.f32.mxu0 %v125
  %873 = vmatmul.mubr.f32.gmra.mrb[0].mxu0 %v124
  %v874 = vpop.f32.mrb[0].mxu0
  %v875 = vadd.f32 %v730, %v874
  %v876 = vpop.f32.mrb[0].mxu0
  %877 = vmatprep.mubr.f32.mxu0 %v143
  %878 = vmatmul.mubr.f32.gmra.mrb[0].mxu0 %v142
  %v879 = vpop.f32.mrb[0].mxu0
  %v880 = vadd.f32 %v735, %v879
  %v881 = vpop.f32.mrb[0].mxu0
  %882 = vmatprep.mubr.f32.mxu0 %v161
  %883 = vmatmul.mubr.f32.gmra.mrb[0].mxu0 %v160
  %v884 = vpop.f32.mrb[0].mxu0
  %v885 = vadd.f32 %v740, %v884
  %v886 = vpop.f32.mrb[0].mxu0
  %887 = vmatprep.mubr.f32.mxu0 %v179
  %888 = vmatmul.mubr.f32.gmra.mrb[0].mxu0 %v178
  %v889 = vpop.f32.mrb[0].mxu0
  %v890 = vadd.f32 %v745, %v889
  %v891 = vpop.f32.mrb[0].mxu0
  %892 = vmatprep.mubr.f32.mxu0 %v197
  %893 = vmatmul.mubr.f32.gmra.mrb[0].mxu0 %v196
  %v894 = vpop.f32.mrb[0].mxu0
  %v895 = vadd.f32 %v750, %v894
  %v896 = vpop.f32.mrb[0].mxu0
  %897 = vmatprep.mubr.f32.mxu0 %v215
  %898 = vmatmul.mubr.f32.gmra.mrb[0].mxu0 %v214
  %v899 = vpop.f32.mrb[0].mxu0
  %v900 = vadd.f32 %v755, %v899
  %v901 = vpop.f32.mrb[0].mxu0
  %902 = vmatprep.mubr.f32.mxu0 %v233
  %903 = vmatmul.mubr.f32.gmra.mrb[0].mxu0 %v232
  %v904 = vpop.f32.mrb[0].mxu0
  %v905 = vadd.f32 %v760, %v904
  %v906 = vpop.f32.mrb[0].mxu0
  %907 = vmatprep.mubr.f32.mxu0 %v251
  %908 = vmatmul.mubr.f32.gmra.mrb[0].mxu0 %v250
  %v909 = vpop.f32.mrb[0].mxu0
  %v910 = vadd.f32 %v765, %v909
  %v911 = vpop.f32.mrb[0].mxu0
  %912 = vmatprep.mubr.f32.mxu0 %v269
  %913 = vmatmul.mubr.f32.gmra.mrb[0].mxu0 %v268
  %v914 = vpop.f32.mrb[0].mxu0
  %v915 = vadd.f32 %v770, %v914
  %v916 = vpop.f32.mrb[0].mxu0
  %917 = vmatprep.mubr.f32.mxu0 %v287
  %918 = vmatmul.mubr.f32.gmra.mrb[0].mxu0 %v286
  %v919 = vpop.f32.mrb[0].mxu0
  %v920 = vadd.f32 %v775, %v919
  %v921 = vpop.f32.mrb[0].mxu0
  %922 = vdwg.mxu0
  %923 = vmatprep.subr.mxu0 0.0
  %924 = vmatpush1.msra.mxu0 %v366
  %925 = vmatprep.subr.mxu0 0.0
  %926 = vmatpush1.msra.mxu0 %v367
  %927 = vmatprep.subr.mxu0 0.0
  %928 = vmatpush1.msra.mxu0 %v368
  %929 = vmatprep.subr.mxu0 0.0
  %930 = vmatpush1.msra.mxu0 %v369
  %931 = vmatprep.subr.mxu0 0.0
  %932 = vmatpush1.msra.mxu0 %v370
  %933 = vmatprep.subr.mxu0 0.0
  %934 = vmatpush1.msra.mxu0 %v371
  %935 = vmatprep.subr.mxu0 0.0
  %936 = vmatpush1.msra.mxu0 %v372
  %937 = vmatprep.subr.mxu0 0.0
  %938 = vmatpush1.msra.mxu0 %v373
  %939 = vmatprep.subr.mxu0 0.0
  %940 = vmatpush1.msra.mxu0 %v374
  %941 = vmatprep.subr.mxu0 0.0
  %942 = vmatpush1.msra.mxu0 %v375
  %943 = vmatprep.subr.mxu0 0.0
  %944 = vmatpush1.msra.mxu0 %v376
  %945 = vmatprep.subr.mxu0 0.0
  %946 = vmatpush1.msra.mxu0 %v377
  %947 = vmatprep.subr.mxu0 0.0
  %948 = vmatpush1.msra.mxu0 %v378
  %949 = vmatprep.subr.mxu0 0.0
  %950 = vmatpush1.msra.mxu0 %v379
  %951 = vmatprep.subr.mxu0 0.0
  %952 = vmatpush1.msra.mxu0 %v380
  %953 = vmatprep.subr.mxu0 0.0
  %954 = vmatpush1.msra.mxu0 %v381
  %955 = vmatprep.subr.mxu0 0.0
  %956 = vmatpush1.msra.mxu0 %v382
  %957 = vmatprep.subr.mxu0 0.0
  %958 = vmatpush1.msra.mxu0 %v383
  %959 = vmatprep.subr.mxu0 0.0
  %960 = vmatpush1.msra.mxu0 %v384
  %961 = vmatprep.subr.mxu0 0.0
  %962 = vmatpush1.msra.mxu0 %v385
  %963 = vmatprep.subr.mxu0 0.0
  %964 = vmatpush1.msra.mxu0 %v386
  %965 = vmatprep.subr.mxu0 0.0
  %966 = vmatpush1.msra.mxu0 %v387
  %967 = vmatprep.subr.mxu0 0.0
  %968 = vmatpush1.msra.mxu0 %v388
  %969 = vmatprep.subr.mxu0 0.0
  %970 = vmatpush1.msra.mxu0 %v389
  %971 = vmatprep.subr.mxu0 0.0
  %972 = vmatpush1.msra.mxu0 %v390
  %973 = vmatprep.subr.mxu0 0.0
  %974 = vmatpush1.msra.mxu0 %v391
  %975 = vmatprep.subr.mxu0 0.0
  %976 = vmatpush1.msra.mxu0 %v392
  %977 = vmatprep.subr.mxu0 0.0
  %978 = vmatpush1.msra.mxu0 %v393
  %979 = vmatprep.subr.mxu0 0.0
  %980 = vmatpush1.msra.mxu0 %v394
  %981 = vmatprep.subr.mxu0 0.0
  %982 = vmatpush1.msra.mxu0 %v395
  %983 = vmatprep.subr.mxu0 0.0
  %984 = vmatpush1.msra.mxu0 %v396
  %985 = vmatprep.subr.mxu0 0.0
  %986 = vmatpush1.msra.mxu0 %v397
  %987 = vmatprep.mubr.f32.mxu0 %v19
  %988 = vmatmul.mubr.f32.gmra.mrb[0].mxu0 %v18
  %v989 = vpop.f32.mrb[0].mxu0
  %v990 = vadd.f32 %v845, %v989
  %v991 = vpop.f32.mrb[0].mxu0
  %992 = vmatprep.mubr.f32.mxu0 %v37
  %993 = vmatmul.mubr.f32.gmra.mrb[0].mxu0 %v36
  %v994 = vpop.f32.mrb[0].mxu0
  %v995 = vadd.f32 %v850, %v994
  %v996 = vpop.f32.mrb[0].mxu0
  %997 = vmatprep.mubr.f32.mxu0 %v55
  %998 = vmatmul.mubr.f32.gmra.mrb[0].mxu0 %v54
  %v999 = vpop.f32.mrb[0].mxu0
  %v1000 = vadd.f32 %v855, %v999
  %v1001 = vpop.f32.mrb[0].mxu0
  %1002 = vmatprep.mubr.f32.mxu0 %v73
  %1003 = vmatmul.mubr.f32.gmra.mrb[0].mxu0 %v72
  %v1004 = vpop.f32.mrb[0].mxu0
  %v1005 = vadd.f32 %v860, %v1004
  %v1006 = vpop.f32.mrb[0].mxu0
  %1007 = vmatprep.mubr.f32.mxu0 %v91
  %1008 = vmatmul.mubr.f32.gmra.mrb[0].mxu0 %v90
  %v1009 = vpop.f32.mrb[0].mxu0
  %v1010 = vadd.f32 %v865, %v1009
  %v1011 = vpop.f32.mrb[0].mxu0
  %1012 = vmatprep.mubr.f32.mxu0 %v109
  %1013 = vmatmul.mubr.f32.gmra.mrb[0].mxu0 %v108
  %v1014 = vpop.f32.mrb[0].mxu0
  %v1015 = vadd.f32 %v870, %v1014
  %v1016 = vpop.f32.mrb[0].mxu0
  %1017 = vmatprep.mubr.f32.mxu0 %v127
  %1018 = vmatmul.mubr.f32.gmra.mrb[0].mxu0 %v126
  %v1019 = vpop.f32.mrb[0].mxu0
  %v1020 = vadd.f32 %v875, %v1019
  %v1021 = vpop.f32.mrb[0].mxu0
  %1022 = vmatprep.mubr.f32.mxu0 %v145
  %1023 = vmatmul.mubr.f32.gmra.mrb[0].mxu0 %v144
  %v1024 = vpop.f32.mrb[0].mxu0
  %v1025 = vadd.f32 %v880, %v1024
  %v1026 = vpop.f32.mrb[0].mxu0
  %1027 = vmatprep.mubr.f32.mxu0 %v163
  %1028 = vmatmul.mubr.f32.gmra.mrb[0].mxu0 %v162
  %v1029 = vpop.f32.mrb[0].mxu0
  %v1030 = vadd.f32 %v885, %v1029
  %v1031 = vpop.f32.mrb[0].mxu0
  %1032 = vmatprep.mubr.f32.mxu0 %v181
  %1033 = vmatmul.mubr.f32.gmra.mrb[0].mxu0 %v180
  %v1034 = vpop.f32.mrb[0].mxu0
  %v1035 = vadd.f32 %v890, %v1034
  %v1036 = vpop.f32.mrb[0].mxu0
  %1037 = vmatprep.mubr.f32.mxu0 %v199
  %1038 = vmatmul.mubr.f32.gmra.mrb[0].mxu0 %v198
  %v1039 = vpop.f32.mrb[0].mxu0
  %v1040 = vadd.f32 %v895, %v1039
  %v1041 = vpop.f32.mrb[0].mxu0
  %1042 = vmatprep.mubr.f32.mxu0 %v217
  %1043 = vmatmul.mubr.f32.gmra.mrb[0].mxu0 %v216
  %v1044 = vpop.f32.mrb[0].mxu0
  %v1045 = vadd.f32 %v900, %v1044
  %v1046 = vpop.f32.mrb[0].mxu0
  %1047 = vmatprep.mubr.f32.mxu0 %v235
  %1048 = vmatmul.mubr.f32.gmra.mrb[0].mxu0 %v234
  %v1049 = vpop.f32.mrb[0].mxu0
  %v1050 = vadd.f32 %v905, %v1049
  %v1051 = vpop.f32.mrb[0].mxu0
  %1052 = vmatprep.mubr.f32.mxu0 %v253
  %1053 = vmatmul.mubr.f32.gmra.mrb[0].mxu0 %v252
  %v1054 = vpop.f32.mrb[0].mxu0
  %v1055 = vadd.f32 %v910, %v1054
  %v1056 = vpop.f32.mrb[0].mxu0
  %1057 = vmatprep.mubr.f32.mxu0 %v271
  %1058 = vmatmul.mubr.f32.gmra.mrb[0].mxu0 %v270
  %v1059 = vpop.f32.mrb[0].mxu0
  %v1060 = vadd.f32 %v915, %v1059
  %v1061 = vpop.f32.mrb[0].mxu0
  %1062 = vmatprep.mubr.f32.mxu0 %v289
  %1063 = vmatmul.mubr.f32.gmra.mrb[0].mxu0 %v288
  %v1064 = vpop.f32.mrb[0].mxu0
  %v1065 = vadd.f32 %v920, %v1064
  %v1066 = vpop.f32.mrb[0].mxu0
  %1067 = vdwg.mxu0
  %1068 = vmatprep.subr.mxu0 0.0
  %1069 = vmatpush1.msra.mxu0 %v398
  %1070 = vmatprep.subr.mxu0 0.0
  %1071 = vmatpush1.msra.mxu0 %v399
  %1072 = vmatprep.subr.mxu0 0.0
  %1073 = vmatpush1.msra.mxu0 %v400
  %1074 = vmatprep.subr.mxu0 0.0
  %1075 = vmatpush1.msra.mxu0 %v401
  %1076 = vmatprep.subr.mxu0 0.0
  %1077 = vmatpush1.msra.mxu0 %v402
  %1078 = vmatprep.subr.mxu0 0.0
  %1079 = vmatpush1.msra.mxu0 %v403
  %1080 = vmatprep.subr.mxu0 0.0
  %1081 = vmatpush1.msra.mxu0 %v404
  %1082 = vmatprep.subr.mxu0 0.0
  %1083 = vmatpush1.msra.mxu0 %v405
  %1084 = vmatprep.subr.mxu0 0.0
  %1085 = vmatpush1.msra.mxu0 %v406
  %1086 = vmatprep.subr.mxu0 0.0
  %1087 = vmatpush1.msra.mxu0 %v407
  %1088 = vmatprep.subr.mxu0 0.0
  %1089 = vmatpush1.msra.mxu0 %v408
  %1090 = vmatprep.subr.mxu0 0.0
  %1091 = vmatpush1.msra.mxu0 %v409
  %1092 = vmatprep.subr.mxu0 0.0
  %1093 = vmatpush1.msra.mxu0 %v410
  %1094 = vmatprep.subr.mxu0 0.0
  %1095 = vmatpush1.msra.mxu0 %v411
  %1096 = vmatprep.subr.mxu0 0.0
  %1097 = vmatpush1.msra.mxu0 %v412
  %1098 = vmatprep.subr.mxu0 0.0
  %1099 = vmatpush1.msra.mxu0 %v413
  %1100 = vmatprep.subr.mxu0 0.0
  %1101 = vmatpush1.msra.mxu0 %v414
  %1102 = vmatprep.subr.mxu0 0.0
  %1103 = vmatpush1.msra.mxu0 %v415
  %1104 = vmatprep.subr.mxu0 0.0
  %1105 = vmatpush1.msra.mxu0 %v416
  %1106 = vmatprep.subr.mxu0 0.0
  %1107 = vmatpush1.msra.mxu0 %v417
  %1108 = vmatprep.subr.mxu0 0.0
  %1109 = vmatpush1.msra.mxu0 %v418
  %1110 = vmatprep.subr.mxu0 0.0
  %1111 = vmatpush1.msra.mxu0 %v419
  %1112 = vmatprep.subr.mxu0 0.0
  %1113 = vmatpush1.msra.mxu0 %v420
  %1114 = vmatprep.subr.mxu0 0.0
  %1115 = vmatpush1.msra.mxu0 %v421
  %1116 = vmatprep.subr.mxu0 0.0
  %1117 = vmatpush1.msra.mxu0 %v422
  %1118 = vmatprep.subr.mxu0 0.0
  %1119 = vmatpush1.msra.mxu0 %v423
  %1120 = vmatprep.subr.mxu0 0.0
  %1121 = vmatpush1.msra.mxu0 %v424
  %1122 = vmatprep.subr.mxu0 0.0
  %1123 = vmatpush1.msra.mxu0 %v425
  %1124 = vmatprep.subr.mxu0 0.0
  %1125 = vmatpush1.msra.mxu0 %v426
  %1126 = vmatprep.subr.mxu0 0.0
  %1127 = vmatpush1.msra.mxu0 %v427
  %1128 = vmatprep.subr.mxu0 0.0
  %1129 = vmatpush1.msra.mxu0 %v428
  %1130 = vmatprep.subr.mxu0 0.0
  %1131 = vmatpush1.msra.mxu0 %v429
  %1132 = vmatprep.mubr.f32.mxu0 %v21
  %1133 = vmatmul.mubr.f32.gmra.mrb[0].mxu0 %v20
  %v1134 = vpop.f32.mrb[0].mxu0
  %v1135 = vadd.f32 %v990, %v1134
  %v1136 = vpop.f32.mrb[0].mxu0
  %1137 = vmatprep.mubr.f32.mxu0 %v39
  %1138 = vmatmul.mubr.f32.gmra.mrb[0].mxu0 %v38
  %v1139 = vpop.f32.mrb[0].mxu0
  %v1140 = vadd.f32 %v995, %v1139
  %v1141 = vpop.f32.mrb[0].mxu0
  %1142 = vmatprep.mubr.f32.mxu0 %v57
  %1143 = vmatmul.mubr.f32.gmra.mrb[0].mxu0 %v56
  %v1144 = vpop.f32.mrb[0].mxu0
  %v1145 = vadd.f32 %v1000, %v1144
  %v1146 = vpop.f32.mrb[0].mxu0
  %1147 = vmatprep.mubr.f32.mxu0 %v75
  %1148 = vmatmul.mubr.f32.gmra.mrb[0].mxu0 %v74
  %v1149 = vpop.f32.mrb[0].mxu0
  %v1150 = vadd.f32 %v1005, %v1149
  %v1151 = vpop.f32.mrb[0].mxu0
  %1152 = vmatprep.mubr.f32.mxu0 %v93
  %1153 = vmatmul.mubr.f32.gmra.mrb[0].mxu0 %v92
  %v1154 = vpop.f32.mrb[0].mxu0
  %v1155 = vadd.f32 %v1010, %v1154
  %v1156 = vpop.f32.mrb[0].mxu0
  %1157 = vmatprep.mubr.f32.mxu0 %v111
  %1158 = vmatmul.mubr.f32.gmra.mrb[0].mxu0 %v110
  %v1159 = vpop.f32.mrb[0].mxu0
  %v1160 = vadd.f32 %v1015, %v1159
  %v1161 = vpop.f32.mrb[0].mxu0
  %1162 = vmatprep.mubr.f32.mxu0 %v129
  %1163 = vmatmul.mubr.f32.gmra.mrb[0].mxu0 %v128
  %v1164 = vpop.f32.mrb[0].mxu0
  %v1165 = vadd.f32 %v1020, %v1164
  %v1166 = vpop.f32.mrb[0].mxu0
  %1167 = vmatprep.mubr.f32.mxu0 %v147
  %1168 = vmatmul.mubr.f32.gmra.mrb[0].mxu0 %v146
  %v1169 = vpop.f32.mrb[0].mxu0
  %v1170 = vadd.f32 %v1025, %v1169
  %v1171 = vpop.f32.mrb[0].mxu0
  %1172 = vmatprep.mubr.f32.mxu0 %v165
  %1173 = vmatmul.mubr.f32.gmra.mrb[0].mxu0 %v164
  %v1174 = vpop.f32.mrb[0].mxu0
  %v1175 = vadd.f32 %v1030, %v1174
  %v1176 = vpop.f32.mrb[0].mxu0
  %1177 = vmatprep.mubr.f32.mxu0 %v183
  %1178 = vmatmul.mubr.f32.gmra.mrb[0].mxu0 %v182
  %v1179 = vpop.f32.mrb[0].mxu0
  %v1180 = vadd.f32 %v1035, %v1179
  %v1181 = vpop.f32.mrb[0].mxu0
  %1182 = vmatprep.mubr.f32.mxu0 %v201
  %1183 = vmatmul.mubr.f32.gmra.mrb[0].mxu0 %v200
  %v1184 = vpop.f32.mrb[0].mxu0
  %v1185 = vadd.f32 %v1040, %v1184
  %v1186 = vpop.f32.mrb[0].mxu0
  %1187 = vmatprep.mubr.f32.mxu0 %v219
  %1188 = vmatmul.mubr.f32.gmra.mrb[0].mxu0 %v218
  %v1189 = vpop.f32.mrb[0].mxu0
  %v1190 = vadd.f32 %v1045, %v1189
  %v1191 = vpop.f32.mrb[0].mxu0
  %1192 = vmatprep.mubr.f32.mxu0 %v237
  %1193 = vmatmul.mubr.f32.gmra.mrb[0].mxu0 %v236
  %v1194 = vpop.f32.mrb[0].mxu0
  %v1195 = vadd.f32 %v1050, %v1194
  %v1196 = vpop.f32.mrb[0].mxu0
  %1197 = vmatprep.mubr.f32.mxu0 %v255
  %1198 = vmatmul.mubr.f32.gmra.mrb[0].mxu0 %v254
  %v1199 = vpop.f32.mrb[0].mxu0
  %v1200 = vadd.f32 %v1055, %v1199
  %v1201 = vpop.f32.mrb[0].mxu0
  %1202 = vmatprep.mubr.f32.mxu0 %v273
  %1203 = vmatmul.mubr.f32.gmra.mrb[0].mxu0 %v272
  %v1204 = vpop.f32.mrb[0].mxu0
  %v1205 = vadd.f32 %v1060, %v1204
  %v1206 = vpop.f32.mrb[0].mxu0
  %1207 = vmatprep.mubr.f32.mxu0 %v291
  %1208 = vmatmul.mubr.f32.gmra.mrb[0].mxu0 %v290
  %v1209 = vpop.f32.mrb[0].mxu0
  %v1210 = vadd.f32 %v1065, %v1209
  %v1211 = vpop.f32.mrb[0].mxu0
  %1212 = vdwg.mxu0
  %1213 = vmatprep.subr.mxu0 0.0
  %1214 = vmatpush1.msra.mxu0 %v430
  %1215 = vmatprep.subr.mxu0 0.0
  %1216 = vmatpush1.msra.mxu0 %v431
  %1217 = vmatprep.subr.mxu0 0.0
  %1218 = vmatpush1.msra.mxu0 %v432
  %1219 = vmatprep.subr.mxu0 0.0
  %1220 = vmatpush1.msra.mxu0 %v433
  %1221 = vmatprep.subr.mxu0 0.0
  %1222 = vmatpush1.msra.mxu0 %v434
  %1223 = vmatprep.subr.mxu0 0.0
  %1224 = vmatpush1.msra.mxu0 %v435
  %1225 = vmatprep.subr.mxu0 0.0
  %1226 = vmatpush1.msra.mxu0 %v436
  %1227 = vmatprep.subr.mxu0 0.0
  %1228 = vmatpush1.msra.mxu0 %v437
  %1229 = vmatprep.subr.mxu0 0.0
  %1230 = vmatpush1.msra.mxu0 %v438
  %1231 = vmatprep.subr.mxu0 0.0
  %1232 = vmatpush1.msra.mxu0 %v439
  %1233 = vmatprep.subr.mxu0 0.0
  %1234 = vmatpush1.msra.mxu0 %v440
  %1235 = vmatprep.subr.mxu0 0.0
  %1236 = vmatpush1.msra.mxu0 %v441
  %1237 = vmatprep.subr.mxu0 0.0
  %1238 = vmatpush1.msra.mxu0 %v442
  %1239 = vmatprep.subr.mxu0 0.0
  %1240 = vmatpush1.msra.mxu0 %v443
  %1241 = vmatprep.subr.mxu0 0.0
  %1242 = vmatpush1.msra.mxu0 %v444
  %1243 = vmatprep.subr.mxu0 0.0
  %1244 = vmatpush1.msra.mxu0 %v445
  %1245 = vmatprep.subr.mxu0 0.0
  %1246 = vmatpush1.msra.mxu0 %v446
  %1247 = vmatprep.subr.mxu0 0.0
  %1248 = vmatpush1.msra.mxu0 %v447
  %1249 = vmatprep.subr.mxu0 0.0
  %1250 = vmatpush1.msra.mxu0 %v448
  %1251 = vmatprep.subr.mxu0 0.0
  %1252 = vmatpush1.msra.mxu0 %v449
  %1253 = vmatprep.subr.mxu0 0.0
  %1254 = vmatpush1.msra.mxu0 %v450
  %1255 = vmatprep.subr.mxu0 0.0
  %1256 = vmatpush1.msra.mxu0 %v451
  %1257 = vmatprep.subr.mxu0 0.0
  %1258 = vmatpush1.msra.mxu0 %v452
  %1259 = vmatprep.subr.mxu0 0.0
  %1260 = vmatpush1.msra.mxu0 %v453
  %1261 = vmatprep.subr.mxu0 0.0
  %1262 = vmatpush1.msra.mxu0 %v454
  %1263 = vmatprep.subr.mxu0 0.0
  %1264 = vmatpush1.msra.mxu0 %v455
  %1265 = vmatprep.subr.mxu0 0.0
  %1266 = vmatpush1.msra.mxu0 %v456
  %1267 = vmatprep.subr.mxu0 0.0
  %1268 = vmatpush1.msra.mxu0 %v457
  %1269 = vmatprep.subr.mxu0 0.0
  %1270 = vmatpush1.msra.mxu0 %v458
  %1271 = vmatprep.subr.mxu0 0.0
  %1272 = vmatpush1.msra.mxu0 %v459
  %1273 = vmatprep.subr.mxu0 0.0
  %1274 = vmatpush1.msra.mxu0 %v460
  %1275 = vmatprep.subr.mxu0 0.0
  %1276 = vmatpush1.msra.mxu0 %v461
  %1277 = vmatprep.mubr.f32.mxu0 %v23
  %1278 = vmatmul.mubr.f32.gmra.mrb[0].mxu0 %v22
  %v1279 = vpop.f32.mrb[0].mxu0
  %v1280 = vadd.f32 %v1135, %v1279
  %v1281 = vpop.f32.mrb[0].mxu0
  %1282 = vmatprep.mubr.f32.mxu0 %v41
  %1283 = vmatmul.mubr.f32.gmra.mrb[0].mxu0 %v40
  %v1284 = vpop.f32.mrb[0].mxu0
  %v1285 = vadd.f32 %v1140, %v1284
  %v1286 = vpop.f32.mrb[0].mxu0
  %1287 = vmatprep.mubr.f32.mxu0 %v59
  %1288 = vmatmul.mubr.f32.gmra.mrb[0].mxu0 %v58
  %v1289 = vpop.f32.mrb[0].mxu0
  %v1290 = vadd.f32 %v1145, %v1289
  %v1291 = vpop.f32.mrb[0].mxu0
  %1292 = vmatprep.mubr.f32.mxu0 %v77
  %1293 = vmatmul.mubr.f32.gmra.mrb[0].mxu0 %v76
  %v1294 = vpop.f32.mrb[0].mxu0
  %v1295 = vadd.f32 %v1150, %v1294
  %v1296 = vpop.f32.mrb[0].mxu0
  %1297 = vmatprep.mubr.f32.mxu0 %v95
  %1298 = vmatmul.mubr.f32.gmra.mrb[0].mxu0 %v94
  %v1299 = vpop.f32.mrb[0].mxu0
  %v1300 = vadd.f32 %v1155, %v1299
  %v1301 = vpop.f32.mrb[0].mxu0
  %1302 = vmatprep.mubr.f32.mxu0 %v113
  %1303 = vmatmul.mubr.f32.gmra.mrb[0].mxu0 %v112
  %v1304 = vpop.f32.mrb[0].mxu0
  %v1305 = vadd.f32 %v1160, %v1304
  %v1306 = vpop.f32.mrb[0].mxu0
  %1307 = vmatprep.mubr.f32.mxu0 %v131
  %1308 = vmatmul.mubr.f32.gmra.mrb[0].mxu0 %v130
  %v1309 = vpop.f32.mrb[0].mxu0
  %v1310 = vadd.f32 %v1165, %v1309
  %v1311 = vpop.f32.mrb[0].mxu0
  %1312 = vmatprep.mubr.f32.mxu0 %v149
  %1313 = vmatmul.mubr.f32.gmra.mrb[0].mxu0 %v148
  %v1314 = vpop.f32.mrb[0].mxu0
  %v1315 = vadd.f32 %v1170, %v1314
  %v1316 = vpop.f32.mrb[0].mxu0
  %1317 = vmatprep.mubr.f32.mxu0 %v167
  %1318 = vmatmul.mubr.f32.gmra.mrb[0].mxu0 %v166
  %v1319 = vpop.f32.mrb[0].mxu0
  %v1320 = vadd.f32 %v1175, %v1319
  %v1321 = vpop.f32.mrb[0].mxu0
  %1322 = vmatprep.mubr.f32.mxu0 %v185
  %1323 = vmatmul.mubr.f32.gmra.mrb[0].mxu0 %v184
  %v1324 = vpop.f32.mrb[0].mxu0
  %v1325 = vadd.f32 %v1180, %v1324
  %v1326 = vpop.f32.mrb[0].mxu0
  %1327 = vmatprep.mubr.f32.mxu0 %v203
  %1328 = vmatmul.mubr.f32.gmra.mrb[0].mxu0 %v202
  %v1329 = vpop.f32.mrb[0].mxu0
  %v1330 = vadd.f32 %v1185, %v1329
  %v1331 = vpop.f32.mrb[0].mxu0
  %1332 = vmatprep.mubr.f32.mxu0 %v221
  %1333 = vmatmul.mubr.f32.gmra.mrb[0].mxu0 %v220
  %v1334 = vpop.f32.mrb[0].mxu0
  %v1335 = vadd.f32 %v1190, %v1334
  %v1336 = vpop.f32.mrb[0].mxu0
  %1337 = vmatprep.mubr.f32.mxu0 %v239
  %1338 = vmatmul.mubr.f32.gmra.mrb[0].mxu0 %v238
  %v1339 = vpop.f32.mrb[0].mxu0
  %v1340 = vadd.f32 %v1195, %v1339
  %v1341 = vpop.f32.mrb[0].mxu0
  %1342 = vmatprep.mubr.f32.mxu0 %v257
  %1343 = vmatmul.mubr.f32.gmra.mrb[0].mxu0 %v256
  %v1344 = vpop.f32.mrb[0].mxu0
  %v1345 = vadd.f32 %v1200, %v1344
  %v1346 = vpop.f32.mrb[0].mxu0
  %1347 = vmatprep.mubr.f32.mxu0 %v275
  %1348 = vmatmul.mubr.f32.gmra.mrb[0].mxu0 %v274
  %v1349 = vpop.f32.mrb[0].mxu0
  %v1350 = vadd.f32 %v1205, %v1349
  %v1351 = vpop.f32.mrb[0].mxu0
  %1352 = vmatprep.mubr.f32.mxu0 %v293
  %1353 = vmatmul.mubr.f32.gmra.mrb[0].mxu0 %v292
  %v1354 = vpop.f32.mrb[0].mxu0
  %v1355 = vadd.f32 %v1210, %v1354
  %v1356 = vpop.f32.mrb[0].mxu0
  %1357 = vdwg.mxu0
  %1358 = vmatprep.subr.mxu0 0.0
  %1359 = vmatpush1.msra.mxu0 %v462
  %1360 = vmatprep.subr.mxu0 0.0
  %1361 = vmatpush1.msra.mxu0 %v463
  %1362 = vmatprep.subr.mxu0 0.0
  %1363 = vmatpush1.msra.mxu0 %v464
  %1364 = vmatprep.subr.mxu0 0.0
  %1365 = vmatpush1.msra.mxu0 %v465
  %1366 = vmatprep.subr.mxu0 0.0
  %1367 = vmatpush1.msra.mxu0 %v466
  %1368 = vmatprep.subr.mxu0 0.0
  %1369 = vmatpush1.msra.mxu0 %v467
  %1370 = vmatprep.subr.mxu0 0.0
  %1371 = vmatpush1.msra.mxu0 %v468
  %1372 = vmatprep.subr.mxu0 0.0
  %1373 = vmatpush1.msra.mxu0 %v469
  %1374 = vmatprep.subr.mxu0 0.0
  %1375 = vmatpush1.msra.mxu0 %v470
  %1376 = vmatprep.subr.mxu0 0.0
  %1377 = vmatpush1.msra.mxu0 %v471
  %1378 = vmatprep.subr.mxu0 0.0
  %1379 = vmatpush1.msra.mxu0 %v472
  %1380 = vmatprep.subr.mxu0 0.0
  %1381 = vmatpush1.msra.mxu0 %v473
  %1382 = vmatprep.subr.mxu0 0.0
  %1383 = vmatpush1.msra.mxu0 %v474
  %1384 = vmatprep.subr.mxu0 0.0
  %1385 = vmatpush1.msra.mxu0 %v475
  %1386 = vmatprep.subr.mxu0 0.0
  %1387 = vmatpush1.msra.mxu0 %v476
  %1388 = vmatprep.subr.mxu0 0.0
  %1389 = vmatpush1.msra.mxu0 %v477
  %1390 = vmatprep.subr.mxu0 0.0
  %1391 = vmatpush1.msra.mxu0 %v478
  %1392 = vmatprep.subr.mxu0 0.0
  %1393 = vmatpush1.msra.mxu0 %v479
  %1394 = vmatprep.subr.mxu0 0.0
  %1395 = vmatpush1.msra.mxu0 %v480
  %1396 = vmatprep.subr.mxu0 0.0
  %1397 = vmatpush1.msra.mxu0 %v481
  %1398 = vmatprep.subr.mxu0 0.0
  %1399 = vmatpush1.msra.mxu0 %v482
  %1400 = vmatprep.subr.mxu0 0.0
  %1401 = vmatpush1.msra.mxu0 %v483
  %1402 = vmatprep.subr.mxu0 0.0
  %1403 = vmatpush1.msra.mxu0 %v484
  %1404 = vmatprep.subr.mxu0 0.0
  %1405 = vmatpush1.msra.mxu0 %v485
  %1406 = vmatprep.subr.mxu0 0.0
  %1407 = vmatpush1.msra.mxu0 %v486
  %1408 = vmatprep.subr.mxu0 0.0
  %1409 = vmatpush1.msra.mxu0 %v487
  %1410 = vmatprep.subr.mxu0 0.0
  %1411 = vmatpush1.msra.mxu0 %v488
  %1412 = vmatprep.subr.mxu0 0.0
  %1413 = vmatpush1.msra.mxu0 %v489
  %1414 = vmatprep.subr.mxu0 0.0
  %1415 = vmatpush1.msra.mxu0 %v490
  %1416 = vmatprep.subr.mxu0 0.0
  %1417 = vmatpush1.msra.mxu0 %v491
  %1418 = vmatprep.subr.mxu0 0.0
  %1419 = vmatpush1.msra.mxu0 %v492
  %1420 = vmatprep.subr.mxu0 0.0
  %1421 = vmatpush1.msra.mxu0 %v493
  %1422 = vmatprep.mubr.f32.mxu0 %v25
  %1423 = vmatmul.mubr.f32.gmra.mrb[0].mxu0 %v24
  %v1424 = vpop.f32.mrb[0].mxu0
  %v1425 = vadd.f32 %v1280, %v1424
  %v1426 = vpop.f32.mrb[0].mxu0
  %1427 = vmatprep.mubr.f32.mxu0 %v43
  %1428 = vmatmul.mubr.f32.gmra.mrb[0].mxu0 %v42
  %v1429 = vpop.f32.mrb[0].mxu0
  %v1430 = vadd.f32 %v1285, %v1429
  %v1431 = vpop.f32.mrb[0].mxu0
  %1432 = vmatprep.mubr.f32.mxu0 %v61
  %1433 = vmatmul.mubr.f32.gmra.mrb[0].mxu0 %v60
  %v1434 = vpop.f32.mrb[0].mxu0
  %v1435 = vadd.f32 %v1290, %v1434
  %v1436 = vpop.f32.mrb[0].mxu0
  %1437 = vmatprep.mubr.f32.mxu0 %v79
  %1438 = vmatmul.mubr.f32.gmra.mrb[0].mxu0 %v78
  %v1439 = vpop.f32.mrb[0].mxu0
  %v1440 = vadd.f32 %v1295, %v1439
  %v1441 = vpop.f32.mrb[0].mxu0
  %1442 = vmatprep.mubr.f32.mxu0 %v97
  %1443 = vmatmul.mubr.f32.gmra.mrb[0].mxu0 %v96
  %v1444 = vpop.f32.mrb[0].mxu0
  %v1445 = vadd.f32 %v1300, %v1444
  %v1446 = vpop.f32.mrb[0].mxu0
  %1447 = vmatprep.mubr.f32.mxu0 %v115
  %1448 = vmatmul.mubr.f32.gmra.mrb[0].mxu0 %v114
  %v1449 = vpop.f32.mrb[0].mxu0
  %v1450 = vadd.f32 %v1305, %v1449
  %v1451 = vpop.f32.mrb[0].mxu0
  %1452 = vmatprep.mubr.f32.mxu0 %v133
  %1453 = vmatmul.mubr.f32.gmra.mrb[0].mxu0 %v132
  %v1454 = vpop.f32.mrb[0].mxu0
  %v1455 = vadd.f32 %v1310, %v1454
  %v1456 = vpop.f32.mrb[0].mxu0
  %1457 = vmatprep.mubr.f32.mxu0 %v151
  %1458 = vmatmul.mubr.f32.gmra.mrb[0].mxu0 %v150
  %v1459 = vpop.f32.mrb[0].mxu0
  %v1460 = vadd.f32 %v1315, %v1459
  %v1461 = vpop.f32.mrb[0].mxu0
  %1462 = vmatprep.mubr.f32.mxu0 %v169
  %1463 = vmatmul.mubr.f32.gmra.mrb[0].mxu0 %v168
  %v1464 = vpop.f32.mrb[0].mxu0
  %v1465 = vadd.f32 %v1320, %v1464
  %v1466 = vpop.f32.mrb[0].mxu0
  %1467 = vmatprep.mubr.f32.mxu0 %v187
  %1468 = vmatmul.mubr.f32.gmra.mrb[0].mxu0 %v186
  %v1469 = vpop.f32.mrb[0].mxu0
  %v1470 = vadd.f32 %v1325, %v1469
  %v1471 = vpop.f32.mrb[0].mxu0
  %1472 = vmatprep.mubr.f32.mxu0 %v205
  %1473 = vmatmul.mubr.f32.gmra.mrb[0].mxu0 %v204
  %v1474 = vpop.f32.mrb[0].mxu0
  %v1475 = vadd.f32 %v1330, %v1474
  %v1476 = vpop.f32.mrb[0].mxu0
  %1477 = vmatprep.mubr.f32.mxu0 %v223
  %1478 = vmatmul.mubr.f32.gmra.mrb[0].mxu0 %v222
  %v1479 = vpop.f32.mrb[0].mxu0
  %v1480 = vadd.f32 %v1335, %v1479
  %v1481 = vpop.f32.mrb[0].mxu0
  %1482 = vmatprep.mubr.f32.mxu0 %v241
  %1483 = vmatmul.mubr.f32.gmra.mrb[0].mxu0 %v240
  %v1484 = vpop.f32.mrb[0].mxu0
  %v1485 = vadd.f32 %v1340, %v1484
  %v1486 = vpop.f32.mrb[0].mxu0
  %1487 = vmatprep.mubr.f32.mxu0 %v259
  %1488 = vmatmul.mubr.f32.gmra.mrb[0].mxu0 %v258
  %v1489 = vpop.f32.mrb[0].mxu0
  %v1490 = vadd.f32 %v1345, %v1489
  %v1491 = vpop.f32.mrb[0].mxu0
  %1492 = vmatprep.mubr.f32.mxu0 %v277
  %1493 = vmatmul.mubr.f32.gmra.mrb[0].mxu0 %v276
  %v1494 = vpop.f32.mrb[0].mxu0
  %v1495 = vadd.f32 %v1350, %v1494
  %v1496 = vpop.f32.mrb[0].mxu0
  %1497 = vmatprep.mubr.f32.mxu0 %v295
  %1498 = vmatmul.mubr.f32.gmra.mrb[0].mxu0 %v294
  %v1499 = vpop.f32.mrb[0].mxu0
  %v1500 = vadd.f32 %v1355, %v1499
  %v1501 = vpop.f32.mrb[0].mxu0
  %1502 = vdwg.mxu0
  %1503 = vmatprep.subr.mxu0 0.0
  %1504 = vmatpush1.msra.mxu0 %v494
  %1505 = vmatprep.subr.mxu0 0.0
  %1506 = vmatpush1.msra.mxu0 %v495
  %1507 = vmatprep.subr.mxu0 0.0
  %1508 = vmatpush1.msra.mxu0 %v496
  %1509 = vmatprep.subr.mxu0 0.0
  %1510 = vmatpush1.msra.mxu0 %v497
  %1511 = vmatprep.subr.mxu0 0.0
  %1512 = vmatpush1.msra.mxu0 %v498
  %1513 = vmatprep.subr.mxu0 0.0
  %1514 = vmatpush1.msra.mxu0 %v499
  %1515 = vmatprep.subr.mxu0 0.0
  %1516 = vmatpush1.msra.mxu0 %v500
  %1517 = vmatprep.subr.mxu0 0.0
  %1518 = vmatpush1.msra.mxu0 %v501
  %1519 = vmatprep.subr.mxu0 0.0
  %1520 = vmatpush1.msra.mxu0 %v502
  %1521 = vmatprep.subr.mxu0 0.0
  %1522 = vmatpush1.msra.mxu0 %v503
  %1523 = vmatprep.subr.mxu0 0.0
  %1524 = vmatpush1.msra.mxu0 %v504
  %1525 = vmatprep.subr.mxu0 0.0
  %1526 = vmatpush1.msra.mxu0 %v505
  %1527 = vmatprep.subr.mxu0 0.0
  %1528 = vmatpush1.msra.mxu0 %v506
  %1529 = vmatprep.subr.mxu0 0.0
  %1530 = vmatpush1.msra.mxu0 %v507
  %1531 = vmatprep.subr.mxu0 0.0
  %1532 = vmatpush1.msra.mxu0 %v508
  %1533 = vmatprep.subr.mxu0 0.0
  %1534 = vmatpush1.msra.mxu0 %v509
  %1535 = vmatprep.subr.mxu0 0.0
  %1536 = vmatpush1.msra.mxu0 %v510
  %1537 = vmatprep.subr.mxu0 0.0
  %1538 = vmatpush1.msra.mxu0 %v511
  %1539 = vmatprep.subr.mxu0 0.0
  %1540 = vmatpush1.msra.mxu0 %v512
  %1541 = vmatprep.subr.mxu0 0.0
  %1542 = vmatpush1.msra.mxu0 %v513
  %1543 = vmatprep.subr.mxu0 0.0
  %1544 = vmatpush1.msra.mxu0 %v514
  %1545 = vmatprep.subr.mxu0 0.0
  %1546 = vmatpush1.msra.mxu0 %v515
  %1547 = vmatprep.subr.mxu0 0.0
  %1548 = vmatpush1.msra.mxu0 %v516
  %1549 = vmatprep.subr.mxu0 0.0
  %1550 = vmatpush1.msra.mxu0 %v517
  %1551 = vmatprep.subr.mxu0 0.0
  %1552 = vmatpush1.msra.mxu0 %v518
  %1553 = vmatprep.subr.mxu0 0.0
  %1554 = vmatpush1.msra.mxu0 %v519
  %1555 = vmatprep.subr.mxu0 0.0
  %1556 = vmatpush1.msra.mxu0 %v520
  %1557 = vmatprep.subr.mxu0 0.0
  %1558 = vmatpush1.msra.mxu0 %v521
  %1559 = vmatprep.subr.mxu0 0.0
  %1560 = vmatpush1.msra.mxu0 %v522
  %1561 = vmatprep.subr.mxu0 0.0
  %1562 = vmatpush1.msra.mxu0 %v523
  %1563 = vmatprep.subr.mxu0 0.0
  %1564 = vmatpush1.msra.mxu0 %v524
  %1565 = vmatprep.subr.mxu0 0.0
  %1566 = vmatpush1.msra.mxu0 %v525
  %1567 = vmatprep.mubr.f32.mxu0 %v27
  %1568 = vmatmul.mubr.f32.gmra.mrb[0].mxu0 %v26
  %v1569 = vpop.f32.mrb[0].mxu0
  %v1570 = vadd.f32 %v1425, %v1569
  %v1571 = vpop.f32.mrb[0].mxu0
  %1572 = vmatprep.mubr.f32.mxu0 %v45
  %1573 = vmatmul.mubr.f32.gmra.mrb[0].mxu0 %v44
  %v1574 = vpop.f32.mrb[0].mxu0
  %v1575 = vadd.f32 %v1430, %v1574
  %v1576 = vpop.f32.mrb[0].mxu0
  %1577 = vmatprep.mubr.f32.mxu0 %v63
  %1578 = vmatmul.mubr.f32.gmra.mrb[0].mxu0 %v62
  %v1579 = vpop.f32.mrb[0].mxu0
  %v1580 = vadd.f32 %v1435, %v1579
  %v1581 = vpop.f32.mrb[0].mxu0
  %1582 = vmatprep.mubr.f32.mxu0 %v81
  %1583 = vmatmul.mubr.f32.gmra.mrb[0].mxu0 %v80
  %v1584 = vpop.f32.mrb[0].mxu0
  %v1585 = vadd.f32 %v1440, %v1584
  %v1586 = vpop.f32.mrb[0].mxu0
  %1587 = vmatprep.mubr.f32.mxu0 %v99
  %1588 = vmatmul.mubr.f32.gmra.mrb[0].mxu0 %v98
  %v1589 = vpop.f32.mrb[0].mxu0
  %v1590 = vadd.f32 %v1445, %v1589
  %v1591 = vpop.f32.mrb[0].mxu0
  %1592 = vmatprep.mubr.f32.mxu0 %v117
  %1593 = vmatmul.mubr.f32.gmra.mrb[0].mxu0 %v116
  %v1594 = vpop.f32.mrb[0].mxu0
  %v1595 = vadd.f32 %v1450, %v1594
  %v1596 = vpop.f32.mrb[0].mxu0
  %1597 = vmatprep.mubr.f32.mxu0 %v135
  %1598 = vmatmul.mubr.f32.gmra.mrb[0].mxu0 %v134
  %v1599 = vpop.f32.mrb[0].mxu0
  %v1600 = vadd.f32 %v1455, %v1599
  %v1601 = vpop.f32.mrb[0].mxu0
  %1602 = vmatprep.mubr.f32.mxu0 %v153
  %1603 = vmatmul.mubr.f32.gmra.mrb[0].mxu0 %v152
  %v1604 = vpop.f32.mrb[0].mxu0
  %v1605 = vadd.f32 %v1460, %v1604
  %v1606 = vpop.f32.mrb[0].mxu0
  %1607 = vmatprep.mubr.f32.mxu0 %v171
  %1608 = vmatmul.mubr.f32.gmra.mrb[0].mxu0 %v170
  %v1609 = vpop.f32.mrb[0].mxu0
  %v1610 = vadd.f32 %v1465, %v1609
  %v1611 = vpop.f32.mrb[0].mxu0
  %1612 = vmatprep.mubr.f32.mxu0 %v189
  %1613 = vmatmul.mubr.f32.gmra.mrb[0].mxu0 %v188
  %v1614 = vpop.f32.mrb[0].mxu0
  %v1615 = vadd.f32 %v1470, %v1614
  %v1616 = vpop.f32.mrb[0].mxu0
  %1617 = vmatprep.mubr.f32.mxu0 %v207
  %1618 = vmatmul.mubr.f32.gmra.mrb[0].mxu0 %v206
  %v1619 = vpop.f32.mrb[0].mxu0
  %v1620 = vadd.f32 %v1475, %v1619
  %v1621 = vpop.f32.mrb[0].mxu0
  %1622 = vmatprep.mubr.f32.mxu0 %v225
  %1623 = vmatmul.mubr.f32.gmra.mrb[0].mxu0 %v224
  %v1624 = vpop.f32.mrb[0].mxu0
  %v1625 = vadd.f32 %v1480, %v1624
  %v1626 = vpop.f32.mrb[0].mxu0
  %1627 = vmatprep.mubr.f32.mxu0 %v243
  %1628 = vmatmul.mubr.f32.gmra.mrb[0].mxu0 %v242
  %v1629 = vpop.f32.mrb[0].mxu0
  %v1630 = vadd.f32 %v1485, %v1629
  %v1631 = vpop.f32.mrb[0].mxu0
  %1632 = vmatprep.mubr.f32.mxu0 %v261
  %1633 = vmatmul.mubr.f32.gmra.mrb[0].mxu0 %v260
  %v1634 = vpop.f32.mrb[0].mxu0
  %v1635 = vadd.f32 %v1490, %v1634
  %v1636 = vpop.f32.mrb[0].mxu0
  %1637 = vmatprep.mubr.f32.mxu0 %v279
  %1638 = vmatmul.mubr.f32.gmra.mrb[0].mxu0 %v278
  %v1639 = vpop.f32.mrb[0].mxu0
  %v1640 = vadd.f32 %v1495, %v1639
  %v1641 = vpop.f32.mrb[0].mxu0
  %1642 = vmatprep.mubr.f32.mxu0 %v297
  %1643 = vmatmul.mubr.f32.gmra.mrb[0].mxu0 %v296
  %v1644 = vpop.f32.mrb[0].mxu0
  %v1645 = vadd.f32 %v1500, %v1644
  %v1646 = vpop.f32.mrb[0].mxu0
  %1647 = vdwg.mxu0
  %1648 = vmatprep.subr.mxu0 0.0
  %1649 = vmatpush1.msra.mxu0 %v526
  %1650 = vmatprep.subr.mxu0 0.0
  %1651 = vmatpush1.msra.mxu0 %v527
  %1652 = vmatprep.subr.mxu0 0.0
  %1653 = vmatpush1.msra.mxu0 %v528
  %1654 = vmatprep.subr.mxu0 0.0
  %1655 = vmatpush1.msra.mxu0 %v529
  %1656 = vmatprep.subr.mxu0 0.0
  %1657 = vmatpush1.msra.mxu0 %v530
  %1658 = vmatprep.subr.mxu0 0.0
  %1659 = vmatpush1.msra.mxu0 %v531
  %1660 = vmatprep.subr.mxu0 0.0
  %1661 = vmatpush1.msra.mxu0 %v532
  %1662 = vmatprep.subr.mxu0 0.0
  %1663 = vmatpush1.msra.mxu0 %v533
  %1664 = vmatprep.subr.mxu0 0.0
  %1665 = vmatpush1.msra.mxu0 %v534
  %1666 = vmatprep.subr.mxu0 0.0
  %1667 = vmatpush1.msra.mxu0 %v535
  %1668 = vmatprep.subr.mxu0 0.0
  %1669 = vmatpush1.msra.mxu0 %v536
  %1670 = vmatprep.subr.mxu0 0.0
  %1671 = vmatpush1.msra.mxu0 %v537
  %1672 = vmatprep.subr.mxu0 0.0
  %1673 = vmatpush1.msra.mxu0 %v538
  %1674 = vmatprep.subr.mxu0 0.0
  %1675 = vmatpush1.msra.mxu0 %v539
  %1676 = vmatprep.subr.mxu0 0.0
  %1677 = vmatpush1.msra.mxu0 %v540
  %1678 = vmatprep.subr.mxu0 0.0
  %1679 = vmatpush1.msra.mxu0 %v541
  %1680 = vmatprep.subr.mxu0 0.0
  %1681 = vmatpush1.msra.mxu0 %v542
  %1682 = vmatprep.subr.mxu0 0.0
  %1683 = vmatpush1.msra.mxu0 %v543
  %1684 = vmatprep.subr.mxu0 0.0
  %1685 = vmatpush1.msra.mxu0 %v544
  %1686 = vmatprep.subr.mxu0 0.0
  %1687 = vmatpush1.msra.mxu0 %v545
  %1688 = vmatprep.subr.mxu0 0.0
  %1689 = vmatpush1.msra.mxu0 %v546
  %1690 = vmatprep.subr.mxu0 0.0
  %1691 = vmatpush1.msra.mxu0 %v547
  %1692 = vmatprep.subr.mxu0 0.0
  %1693 = vmatpush1.msra.mxu0 %v548
  %1694 = vmatprep.subr.mxu0 0.0
  %1695 = vmatpush1.msra.mxu0 %v549
  %1696 = vmatprep.subr.mxu0 0.0
  %1697 = vmatpush1.msra.mxu0 %v550
  %1698 = vmatprep.subr.mxu0 0.0
  %1699 = vmatpush1.msra.mxu0 %v551
  %1700 = vmatprep.subr.mxu0 0.0
  %1701 = vmatpush1.msra.mxu0 %v552
  %1702 = vmatprep.subr.mxu0 0.0
  %1703 = vmatpush1.msra.mxu0 %v553
  %1704 = vmatprep.subr.mxu0 0.0
  %1705 = vmatpush1.msra.mxu0 %v554
  %1706 = vmatprep.subr.mxu0 0.0
  %1707 = vmatpush1.msra.mxu0 %v555
  %1708 = vmatprep.subr.mxu0 0.0
  %1709 = vmatpush1.msra.mxu0 %v556
  %1710 = vmatprep.subr.mxu0 0.0
  %1711 = vmatpush1.msra.mxu0 %v557
  %1712 = vmatprep.mubr.f32.mxu0 %v29
  %1713 = vmatmul.mubr.f32.gmra.mrb[0].mxu0 %v28
  %v1714 = vpop.f32.mrb[0].mxu0
  %v1715 = vadd.f32 %v1570, %v1714
  %v1716 = vpop.f32.mrb[0].mxu0
  %1717 = vmatprep.mubr.f32.mxu0 %v47
  %1718 = vmatmul.mubr.f32.gmra.mrb[0].mxu0 %v46
  %v1719 = vpop.f32.mrb[0].mxu0
  %v1720 = vadd.f32 %v1575, %v1719
  %v1721 = vpop.f32.mrb[0].mxu0
  %1722 = vmatprep.mubr.f32.mxu0 %v65
  %1723 = vmatmul.mubr.f32.gmra.mrb[0].mxu0 %v64
  %v1724 = vpop.f32.mrb[0].mxu0
  %v1725 = vadd.f32 %v1580, %v1724
  %v1726 = vpop.f32.mrb[0].mxu0
  %1727 = vmatprep.mubr.f32.mxu0 %v83
  %1728 = vmatmul.mubr.f32.gmra.mrb[0].mxu0 %v82
  %v1729 = vpop.f32.mrb[0].mxu0
  %v1730 = vadd.f32 %v1585, %v1729
  %v1731 = vpop.f32.mrb[0].mxu0
  %1732 = vmatprep.mubr.f32.mxu0 %v101
  %1733 = vmatmul.mubr.f32.gmra.mrb[0].mxu0 %v100
  %v1734 = vpop.f32.mrb[0].mxu0
  %v1735 = vadd.f32 %v1590, %v1734
  %v1736 = vpop.f32.mrb[0].mxu0
  %1737 = vmatprep.mubr.f32.mxu0 %v119
  %1738 = vmatmul.mubr.f32.gmra.mrb[0].mxu0 %v118
  %v1739 = vpop.f32.mrb[0].mxu0
  %v1740 = vadd.f32 %v1595, %v1739
  %v1741 = vpop.f32.mrb[0].mxu0
  %1742 = vmatprep.mubr.f32.mxu0 %v137
  %1743 = vmatmul.mubr.f32.gmra.mrb[0].mxu0 %v136
  %v1744 = vpop.f32.mrb[0].mxu0
  %v1745 = vadd.f32 %v1600, %v1744
  %v1746 = vpop.f32.mrb[0].mxu0
  %1747 = vmatprep.mubr.f32.mxu0 %v155
  %1748 = vmatmul.mubr.f32.gmra.mrb[0].mxu0 %v154
  %v1749 = vpop.f32.mrb[0].mxu0
  %v1750 = vadd.f32 %v1605, %v1749
  %v1751 = vpop.f32.mrb[0].mxu0
  %1752 = vmatprep.mubr.f32.mxu0 %v173
  %1753 = vmatmul.mubr.f32.gmra.mrb[0].mxu0 %v172
  %v1754 = vpop.f32.mrb[0].mxu0
  %v1755 = vadd.f32 %v1610, %v1754
  %v1756 = vpop.f32.mrb[0].mxu0
  %1757 = vmatprep.mubr.f32.mxu0 %v191
  %1758 = vmatmul.mubr.f32.gmra.mrb[0].mxu0 %v190
  %v1759 = vpop.f32.mrb[0].mxu0
  %v1760 = vadd.f32 %v1615, %v1759
  %v1761 = vpop.f32.mrb[0].mxu0
  %1762 = vmatprep.mubr.f32.mxu0 %v209
  %1763 = vmatmul.mubr.f32.gmra.mrb[0].mxu0 %v208
  %v1764 = vpop.f32.mrb[0].mxu0
  %v1765 = vadd.f32 %v1620, %v1764
  %v1766 = vpop.f32.mrb[0].mxu0
  %1767 = vmatprep.mubr.f32.mxu0 %v227
  %1768 = vmatmul.mubr.f32.gmra.mrb[0].mxu0 %v226
  %v1769 = vpop.f32.mrb[0].mxu0
  %v1770 = vadd.f32 %v1625, %v1769
  %v1771 = vpop.f32.mrb[0].mxu0
  %1772 = vmatprep.mubr.f32.mxu0 %v245
  %1773 = vmatmul.mubr.f32.gmra.mrb[0].mxu0 %v244
  %v1774 = vpop.f32.mrb[0].mxu0
  %v1775 = vadd.f32 %v1630, %v1774
  %v1776 = vpop.f32.mrb[0].mxu0
  %1777 = vmatprep.mubr.f32.mxu0 %v263
  %1778 = vmatmul.mubr.f32.gmra.mrb[0].mxu0 %v262
  %v1779 = vpop.f32.mrb[0].mxu0
  %v1780 = vadd.f32 %v1635, %v1779
  %v1781 = vpop.f32.mrb[0].mxu0
  %1782 = vmatprep.mubr.f32.mxu0 %v281
  %1783 = vmatmul.mubr.f32.gmra.mrb[0].mxu0 %v280
  %v1784 = vpop.f32.mrb[0].mxu0
  %v1785 = vadd.f32 %v1640, %v1784
  %v1786 = vpop.f32.mrb[0].mxu0
  %1787 = vmatprep.mubr.f32.mxu0 %v299
  %1788 = vmatmul.mubr.f32.gmra.mrb[0].mxu0 %v298
  %v1789 = vpop.f32.mrb[0].mxu0
  %v1790 = vadd.f32 %v1645, %v1789
  %v1791 = vpop.f32.mrb[0].mxu0
  %1792 = vdwg.mxu0
  %1793 = vmatprep.subr.mxu0 0.0
  %1794 = vmatpush1.msra.mxu0 %v558
  %1795 = vmatprep.subr.mxu0 0.0
  %1796 = vmatpush1.msra.mxu0 %v559
  %1797 = vmatprep.subr.mxu0 0.0
  %1798 = vmatpush1.msra.mxu0 %v560
  %1799 = vmatprep.subr.mxu0 0.0
  %1800 = vmatpush1.msra.mxu0 %v561
  %1801 = vmatprep.subr.mxu0 0.0
  %1802 = vmatpush1.msra.mxu0 %v562
  %1803 = vmatprep.subr.mxu0 0.0
  %1804 = vmatpush1.msra.mxu0 %v563
  %1805 = vmatprep.subr.mxu0 0.0
  %1806 = vmatpush1.msra.mxu0 %v564
  %1807 = vmatprep.subr.mxu0 0.0
  %1808 = vmatpush1.msra.mxu0 %v565
  %1809 = vmatprep.subr.mxu0 0.0
  %1810 = vmatpush1.msra.mxu0 %v566
  %1811 = vmatprep.subr.mxu0 0.0
  %1812 = vmatpush1.msra.mxu0 %v567
  %1813 = vmatprep.subr.mxu0 0.0
  %1814 = vmatpush1.msra.mxu0 %v568
  %1815 = vmatprep.subr.mxu0 0.0
  %1816 = vmatpush1.msra.mxu0 %v569
  %1817 = vmatprep.subr.mxu0 0.0
  %1818 = vmatpush1.msra.mxu0 %v570
  %1819 = vmatprep.subr.mxu0 0.0
  %1820 = vmatpush1.msra.mxu0 %v571
  %1821 = vmatprep.subr.mxu0 0.0
  %1822 = vmatpush1.msra.mxu0 %v572
  %1823 = vmatprep.subr.mxu0 0.0
  %1824 = vmatpush1.msra.mxu0 %v573
  %1825 = vmatprep.subr.mxu0 0.0
  %1826 = vmatpush1.msra.mxu0 %v574
  %1827 = vmatprep.subr.mxu0 0.0
  %1828 = vmatpush1.msra.mxu0 %v575
  %1829 = vmatprep.subr.mxu0 0.0
  %1830 = vmatpush1.msra.mxu0 %v576
  %1831 = vmatprep.subr.mxu0 0.0
  %1832 = vmatpush1.msra.mxu0 0.0
  %1833 = vmatprep.subr.mxu0 0.0
  %1834 = vmatpush1.msra.mxu0 0.0
  %1835 = vmatprep.subr.mxu0 0.0
  %1836 = vmatpush1.msra.mxu0 0.0
  %1837 = vmatprep.subr.mxu0 0.0
  %1838 = vmatpush1.msra.mxu0 0.0
  %1839 = vmatprep.subr.mxu0 0.0
  %1840 = vmatpush1.msra.mxu0 0.0
  %1841 = vmatprep.subr.mxu0 0.0
  %1842 = vmatpush1.msra.mxu0 0.0
  %1843 = vmatprep.subr.mxu0 0.0
  %1844 = vmatpush1.msra.mxu0 0.0
  %1845 = vmatprep.subr.mxu0 0.0
  %1846 = vmatpush1.msra.mxu0 0.0
  %1847 = vmatprep.subr.mxu0 0.0
  %1848 = vmatpush1.msra.mxu0 0.0
  %1849 = vmatprep.subr.mxu0 0.0
  %1850 = vmatpush1.msra.mxu0 0.0
  %1851 = vmatprep.subr.mxu0 0.0
  %1852 = vmatpush1.msra.mxu0 0.0
  %1853 = vmatprep.subr.mxu0 0.0
  %1854 = vmatpush1.msra.mxu0 0.0
  %1855 = vmatprep.subr.mxu0 0.0
  %1856 = vmatpush1.msra.mxu0 0.0
  %1857 = vmatprep.mubr.f32.mxu0 %v586
  %1858 = vmatmul.mubr.f32.gmra.mrb[0].mxu0 %v30
  %v1859 = vpop.f32.mrb[0].mxu0
  %v1860 = vadd.f32 %v1715, %v1859
  %v1861 = vpop.f32.mrb[0].mxu0
  %1862 = vmatprep.mubr.f32.mxu0 %v589
  %1863 = vmatmul.mubr.f32.gmra.mrb[0].mxu0 %v48
  %v1864 = vpop.f32.mrb[0].mxu0
  %v1865 = vadd.f32 %v1720, %v1864
  %v1866 = vpop.f32.mrb[0].mxu0
  %1867 = vmatprep.mubr.f32.mxu0 %v592
  %1868 = vmatmul.mubr.f32.gmra.mrb[0].mxu0 %v66
  %v1869 = vpop.f32.mrb[0].mxu0
  %v1870 = vadd.f32 %v1725, %v1869
  %v1871 = vpop.f32.mrb[0].mxu0
  %1872 = vmatprep.mubr.f32.mxu0 %v595
  %1873 = vmatmul.mubr.f32.gmra.mrb[0].mxu0 %v84
  %v1874 = vpop.f32.mrb[0].mxu0
  %v1875 = vadd.f32 %v1730, %v1874
  %v1876 = vpop.f32.mrb[0].mxu0
  %1877 = vmatprep.mubr.f32.mxu0 %v598
  %1878 = vmatmul.mubr.f32.gmra.mrb[0].mxu0 %v102
  %v1879 = vpop.f32.mrb[0].mxu0
  %v1880 = vadd.f32 %v1735, %v1879
  %v1881 = vpop.f32.mrb[0].mxu0
  %1882 = vmatprep.mubr.f32.mxu0 %v601
  %1883 = vmatmul.mubr.f32.gmra.mrb[0].mxu0 %v120
  %v1884 = vpop.f32.mrb[0].mxu0
  %v1885 = vadd.f32 %v1740, %v1884
  %v1886 = vpop.f32.mrb[0].mxu0
  %1887 = vmatprep.mubr.f32.mxu0 %v604
  %1888 = vmatmul.mubr.f32.gmra.mrb[0].mxu0 %v138
  %v1889 = vpop.f32.mrb[0].mxu0
  %v1890 = vadd.f32 %v1745, %v1889
  %v1891 = vpop.f32.mrb[0].mxu0
  %1892 = vmatprep.mubr.f32.mxu0 %v607
  %1893 = vmatmul.mubr.f32.gmra.mrb[0].mxu0 %v156
  %v1894 = vpop.f32.mrb[0].mxu0
  %v1895 = vadd.f32 %v1750, %v1894
  %v1896 = vpop.f32.mrb[0].mxu0
  %1897 = vmatprep.mubr.f32.mxu0 %v610
  %1898 = vmatmul.mubr.f32.gmra.mrb[0].mxu0 %v174
  %v1899 = vpop.f32.mrb[0].mxu0
  %v1900 = vadd.f32 %v1755, %v1899
  %v1901 = vpop.f32.mrb[0].mxu0
  %1902 = vmatprep.mubr.f32.mxu0 %v613
  %1903 = vmatmul.mubr.f32.gmra.mrb[0].mxu0 %v192
  %v1904 = vpop.f32.mrb[0].mxu0
  %v1905 = vadd.f32 %v1760, %v1904
  %v1906 = vpop.f32.mrb[0].mxu0
  %1907 = vmatprep.mubr.f32.mxu0 %v616
  %1908 = vmatmul.mubr.f32.gmra.mrb[0].mxu0 %v210
  %v1909 = vpop.f32.mrb[0].mxu0
  %v1910 = vadd.f32 %v1765, %v1909
  %v1911 = vpop.f32.mrb[0].mxu0
  %1912 = vmatprep.mubr.f32.mxu0 %v619
  %1913 = vmatmul.mubr.f32.gmra.mrb[0].mxu0 %v228
  %v1914 = vpop.f32.mrb[0].mxu0
  %v1915 = vadd.f32 %v1770, %v1914
  %v1916 = vpop.f32.mrb[0].mxu0
  %1917 = vmatprep.mubr.f32.mxu0 %v622
  %1918 = vmatmul.mubr.f32.gmra.mrb[0].mxu0 %v246
  %v1919 = vpop.f32.mrb[0].mxu0
  %v1920 = vadd.f32 %v1775, %v1919
  %v1921 = vpop.f32.mrb[0].mxu0
  %1922 = vmatprep.mubr.f32.mxu0 %v625
  %1923 = vmatmul.mubr.f32.gmra.mrb[0].mxu0 %v264
  %v1924 = vpop.f32.mrb[0].mxu0
  %v1925 = vadd.f32 %v1780, %v1924
  %v1926 = vpop.f32.mrb[0].mxu0
  %1927 = vmatprep.mubr.f32.mxu0 %v628
  %1928 = vmatmul.mubr.f32.gmra.mrb[0].mxu0 %v282
  %v1929 = vpop.f32.mrb[0].mxu0
  %v1930 = vadd.f32 %v1785, %v1929
  %v1931 = vpop.f32.mrb[0].mxu0
  %1932 = vmatprep.mubr.f32.mxu0 %v631
  %1933 = vmatmul.mubr.f32.gmra.mrb[0].mxu0 %v300
  %v1934 = vpop.f32.mrb[0].mxu0
  %v1935 = vadd.f32 %v1790, %v1934
  %v1936 = vpop.f32.mrb[0].mxu0
  %1937 = vdwg.mxu0
  %vm1938 = vcmask 162816
  %1939 = vst.msk [vmem:[%s3] sm:$0xff] %vm1938, %v1860
  %1940 = vst.msk [vmem:[%s3 + $0x8] sm:$0xff] %vm1938, %v1865
  %1941 = vst.msk [vmem:[%s3 + $0x10] sm:$0xff] %vm1938, %v1870
  %1942 = vst.msk [vmem:[%s3 + $0x18] sm:$0xff] %vm1938, %v1875
  %1943 = vst.msk [vmem:[%s3 + $0x20] sm:$0xff] %vm1938, %v1880
  %1944 = vst.msk [vmem:[%s3 + $0x28] sm:$0xff] %vm1938, %v1885
  %1945 = vst.msk [vmem:[%s3 + $0x30] sm:$0xff] %vm1938, %v1890
  %1946 = vst.msk [vmem:[%s3 + $0x38] sm:$0xff] %vm1938, %v1895
  %1947 = vst.msk [vmem:[%s3 + $0x40] sm:$0xff] %vm1938, %v1900
  %1948 = vst.msk [vmem:[%s3 + $0x48] sm:$0xff] %vm1938, %v1905
  %1949 = vst.msk [vmem:[%s3 + $0x50] sm:$0xff] %vm1938, %v1910
  %1950 = vst.msk [vmem:[%s3 + $0x58] sm:$0xff] %vm1938, %v1915
  %1951 = vst.msk [vmem:[%s3 + $0x60] sm:$0xff] %vm1938, %v1920
  %1952 = vst.msk [vmem:[%s3 + $0x68] sm:$0xff] %vm1938, %v1925
  %1953 = vst.msk [vmem:[%s3 + $0x70] sm:$0xff] %vm1938, %v1930
  %1954 = vst.msk [vmem:[%s3 + $0x78] sm:$0xff] %vm1938, %v1935
  // Predicated region
  $region14: #{net_forward.25} parent=0 // pred_check
    _
  $region15: #{net_forward.25} parent=0 // pred_check_branch
    %1956 = sbr.rel (0) target = $region17
  $region16: #{net_forward.25} parent=0 // pred_region
    _
  $region17: #{net_forward.25} parent=0 // pred_fallthru
    _
  // Predicated region
  $region18: #{net_forward.25} parent=0 // pred_check
    _
  $region19: #{net_forward.25} parent=0 // pred_check_branch
    %1958 = sbr.rel (0) target = $region21
  $region20: #{net_forward.25} parent=0 // pred_region
    _
  $region21: #{net_forward.25} parent=0 // pred_fallthru
    _

// kernel: net_forward.26
$region0: #{net_forward.26}
  #allocation0 [shape = 'u32[]', space=smem, size = 0x4, offset = 0x4, fixed_abs, tag = 'smem constant byte address 0x4 - core index']
  #allocation1 [shape = 'u32[144,128]{1,0:T(1,128)}', space=vmem, size = 0x12000, scoped, tag = 'internal scratch']
  %s0 = inlined_call_operand.vmem [shape: f32[4,8,80], index: 0, kind: input, shape index: {}]
  %s1 = inlined_call_operand.vmem [shape: f32[8,80], index: 1, kind: output, shape index: {}]
  %s2 = sld [smem:[#allocation0]]
  $region14: #{net_forward.26} parent=0
    _
  %s4 = ssub.s32 1, %s2
  %s5 = scalar_select 0, %s4, %s2
  // Predicated region
  $region2: #{net_forward.26} parent=0 // pred_check
    _
  $region3: #{net_forward.26} parent=0 // pred_check_branch
    %7 = sbr.rel (0) target = $region5
  $region4: #{net_forward.26} parent=0 // pred_region
    _
  $region5: #{net_forward.26} parent=0 // pred_fallthru
    _
  %v8 = vld [vmem:[%s0] sm:$0xff]
  %s9 = scalar_lea.vmem %s0, 8
  %v10 = vld [vmem:[%s9] sm:$0xff]
  %v11 = vmax.f32 %v8, %v10
  %s12 = scalar_lea.vmem %s0, 16
  %v13 = vld [vmem:[%s12] sm:$0xff]
  %v14 = vmax.f32 %v11, %v13
  %s15 = scalar_lea.vmem %s0, 24
  %v16 = vld [vmem:[%s15] sm:$0xff]
  %v17 = vmax.f32 %v14, %v16
  %v18 = vmax.f32 %v17, 0.0
  %vm19 = vcmask 654336
  %20 = vst.msk [vmem:[%s1] sm:$0xff] %vm19, %v18
  // Predicated region
  $region6: #{net_forward.26} parent=0 // pred_check
    _
  $region7: #{net_forward.26} parent=0 // pred_check_branch
    %22 = sbr.rel (0) target = $region9
  $region8: #{net_forward.26} parent=0 // pred_region
    _
  $region9: #{net_forward.26} parent=0 // pred_fallthru
    _
  // Predicated region
  $region10: #{net_forward.26} parent=0 // pred_check
    _
  $region11: #{net_forward.26} parent=0 // pred_check_branch
    %24 = sbr.rel (0) target = $region13
  $region12: #{net_forward.26} parent=0 // pred_region
    _
  $region13: #{net_forward.26} parent=0 // pred_fallthru
    _

// kernel: net_forward.27
$region0: #{net_forward.27}
  #allocation0 [shape = 'u32[]', space=smem, size = 0x4, offset = 0x4, fixed_abs, tag = 'smem constant byte address 0x4 - core index']
  #allocation1 [shape = 'u32[144,128]{1,0:T(1,128)}', space=vmem, size = 0x12000, scoped, tag = 'internal scratch']
  %s0 = inlined_call_operand.vmem [shape: f32[32,24], index: 0, kind: input, shape index: {}]
  %s1 = inlined_call_operand.vmem [shape: f32[24,48], index: 1, kind: input, shape index: {}]
  %s2 = inlined_call_operand.vmem [shape: f32[1,48], index: 2, kind: input, shape index: {}]
  %s3 = inlined_call_operand.vmem [shape: f32[32,48], index: 3, kind: output, shape index: {}]
  %s4 = sld [smem:[#allocation0]]
  $region22: #{net_forward.27} parent=0
    _
  %s6 = ssub.s32 1, %s4
  %s7 = scalar_select 0, %s6, %s4
  // Predicated region
  $region2: #{net_forward.27} parent=0 // pred_check
    _
  $region3: #{net_forward.27} parent=0 // pred_check_branch
    %9 = sbr.rel (0) target = $region5
  $region4: #{net_forward.27} parent=0 // pred_region
    _
  $region5: #{net_forward.27} parent=0 // pred_fallthru
    _
  // Predicated region
  $region6: #{net_forward.27} parent=0 // pred_check
    _
  $region7: #{net_forward.27} parent=0 // pred_check_branch
    %11 = sbr.rel (0) target = $region9
  $region8: #{net_forward.27} parent=0 // pred_region
    _
  $region9: #{net_forward.27} parent=0 // pred_fallthru
    _
  // Predicated region
  $region10: #{net_forward.27} parent=0 // pred_check
    _
  $region11: #{net_forward.27} parent=0 // pred_check_branch
    %13 = sbr.rel (0) target = $region13
  $region12: #{net_forward.27} parent=0 // pred_region
    _
  $region13: #{net_forward.27} parent=0 // pred_fallthru
    _
  %v14 = vld [vmem:[%s0] sm:$0xff]
  %v15 = vld [vmem:[%s0 + $0x8] sm:$0xff]
  %v16 = vld [vmem:[%s0 + $0x10] sm:$0xff]
  %v17 = vld [vmem:[%s0 + $0x18] sm:$0xff]
  %v18 = vld [vmem:[%s1] sm:$0xff]
  %v19 = vld [vmem:[%s1 + $0x8] sm:$0xff]
  %v20 = vld [vmem:[%s1 + $0x10] sm:$0xff]
  %v21 = vld [vmem:[%s2] sm:$0x1]
  %v23 = vlaneseq
  %v24 = vshrl.u32 %v23, 7
  %v25 = vsub.s32 0, %v24
  %v26 = vrot.slane %v21, %v25
  %vm28 = vcmask 195584
  %v30 = vsel %vm28, %v14, 0
  %v33 = vsel %vm28, %v15, 0
  %v36 = vsel %vm28, %v16, 0
  %v39 = vsel %vm28, %v17, 0
  %41 = vmatprep.subr.mxu0 0.0
  %42 = vmatpush1.msra.mxu0 %v18
  %43 = vmatprep.subr.mxu0 0.0
  %44 = vmatpush1.msra.mxu0 %v19
  %45 = vmatprep.subr.mxu0 0.0
  %46 = vmatpush1.msra.mxu0 %v20
  %47 = vmatprep.subr.mxu0 0.0
  %48 = vmatpush1.msra.mxu0 0.0
  %49 = vmatprep.subr.mxu0 0.0
  %50 = vmatpush1.msra.mxu0 0.0
  %51 = vmatprep.subr.mxu0 0.0
  %52 = vmatpush1.msra.mxu0 0.0
  %53 = vmatprep.subr.mxu0 0.0
  %54 = vmatpush1.msra.mxu0 0.0
  %55 = vmatprep.subr.mxu0 0.0
  %56 = vmatpush1.msra.mxu0 0.0
  %57 = vmatprep.subr.mxu0 0.0
  %58 = vmatpush1.msra.mxu0 0.0
  %59 = vmatprep.subr.mxu0 0.0
  %60 = vmatpush1.msra.mxu0 0.0
  %61 = vmatprep.subr.mxu0 0.0
  %62 = vmatpush1.msra.mxu0 0.0
  %63 = vmatprep.subr.mxu0 0.0
  %64 = vmatpush1.msra.mxu0 0.0
  %65 = vmatprep.subr.mxu0 0.0
  %66 = vmatpush1.msra.mxu0 0.0
  %67 = vmatprep.subr.mxu0 0.0
  %68 = vmatpush1.msra.mxu0 0.0
  %69 = vmatprep.subr.mxu0 0.0
  %70 = vmatpush1.msra.mxu0 0.0
  %71 = vmatprep.subr.mxu0 0.0
  %72 = vmatpush1.msra.mxu0 0.0
  %73 = vmatprep.subr.mxu0 0.0
  %74 = vmatpush1.msra.mxu0 0.0
  %75 = vmatprep.subr.mxu0 0.0
  %76 = vmatpush1.msra.mxu0 0.0
  %77 = vmatprep.subr.mxu0 0.0
  %78 = vmatpush1.msra.mxu0 0.0
  %79 = vmatprep.subr.mxu0 0.0
  %80 = vmatpush1.msra.mxu0 0.0
  %81 = vmatprep.subr.mxu0 0.0
  %82 = vmatpush1.msra.mxu0 0.0
  %83 = vmatprep.subr.mxu0 0.0
  %84 = vmatpush1.msra.mxu0 0.0
  %85 = vmatprep.subr.mxu0 0.0
  %86 = vmatpush1.msra.mxu0 0.0
  %87 = vmatprep.subr.mxu0 0.0
  %88 = vmatpush1.msra.mxu0 0.0
  %89 = vmatprep.subr.mxu0 0.0
  %90 = vmatpush1.msra.mxu0 0.0
  %91 = vmatprep.subr.mxu0 0.0
  %92 = vmatpush1.msra.mxu0 0.0
  %93 = vmatprep.subr.mxu0 0.0
  %94 = vmatpush1.msra.mxu0 0.0
  %95 = vmatprep.subr.mxu0 0.0
  %96 = vmatpush1.msra.mxu0 0.0
  %97 = vmatprep.subr.mxu0 0.0
  %98 = vmatpush1.msra.mxu0 0.0
  %99 = vmatprep.subr.mxu0 0.0
  %100 = vmatpush1.msra.mxu0 0.0
  %101 = vmatprep.subr.mxu0 0.0
  %102 = vmatpush1.msra.mxu0 0.0
  %103 = vmatprep.subr.mxu0 0.0
  %104 = vmatpush1.msra.mxu0 0.0
  %105 = vmatprep.mubr.f32.mxu0 0.0
  %106 = vmatmul.mubr.f32.gmra.mrb[0].mxu0 %v30
  %v107 = vpop.f32.mrb[0].mxu0
  %v108 = vadd.f32 %v26, %v107
  %v109 = vpop.f32.mrb[0].mxu0
  %110 = vmatprep.mubr.f32.mxu0 0.0
  %111 = vmatmul.mubr.f32.gmra.mrb[0].mxu0 %v33
  %v112 = vpop.f32.mrb[0].mxu0
  %v113 = vadd.f32 %v26, %v112
  %v114 = vpop.f32.mrb[0].mxu0
  %115 = vmatprep.mubr.f32.mxu0 0.0
  %116 = vmatmul.mubr.f32.gmra.mrb[0].mxu0 %v36
  %v117 = vpop.f32.mrb[0].mxu0
  %v118 = vadd.f32 %v26, %v117
  %v119 = vpop.f32.mrb[0].mxu0
  %120 = vmatprep.mubr.f32.mxu0 0.0
  %121 = vmatmul.mubr.f32.gmra.mrb[0].mxu0 %v39
  %v122 = vpop.f32.mrb[0].mxu0
  %v123 = vadd.f32 %v26, %v122
  %v124 = vpop.f32.mrb[0].mxu0
  %125 = vdwg.mxu0
  %vm126 = vcmask 392192
  %127 = vst.msk [vmem:[%s3] sm:$0xff] %vm126, %v108
  %128 = vst.msk [vmem:[%s3 + $0x8] sm:$0xff] %vm126, %v113
  %129 = vst.msk [vmem:[%s3 + $0x10] sm:$0xff] %vm126, %v118
  %130 = vst.msk [vmem:[%s3 + $0x18] sm:$0xff] %vm126, %v123
  // Predicated region
  $region14: #{net_forward.27} parent=0 // pred_check
    _
  $region15: #{net_forward.27} parent=0 // pred_check_branch
    %132 = sbr.rel (0) target = $region17
  $region16: #{net_forward.27} parent=0 // pred_region
    _
  $region17: #{net_forward.27} parent=0 // pred_fallthru
    _
  // Predicated region
  $region18: #{net_forward.27} parent=0 // pred_check
    _
  $region19: #{net_forward.27} parent=0 // pred_check_branch
    %134 = sbr.rel (0) target = $region21
  $region20: #{net_forward.27} parent=0 // pred_region
    _
  $region21: #{net_forward.27} parent=0 // pred_fallthru
    _

// kernel: net_forward.29
$region0: #{net_forward.29}
  #allocation0 [shape = 'u32[]', space=smem, size = 0x4, offset = 0x4, fixed_abs, tag = 'smem constant byte address 0x4 - core index']
  #allocation1 [shape = 'u32[144,128]{1,0:T(1,128)}', space=vmem, size = 0x12000, scoped, tag = 'internal scratch']
  %s0 = inlined_call_operand.vmem [shape: f32[32,144], index: 0, kind: input, shape index: {}]
  %s1 = inlined_call_operand.vmem [shape: f32[144,24], index: 1, kind: input, shape index: {}]
  %s2 = inlined_call_operand.vmem [shape: f32[1,24], index: 2, kind: input, shape index: {}]
  %s3 = inlined_call_operand.vmem [shape: f32[32,24], index: 3, kind: output, shape index: {}]
  %s4 = sld [smem:[#allocation0]]
  $region22: #{net_forward.29} parent=0
    _
  %s6 = ssub.s32 1, %s4
  %s7 = scalar_select 0, %s6, %s4
  // Predicated region
  $region2: #{net_forward.29} parent=0 // pred_check
    _
  $region3: #{net_forward.29} parent=0 // pred_check_branch
    %9 = sbr.rel (0) target = $region5
  $region4: #{net_forward.29} parent=0 // pred_region
    _
  $region5: #{net_forward.29} parent=0 // pred_fallthru
    _
  // Predicated region
  $region6: #{net_forward.29} parent=0 // pred_check
    _
  $region7: #{net_forward.29} parent=0 // pred_check_branch
    %11 = sbr.rel (0) target = $region9
  $region8: #{net_forward.29} parent=0 // pred_region
    _
  $region9: #{net_forward.29} parent=0 // pred_fallthru
    _
  // Predicated region
  $region10: #{net_forward.29} parent=0 // pred_check
    _
  $region11: #{net_forward.29} parent=0 // pred_check_branch
    %13 = sbr.rel (0) target = $region13
  $region12: #{net_forward.29} parent=0 // pred_region
    _
  $region13: #{net_forward.29} parent=0 // pred_fallthru
    _
  %v14 = vld [vmem:[%s0] sm:$0xff]
  %v15 = vld [vmem:[%s0 + $0x8] sm:$0xff]
  %v16 = vld [vmem:[%s0 + $0x10] sm:$0xff]
  %v17 = vld [vmem:[%s0 + $0x18] sm:$0xff]
  %v18 = vld [vmem:[%s0 + $0x20] sm:$0xff]
  %v19 = vld [vmem:[%s0 + $0x28] sm:$0xff]
  %v20 = vld [vmem:[%s0 + $0x30] sm:$0xff]
  %v21 = vld [vmem:[%s0 + $0x38] sm:$0xff]
  %v22 = vld [vmem:[%s1] sm:$0xff]
  %v23 = vld [vmem:[%s1 + $0x8] sm:$0xff]
  %v24 = vld [vmem:[%s1 + $0x10] sm:$0xff]
  %v25 = vld [vmem:[%s1 + $0x18] sm:$0xff]
  %v26 = vld [vmem:[%s1 + $0x20] sm:$0xff]
  %v27 = vld [vmem:[%s1 + $0x28] sm:$0xff]
  %v28 = vld [vmem:[%s1 + $0x30] sm:$0xff]
  %v29 = vld [vmem:[%s1 + $0x38] sm:$0xff]
  %v30 = vld [vmem:[%s1 + $0x40] sm:$0xff]
  %v31 = vld [vmem:[%s1 + $0x48] sm:$0xff]
  %v32 = vld [vmem:[%s1 + $0x50] sm:$0xff]
  %v33 = vld [vmem:[%s1 + $0x58] sm:$0xff]
  %v34 = vld [vmem:[%s1 + $0x60] sm:$0xff]
  %v35 = vld [vmem:[%s1 + $0x68] sm:$0xff]
  %v36 = vld [vmem:[%s1 + $0x70] sm:$0xff]
  %v37 = vld [vmem:[%s1 + $0x78] sm:$0xff]
  %v38 = vld [vmem:[%s1 + $0x80] sm:$0xff]
  %v39 = vld [vmem:[%s1 + $0x88] sm:$0xff]
  %v40 = vld [vmem:[%s2] sm:$0x1]
  %v42 = vlaneseq
  %v43 = vshrl.u32 %v42, 7
  %v44 = vsub.s32 0, %v43
  %v45 = vrot.slane %v40, %v44
  %vm47 = vcmask 130048
  %v49 = vsel %vm47, %v15, 0
  %v52 = vsel %vm47, %v17, 0
  %v55 = vsel %vm47, %v19, 0
  %v58 = vsel %vm47, %v21, 0
  %60 = vmatprep.subr.mxu0 0.0
  %61 = vmatpush1.msra.mxu0 %v22
  %62 = vmatprep.subr.mxu0 0.0
  %63 = vmatpush1.msra.mxu0 %v23
  %64 = vmatprep.subr.mxu0 0.0
  %65 = vmatpush1.msra.mxu0 %v24
  %66 = vmatprep.subr.mxu0 0.0
  %67 = vmatpush1.msra.mxu0 %v25
  %68 = vmatprep.subr.mxu0 0.0
  %69 = vmatpush1.msra.mxu0 %v26
  %70 = vmatprep.subr.mxu0 0.0
  %71 = vmatpush1.msra.mxu0 %v27
  %72 = vmatprep.subr.mxu0 0.0
  %73 = vmatpush1.msra.mxu0 %v28
  %74 = vmatprep.subr.mxu0 0.0
  %75 = vmatpush1.msra.mxu0 %v29
  %76 = vmatprep.subr.mxu0 0.0
  %77 = vmatpush1.msra.mxu0 %v30
  %78 = vmatprep.subr.mxu0 0.0
  %79 = vmatpush1.msra.mxu0 %v31
  %80 = vmatprep.subr.mxu0 0.0
  %81 = vmatpush1.msra.mxu0 %v32
  %82 = vmatprep.subr.mxu0 0.0
  %83 = vmatpush1.msra.mxu0 %v33
  %84 = vmatprep.subr.mxu0 0.0
  %85 = vmatpush1.msra.mxu0 %v34
  %86 = vmatprep.subr.mxu0 0.0
  %87 = vmatpush1.msra.mxu0 %v35
  %88 = vmatprep.subr.mxu0 0.0
  %89 = vmatpush1.msra.mxu0 %v36
  %90 = vmatprep.subr.mxu0 0.0
  %91 = vmatpush1.msra.mxu0 %v37
  %92 = vmatprep.subr.mxu0 0.0
  %93 = vmatpush1.msra.mxu0 %v38
  %94 = vmatprep.subr.mxu0 0.0
  %95 = vmatpush1.msra.mxu0 %v39
  %96 = vmatprep.subr.mxu0 0.0
  %97 = vmatpush1.msra.mxu0 0.0
  %98 = vmatprep.subr.mxu0 0.0
  %99 = vmatpush1.msra.mxu0 0.0
  %100 = vmatprep.subr.mxu0 0.0
  %101 = vmatpush1.msra.mxu0 0.0
  %102 = vmatprep.subr.mxu0 0.0
  %103 = vmatpush1.msra.mxu0 0.0
  %104 = vmatprep.subr.mxu0 0.0
  %105 = vmatpush1.msra.mxu0 0.0
  %106 = vmatprep.subr.mxu0 0.0
  %107 = vmatpush1.msra.mxu0 0.0
  %108 = vmatprep.subr.mxu0 0.0
  %109 = vmatpush1.msra.mxu0 0.0
  %110 = vmatprep.subr.mxu0 0.0
  %111 = vmatpush1.msra.mxu0 0.0
  %112 = vmatprep.subr.mxu0 0.0
  %113 = vmatpush1.msra.mxu0 0.0
  %114 = vmatprep.subr.mxu0 0.0
  %115 = vmatpush1.msra.mxu0 0.0
  %116 = vmatprep.subr.mxu0 0.0
  %117 = vmatpush1.msra.mxu0 0.0
  %118 = vmatprep.subr.mxu0 0.0
  %119 = vmatpush1.msra.mxu0 0.0
  %120 = vmatprep.subr.mxu0 0.0
  %121 = vmatpush1.msra.mxu0 0.0
  %122 = vmatprep.subr.mxu0 0.0
  %123 = vmatpush1.msra.mxu0 0.0
  %124 = vmatprep.mubr.f32.mxu0 %v49
  %125 = vmatmul.mubr.f32.gmra.mrb[0].mxu0 %v14
  %v126 = vpop.f32.mrb[0].mxu0
  %v127 = vadd.f32 %v45, %v126
  %v128 = vpop.f32.mrb[0].mxu0
  %129 = vmatprep.mubr.f32.mxu0 %v52
  %130 = vmatmul.mubr.f32.gmra.mrb[0].mxu0 %v16
  %v131 = vpop.f32.mrb[0].mxu0
  %v132 = vadd.f32 %v45, %v131
  %v133 = vpop.f32.mrb[0].mxu0
  %134 = vmatprep.mubr.f32.mxu0 %v55
  %135 = vmatmul.mubr.f32.gmra.mrb[0].mxu0 %v18
  %v136 = vpop.f32.mrb[0].mxu0
  %v137 = vadd.f32 %v45, %v136
  %v138 = vpop.f32.mrb[0].mxu0
  %139 = vmatprep.mubr.f32.mxu0 %v58
  %140 = vmatmul.mubr.f32.gmra.mrb[0].mxu0 %v20
  %v141 = vpop.f32.mrb[0].mxu0
  %v142 = vadd.f32 %v45, %v141
  %v143 = vpop.f32.mrb[0].mxu0
  %144 = vdwg.mxu0
  %vm145 = vcmask 195584
  %146 = vst.msk [vmem:[%s3] sm:$0xff] %vm145, %v127
  %147 = vst.msk [vmem:[%s3 + $0x8] sm:$0xff] %vm145, %v132
  %148 = vst.msk [vmem:[%s3 + $0x10] sm:$0xff] %vm145, %v137
  %149 = vst.msk [vmem:[%s3 + $0x18] sm:$0xff] %vm145, %v142
  // Predicated region
  $region14: #{net_forward.29} parent=0 // pred_check
    _
  $region15: #{net_forward.29} parent=0 // pred_check_branch
    %151 = sbr.rel (0) target = $region17
  $region16: #{net_forward.29} parent=0 // pred_region
    _
  $region17: #{net_forward.29} parent=0 // pred_fallthru
    _
  // Predicated region
  $region18: #{net_forward.29} parent=0 // pred_check
    _
  $region19: #{net_forward.29} parent=0 // pred_check_branch
    %153 = sbr.rel (0) target = $region21
  $region20: #{net_forward.29} parent=0 // pred_region
    _
  $region21: #{net_forward.29} parent=0 // pred_fallthru
    _

// kernel: net_forward.30
$region0: #{net_forward.30}
  #allocation0 [shape = 'u32[]', space=smem, size = 0x4, offset = 0x4, fixed_abs, tag = 'smem constant byte address 0x4 - core index']
  #allocation1 [shape = 'u32[144,128]{1,0:T(1,128)}', space=vmem, size = 0x12000, scoped, tag = 'internal scratch']
  %s0 = inlined_call_operand.vmem [shape: f32[32,216], index: 0, kind: input, shape index: {}]
  %s1 = inlined_call_operand.vmem [shape: f32[216,24], index: 1, kind: input, shape index: {}]
  %s2 = inlined_call_operand.vmem [shape: f32[1,24], index: 2, kind: input, shape index: {}]
  %s3 = inlined_call_operand.vmem [shape: f32[32,24], index: 3, kind: output, shape index: {}]
  %s4 = sld [smem:[#allocation0]]
  $region22: #{net_forward.30} parent=0
    _
  %s6 = ssub.s32 1, %s4
  %s7 = scalar_select 0, %s6, %s4
  // Predicated region
  $region2: #{net_forward.30} parent=0 // pred_check
    _
  $region3: #{net_forward.30} parent=0 // pred_check_branch
    %9 = sbr.rel (0) target = $region5
  $region4: #{net_forward.30} parent=0 // pred_region
    _
  $region5: #{net_forward.30} parent=0 // pred_fallthru
    _
  // Predicated region
  $region6: #{net_forward.30} parent=0 // pred_check
    _
  $region7: #{net_forward.30} parent=0 // pred_check_branch
    %11 = sbr.rel (0) target = $region9
  $region8: #{net_forward.30} parent=0 // pred_region
    _
  $region9: #{net_forward.30} parent=0 // pred_fallthru
    _
  // Predicated region
  $region10: #{net_forward.30} parent=0 // pred_check
    _
  $region11: #{net_forward.30} parent=0 // pred_check_branch
    %13 = sbr.rel (0) target = $region13
  $region12: #{net_forward.30} parent=0 // pred_region
    _
  $region13: #{net_forward.30} parent=0 // pred_fallthru
    _
  %v14 = vld [vmem:[%s0] sm:$0xff]
  %v15 = vld [vmem:[%s0 + $0x8] sm:$0xff]
  %v16 = vld [vmem:[%s0 + $0x10] sm:$0xff]
  %v17 = vld [vmem:[%s0 + $0x18] sm:$0xff]
  %v18 = vld [vmem:[%s0 + $0x20] sm:$0xff]
  %v19 = vld [vmem:[%s0 + $0x28] sm:$0xff]
  %v20 = vld [vmem:[%s0 + $0x30] sm:$0xff]
  %v21 = vld [vmem:[%s0 + $0x38] sm:$0xff]
  %v22 = vld [vmem:[%s1] sm:$0xff]
  %v23 = vld [vmem:[%s1 + $0x8] sm:$0xff]
  %v24 = vld [vmem:[%s1 + $0x10] sm:$0xff]
  %v25 = vld [vmem:[%s1 + $0x18] sm:$0xff]
  %v26 = vld [vmem:[%s1 + $0x20] sm:$0xff]
  %v27 = vld [vmem:[%s1 + $0x28] sm:$0xff]
  %v28 = vld [vmem:[%s1 + $0x30] sm:$0xff]
  %v29 = vld [vmem:[%s1 + $0x38] sm:$0xff]
  %v30 = vld [vmem:[%s1 + $0x40] sm:$0xff]
  %v31 = vld [vmem:[%s1 + $0x48] sm:$0xff]
  %v32 = vld [vmem:[%s1 + $0x50] sm:$0xff]
  %v33 = vld [vmem:[%s1 + $0x58] sm:$0xff]
  %v34 = vld [vmem:[%s1 + $0x60] sm:$0xff]
  %v35 = vld [vmem:[%s1 + $0x68] sm:$0xff]
  %v36 = vld [vmem:[%s1 + $0x70] sm:$0xff]
  %v37 = vld [vmem:[%s1 + $0x78] sm:$0xff]
  %v38 = vld [vmem:[%s1 + $0x80] sm:$0xff]
  %v39 = vld [vmem:[%s1 + $0x88] sm:$0xff]
  %v40 = vld [vmem:[%s1 + $0x90] sm:$0xff]
  %v41 = vld [vmem:[%s1 + $0x98] sm:$0xff]
  %v42 = vld [vmem:[%s1 + $0xa0] sm:$0xff]
  %v43 = vld [vmem:[%s1 + $0xa8] sm:$0xff]
  %v44 = vld [vmem:[%s1 + $0xb0] sm:$0xff]
  %v45 = vld [vmem:[%s1 + $0xb8] sm:$0xff]
  %v46 = vld [vmem:[%s1 + $0xc0] sm:$0xff]
  %v47 = vld [vmem:[%s1 + $0xc8] sm:$0xff]
  %v48 = vld [vmem:[%s1 + $0xd0] sm:$0xff]
  %v49 = vld [vmem:[%s2] sm:$0x1]
  %v51 = vlaneseq
  %v52 = vshrl.u32 %v51, 7
  %v53 = vsub.s32 0, %v52
  %v54 = vrot.slane %v49, %v53
  %vm56 = vcmask 719872
  %v58 = vsel %vm56, %v15, 0
  %v61 = vsel %vm56, %v17, 0
  %v64 = vsel %vm56, %v19, 0
  %v67 = vsel %vm56, %v21, 0
  %69 = vmatprep.subr.mxu0 0.0
  %70 = vmatpush1.msra.mxu0 %v22
  %71 = vmatprep.subr.mxu0 0.0
  %72 = vmatpush1.msra.mxu0 %v23
  %73 = vmatprep.subr.mxu0 0.0
  %74 = vmatpush1.msra.mxu0 %v24
  %75 = vmatprep.subr.mxu0 0.0
  %76 = vmatpush1.msra.mxu0 %v25
  %77 = vmatprep.subr.mxu0 0.0
  %78 = vmatpush1.msra.mxu0 %v26
  %79 = vmatprep.subr.mxu0 0.0
  %80 = vmatpush1.msra.mxu0 %v27
  %81 = vmatprep.subr.mxu0 0.0
  %82 = vmatpush1.msra.mxu0 %v28
  %83 = vmatprep.subr.mxu0 0.0
  %84 = vmatpush1.msra.mxu0 %v29
  %85 = vmatprep.subr.mxu0 0.0
  %86 = vmatpush1.msra.mxu0 %v30
  %87 = vmatprep.subr.mxu0 0.0
  %88 = vmatpush1.msra.mxu0 %v31
  %89 = vmatprep.subr.mxu0 0.0
  %90 = vmatpush1.msra.mxu0 %v32
  %91 = vmatprep.subr.mxu0 0.0
  %92 = vmatpush1.msra.mxu0 %v33
  %93 = vmatprep.subr.mxu0 0.0
  %94 = vmatpush1.msra.mxu0 %v34
  %95 = vmatprep.subr.mxu0 0.0
  %96 = vmatpush1.msra.mxu0 %v35
  %97 = vmatprep.subr.mxu0 0.0
  %98 = vmatpush1.msra.mxu0 %v36
  %99 = vmatprep.subr.mxu0 0.0
  %100 = vmatpush1.msra.mxu0 %v37
  %101 = vmatprep.subr.mxu0 0.0
  %102 = vmatpush1.msra.mxu0 %v38
  %103 = vmatprep.subr.mxu0 0.0
  %104 = vmatpush1.msra.mxu0 %v39
  %105 = vmatprep.subr.mxu0 0.0
  %106 = vmatpush1.msra.mxu0 %v40
  %107 = vmatprep.subr.mxu0 0.0
  %108 = vmatpush1.msra.mxu0 %v41
  %109 = vmatprep.subr.mxu0 0.0
  %110 = vmatpush1.msra.mxu0 %v42
  %111 = vmatprep.subr.mxu0 0.0
  %112 = vmatpush1.msra.mxu0 %v43
  %113 = vmatprep.subr.mxu0 0.0
  %114 = vmatpush1.msra.mxu0 %v44
  %115 = vmatprep.subr.mxu0 0.0
  %116 = vmatpush1.msra.mxu0 %v45
  %117 = vmatprep.subr.mxu0 0.0
  %118 = vmatpush1.msra.mxu0 %v46
  %119 = vmatprep.subr.mxu0 0.0
  %120 = vmatpush1.msra.mxu0 %v47
  %121 = vmatprep.subr.mxu0 0.0
  %122 = vmatpush1.msra.mxu0 %v48
  %123 = vmatprep.subr.mxu0 0.0
  %124 = vmatpush1.msra.mxu0 0.0
  %125 = vmatprep.subr.mxu0 0.0
  %126 = vmatpush1.msra.mxu0 0.0
  %127 = vmatprep.subr.mxu0 0.0
  %128 = vmatpush1.msra.mxu0 0.0
  %129 = vmatprep.subr.mxu0 0.0
  %130 = vmatpush1.msra.mxu0 0.0
  %131 = vmatprep.subr.mxu0 0.0
  %132 = vmatpush1.msra.mxu0 0.0
  %133 = vmatprep.mubr.f32.mxu0 %v58
  %134 = vmatmul.mubr.f32.gmra.mrb[0].mxu0 %v14
  %v135 = vpop.f32.mrb[0].mxu0
  %v136 = vadd.f32 %v54, %v135
  %v137 = vpop.f32.mrb[0].mxu0
  %138 = vmatprep.mubr.f32.mxu0 %v61
  %139 = vmatmul.mubr.f32.gmra.mrb[0].mxu0 %v16
  %v140 = vpop.f32.mrb[0].mxu0
  %v141 = vadd.f32 %v54, %v140
  %v142 = vpop.f32.mrb[0].mxu0
  %143 = vmatprep.mubr.f32.mxu0 %v64
  %144 = vmatmul.mubr.f32.gmra.mrb[0].mxu0 %v18
  %v145 = vpop.f32.mrb[0].mxu0
  %v146 = vadd.f32 %v54, %v145
  %v147 = vpop.f32.mrb[0].mxu0
  %148 = vmatprep.mubr.f32.mxu0 %v67
  %149 = vmatmul.mubr.f32.gmra.mrb[0].mxu0 %v20
  %v150 = vpop.f32.mrb[0].mxu0
  %v151 = vadd.f32 %v54, %v150
  %v152 = vpop.f32.mrb[0].mxu0
  %153 = vdwg.mxu0
  %vm154 = vcmask 195584
  %155 = vst.msk [vmem:[%s3] sm:$0xff] %vm154, %v136
  %156 = vst.msk [vmem:[%s3 + $0x8] sm:$0xff] %vm154, %v141
  %157 = vst.msk [vmem:[%s3 + $0x10] sm:$0xff] %vm154, %v146
  %158 = vst.msk [vmem:[%s3 + $0x18] sm:$0xff] %vm154, %v151
  // Predicated region
  $region14: #{net_forward.30} parent=0 // pred_check
    _
  $region15: #{net_forward.30} parent=0 // pred_check_branch
    %160 = sbr.rel (0) target = $region17
  $region16: #{net_forward.30} parent=0 // pred_region
    _
  $region17: #{net_forward.30} parent=0 // pred_fallthru
    _
  // Predicated region
  $region18: #{net_forward.30} parent=0 // pred_check
    _
  $region19: #{net_forward.30} parent=0 // pred_check_branch
    %162 = sbr.rel (0) target = $region21
  $region20: #{net_forward.30} parent=0 // pred_region
    _
  $region21: #{net_forward.30} parent=0 // pred_fallthru
    _

// kernel: net_forward.28
$region0: #{net_forward.28}
  #allocation0 [shape = 'u32[]', space=smem, size = 0x4, offset = 0x4, fixed_abs, tag = 'smem constant byte address 0x4 - core index']
  #allocation1 [shape = 'u32[144,128]{1,0:T(1,128)}', space=vmem, size = 0x12000, scoped, tag = 'internal scratch']
  %s0 = inlined_call_operand.vmem [shape: f32[32,400], index: 0, kind: input, shape index: {}]
  %s1 = inlined_call_operand.vmem [shape: f32[400,24], index: 1, kind: input, shape index: {}]
  %s2 = inlined_call_operand.vmem [shape: f32[1,24], index: 2, kind: input, shape index: {}]
  %s3 = inlined_call_operand.vmem [shape: f32[32,24], index: 3, kind: output, shape index: {}]
  %s4 = sld [smem:[#allocation0]]
  $region22: #{net_forward.28} parent=0
    _
  %s6 = ssub.s32 1, %s4
  %s7 = scalar_select 0, %s6, %s4
  // Predicated region
  $region2: #{net_forward.28} parent=0 // pred_check
    _
  $region3: #{net_forward.28} parent=0 // pred_check_branch
    %9 = sbr.rel (0) target = $region5
  $region4: #{net_forward.28} parent=0 // pred_region
    _
  $region5: #{net_forward.28} parent=0 // pred_fallthru
    _
  // Predicated region
  $region6: #{net_forward.28} parent=0 // pred_check
    _
  $region7: #{net_forward.28} parent=0 // pred_check_branch
    %11 = sbr.rel (0) target = $region9
  $region8: #{net_forward.28} parent=0 // pred_region
    _
  $region9: #{net_forward.28} parent=0 // pred_fallthru
    _
  // Predicated region
  $region10: #{net_forward.28} parent=0 // pred_check
    _
  $region11: #{net_forward.28} parent=0 // pred_check_branch
    %13 = sbr.rel (0) target = $region13
  $region12: #{net_forward.28} parent=0 // pred_region
    _
  $region13: #{net_forward.28} parent=0 // pred_fallthru
    _
  %v14 = vld [vmem:[%s0] sm:$0xff]
  %v15 = vld [vmem:[%s0 + $0x8] sm:$0xff]
  %v16 = vld [vmem:[%s0 + $0x10] sm:$0xff]
  %v17 = vld [vmem:[%s0 + $0x18] sm:$0xff]
  %v18 = vld [vmem:[%s0 + $0x20] sm:$0xff]
  %v19 = vld [vmem:[%s0 + $0x28] sm:$0xff]
  %v20 = vld [vmem:[%s0 + $0x30] sm:$0xff]
  %v21 = vld [vmem:[%s0 + $0x38] sm:$0xff]
  %v22 = vld [vmem:[%s0 + $0x40] sm:$0xff]
  %v23 = vld [vmem:[%s0 + $0x48] sm:$0xff]
  %v24 = vld [vmem:[%s0 + $0x50] sm:$0xff]
  %v25 = vld [vmem:[%s0 + $0x58] sm:$0xff]
  %v26 = vld [vmem:[%s0 + $0x60] sm:$0xff]
  %v27 = vld [vmem:[%s0 + $0x68] sm:$0xff]
  %v28 = vld [vmem:[%s0 + $0x70] sm:$0xff]
  %v29 = vld [vmem:[%s0 + $0x78] sm:$0xff]
  %v30 = vld [vmem:[%s1] sm:$0xff]
  %v31 = vld [vmem:[%s1 + $0x8] sm:$0xff]
  %v32 = vld [vmem:[%s1 + $0x10] sm:$0xff]
  %v33 = vld [vmem:[%s1 + $0x18] sm:$0xff]
  %v34 = vld [vmem:[%s1 + $0x20] sm:$0xff]
  %v35 = vld [vmem:[%s1 + $0x28] sm:$0xff]
  %v36 = vld [vmem:[%s1 + $0x30] sm:$0xff]
  %v37 = vld [vmem:[%s1 + $0x38] sm:$0xff]
  %v38 = vld [vmem:[%s1 + $0x40] sm:$0xff]
  %v39 = vld [vmem:[%s1 + $0x48] sm:$0xff]
  %v40 = vld [vmem:[%s1 + $0x50] sm:$0xff]
  %v41 = vld [vmem:[%s1 + $0x58] sm:$0xff]
  %v42 = vld [vmem:[%s1 + $0x60] sm:$0xff]
  %v43 = vld [vmem:[%s1 + $0x68] sm:$0xff]
  %v44 = vld [vmem:[%s1 + $0x70] sm:$0xff]
  %v45 = vld [vmem:[%s1 + $0x78] sm:$0xff]
  %v46 = vld [vmem:[%s1 + $0x80] sm:$0xff]
  %v47 = vld [vmem:[%s1 + $0x88] sm:$0xff]
  %v48 = vld [vmem:[%s1 + $0x90] sm:$0xff]
  %v49 = vld [vmem:[%s1 + $0x98] sm:$0xff]
  %v50 = vld [vmem:[%s1 + $0xa0] sm:$0xff]
  %v51 = vld [vmem:[%s1 + $0xa8] sm:$0xff]
  %v52 = vld [vmem:[%s1 + $0xb0] sm:$0xff]
  %v53 = vld [vmem:[%s1 + $0xb8] sm:$0xff]
  %v54 = vld [vmem:[%s1 + $0xc0] sm:$0xff]
  %v55 = vld [vmem:[%s1 + $0xc8] sm:$0xff]
  %v56 = vld [vmem:[%s1 + $0xd0] sm:$0xff]
  %v57 = vld [vmem:[%s1 + $0xd8] sm:$0xff]
  %v58 = vld [vmem:[%s1 + $0xe0] sm:$0xff]
  %v59 = vld [vmem:[%s1 + $0xe8] sm:$0xff]
  %v60 = vld [vmem:[%s1 + $0xf0] sm:$0xff]
  %v61 = vld [vmem:[%s1 + $0xf8] sm:$0xff]
  %v62 = vld [vmem:[%s1 + $0x100] sm:$0xff]
  %v63 = vld [vmem:[%s1 + $0x108] sm:$0xff]
  %v64 = vld [vmem:[%s1 + $0x110] sm:$0xff]
  %v65 = vld [vmem:[%s1 + $0x118] sm:$0xff]
  %v66 = vld [vmem:[%s1 + $0x120] sm:$0xff]
  %v67 = vld [vmem:[%s1 + $0x128] sm:$0xff]
  %v68 = vld [vmem:[%s1 + $0x130] sm:$0xff]
  %v69 = vld [vmem:[%s1 + $0x138] sm:$0xff]
  %v70 = vld [vmem:[%s1 + $0x140] sm:$0xff]
  %v71 = vld [vmem:[%s1 + $0x148] sm:$0xff]
  %v72 = vld [vmem:[%s1 + $0x150] sm:$0xff]
  %v73 = vld [vmem:[%s1 + $0x158] sm:$0xff]
  %v74 = vld [vmem:[%s1 + $0x160] sm:$0xff]
  %v75 = vld [vmem:[%s1 + $0x168] sm:$0xff]
  %v76 = vld [vmem:[%s1 + $0x170] sm:$0xff]
  %v77 = vld [vmem:[%s1 + $0x178] sm:$0xff]
  %v78 = vld [vmem:[%s1 + $0x180] sm:$0xff]
  %v79 = vld [vmem:[%s1 + $0x188] sm:$0xff]
  %v80 = vld [vmem:[%s2] sm:$0x1]
  %v82 = vlaneseq
  %v83 = vshrl.u32 %v82, 7
  %v84 = vsub.s32 0, %v83
  %v85 = vrot.slane %v80, %v84
  %vm87 = vcmask 130048
  %v89 = vsel %vm87, %v17, 0
  %v92 = vsel %vm87, %v21, 0
  %v95 = vsel %vm87, %v25, 0
  %v98 = vsel %vm87, %v29, 0
  %100 = vmatprep.subr.mxu0 0.0
  %101 = vmatpush1.msra.mxu0 %v30
  %102 = vmatprep.subr.mxu0 0.0
  %103 = vmatpush1.msra.mxu0 %v31
  %104 = vmatprep.subr.mxu0 0.0
  %105 = vmatpush1.msra.mxu0 %v32
  %106 = vmatprep.subr.mxu0 0.0
  %107 = vmatpush1.msra.mxu0 %v33
  %108 = vmatprep.subr.mxu0 0.0
  %109 = vmatpush1.msra.mxu0 %v34
  %110 = vmatprep.subr.mxu0 0.0
  %111 = vmatpush1.msra.mxu0 %v35
  %112 = vmatprep.subr.mxu0 0.0
  %113 = vmatpush1.msra.mxu0 %v36
  %114 = vmatprep.subr.mxu0 0.0
  %115 = vmatpush1.msra.mxu0 %v37
  %116 = vmatprep.subr.mxu0 0.0
  %117 = vmatpush1.msra.mxu0 %v38
  %118 = vmatprep.subr.mxu0 0.0
  %119 = vmatpush1.msra.mxu0 %v39
  %120 = vmatprep.subr.mxu0 0.0
  %121 = vmatpush1.msra.mxu0 %v40
  %122 = vmatprep.subr.mxu0 0.0
  %123 = vmatpush1.msra.mxu0 %v41
  %124 = vmatprep.subr.mxu0 0.0
  %125 = vmatpush1.msra.mxu0 %v42
  %126 = vmatprep.subr.mxu0 0.0
  %127 = vmatpush1.msra.mxu0 %v43
  %128 = vmatprep.subr.mxu0 0.0
  %129 = vmatpush1.msra.mxu0 %v44
  %130 = vmatprep.subr.mxu0 0.0
  %131 = vmatpush1.msra.mxu0 %v45
  %132 = vmatprep.subr.mxu0 0.0
  %133 = vmatpush1.msra.mxu0 %v46
  %134 = vmatprep.subr.mxu0 0.0
  %135 = vmatpush1.msra.mxu0 %v47
  %136 = vmatprep.subr.mxu0 0.0
  %137 = vmatpush1.msra.mxu0 %v48
  %138 = vmatprep.subr.mxu0 0.0
  %139 = vmatpush1.msra.mxu0 %v49
  %140 = vmatprep.subr.mxu0 0.0
  %141 = vmatpush1.msra.mxu0 %v50
  %142 = vmatprep.subr.mxu0 0.0
  %143 = vmatpush1.msra.mxu0 %v51
  %144 = vmatprep.subr.mxu0 0.0
  %145 = vmatpush1.msra.mxu0 %v52
  %146 = vmatprep.subr.mxu0 0.0
  %147 = vmatpush1.msra.mxu0 %v53
  %148 = vmatprep.subr.mxu0 0.0
  %149 = vmatpush1.msra.mxu0 %v54
  %150 = vmatprep.subr.mxu0 0.0
  %151 = vmatpush1.msra.mxu0 %v55
  %152 = vmatprep.subr.mxu0 0.0
  %153 = vmatpush1.msra.mxu0 %v56
  %154 = vmatprep.subr.mxu0 0.0
  %155 = vmatpush1.msra.mxu0 %v57
  %156 = vmatprep.subr.mxu0 0.0
  %157 = vmatpush1.msra.mxu0 %v58
  %158 = vmatprep.subr.mxu0 0.0
  %159 = vmatpush1.msra.mxu0 %v59
  %160 = vmatprep.subr.mxu0 0.0
  %161 = vmatpush1.msra.mxu0 %v60
  %162 = vmatprep.subr.mxu0 0.0
  %163 = vmatpush1.msra.mxu0 %v61
  %164 = vmatprep.mubr.f32.mxu0 %v15
  %165 = vmatmul.mubr.f32.gmra.mrb[0].mxu0 %v14
  %v166 = vpop.f32.mrb[0].mxu0
  %v167 = vadd.f32 %v85, %v166
  %v168 = vpop.f32.mrb[0].mxu0
  %169 = vmatprep.mubr.f32.mxu0 %v19
  %170 = vmatmul.mubr.f32.gmra.mrb[0].mxu0 %v18
  %v171 = vpop.f32.mrb[0].mxu0
  %v172 = vadd.f32 %v85, %v171
  %v173 = vpop.f32.mrb[0].mxu0
  %174 = vmatprep.mubr.f32.mxu0 %v23
  %175 = vmatmul.mubr.f32.gmra.mrb[0].mxu0 %v22
  %v176 = vpop.f32.mrb[0].mxu0
  %v177 = vadd.f32 %v85, %v176
  %v178 = vpop.f32.mrb[0].mxu0
  %179 = vmatprep.mubr.f32.mxu0 %v27
  %180 = vmatmul.mubr.f32.gmra.mrb[0].mxu0 %v26
  %v181 = vpop.f32.mrb[0].mxu0
  %v182 = vadd.f32 %v85, %v181
  %v183 = vpop.f32.mrb[0].mxu0
  %184 = vdwg.mxu0
  %185 = vmatprep.subr.mxu0 0.0
  %186 = vmatpush1.msra.mxu0 %v62
  %187 = vmatprep.subr.mxu0 0.0
  %188 = vmatpush1.msra.mxu0 %v63
  %189 = vmatprep.subr.mxu0 0.0
  %190 = vmatpush1.msra.mxu0 %v64
  %191 = vmatprep.subr.mxu0 0.0
  %192 = vmatpush1.msra.mxu0 %v65
  %193 = vmatprep.subr.mxu0 0.0
  %194 = vmatpush1.msra.mxu0 %v66
  %195 = vmatprep.subr.mxu0 0.0
  %196 = vmatpush1.msra.mxu0 %v67
  %197 = vmatprep.subr.mxu0 0.0
  %198 = vmatpush1.msra.mxu0 %v68
  %199 = vmatprep.subr.mxu0 0.0
  %200 = vmatpush1.msra.mxu0 %v69
  %201 = vmatprep.subr.mxu0 0.0
  %202 = vmatpush1.msra.mxu0 %v70
  %203 = vmatprep.subr.mxu0 0.0
  %204 = vmatpush1.msra.mxu0 %v71
  %205 = vmatprep.subr.mxu0 0.0
  %206 = vmatpush1.msra.mxu0 %v72
  %207 = vmatprep.subr.mxu0 0.0
  %208 = vmatpush1.msra.mxu0 %v73
  %209 = vmatprep.subr.mxu0 0.0
  %210 = vmatpush1.msra.mxu0 %v74
  %211 = vmatprep.subr.mxu0 0.0
  %212 = vmatpush1.msra.mxu0 %v75
  %213 = vmatprep.subr.mxu0 0.0
  %214 = vmatpush1.msra.mxu0 %v76
  %215 = vmatprep.subr.mxu0 0.0
  %216 = vmatpush1.msra.mxu0 %v77
  %217 = vmatprep.subr.mxu0 0.0
  %218 = vmatpush1.msra.mxu0 %v78
  %219 = vmatprep.subr.mxu0 0.0
  %220 = vmatpush1.msra.mxu0 %v79
  %221 = vmatprep.subr.mxu0 0.0
  %222 = vmatpush1.msra.mxu0 0.0
  %223 = vmatprep.subr.mxu0 0.0
  %224 = vmatpush1.msra.mxu0 0.0
  %225 = vmatprep.subr.mxu0 0.0
  %226 = vmatpush1.msra.mxu0 0.0
  %227 = vmatprep.subr.mxu0 0.0
  %228 = vmatpush1.msra.mxu0 0.0
  %229 = vmatprep.subr.mxu0 0.0
  %230 = vmatpush1.msra.mxu0 0.0
  %231 = vmatprep.subr.mxu0 0.0
  %232 = vmatpush1.msra.mxu0 0.0
  %233 = vmatprep.subr.mxu0 0.0
  %234 = vmatpush1.msra.mxu0 0.0
  %235 = vmatprep.subr.mxu0 0.0
  %236 = vmatpush1.msra.mxu0 0.0
  %237 = vmatprep.subr.mxu0 0.0
  %238 = vmatpush1.msra.mxu0 0.0
  %239 = vmatprep.subr.mxu0 0.0
  %240 = vmatpush1.msra.mxu0 0.0
  %241 = vmatprep.subr.mxu0 0.0
  %242 = vmatpush1.msra.mxu0 0.0
  %243 = vmatprep.subr.mxu0 0.0
  %244 = vmatpush1.msra.mxu0 0.0
  %245 = vmatprep.subr.mxu0 0.0
  %246 = vmatpush1.msra.mxu0 0.0
  %247 = vmatprep.subr.mxu0 0.0
  %248 = vmatpush1.msra.mxu0 0.0
  %249 = vmatprep.mubr.f32.mxu0 %v89
  %250 = vmatmul.mubr.f32.gmra.mrb[0].mxu0 %v16
  %v251 = vpop.f32.mrb[0].mxu0
  %v252 = vadd.f32 %v167, %v251
  %v253 = vpop.f32.mrb[0].mxu0
  %254 = vmatprep.mubr.f32.mxu0 %v92
  %255 = vmatmul.mubr.f32.gmra.mrb[0].mxu0 %v20
  %v256 = vpop.f32.mrb[0].mxu0
  %v257 = vadd.f32 %v172, %v256
  %v258 = vpop.f32.mrb[0].mxu0
  %259 = vmatprep.mubr.f32.mxu0 %v95
  %260 = vmatmul.mubr.f32.gmra.mrb[0].mxu0 %v24
  %v261 = vpop.f32.mrb[0].mxu0
  %v262 = vadd.f32 %v177, %v261
  %v263 = vpop.f32.mrb[0].mxu0
  %264 = vmatprep.mubr.f32.mxu0 %v98
  %265 = vmatmul.mubr.f32.gmra.mrb[0].mxu0 %v28
  %v266 = vpop.f32.mrb[0].mxu0
  %v267 = vadd.f32 %v182, %v266
  %v268 = vpop.f32.mrb[0].mxu0
  %269 = vdwg.mxu0
  %vm270 = vcmask 195584
  %271 = vst.msk [vmem:[%s3] sm:$0xff] %vm270, %v252
  %272 = vst.msk [vmem:[%s3 + $0x8] sm:$0xff] %vm270, %v257
  %273 = vst.msk [vmem:[%s3 + $0x10] sm:$0xff] %vm270, %v262
  %274 = vst.msk [vmem:[%s3 + $0x18] sm:$0xff] %vm270, %v267
  // Predicated region
  $region14: #{net_forward.28} parent=0 // pred_check
    _
  $region15: #{net_forward.28} parent=0 // pred_check_branch
    %276 = sbr.rel (0) target = $region17
  $region16: #{net_forward.28} parent=0 // pred_region
    _
  $region17: #{net_forward.28} parent=0 // pred_fallthru
    _
  // Predicated region
  $region18: #{net_forward.28} parent=0 // pred_check
    _
  $region19: #{net_forward.28} parent=0 // pred_check_branch
    %278 = sbr.rel (0) target = $region21
  $region20: #{net_forward.28} parent=0 // pred_region
    _
  $region21: #{net_forward.28} parent=0 // pred_fallthru
    _

// kernel: net_forward.31
$region0: #{net_forward.31}
  #allocation0 [shape = 'u32[]', space=smem, size = 0x4, offset = 0x4, fixed_abs, tag = 'smem constant byte address 0x4 - core index']
  #allocation1 [shape = 'u32[144,128]{1,0:T(1,128)}', space=vmem, size = 0x12000, scoped, tag = 'internal scratch']
  %s0 = inlined_call_operand.vmem [shape: f32[9,8,80], index: 0, kind: input, shape index: {}]
  %s1 = inlined_call_operand.vmem [shape: f32[8,80], index: 1, kind: output, shape index: {}]
  %s2 = sld [smem:[#allocation0]]
  $region14: #{net_forward.31} parent=0
    _
  %s4 = ssub.s32 1, %s2
  %s5 = scalar_select 0, %s4, %s2
  // Predicated region
  $region2: #{net_forward.31} parent=0 // pred_check
    _
  $region3: #{net_forward.31} parent=0 // pred_check_branch
    %7 = sbr.rel (0) target = $region5
  $region4: #{net_forward.31} parent=0 // pred_region
    _
  $region5: #{net_forward.31} parent=0 // pred_fallthru
    _
  %v8 = vld [vmem:[%s0] sm:$0xff]
  %s9 = scalar_lea.vmem %s0, 8
  %v10 = vld [vmem:[%s9] sm:$0xff]
  %v11 = vadd.f32 %v8, %v10
  %s12 = scalar_lea.vmem %s0, 16
  %v13 = vld [vmem:[%s12] sm:$0xff]
  %v14 = vadd.f32 %v11, %v13
  %s15 = scalar_lea.vmem %s0, 24
  %v16 = vld [vmem:[%s15] sm:$0xff]
  %v17 = vadd.f32 %v14, %v16
  %s18 = scalar_lea.vmem %s0, 32
  %v19 = vld [vmem:[%s18] sm:$0xff]
  %v20 = vadd.f32 %v17, %v19
  %s21 = scalar_lea.vmem %s0, 40
  %v22 = vld [vmem:[%s21] sm:$0xff]
  %v23 = vadd.f32 %v20, %v22
  %s24 = scalar_lea.vmem %s0, 48
  %v25 = vld [vmem:[%s24] sm:$0xff]
  %v26 = vadd.f32 %v23, %v25
  %s27 = scalar_lea.vmem %s0, 56
  %v28 = vld [vmem:[%s27] sm:$0xff]
  %v29 = vadd.f32 %v26, %v28
  %s30 = scalar_lea.vmem %s0, 64
  %v31 = vld [vmem:[%s30] sm:$0xff]
  %v32 = vadd.f32 %v29, %v31
  %v33 = vmul.f32 %v32, 0.11111111
  %vm34 = vcmask 654336
  %35 = vst.msk [vmem:[%s1] sm:$0xff] %vm34, %v33
  // Predicated region
  $region6: #{net_forward.31} parent=0 // pred_check
    _
  $region7: #{net_forward.31} parent=0 // pred_check_branch
    %37 = sbr.rel (0) target = $region9
  $region8: #{net_forward.31} parent=0 // pred_region
    _
  $region9: #{net_forward.31} parent=0 // pred_fallthru
    _
  // Predicated region
  $region10: #{net_forward.31} parent=0 // pred_check
    _
  $region11: #{net_forward.31} parent=0 // pred_check_branch
    %39 = sbr.rel (0) target = $region13
  $region12: #{net_forward.31} parent=0 // pred_region
    _
  $region13: #{net_forward.31} parent=0 // pred_fallthru
    _

// kernel: net_forward.32
$region0: #{net_forward.32}
  #allocation0 [shape = 'u32[]', space=smem, size = 0x4, offset = 0x4, fixed_abs, tag = 'smem constant byte address 0x4 - core index']
  #allocation1 [shape = 'u32[144,128]{1,0:T(1,128)}', space=vmem, size = 0x12000, scoped, tag = 'internal scratch']
  %s0 = inlined_call_operand.vmem [shape: f32[32,24], index: 0, kind: input, shape index: {}]
  %s1 = inlined_call_operand.vmem [shape: f32[24,24], index: 1, kind: input, shape index: {}]
  %s2 = inlined_call_operand.vmem [shape: f32[1,24], index: 2, kind: input, shape index: {}]
  %s3 = inlined_call_operand.vmem [shape: f32[32,24], index: 3, kind: output, shape index: {}]
  %s4 = sld [smem:[#allocation0]]
  $region22: #{net_forward.32} parent=0
    _
  %s6 = ssub.s32 1, %s4
  %s7 = scalar_select 0, %s6, %s4
  // Predicated region
  $region2: #{net_forward.32} parent=0 // pred_check
    _
  $region3: #{net_forward.32} parent=0 // pred_check_branch
    %9 = sbr.rel (0) target = $region5
  $region4: #{net_forward.32} parent=0 // pred_region
    _
  $region5: #{net_forward.32} parent=0 // pred_fallthru
    _
  // Predicated region
  $region6: #{net_forward.32} parent=0 // pred_check
    _
  $region7: #{net_forward.32} parent=0 // pred_check_branch
    %11 = sbr.rel (0) target = $region9
  $region8: #{net_forward.32} parent=0 // pred_region
    _
  $region9: #{net_forward.32} parent=0 // pred_fallthru
    _
  // Predicated region
  $region10: #{net_forward.32} parent=0 // pred_check
    _
  $region11: #{net_forward.32} parent=0 // pred_check_branch
    %13 = sbr.rel (0) target = $region13
  $region12: #{net_forward.32} parent=0 // pred_region
    _
  $region13: #{net_forward.32} parent=0 // pred_fallthru
    _
  %v14 = vld [vmem:[%s0] sm:$0xff]
  %v15 = vld [vmem:[%s0 + $0x8] sm:$0xff]
  %v16 = vld [vmem:[%s0 + $0x10] sm:$0xff]
  %v17 = vld [vmem:[%s0 + $0x18] sm:$0xff]
  %v18 = vld [vmem:[%s1] sm:$0xff]
  %v19 = vld [vmem:[%s1 + $0x8] sm:$0xff]
  %v20 = vld [vmem:[%s1 + $0x10] sm:$0xff]
  %v21 = vld [vmem:[%s2] sm:$0x1]
  %v23 = vlaneseq
  %v24 = vshrl.u32 %v23, 7
  %v25 = vsub.s32 0, %v24
  %v26 = vrot.slane %v21, %v25
  %vm28 = vcmask 195584
  %v30 = vsel %vm28, %v14, 0
  %v33 = vsel %vm28, %v15, 0
  %v36 = vsel %vm28, %v16, 0
  %v39 = vsel %vm28, %v17, 0
  %41 = vmatprep.subr.mxu0 0.0
  %42 = vmatpush1.msra.mxu0 %v18
  %43 = vmatprep.subr.mxu0 0.0
  %44 = vmatpush1.msra.mxu0 %v19
  %45 = vmatprep.subr.mxu0 0.0
  %46 = vmatpush1.msra.mxu0 %v20
  %47 = vmatprep.subr.mxu0 0.0
  %48 = vmatpush1.msra.mxu0 0.0
  %49 = vmatprep.subr.mxu0 0.0
  %50 = vmatpush1.msra.mxu0 0.0
  %51 = vmatprep.subr.mxu0 0.0
  %52 = vmatpush1.msra.mxu0 0.0
  %53 = vmatprep.subr.mxu0 0.0
  %54 = vmatpush1.msra.mxu0 0.0
  %55 = vmatprep.subr.mxu0 0.0
  %56 = vmatpush1.msra.mxu0 0.0
  %57 = vmatprep.subr.mxu0 0.0
  %58 = vmatpush1.msra.mxu0 0.0
  %59 = vmatprep.subr.mxu0 0.0
  %60 = vmatpush1.msra.mxu0 0.0
  %61 = vmatprep.subr.mxu0 0.0
  %62 = vmatpush1.msra.mxu0 0.0
  %63 = vmatprep.subr.mxu0 0.0
  %64 = vmatpush1.msra.mxu0 0.0
  %65 = vmatprep.subr.mxu0 0.0
  %66 = vmatpush1.msra.mxu0 0.0
  %67 = vmatprep.subr.mxu0 0.0
  %68 = vmatpush1.msra.mxu0 0.0
  %69 = vmatprep.subr.mxu0 0.0
  %70 = vmatpush1.msra.mxu0 0.0
  %71 = vmatprep.subr.mxu0 0.0
  %72 = vmatpush1.msra.mxu0 0.0
  %73 = vmatprep.subr.mxu0 0.0
  %74 = vmatpush1.msra.mxu0 0.0
  %75 = vmatprep.subr.mxu0 0.0
  %76 = vmatpush1.msra.mxu0 0.0
  %77 = vmatprep.subr.mxu0 0.0
  %78 = vmatpush1.msra.mxu0 0.0
  %79 = vmatprep.subr.mxu0 0.0
  %80 = vmatpush1.msra.mxu0 0.0
  %81 = vmatprep.subr.mxu0 0.0
  %82 = vmatpush1.msra.mxu0 0.0
  %83 = vmatprep.subr.mxu0 0.0
  %84 = vmatpush1.msra.mxu0 0.0
  %85 = vmatprep.subr.mxu0 0.0
  %86 = vmatpush1.msra.mxu0 0.0
  %87 = vmatprep.subr.mxu0 0.0
  %88 = vmatpush1.msra.mxu0 0.0
  %89 = vmatprep.subr.mxu0 0.0
  %90 = vmatpush1.msra.mxu0 0.0
  %91 = vmatprep.subr.mxu0 0.0
  %92 = vmatpush1.msra.mxu0 0.0
  %93 = vmatprep.subr.mxu0 0.0
  %94 = vmatpush1.msra.mxu0 0.0
  %95 = vmatprep.subr.mxu0 0.0
  %96 = vmatpush1.msra.mxu0 0.0
  %97 = vmatprep.subr.mxu0 0.0
  %98 = vmatpush1.msra.mxu0 0.0
  %99 = vmatprep.subr.mxu0 0.0
  %100 = vmatpush1.msra.mxu0 0.0
  %101 = vmatprep.subr.mxu0 0.0
  %102 = vmatpush1.msra.mxu0 0.0
  %103 = vmatprep.subr.mxu0 0.0
  %104 = vmatpush1.msra.mxu0 0.0
  %105 = vmatprep.mubr.f32.mxu0 0.0
  %106 = vmatmul.mubr.f32.gmra.mrb[0].mxu0 %v30
  %v107 = vpop.f32.mrb[0].mxu0
  %v108 = vadd.f32 %v26, %v107
  %v109 = vpop.f32.mrb[0].mxu0
  %110 = vmatprep.mubr.f32.mxu0 0.0
  %111 = vmatmul.mubr.f32.gmra.mrb[0].mxu0 %v33
  %v112 = vpop.f32.mrb[0].mxu0
  %v113 = vadd.f32 %v26, %v112
  %v114 = vpop.f32.mrb[0].mxu0
  %115 = vmatprep.mubr.f32.mxu0 0.0
  %116 = vmatmul.mubr.f32.gmra.mrb[0].mxu0 %v36
  %v117 = vpop.f32.mrb[0].mxu0
  %v118 = vadd.f32 %v26, %v117
  %v119 = vpop.f32.mrb[0].mxu0
  %120 = vmatprep.mubr.f32.mxu0 0.0
  %121 = vmatmul.mubr.f32.gmra.mrb[0].mxu0 %v39
  %v122 = vpop.f32.mrb[0].mxu0
  %v123 = vadd.f32 %v26, %v122
  %v124 = vpop.f32.mrb[0].mxu0
  %125 = vdwg.mxu0
  %126 = vst.msk [vmem:[%s3] sm:$0xff] %vm28, %v108
  %127 = vst.msk [vmem:[%s3 + $0x8] sm:$0xff] %vm28, %v113
  %128 = vst.msk [vmem:[%s3 + $0x10] sm:$0xff] %vm28, %v118
  %129 = vst.msk [vmem:[%s3 + $0x18] sm:$0xff] %vm28, %v123
  // Predicated region
  $region14: #{net_forward.32} parent=0 // pred_check
    _
  $region15: #{net_forward.32} parent=0 // pred_check_branch
    %131 = sbr.rel (0) target = $region17
  $region16: #{net_forward.32} parent=0 // pred_region
    _
  $region17: #{net_forward.32} parent=0 // pred_fallthru
    _
  // Predicated region
  $region18: #{net_forward.32} parent=0 // pred_check
    _
  $region19: #{net_forward.32} parent=0 // pred_check_branch
    %133 = sbr.rel (0) target = $region21
  $region20: #{net_forward.32} parent=0 // pred_region
    _
  $region21: #{net_forward.32} parent=0 // pred_fallthru
    _

// kernel: net_forward.33
$region0: #{net_forward.33}
  #allocation0 [shape = 'u32[]', space=smem, size = 0x4, offset = 0x4, fixed_abs, tag = 'smem constant byte address 0x4 - core index']
  #allocation1 [shape = 'u32[144,128]{1,0:T(1,128)}', space=vmem, size = 0x12000, scoped, tag = 'internal scratch']
  %s0 = inlined_call_operand.vmem [shape: f32[2,1408], index: 0, kind: input, shape index: {}]
  %s1 = inlined_call_operand.vmem [shape: f32[1408,10], index: 1, kind: input, shape index: {}]
  %s2 = inlined_call_operand.vmem [shape: f32[1,10], index: 2, kind: input, shape index: {}]
  %s3 = inlined_call_operand.hbm [shape: f32[2,10], index: 3, kind: output, shape index: {}]
  %s4 = sld [smem:[#allocation0]]
  $region22: #{net_forward.33} parent=0
    _
  %s6 = ssub.s32 1, %s4
  %s7 = scalar_select 0, %s6, %s4
  $region1: #{net_forward.33} parent=0
    #allocation2 [shape = 'u8[1024]{0}', space=vmem, size = 0x400, scoped, tag = 'output window, operand 0, single buffered']
    #allocation3 [shape = 's32[1]{0}', space=sflag, size = 0x4, scoped, tag = 'scoped memory for net_forward.33']
    %8 = vsyncpa [#allocation3], 0
    // Predicated region
    $region2: #{net_forward.33} parent=1 // pred_check
      _
    $region3: #{net_forward.33} parent=1 // pred_check_branch
      %10 = sbr.rel (0) target = $region5
    $region4: #{net_forward.33} parent=1 // pred_region
      _
    $region5: #{net_forward.33} parent=1 // pred_fallthru
      _
    // Predicated region
    $region6: #{net_forward.33} parent=1 // pred_check
      _
    $region7: #{net_forward.33} parent=1 // pred_check_branch
      %12 = sbr.rel (0) target = $region9
    $region8: #{net_forward.33} parent=1 // pred_region
      _
    $region9: #{net_forward.33} parent=1 // pred_fallthru
      _
    // Predicated region
    $region10: #{net_forward.33} parent=1 // pred_check
      _
    $region11: #{net_forward.33} parent=1 // pred_check_branch
      %14 = sbr.rel (0) target = $region13
    $region12: #{net_forward.33} parent=1 // pred_region
      _
    $region13: #{net_forward.33} parent=1 // pred_fallthru
      _
    %v15 = vld [vmem:[%s0] sm:$0xff]
    %v16 = vld [vmem:[%s0 + $0x8] sm:$0xff]
    %v17 = vld [vmem:[%s0 + $0x10] sm:$0x3f]
    %v18 = vld [vmem:[%s1] sm:$0xff]
    %v19 = vld [vmem:[%s1 + $0x8] sm:$0xff]
    %v20 = vld [vmem:[%s1 + $0x10] sm:$0xff]
    %v21 = vld [vmem:[%s1 + $0x18] sm:$0xff]
    %v22 = vld [vmem:[%s1 + $0x20] sm:$0xff]
    %v23 = vld [vmem:[%s1 + $0x28] sm:$0xff]
    %v24 = vld [vmem:[%s1 + $0x30] sm:$0xff]
    %v25 = vld [vmem:[%s1 + $0x38] sm:$0xff]
    %v26 = vld [vmem:[%s1 + $0x40] sm:$0xff]
    %v27 = vld [vmem:[%s1 + $0x48] sm:$0xff]
    %v28 = vld [vmem:[%s1 + $0x50] sm:$0xff]
    %v29 = vld [vmem:[%s1 + $0x58] sm:$0xff]
    %v30 = vld [vmem:[%s1 + $0x60] sm:$0xff]
    %v31 = vld [vmem:[%s1 + $0x68] sm:$0xff]
    %v32 = vld [vmem:[%s1 + $0x70] sm:$0xff]
    %v33 = vld [vmem:[%s1 + $0x78] sm:$0xff]
    %v34 = vld [vmem:[%s1 + $0x80] sm:$0xff]
    %v35 = vld [vmem:[%s1 + $0x88] sm:$0xff]
    %v36 = vld [vmem:[%s1 + $0x90] sm:$0xff]
    %v37 = vld [vmem:[%s1 + $0x98] sm:$0xff]
    %v38 = vld [vmem:[%s1 + $0xa0] sm:$0xff]
    %v39 = vld [vmem:[%s1 + $0xa8] sm:$0xff]
    %v40 = vld [vmem:[%s1 + $0xb0] sm:$0xff]
    %v41 = vld [vmem:[%s1 + $0xb8] sm:$0xff]
    %v42 = vld [vmem:[%s1 + $0xc0] sm:$0xff]
    %v43 = vld [vmem:[%s1 + $0xc8] sm:$0xff]
    %v44 = vld [vmem:[%s1 + $0xd0] sm:$0xff]
    %v45 = vld [vmem:[%s1 + $0xd8] sm:$0xff]
    %v46 = vld [vmem:[%s1 + $0xe0] sm:$0xff]
    %v47 = vld [vmem:[%s1 + $0xe8] sm:$0xff]
    %v48 = vld [vmem:[%s1 + $0xf0] sm:$0xff]
    %v49 = vld [vmem:[%s1 + $0xf8] sm:$0xff]
    %v50 = vld [vmem:[%s1 + $0x100] sm:$0xff]
    %v51 = vld [vmem:[%s1 + $0x108] sm:$0xff]
    %v52 = vld [vmem:[%s1 + $0x110] sm:$0xff]
    %v53 = vld [vmem:[%s1 + $0x118] sm:$0xff]
    %v54 = vld [vmem:[%s1 + $0x120] sm:$0xff]
    %v55 = vld [vmem:[%s1 + $0x128] sm:$0xff]
    %v56 = vld [vmem:[%s1 + $0x130] sm:$0xff]
    %v57 = vld [vmem:[%s1 + $0x138] sm:$0xff]
    %v58 = vld [vmem:[%s1 + $0x140] sm:$0xff]
    %v59 = vld [vmem:[%s1 + $0x148] sm:$0xff]
    %v60 = vld [vmem:[%s1 + $0x150] sm:$0xff]
    %v61 = vld [vmem:[%s1 + $0x158] sm:$0xff]
    %v62 = vld [vmem:[%s1 + $0x160] sm:$0xff]
    %v63 = vld [vmem:[%s1 + $0x168] sm:$0xff]
    %v64 = vld [vmem:[%s1 + $0x170] sm:$0xff]
    %v65 = vld [vmem:[%s1 + $0x178] sm:$0xff]
    %v66 = vld [vmem:[%s1 + $0x180] sm:$0xff]
    %v67 = vld [vmem:[%s1 + $0x188] sm:$0xff]
    %v68 = vld [vmem:[%s1 + $0x190] sm:$0xff]
    %v69 = vld [vmem:[%s1 + $0x198] sm:$0xff]
    %v70 = vld [vmem:[%s1 + $0x1a0] sm:$0xff]
    %v71 = vld [vmem:[%s1 + $0x1a8] sm:$0xff]
    %v72 = vld [vmem:[%s1 + $0x1b0] sm:$0xff]
    %v73 = vld [vmem:[%s1 + $0x1b8] sm:$0xff]
    %v74 = vld [vmem:[%s1 + $0x1c0] sm:$0xff]
    %v75 = vld [vmem:[%s1 + $0x1c8] sm:$0xff]
    %v76 = vld [vmem:[%s1 + $0x1d0] sm:$0xff]
    %v77 = vld [vmem:[%s1 + $0x1d8] sm:$0xff]
    %v78 = vld [vmem:[%s1 + $0x1e0] sm:$0xff]
    %v79 = vld [vmem:[%s1 + $0x1e8] sm:$0xff]
    %v80 = vld [vmem:[%s1 + $0x1f0] sm:$0xff]
    %v81 = vld [vmem:[%s1 + $0x1f8] sm:$0xff]
    %v82 = vld [vmem:[%s1 + $0x200] sm:$0xff]
    %v83 = vld [vmem:[%s1 + $0x208] sm:$0xff]
    %v84 = vld [vmem:[%s1 + $0x210] sm:$0xff]
    %v85 = vld [vmem:[%s1 + $0x218] sm:$0xff]
    %v86 = vld [vmem:[%s1 + $0x220] sm:$0xff]
    %v87 = vld [vmem:[%s1 + $0x228] sm:$0xff]
    %v88 = vld [vmem:[%s1 + $0x230] sm:$0xff]
    %v89 = vld [vmem:[%s1 + $0x238] sm:$0xff]
    %v90 = vld [vmem:[%s1 + $0x240] sm:$0xff]
    %v91 = vld [vmem:[%s1 + $0x248] sm:$0xff]
    %v92 = vld [vmem:[%s1 + $0x250] sm:$0xff]
    %v93 = vld [vmem:[%s1 + $0x258] sm:$0xff]
    %v94 = vld [vmem:[%s1 + $0x260] sm:$0xff]
    %v95 = vld [vmem:[%s1 + $0x268] sm:$0xff]
    %v96 = vld [vmem:[%s1 + $0x270] sm:$0xff]
    %v97 = vld [vmem:[%s1 + $0x278] sm:$0xff]
    %v98 = vld [vmem:[%s1 + $0x280] sm:$0xff]
    %v99 = vld [vmem:[%s1 + $0x288] sm:$0xff]
    %v100 = vld [vmem:[%s1 + $0x290] sm:$0xff]
    %v101 = vld [vmem:[%s1 + $0x298] sm:$0xff]
    %v102 = vld [vmem:[%s1 + $0x2a0] sm:$0xff]
    %v103 = vld [vmem:[%s1 + $0x2a8] sm:$0xff]
    %v104 = vld [vmem:[%s1 + $0x2b0] sm:$0xff]
    %v105 = vld [vmem:[%s1 + $0x2b8] sm:$0xff]
    %v106 = vld [vmem:[%s1 + $0x2c0] sm:$0xff]
    %v107 = vld [vmem:[%s1 + $0x2c8] sm:$0xff]
    %v108 = vld [vmem:[%s1 + $0x2d0] sm:$0xff]
    %v109 = vld [vmem:[%s1 + $0x2d8] sm:$0xff]
    %v110 = vld [vmem:[%s1 + $0x2e0] sm:$0xff]
    %v111 = vld [vmem:[%s1 + $0x2e8] sm:$0xff]
    %v112 = vld [vmem:[%s1 + $0x2f0] sm:$0xff]
    %v113 = vld [vmem:[%s1 + $0x2f8] sm:$0xff]
    %v114 = vld [vmem:[%s1 + $0x300] sm:$0xff]
    %v115 = vld [vmem:[%s1 + $0x308] sm:$0xff]
    %v116 = vld [vmem:[%s1 + $0x310] sm:$0xff]
    %v117 = vld [vmem:[%s1 + $0x318] sm:$0xff]
    %v118 = vld [vmem:[%s1 + $0x320] sm:$0xff]
    %v119 = vld [vmem:[%s1 + $0x328] sm:$0xff]
    %v120 = vld [vmem:[%s1 + $0x330] sm:$0xff]
    %v121 = vld [vmem:[%s1 + $0x338] sm:$0xff]
    %v122 = vld [vmem:[%s1 + $0x340] sm:$0xff]
    %v123 = vld [vmem:[%s1 + $0x348] sm:$0xff]
    %v124 = vld [vmem:[%s1 + $0x350] sm:$0xff]
    %v125 = vld [vmem:[%s1 + $0x358] sm:$0xff]
    %v126 = vld [vmem:[%s1 + $0x360] sm:$0xff]
    %v127 = vld [vmem:[%s1 + $0x368] sm:$0xff]
    %v128 = vld [vmem:[%s1 + $0x370] sm:$0xff]
    %v129 = vld [vmem:[%s1 + $0x378] sm:$0xff]
    %v130 = vld [vmem:[%s1 + $0x380] sm:$0xff]
    %v131 = vld [vmem:[%s1 + $0x388] sm:$0xff]
    %v132 = vld [vmem:[%s1 + $0x390] sm:$0xff]
    %v133 = vld [vmem:[%s1 + $0x398] sm:$0xff]
    %v134 = vld [vmem:[%s1 + $0x3a0] sm:$0xff]
    %v135 = vld [vmem:[%s1 + $0x3a8] sm:$0xff]
    %v136 = vld [vmem:[%s1 + $0x3b0] sm:$0xff]
    %v137 = vld [vmem:[%s1 + $0x3b8] sm:$0xff]
    %v138 = vld [vmem:[%s1 + $0x3c0] sm:$0xff]
    %v139 = vld [vmem:[%s1 + $0x3c8] sm:$0xff]
    %v140 = vld [vmem:[%s1 + $0x3d0] sm:$0xff]
    %v141 = vld [vmem:[%s1 + $0x3d8] sm:$0xff]
    %v142 = vld [vmem:[%s1 + $0x3e0] sm:$0xff]
    %v143 = vld [vmem:[%s1 + $0x3e8] sm:$0xff]
    %v144 = vld [vmem:[%s1 + $0x3f0] sm:$0xff]
    %v145 = vld [vmem:[%s1 + $0x3f8] sm:$0xff]
    %v146 = vld [vmem:[%s1 + $0x400] sm:$0xff]
    %v147 = vld [vmem:[%s1 + $0x408] sm:$0xff]
    %v148 = vld [vmem:[%s1 + $0x410] sm:$0xff]
    %v149 = vld [vmem:[%s1 + $0x418] sm:$0xff]
    %v150 = vld [vmem:[%s1 + $0x420] sm:$0xff]
    %v151 = vld [vmem:[%s1 + $0x428] sm:$0xff]
    %v152 = vld [vmem:[%s1 + $0x430] sm:$0xff]
    %v153 = vld [vmem:[%s1 + $0x438] sm:$0xff]
    %v154 = vld [vmem:[%s1 + $0x440] sm:$0xff]
    %v155 = vld [vmem:[%s1 + $0x448] sm:$0xff]
    %v156 = vld [vmem:[%s1 + $0x450] sm:$0xff]
    %v157 = vld [vmem:[%s1 + $0x458] sm:$0xff]
    %v158 = vld [vmem:[%s1 + $0x460] sm:$0xff]
    %v159 = vld [vmem:[%s1 + $0x468] sm:$0xff]
    %v160 = vld [vmem:[%s1 + $0x470] sm:$0xff]
    %v161 = vld [vmem:[%s1 + $0x478] sm:$0xff]
    %v162 = vld [vmem:[%s1 + $0x480] sm:$0xff]
    %v163 = vld [vmem:[%s1 + $0x488] sm:$0xff]
    %v164 = vld [vmem:[%s1 + $0x490] sm:$0xff]
    %v165 = vld [vmem:[%s1 + $0x498] sm:$0xff]
    %v166 = vld [vmem:[%s1 + $0x4a0] sm:$0xff]
    %v167 = vld [vmem:[%s1 + $0x4a8] sm:$0xff]
    %v168 = vld [vmem:[%s1 + $0x4b0] sm:$0xff]
    %v169 = vld [vmem:[%s1 + $0x4b8] sm:$0xff]
    %v170 = vld [vmem:[%s1 + $0x4c0] sm:$0xff]
    %v171 = vld [vmem:[%s1 + $0x4c8] sm:$0xff]
    %v172 = vld [vmem:[%s1 + $0x4d0] sm:$0xff]
    %v173 = vld [vmem:[%s1 + $0x4d8] sm:$0xff]
    %v174 = vld [vmem:[%s1 + $0x4e0] sm:$0xff]
    %v175 = vld [vmem:[%s1 + $0x4e8] sm:$0xff]
    %v176 = vld [vmem:[%s1 + $0x4f0] sm:$0xff]
    %v177 = vld [vmem:[%s1 + $0x4f8] sm:$0xff]
    %v178 = vld [vmem:[%s1 + $0x500] sm:$0xff]
    %v179 = vld [vmem:[%s1 + $0x508] sm:$0xff]
    %v180 = vld [vmem:[%s1 + $0x510] sm:$0xff]
    %v181 = vld [vmem:[%s1 + $0x518] sm:$0xff]
    %v182 = vld [vmem:[%s1 + $0x520] sm:$0xff]
    %v183 = vld [vmem:[%s1 + $0x528] sm:$0xff]
    %v184 = vld [vmem:[%s1 + $0x530] sm:$0xff]
    %v185 = vld [vmem:[%s1 + $0x538] sm:$0xff]
    %v186 = vld [vmem:[%s1 + $0x540] sm:$0xff]
    %v187 = vld [vmem:[%s1 + $0x548] sm:$0xff]
    %v188 = vld [vmem:[%s1 + $0x550] sm:$0xff]
    %v189 = vld [vmem:[%s1 + $0x558] sm:$0xff]
    %v190 = vld [vmem:[%s1 + $0x560] sm:$0xff]
    %v191 = vld [vmem:[%s1 + $0x568] sm:$0xff]
    %v192 = vld [vmem:[%s1 + $0x570] sm:$0xff]
    %v193 = vld [vmem:[%s1 + $0x578] sm:$0xff]
    %v194 = vld [vmem:[%s2] sm:$0x1]
    %v196 = vlaneseq
    %v197 = vshrl.u32 %v196, 7
    %v198 = vsub.s32 0, %v197
    %v199 = vrot.slane %v194, %v198
    %v204 = vcombine.high %v15, %v15
    %v206 = vunpack.c.l.s4 1983009808
    %v207 = vunpack.c.0.s8 %v206
    %v208 = vlaneseq
    %v209 = vshrl.u32 %v208, 7
    %v210 = vsub.s32 %v207, %v209
    %v211 = vrot.slane %v15, %v210
    %v213 = vunpack.c.l.s4 1983009808
    %v214 = vunpack.c.0.s8 %v213
    %v215 = vlaneseq
    %v216 = vshrl.u32 %v215, 7
    %v217 = vsub.s32 %v214, %v216
    %v218 = vrot.slane %v204, %v217
    %v219 = vcombine.high %v211, %v211
    %v220 = vcombine.high %v218, %v218
    %v221 = vcombine.high %v16, %v16
    %v223 = vunpack.c.l.s4 1983009808
    %v224 = vunpack.c.0.s8 %v223
    %v225 = vlaneseq
    %v226 = vshrl.u32 %v225, 7
    %v227 = vsub.s32 %v224, %v226
    %v228 = vrot.slane %v16, %v227
    %v230 = vunpack.c.l.s4 1983009808
    %v231 = vunpack.c.0.s8 %v230
    %v232 = vlaneseq
    %v233 = vshrl.u32 %v232, 7
    %v234 = vsub.s32 %v231, %v233
    %v235 = vrot.slane %v221, %v234
    %v236 = vcombine.high %v228, %v228
    %v237 = vcombine.high %v235, %v235
    %v238 = vcombine.high %v17, %v17
    %v240 = vunpack.c.l.s4 1983009808
    %v241 = vunpack.c.0.s8 %v240
    %v242 = vlaneseq
    %v243 = vshrl.u32 %v242, 7
    %v244 = vsub.s32 %v241, %v243
    %v245 = vrot.slane %v17, %v244
    %v247 = vunpack.c.l.s4 1983009808
    %v248 = vunpack.c.0.s8 %v247
    %v249 = vlaneseq
    %v250 = vshrl.u32 %v249, 7
    %v251 = vsub.s32 %v248, %v250
    %v252 = vrot.slane %v238, %v251
    %v253 = vcombine.high %v245, %v245
    %265 = vmatprep.subr.mxu0 0.0
    %266 = vmatpush1.msra.mxu0 %v18
    %267 = vmatprep.subr.mxu0 0.0
    %268 = vmatpush1.msra.mxu0 %v19
    %269 = vmatprep.subr.mxu0 0.0
    %270 = vmatpush1.msra.mxu0 %v20
    %271 = vmatprep.subr.mxu0 0.0
    %272 = vmatpush1.msra.mxu0 %v21
    %273 = vmatprep.subr.mxu0 0.0
    %274 = vmatpush1.msra.mxu0 %v22
    %275 = vmatprep.subr.mxu0 0.0
    %276 = vmatpush1.msra.mxu0 %v23
    %277 = vmatprep.subr.mxu0 0.0
    %278 = vmatpush1.msra.mxu0 %v24
    %279 = vmatprep.subr.mxu0 0.0
    %280 = vmatpush1.msra.mxu0 %v25
    %281 = vmatprep.subr.mxu0 0.0
    %282 = vmatpush1.msra.mxu0 %v26
    %283 = vmatprep.subr.mxu0 0.0
    %284 = vmatpush1.msra.mxu0 %v27
    %285 = vmatprep.subr.mxu0 0.0
    %286 = vmatpush1.msra.mxu0 %v28
    %287 = vmatprep.subr.mxu0 0.0
    %288 = vmatpush1.msra.mxu0 %v29
    %289 = vmatprep.subr.mxu0 0.0
    %290 = vmatpush1.msra.mxu0 %v30
    %291 = vmatprep.subr.mxu0 0.0
    %292 = vmatpush1.msra.mxu0 %v31
    %293 = vmatprep.subr.mxu0 0.0
    %294 = vmatpush1.msra.mxu0 %v32
    %295 = vmatprep.subr.mxu0 0.0
    %296 = vmatpush1.msra.mxu0 %v33
    %297 = vmatprep.subr.mxu0 0.0
    %298 = vmatpush1.msra.mxu0 %v34
    %299 = vmatprep.subr.mxu0 0.0
    %300 = vmatpush1.msra.mxu0 %v35
    %301 = vmatprep.subr.mxu0 0.0
    %302 = vmatpush1.msra.mxu0 %v36
    %303 = vmatprep.subr.mxu0 0.0
    %304 = vmatpush1.msra.mxu0 %v37
    %305 = vmatprep.subr.mxu0 0.0
    %306 = vmatpush1.msra.mxu0 %v38
    %307 = vmatprep.subr.mxu0 0.0
    %308 = vmatpush1.msra.mxu0 %v39
    %309 = vmatprep.subr.mxu0 0.0
    %310 = vmatpush1.msra.mxu0 %v40
    %311 = vmatprep.subr.mxu0 0.0
    %312 = vmatpush1.msra.mxu0 %v41
    %313 = vmatprep.subr.mxu0 0.0
    %314 = vmatpush1.msra.mxu0 %v42
    %315 = vmatprep.subr.mxu0 0.0
    %316 = vmatpush1.msra.mxu0 %v43
    %317 = vmatprep.subr.mxu0 0.0
    %318 = vmatpush1.msra.mxu0 %v44
    %319 = vmatprep.subr.mxu0 0.0
    %320 = vmatpush1.msra.mxu0 %v45
    %321 = vmatprep.subr.mxu0 0.0
    %322 = vmatpush1.msra.mxu0 %v46
    %323 = vmatprep.subr.mxu0 0.0
    %324 = vmatpush1.msra.mxu0 %v47
    %325 = vmatprep.subr.mxu0 0.0
    %326 = vmatpush1.msra.mxu0 %v48
    %327 = vmatprep.subr.mxu0 0.0
    %328 = vmatpush1.msra.mxu0 %v49
    %329 = vmatprep.mubr.f32.mxu0 %v219
    %330 = vmatmul.mubr.f32.gmra.mrb[0].mxu0 %v211
    %v331 = vpop.f32.mrb[0].mxu0
    %v332 = vadd.f32 %v199, %v331
    %v333 = vpop.f32.mrb[0].mxu0
    %334 = vdwg.mxu0
    %335 = vmatprep.subr.mxu0 0.0
    %336 = vmatpush1.msra.mxu0 %v50
    %337 = vmatprep.subr.mxu0 0.0
    %338 = vmatpush1.msra.mxu0 %v51
    %339 = vmatprep.subr.mxu0 0.0
    %340 = vmatpush1.msra.mxu0 %v52
    %341 = vmatprep.subr.mxu0 0.0
    %342 = vmatpush1.msra.mxu0 %v53
    %343 = vmatprep.subr.mxu0 0.0
    %344 = vmatpush1.msra.mxu0 %v54
    %345 = vmatprep.subr.mxu0 0.0
    %346 = vmatpush1.msra.mxu0 %v55
    %347 = vmatprep.subr.mxu0 0.0
    %348 = vmatpush1.msra.mxu0 %v56
    %349 = vmatprep.subr.mxu0 0.0
    %350 = vmatpush1.msra.mxu0 %v57
    %351 = vmatprep.subr.mxu0 0.0
    %352 = vmatpush1.msra.mxu0 %v58
    %353 = vmatprep.subr.mxu0 0.0
    %354 = vmatpush1.msra.mxu0 %v59
    %355 = vmatprep.subr.mxu0 0.0
    %356 = vmatpush1.msra.mxu0 %v60
    %357 = vmatprep.subr.mxu0 0.0
    %358 = vmatpush1.msra.mxu0 %v61
    %359 = vmatprep.subr.mxu0 0.0
    %360 = vmatpush1.msra.mxu0 %v62
    %361 = vmatprep.subr.mxu0 0.0
    %362 = vmatpush1.msra.mxu0 %v63
    %363 = vmatprep.subr.mxu0 0.0
    %364 = vmatpush1.msra.mxu0 %v64
    %365 = vmatprep.subr.mxu0 0.0
    %366 = vmatpush1.msra.mxu0 %v65
    %367 = vmatprep.subr.mxu0 0.0
    %368 = vmatpush1.msra.mxu0 %v66
    %369 = vmatprep.subr.mxu0 0.0
    %370 = vmatpush1.msra.mxu0 %v67
    %371 = vmatprep.subr.mxu0 0.0
    %372 = vmatpush1.msra.mxu0 %v68
    %373 = vmatprep.subr.mxu0 0.0
    %374 = vmatpush1.msra.mxu0 %v69
    %375 = vmatprep.subr.mxu0 0.0
    %376 = vmatpush1.msra.mxu0 %v70
    %377 = vmatprep.subr.mxu0 0.0
    %378 = vmatpush1.msra.mxu0 %v71
    %379 = vmatprep.subr.mxu0 0.0
    %380 = vmatpush1.msra.mxu0 %v72
    %381 = vmatprep.subr.mxu0 0.0
    %382 = vmatpush1.msra.mxu0 %v73
    %383 = vmatprep.subr.mxu0 0.0
    %384 = vmatpush1.msra.mxu0 %v74
    %385 = vmatprep.subr.mxu0 0.0
    %386 = vmatpush1.msra.mxu0 %v75
    %387 = vmatprep.subr.mxu0 0.0
    %388 = vmatpush1.msra.mxu0 %v76
    %389 = vmatprep.subr.mxu0 0.0
    %390 = vmatpush1.msra.mxu0 %v77
    %391 = vmatprep.subr.mxu0 0.0
    %392 = vmatpush1.msra.mxu0 %v78
    %393 = vmatprep.subr.mxu0 0.0
    %394 = vmatpush1.msra.mxu0 %v79
    %395 = vmatprep.subr.mxu0 0.0
    %396 = vmatpush1.msra.mxu0 %v80
    %397 = vmatprep.subr.mxu0 0.0
    %398 = vmatpush1.msra.mxu0 %v81
    %399 = vmatprep.mubr.f32.mxu0 %v220
    %400 = vmatmul.mubr.f32.gmra.mrb[0].mxu0 %v218
    %v401 = vpop.f32.mrb[0].mxu0
    %v402 = vadd.f32 %v332, %v401
    %v403 = vpop.f32.mrb[0].mxu0
    %404 = vdwg.mxu0
    %405 = vmatprep.subr.mxu0 0.0
    %406 = vmatpush1.msra.mxu0 %v82
    %407 = vmatprep.subr.mxu0 0.0
    %408 = vmatpush1.msra.mxu0 %v83
    %409 = vmatprep.subr.mxu0 0.0
    %410 = vmatpush1.msra.mxu0 %v84
    %411 = vmatprep.subr.mxu0 0.0
    %412 = vmatpush1.msra.mxu0 %v85
    %413 = vmatprep.subr.mxu0 0.0
    %414 = vmatpush1.msra.mxu0 %v86
    %415 = vmatprep.subr.mxu0 0.0
    %416 = vmatpush1.msra.mxu0 %v87
    %417 = vmatprep.subr.mxu0 0.0
    %418 = vmatpush1.msra.mxu0 %v88
    %419 = vmatprep.subr.mxu0 0.0
    %420 = vmatpush1.msra.mxu0 %v89
    %421 = vmatprep.subr.mxu0 0.0
    %422 = vmatpush1.msra.mxu0 %v90
    %423 = vmatprep.subr.mxu0 0.0
    %424 = vmatpush1.msra.mxu0 %v91
    %425 = vmatprep.subr.mxu0 0.0
    %426 = vmatpush1.msra.mxu0 %v92
    %427 = vmatprep.subr.mxu0 0.0
    %428 = vmatpush1.msra.mxu0 %v93
    %429 = vmatprep.subr.mxu0 0.0
    %430 = vmatpush1.msra.mxu0 %v94
    %431 = vmatprep.subr.mxu0 0.0
    %432 = vmatpush1.msra.mxu0 %v95
    %433 = vmatprep.subr.mxu0 0.0
    %434 = vmatpush1.msra.mxu0 %v96
    %435 = vmatprep.subr.mxu0 0.0
    %436 = vmatpush1.msra.mxu0 %v97
    %437 = vmatprep.subr.mxu0 0.0
    %438 = vmatpush1.msra.mxu0 %v98
    %439 = vmatprep.subr.mxu0 0.0
    %440 = vmatpush1.msra.mxu0 %v99
    %441 = vmatprep.subr.mxu0 0.0
    %442 = vmatpush1.msra.mxu0 %v100
    %443 = vmatprep.subr.mxu0 0.0
    %444 = vmatpush1.msra.mxu0 %v101
    %445 = vmatprep.subr.mxu0 0.0
    %446 = vmatpush1.msra.mxu0 %v102
    %447 = vmatprep.subr.mxu0 0.0
    %448 = vmatpush1.msra.mxu0 %v103
    %449 = vmatprep.subr.mxu0 0.0
    %450 = vmatpush1.msra.mxu0 %v104
    %451 = vmatprep.subr.mxu0 0.0
    %452 = vmatpush1.msra.mxu0 %v105
    %453 = vmatprep.subr.mxu0 0.0
    %454 = vmatpush1.msra.mxu0 %v106
    %455 = vmatprep.subr.mxu0 0.0
    %456 = vmatpush1.msra.mxu0 %v107
    %457 = vmatprep.subr.mxu0 0.0
    %458 = vmatpush1.msra.mxu0 %v108
    %459 = vmatprep.subr.mxu0 0.0
    %460 = vmatpush1.msra.mxu0 %v109
    %461 = vmatprep.subr.mxu0 0.0
    %462 = vmatpush1.msra.mxu0 %v110
    %463 = vmatprep.subr.mxu0 0.0
    %464 = vmatpush1.msra.mxu0 %v111
    %465 = vmatprep.subr.mxu0 0.0
    %466 = vmatpush1.msra.mxu0 %v112
    %467 = vmatprep.subr.mxu0 0.0
    %468 = vmatpush1.msra.mxu0 %v113
    %469 = vmatprep.mubr.f32.mxu0 %v236
    %470 = vmatmul.mubr.f32.gmra.mrb[0].mxu0 %v228
    %v471 = vpop.f32.mrb[0].mxu0
    %v472 = vadd.f32 %v402, %v471
    %v473 = vpop.f32.mrb[0].mxu0
    %474 = vdwg.mxu0
    %475 = vmatprep.subr.mxu0 0.0
    %476 = vmatpush1.msra.mxu0 %v114
    %477 = vmatprep.subr.mxu0 0.0
    %478 = vmatpush1.msra.mxu0 %v115
    %479 = vmatprep.subr.mxu0 0.0
    %480 = vmatpush1.msra.mxu0 %v116
    %481 = vmatprep.subr.mxu0 0.0
    %482 = vmatpush1.msra.mxu0 %v117
    %483 = vmatprep.subr.mxu0 0.0
    %484 = vmatpush1.msra.mxu0 %v118
    %485 = vmatprep.subr.mxu0 0.0
    %486 = vmatpush1.msra.mxu0 %v119
    %487 = vmatprep.subr.mxu0 0.0
    %488 = vmatpush1.msra.mxu0 %v120
    %489 = vmatprep.subr.mxu0 0.0
    %490 = vmatpush1.msra.mxu0 %v121
    %491 = vmatprep.subr.mxu0 0.0
    %492 = vmatpush1.msra.mxu0 %v122
    %493 = vmatprep.subr.mxu0 0.0
    %494 = vmatpush1.msra.mxu0 %v123
    %495 = vmatprep.subr.mxu0 0.0
    %496 = vmatpush1.msra.mxu0 %v124
    %497 = vmatprep.subr.mxu0 0.0
    %498 = vmatpush1.msra.mxu0 %v125
    %499 = vmatprep.subr.mxu0 0.0
    %500 = vmatpush1.msra.mxu0 %v126
    %501 = vmatprep.subr.mxu0 0.0
    %502 = vmatpush1.msra.mxu0 %v127
    %503 = vmatprep.subr.mxu0 0.0
    %504 = vmatpush1.msra.mxu0 %v128
    %505 = vmatprep.subr.mxu0 0.0
    %506 = vmatpush1.msra.mxu0 %v129
    %507 = vmatprep.subr.mxu0 0.0
    %508 = vmatpush1.msra.mxu0 %v130
    %509 = vmatprep.subr.mxu0 0.0
    %510 = vmatpush1.msra.mxu0 %v131
    %511 = vmatprep.subr.mxu0 0.0
    %512 = vmatpush1.msra.mxu0 %v132
    %513 = vmatprep.subr.mxu0 0.0
    %514 = vmatpush1.msra.mxu0 %v133
    %515 = vmatprep.subr.mxu0 0.0
    %516 = vmatpush1.msra.mxu0 %v134
    %517 = vmatprep.subr.mxu0 0.0
    %518 = vmatpush1.msra.mxu0 %v135
    %519 = vmatprep.subr.mxu0 0.0
    %520 = vmatpush1.msra.mxu0 %v136
    %521 = vmatprep.subr.mxu0 0.0
    %522 = vmatpush1.msra.mxu0 %v137
    %523 = vmatprep.subr.mxu0 0.0
    %524 = vmatpush1.msra.mxu0 %v138
    %525 = vmatprep.subr.mxu0 0.0
    %526 = vmatpush1.msra.mxu0 %v139
    %527 = vmatprep.subr.mxu0 0.0
    %528 = vmatpush1.msra.mxu0 %v140
    %529 = vmatprep.subr.mxu0 0.0
    %530 = vmatpush1.msra.mxu0 %v141
    %531 = vmatprep.subr.mxu0 0.0
    %532 = vmatpush1.msra.mxu0 %v142
    %533 = vmatprep.subr.mxu0 0.0
    %534 = vmatpush1.msra.mxu0 %v143
    %535 = vmatprep.subr.mxu0 0.0
    %536 = vmatpush1.msra.mxu0 %v144
    %537 = vmatprep.subr.mxu0 0.0
    %538 = vmatpush1.msra.mxu0 %v145
    %539 = vmatprep.mubr.f32.mxu0 %v237
    %540 = vmatmul.mubr.f32.gmra.mrb[0].mxu0 %v235
    %v541 = vpop.f32.mrb[0].mxu0
    %v542 = vadd.f32 %v472, %v541
    %v543 = vpop.f32.mrb[0].mxu0
    %544 = vdwg.mxu0
    %545 = vmatprep.subr.mxu0 0.0
    %546 = vmatpush1.msra.mxu0 %v146
    %547 = vmatprep.subr.mxu0 0.0
    %548 = vmatpush1.msra.mxu0 %v147
    %549 = vmatprep.subr.mxu0 0.0
    %550 = vmatpush1.msra.mxu0 %v148
    %551 = vmatprep.subr.mxu0 0.0
    %552 = vmatpush1.msra.mxu0 %v149
    %553 = vmatprep.subr.mxu0 0.0
    %554 = vmatpush1.msra.mxu0 %v150
    %555 = vmatprep.subr.mxu0 0.0
    %556 = vmatpush1.msra.mxu0 %v151
    %557 = vmatprep.subr.mxu0 0.0
    %558 = vmatpush1.msra.mxu0 %v152
    %559 = vmatprep.subr.mxu0 0.0
    %560 = vmatpush1.msra.mxu0 %v153
    %561 = vmatprep.subr.mxu0 0.0
    %562 = vmatpush1.msra.mxu0 %v154
    %563 = vmatprep.subr.mxu0 0.0
    %564 = vmatpush1.msra.mxu0 %v155
    %565 = vmatprep.subr.mxu0 0.0
    %566 = vmatpush1.msra.mxu0 %v156
    %567 = vmatprep.subr.mxu0 0.0
    %568 = vmatpush1.msra.mxu0 %v157
    %569 = vmatprep.subr.mxu0 0.0
    %570 = vmatpush1.msra.mxu0 %v158
    %571 = vmatprep.subr.mxu0 0.0
    %572 = vmatpush1.msra.mxu0 %v159
    %573 = vmatprep.subr.mxu0 0.0
    %574 = vmatpush1.msra.mxu0 %v160
    %575 = vmatprep.subr.mxu0 0.0
    %576 = vmatpush1.msra.mxu0 %v161
    %577 = vmatprep.subr.mxu0 0.0
    %578 = vmatpush1.msra.mxu0 %v162
    %579 = vmatprep.subr.mxu0 0.0
    %580 = vmatpush1.msra.mxu0 %v163
    %581 = vmatprep.subr.mxu0 0.0
    %582 = vmatpush1.msra.mxu0 %v164
    %583 = vmatprep.subr.mxu0 0.0
    %584 = vmatpush1.msra.mxu0 %v165
    %585 = vmatprep.subr.mxu0 0.0
    %586 = vmatpush1.msra.mxu0 %v166
    %587 = vmatprep.subr.mxu0 0.0
    %588 = vmatpush1.msra.mxu0 %v167
    %589 = vmatprep.subr.mxu0 0.0
    %590 = vmatpush1.msra.mxu0 %v168
    %591 = vmatprep.subr.mxu0 0.0
    %592 = vmatpush1.msra.mxu0 %v169
    %593 = vmatprep.subr.mxu0 0.0
    %594 = vmatpush1.msra.mxu0 %v170
    %595 = vmatprep.subr.mxu0 0.0
    %596 = vmatpush1.msra.mxu0 %v171
    %597 = vmatprep.subr.mxu0 0.0
    %598 = vmatpush1.msra.mxu0 %v172
    %599 = vmatprep.subr.mxu0 0.0
    %600 = vmatpush1.msra.mxu0 %v173
    %601 = vmatprep.subr.mxu0 0.0
    %602 = vmatpush1.msra.mxu0 %v174
    %603 = vmatprep.subr.mxu0 0.0
    %604 = vmatpush1.msra.mxu0 %v175
    %605 = vmatprep.subr.mxu0 0.0
    %606 = vmatpush1.msra.mxu0 %v176
    %607 = vmatprep.subr.mxu0 0.0
    %608 = vmatpush1.msra.mxu0 %v177
    %609 = vmatprep.mubr.f32.mxu0 %v253
    %610 = vmatmul.mubr.f32.gmra.mrb[0].mxu0 %v245
    %v611 = vpop.f32.mrb[0].mxu0
    %v612 = vadd.f32 %v542, %v611
    %v613 = vpop.f32.mrb[0].mxu0
    %614 = vdwg.mxu0
    %615 = vmatprep.subr.mxu0 0.0
    %616 = vmatpush1.msra.mxu0 %v178
    %617 = vmatprep.subr.mxu0 0.0
    %618 = vmatpush1.msra.mxu0 %v179
    %619 = vmatprep.subr.mxu0 0.0
    %620 = vmatpush1.msra.mxu0 %v180
    %621 = vmatprep.subr.mxu0 0.0
    %622 = vmatpush1.msra.mxu0 %v181
    %623 = vmatprep.subr.mxu0 0.0
    %624 = vmatpush1.msra.mxu0 %v182
    %625 = vmatprep.subr.mxu0 0.0
    %626 = vmatpush1.msra.mxu0 %v183
    %627 = vmatprep.subr.mxu0 0.0
    %628 = vmatpush1.msra.mxu0 %v184
    %629 = vmatprep.subr.mxu0 0.0
    %630 = vmatpush1.msra.mxu0 %v185
    %631 = vmatprep.subr.mxu0 0.0
    %632 = vmatpush1.msra.mxu0 %v186
    %633 = vmatprep.subr.mxu0 0.0
    %634 = vmatpush1.msra.mxu0 %v187
    %635 = vmatprep.subr.mxu0 0.0
    %636 = vmatpush1.msra.mxu0 %v188
    %637 = vmatprep.subr.mxu0 0.0
    %638 = vmatpush1.msra.mxu0 %v189
    %639 = vmatprep.subr.mxu0 0.0
    %640 = vmatpush1.msra.mxu0 %v190
    %641 = vmatprep.subr.mxu0 0.0
    %642 = vmatpush1.msra.mxu0 %v191
    %643 = vmatprep.subr.mxu0 0.0
    %644 = vmatpush1.msra.mxu0 %v192
    %645 = vmatprep.subr.mxu0 0.0
    %646 = vmatpush1.msra.mxu0 %v193
    %647 = vmatprep.subr.mxu0 0.0
    %648 = vmatpush1.msra.mxu0 0.0
    %649 = vmatprep.subr.mxu0 0.0
    %650 = vmatpush1.msra.mxu0 0.0
    %651 = vmatprep.subr.mxu0 0.0
    %652 = vmatpush1.msra.mxu0 0.0
    %653 = vmatprep.subr.mxu0 0.0
    %654 = vmatpush1.msra.mxu0 0.0
    %655 = vmatprep.subr.mxu0 0.0
    %656 = vmatpush1.msra.mxu0 0.0
    %657 = vmatprep.subr.mxu0 0.0
    %658 = vmatpush1.msra.mxu0 0.0
    %659 = vmatprep.subr.mxu0 0.0
    %660 = vmatpush1.msra.mxu0 0.0
    %661 = vmatprep.subr.mxu0 0.0
    %662 = vmatpush1.msra.mxu0 0.0
    %663 = vmatprep.subr.mxu0 0.0
    %664 = vmatpush1.msra.mxu0 0.0
    %665 = vmatprep.subr.mxu0 0.0
    %666 = vmatpush1.msra.mxu0 0.0
    %667 = vmatprep.subr.mxu0 0.0
    %668 = vmatpush1.msra.mxu0 0.0
    %669 = vmatprep.subr.mxu0 0.0
    %670 = vmatpush1.msra.mxu0 0.0
    %671 = vmatprep.subr.mxu0 0.0
    %672 = vmatpush1.msra.mxu0 0.0
    %673 = vmatprep.subr.mxu0 0.0
    %674 = vmatpush1.msra.mxu0 0.0
    %675 = vmatprep.subr.mxu0 0.0
    %676 = vmatpush1.msra.mxu0 0.0
    %677 = vmatprep.subr.mxu0 0.0
    %678 = vmatpush1.msra.mxu0 0.0
    %679 = vmatprep.mubr.f32.mxu0 0.0
    %680 = vmatmul.mubr.f32.gmra.mrb[0].mxu0 %v252
    %v681 = vpop.f32.mrb[0].mxu0
    %v682 = vadd.f32 %v612, %v681
    %v683 = vpop.f32.mrb[0].mxu0
    %684 = vdwg.mxu0
    %vm685 = vcmask 74752
    %686 = vst.msk [vmem:[#allocation2] sm:$0x3] %vm685, %v682
    // Predicated region
    $region14: #{net_forward.33} parent=1 // pred_check
      _
    $region15: #{net_forward.33} parent=1 // pred_check_branch
      %688 = sbr.rel (0) target = $region17
    $region16: #{net_forward.33} parent=1 // pred_region
      %s690 = ssub.s32 32, 32
      %691 = vsyncadd [#allocation3], %s690
      %s693 = sshll.u32 [#allocation2], 4
      %s694 = int_to_ptr.vmem [resolvable:$true] %s693
      %696 = dma.vmem_to_hbm [thread:$0]  %s694, 32, %s3, [#allocation3]
    $region17: #{net_forward.33} parent=1 // pred_fallthru
      _
    // Predicated region
    $region18: #{net_forward.33} parent=1 // pred_check
      _
    $region19: #{net_forward.33} parent=1 // pred_check_branch
      %698 = sbr.rel (0) target = $region21
    $region20: #{net_forward.33} parent=1 // pred_region
      %699 = dma.done [#allocation3], 32
    $region21: #{net_forward.33} parent=1 // pred_fallthru
      _
    %700 = vsyncpa [#allocation3], 1

</llo_original>
